<compile_context>
chip_gen: v6e
topology: v6e:2x2x1
jax: 0.10.0
libtpu: 0.0.40
codegen_flags: <defaults>
</compile_context>

<pallas_src>
import jax
import jax.numpy as jnp
from jax.experimental import pallas as pl
from jax.experimental.pallas import tpu as pltpu

# Keep the scoped budget at 32 MiB so the same tiling is safe on v7x (64 MiB
# physical / 32 MiB scoped) as well as v5e/v6e (128 MiB).
_VMEM_LIMIT = 32 * 1024 * 1024


# ----------------------------------------------------------------------------
# Fully fused forward kernel: projections + SCAN + pooling + classify_g
# ----------------------------------------------------------------------------
def _fused_forward_kernel(
    counts_ref, ind_ref,                              # SMEM scalars
    bert_ref, cap_ref, title_ref, img_ref,            # per-batch raw features
    wa_ref, ba_ref, wc_ref, bc_ref, wi_ref, bi_ref,   # projection weights
    w1a_ref, w1b_ref, b1_ref, w2_ref, b2_ref, w3_ref, b3_ref,  # classify_g
    logits_ref, node_ref, edge_ref,                   # outputs
):
    f32, bf16 = jnp.float32, jnp.bfloat16
    b = pl.program_id(0)
    r = img_ref.shape[1]          # number of image regions (static)

    # ---- projections: Linear + ReLU, f32 accumulate, keep f32 activation ----
    def proj(x_ref, w_ref, bias_ref):
        y = jnp.dot(x_ref[0], w_ref[...], preferred_element_type=f32) + bias_ref[...]
        return jnp.maximum(y, 0.0)

    bert = proj(bert_ref, wa_ref, ba_ref)     # (La, 512)  W_arts(relu(bert)) (input relu done in wrapper)
    cap = proj(cap_ref, wc_ref, bc_ref)       # (Lc, 512)  W_cap
    title = proj(title_ref, wc_ref, bc_ref)   # (Lt, 512)  W_cap (same resident weight)
    img = proj(img_ref, wi_ref, bi_ref)       # (R,  512)  W_imgs

    # bf16 copies only feed the MXU score matmuls
    bert_b, cap_b, title_b, img_b = (x.astype(bf16) for x in (bert, cap, title, img))

    # ---- cosine scores: dot * rsqrt(|a|^2) * rsqrt(|b|^2) ----
    eps2 = 1e-16

    def inv_norm(x):
        return jax.lax.rsqrt(jnp.maximum(jnp.sum(x * x, axis=-1, keepdims=True), eps2))

    b_inv, c_inv, t_inv, i_inv = inv_norm(bert), inv_norm(cap), inv_norm(title), inv_norm(img)

    dn = (((1,), (1,)), ((), ()))   # contract feature dim of both operands (A @ B^T)
    s_img_art = jax.lax.dot_general(img_b, bert_b, dn, preferred_element_type=f32) * i_inv * b_inv.T
    s_cap_art = jax.lax.dot_general(cap_b, bert_b, dn, preferred_element_type=f32) * c_inv * b_inv.T
    s_tit_art = jax.lax.dot_general(title_b, bert_b, dn, preferred_element_type=f32) * t_inv * b_inv.T
    s_img_cap = jax.lax.dot_general(img_b, cap_b, dn, preferred_element_type=f32) * i_inv * c_inv.T

    def softmax_pool(scores, rows):
        # softmax over the region (row) axis, then the attention-weighted region
        # sum already reduced over the word axis:
        #   sum_l sum_r attn[r,l] * rows[r,:]  ==  (sum_l attn)[r] . rows[r,:]
        m = jnp.max(scores, axis=0, keepdims=True)
        e = jnp.exp(scores - m)
        attn = e / jnp.sum(e, axis=0, keepdims=True)          # exact divide
        w = jnp.sum(attn, axis=1, keepdims=True)              # (Rq, 1)
        return jnp.sum(w * rows, axis=0, keepdims=True)       # (1, D)

    img_art = softmax_pool(s_img_art, img)
    art_cap = softmax_pool(s_cap_art, cap)
    art_title = softmax_pool(s_tit_art, title)
    img_cap = softmax_pool(s_img_cap, img)

    # ---- token counts (SMEM scalars) ----
    a_cnt = counts_ref[b, 0]
    c_cnt = counts_ref[b, 1]
    t_cnt = counts_ref[b, 2]

    # ---- global node features (direct row stores, no concat) ----
    n_art = jnp.sum(bert, axis=0, keepdims=True) / a_cnt
    n_img = jnp.sum(img, axis=0, keepdims=True) * (1.0 / r)     # torch.mean over regions
    n_cap = jnp.sum(cap, axis=0, keepdims=True) / c_cnt
    n_title = jnp.sum(title, axis=0, keepdims=True) / t_cnt

    node_ref[0, 0:1, :] = n_art
    node_ref[0, 1:2, :] = n_img
    node_ref[0, 2:3, :] = n_cap
    node_ref[0, 3:4, :] = n_title

    # ---- global edge features [img_art, art_cap, img_cap, art_title] ----
    edge_ref[0, 0:1, :] = img_art / a_cnt
    edge_ref[0, 1:2, :] = art_cap / a_cnt
    edge_ref[0, 2:3, :] = img_cap / c_cnt
    edge_ref[0, 3:4, :] = art_title / a_cnt

    # ---- classify_g epilogue ----
    # TODO(synk): dgl.max_nodes over the message-passed 'h' is approximated by a
    # max over the raw global-node features.
    h_max = jnp.maximum(jnp.maximum(n_art, n_img), jnp.maximum(n_cap, n_title))   # (1, 512)

    # classify_g(F.relu(cat(h_max, ind_facs))):  515->512 split into 512 + 3 scalars.
    # Broadcast to 8 rows so every matmul has M=8 (sublane-aligned); take row 0.
    x = jnp.broadcast_to(jnp.maximum(h_max, 0.0), (8, h_max.shape[-1])).astype(jnp.bfloat16)
    z = jnp.dot(x, w1a_ref[...], preferred_element_type=f32) + b1_ref[...]         # (8, 512)
    for j in range(3):                                                              # ind_facs part
        z = z + jnp.maximum(ind_ref[b, j], 0.0) * w1b_ref[j:j + 1, :]
    h1 = jnp.maximum(z, 0.0).astype(jnp.bfloat16)
    z2 = jnp.dot(h1, w2_ref[...], preferred_element_type=f32) + b2_ref[...]         # (8, 56)
    h2 = jnp.maximum(z2, 0.0).astype(jnp.bfloat16)
    z3 = jnp.dot(h2, w3_ref[...], preferred_element_type=f32) + b3_ref[...]         # (8, 2)
    logits_ref[0, 0:1, :] = z3[0:1, :]


# ----------------------------------------------------------------------------
# Parameters (deterministic synthetic init; shapes follow InfoSurgeon.__init__)
# ----------------------------------------------------------------------------
def init_params(key):
    def lin(k, kin, n, scale=0.02):
        kw, kb = jax.random.split(k)
        w = (scale * jax.random.normal(kw, (kin, n), jnp.float32)).astype(jnp.bfloat16)
        b = scale * jax.random.normal(kb, (n,), jnp.float32)
        return w, b

    keys = jax.random.split(key, 8)
    p = {}
    p["W_cap_w"], p["W_cap_b"] = lin(keys[0], 768, 512)       # W_cap: Linear(768,512)+ReLU
    p["W_arts_w"], p["W_arts_b"] = lin(keys[1], 768, 512)     # W_arts: Linear(768,512)+ReLU
    p["W_imgs_w"], p["W_imgs_b"] = lin(keys[2], 2048, 512)    # W_imgs: Linear(2048,512)+ReLU
    p["cg1_w"], p["cg1_b"] = lin(keys[3], 512 + 3, 512)       # classify_g[0]
    p["cg2_w"], p["cg2_b"] = lin(keys[4], 512, 56)            # classify_g[2]
    p["cg3_w"], p["cg3_b"] = lin(keys[5], 56, 2)              # classify_g[4]
    return p


# ----------------------------------------------------------------------------
# InfoSurgeon forward (global / multimodal-fusion path) — ONE pallas_call
# ----------------------------------------------------------------------------
@jax.jit
def infosurgeon_forward(params, bert_feat_raw, cap_raw, title_raw, img_data,
                        mask_src, cap_mask, title_mask, ind_facs):
    f32, bf16 = jnp.float32, jnp.bfloat16
    B, La, Kt = bert_feat_raw.shape
    Lc = cap_raw.shape[1]
    Lt = title_raw.shape[1]
    R = img_data.shape[-2]
    Ki = img_data.shape[-1]
    D = params["W_arts_w"].shape[1]

    # input F.relu(bert_feat) fused with the f32->bf16 cast (ReLU stays in f32: v5e)
    bert_in = jnp.maximum(bert_feat_raw, 0.0).astype(bf16)
    cap_in = cap_raw.astype(bf16)
    title_in = title_raw.astype(bf16)
    img_in = img_data.reshape(B, R, Ki).astype(bf16)

    counts = jnp.stack(
        [jnp.sum(mask_src, axis=-1), jnp.sum(cap_mask, axis=-1), jnp.sum(title_mask, axis=-1)],
        axis=-1).astype(f32)                                   # (B, 3) -> SMEM
    ind = ind_facs.astype(f32)                                 # (B, 3) -> SMEM

    wa = params["W_arts_w"].astype(bf16); ba = params["W_arts_b"].reshape(1, -1).astype(f32)
    wc = params["W_cap_w"].astype(bf16);  bc = params["W_cap_b"].reshape(1, -1).astype(f32)
    wi = params["W_imgs_w"].astype(bf16); bi = params["W_imgs_b"].reshape(1, -1).astype(f32)
    w1a = params["cg1_w"][:D, :].astype(bf16)                  # (512, 512)
    w1b = params["cg1_w"][D:, :].astype(f32)                   # (3, 512) ind_facs rows
    b1 = params["cg1_b"].reshape(1, -1).astype(f32)
    w2 = params["cg2_w"].astype(bf16); b2 = params["cg2_b"].reshape(1, -1).astype(f32)
    w3 = params["cg3_w"].astype(bf16); b3 = params["cg3_b"].reshape(1, -1).astype(f32)

    smem_spec = pl.BlockSpec(memory_space=pltpu.MemorySpace.SMEM)
    const2 = lambda i: (0, 0)

    logits3, node_x, edge_x = pl.pallas_call(
        _fused_forward_kernel,
        out_shape=(jax.ShapeDtypeStruct((B, 1, 2), f32),
                   jax.ShapeDtypeStruct((B, 4, D), f32),
                   jax.ShapeDtypeStruct((B, 4, D), f32)),
        grid_spec=pltpu.PrefetchScalarGridSpec(
            num_scalar_prefetch=0,
            grid=(B,),
            in_specs=[
                smem_spec,                                             # counts
                smem_spec,                                             # ind_facs
                pl.BlockSpec((1, La, Kt), lambda i: (i, 0, 0)),        # bert_in
                pl.BlockSpec((1, Lc, Kt), lambda i: (i, 0, 0)),        # cap_in
                pl.BlockSpec((1, Lt, Kt), lambda i: (i, 0, 0)),        # title_in
                pl.BlockSpec((1, R, Ki), lambda i: (i, 0, 0)),         # img_in
                pl.BlockSpec((Kt, D), const2),                         # W_arts
                pl.BlockSpec((1, D), const2),                          # b_arts
                pl.BlockSpec((Kt, D), const2),                         # W_cap
                pl.BlockSpec((1, D), const2),                          # b_cap
                pl.BlockSpec((Ki, D), const2),                         # W_imgs
                pl.BlockSpec((1, D), const2),                          # b_imgs
                pl.BlockSpec((D, D), const2),                          # cg1 W (h part)
                pl.BlockSpec((3, D), const2),                          # cg1 W (ind part)
                pl.BlockSpec((1, D), const2),                          # cg1 b
                pl.BlockSpec((D, 56), const2),                         # cg2 W
                pl.BlockSpec((1, 56), const2),                         # cg2 b
                pl.BlockSpec((56, 2), const2),                         # cg3 W
                pl.BlockSpec((1, 2), const2),                          # cg3 b
            ],
            out_specs=[
                pl.BlockSpec((1, 1, 2), lambda i: (i, 0, 0)),          # logits
                pl.BlockSpec((1, 4, D), lambda i: (i, 0, 0)),          # global node x
                pl.BlockSpec((1, 4, D), lambda i: (i, 0, 0)),          # global edge x
            ],
        ),
        compiler_params=pltpu.CompilerParams(
            dimension_semantics=("parallel",),        # B>=2 feeds both v7x TensorCores
            vmem_limit_bytes=_VMEM_LIMIT,
        ),
    )(counts, ind, bert_in, cap_in, title_in, img_in,
      wa, ba, wc, bc, wi, bi, w1a, w1b, b1, w2, b2, w3, b3)

    logits = logits3.reshape(B, 2)
    return logits, (node_x, edge_x)


# ----------------------------------------------------------------------------
# Demo
# ----------------------------------------------------------------------------
if __name__ == "__main__":
    key = jax.random.PRNGKey(0)
    kp, k1, k2, k3, k4, k5 = jax.random.split(key, 6)

    B, La, Lc, Lt, R = 2, 8, 8, 8, 8   # small shapes

    params = init_params(kp)

    bert_feat_raw = jax.random.normal(k1, (B, La, 768), jnp.float32)   # article BERT feats
    cap_raw = jax.random.normal(k2, (B, Lc, 768), jnp.float32)         # caption BERT feats
    title_raw = jax.random.normal(k3, (B, Lt, 768), jnp.float32)       # title BERT feats
    img_data = jax.random.normal(k4, (B, 1, R, 2048), jnp.float32)     # image region feats
    ind_facs = jax.random.normal(k5, (B, 3), jnp.float32)

    mask_src = jnp.ones((B, La), jnp.float32)
    cap_mask = jnp.ones((B, Lc), jnp.float32)
    title_mask = jnp.ones((B, Lt), jnp.float32)

    logits, (gnode, gedge) = infosurgeon_forward(
        params, bert_feat_raw, cap_raw, title_raw, img_data,
        mask_src, cap_mask, title_mask, ind_facs)

    jax.block_until_ready((logits, gnode, gedge))
    assert logits.shape == (B, 2)
    assert gnode.shape == (B, 4, 512) and gedge.shape == (B, 4, 512)
    assert bool(jnp.all(jnp.isfinite(logits)))
    print("KERNEL_OK")
</pallas_src>

<mosaic_0001>
module attributes {stable_mosaic.version = 11 : i64} {
  func.func @_fused_forward_kernel(%arg0: i32, %arg1: memref<2x3xf32, #tpu.memory_space<smem>>, %arg2: memref<2x3xf32, #tpu.memory_space<smem>>, %arg3: memref<1x8x768xbf16, #tpu.memory_space<vmem>>, %arg4: memref<1x8x768xbf16, #tpu.memory_space<vmem>>, %arg5: memref<1x8x768xbf16, #tpu.memory_space<vmem>>, %arg6: memref<1x8x2048xbf16, #tpu.memory_space<vmem>>, %arg7: memref<768x512xbf16, #tpu.memory_space<vmem>>, %arg8: memref<1x512xf32, #tpu.memory_space<vmem>>, %arg9: memref<768x512xbf16, #tpu.memory_space<vmem>>, %arg10: memref<1x512xf32, #tpu.memory_space<vmem>>, %arg11: memref<2048x512xbf16, #tpu.memory_space<vmem>>, %arg12: memref<1x512xf32, #tpu.memory_space<vmem>>, %arg13: memref<512x512xbf16, #tpu.memory_space<vmem>>, %arg14: memref<3x512xf32, #tpu.memory_space<vmem>>, %arg15: memref<1x512xf32, #tpu.memory_space<vmem>>, %arg16: memref<512x56xbf16, #tpu.memory_space<vmem>>, %arg17: memref<1x56xf32, #tpu.memory_space<vmem>>, %arg18: memref<56x2xbf16, #tpu.memory_space<vmem>>, %arg19: memref<1x2xf32, #tpu.memory_space<vmem>>, %arg20: memref<1x1x2xf32, #tpu.memory_space<vmem>>, %arg21: memref<1x4x512xf32, #tpu.memory_space<vmem>>, %arg22: memref<1x4x512xf32, #tpu.memory_space<vmem>>) attributes {dimension_semantics = [#tpu.dimension_semantics<parallel>], iteration_bounds = array<i64: 2>, scalar_prefetch = 0 : i64, scratch_operands = 0 : i64, tpu.core_type = #tpu.core_type<tc>, window_params = [{transform_indices = @transform_0, window_bounds = array<i64: 2, 3>}, {transform_indices = @transform_1, window_bounds = array<i64: 2, 3>}, {transform_indices = @transform_2, window_bounds = array<i64: 1, 8, 768>}, {transform_indices = @transform_3, window_bounds = array<i64: 1, 8, 768>}, {transform_indices = @transform_4, window_bounds = array<i64: 1, 8, 768>}, {transform_indices = @transform_5, window_bounds = array<i64: 1, 8, 2048>}, {pipeline_mode = #tpu.pipeline_mode<synchronous>, transform_indices = @transform_6, window_bounds = array<i64: 768, 512>}, {pipeline_mode = #tpu.pipeline_mode<synchronous>, transform_indices = @transform_7, window_bounds = array<i64: 1, 512>}, {pipeline_mode = #tpu.pipeline_mode<synchronous>, transform_indices = @transform_8, window_bounds = array<i64: 768, 512>}, {pipeline_mode = #tpu.pipeline_mode<synchronous>, transform_indices = @transform_9, window_bounds = array<i64: 1, 512>}, {pipeline_mode = #tpu.pipeline_mode<synchronous>, transform_indices = @transform_10, window_bounds = array<i64: 2048, 512>}, {pipeline_mode = #tpu.pipeline_mode<synchronous>, transform_indices = @transform_11, window_bounds = array<i64: 1, 512>}, {pipeline_mode = #tpu.pipeline_mode<synchronous>, transform_indices = @transform_12, window_bounds = array<i64: 512, 512>}, {pipeline_mode = #tpu.pipeline_mode<synchronous>, transform_indices = @transform_13, window_bounds = array<i64: 3, 512>}, {pipeline_mode = #tpu.pipeline_mode<synchronous>, transform_indices = @transform_14, window_bounds = array<i64: 1, 512>}, {pipeline_mode = #tpu.pipeline_mode<synchronous>, transform_indices = @transform_15, window_bounds = array<i64: 512, 56>}, {pipeline_mode = #tpu.pipeline_mode<synchronous>, transform_indices = @transform_16, window_bounds = array<i64: 1, 56>}, {pipeline_mode = #tpu.pipeline_mode<synchronous>, transform_indices = @transform_17, window_bounds = array<i64: 56, 2>}, {pipeline_mode = #tpu.pipeline_mode<synchronous>, transform_indices = @transform_18, window_bounds = array<i64: 1, 2>}, {transform_indices = @transform_19, window_bounds = array<i64: 1, 1, 2>}, {transform_indices = @transform_20, window_bounds = array<i64: 1, 4, 512>}, {transform_indices = @transform_21, window_bounds = array<i64: 1, 4, 512>}]} {
    %c0 = arith.constant 0 : index
    %c0_0 = arith.constant 0 : index
    %c0_1 = arith.constant 0 : index
    %0 = vector.load %arg3[%c0, %c0_0, %c0_1] : memref<1x8x768xbf16, #tpu.memory_space<vmem>>, vector<1x8x768xbf16>
    %1 = vector.shape_cast %0 : vector<1x8x768xbf16> to vector<8x768xbf16>
    %c0_2 = arith.constant 0 : index
    %c0_3 = arith.constant 0 : index
    %2 = vector.load %arg7[%c0_2, %c0_3] : memref<768x512xbf16, #tpu.memory_space<vmem>>, vector<768x512xbf16>
    %cst = arith.constant dense<0.000000e+00> : vector<8x512xf32>
    %3 = tpu.matmul %1, %2, %cst {dimension_numbers = #tpu.dot_dimension_numbers<[1], [0], [0], [1], [0, 0, 1, 1], [], []>} : vector<8x768xbf16>, vector<768x512xbf16>, vector<8x512xf32> -> vector<8x512xf32>
    %c0_4 = arith.constant 0 : index
    %c0_5 = arith.constant 0 : index
    %4 = vector.load %arg8[%c0_4, %c0_5] : memref<1x512xf32, #tpu.memory_space<vmem>>, vector<1x512xf32>
    %5 = vector.broadcast %4 : vector<1x512xf32> to vector<8x512xf32>
    %6 = arith.addf %3, %5 : vector<8x512xf32>
    %cst_6 = arith.constant 0.000000e+00 : f32
    %7 = vector.broadcast %cst_6 : f32 to vector<8x512xf32>
    %8 = arith.maximumf %6, %7 : vector<8x512xf32>
    %c0_7 = arith.constant 0 : index
    %c0_8 = arith.constant 0 : index
    %c0_9 = arith.constant 0 : index
    %9 = vector.load %arg4[%c0_7, %c0_8, %c0_9] : memref<1x8x768xbf16, #tpu.memory_space<vmem>>, vector<1x8x768xbf16>
    %10 = vector.shape_cast %9 : vector<1x8x768xbf16> to vector<8x768xbf16>
    %c0_10 = arith.constant 0 : index
    %c0_11 = arith.constant 0 : index
    %11 = vector.load %arg9[%c0_10, %c0_11] : memref<768x512xbf16, #tpu.memory_space<vmem>>, vector<768x512xbf16>
    %cst_12 = arith.constant dense<0.000000e+00> : vector<8x512xf32>
    %12 = tpu.matmul %10, %11, %cst_12 {dimension_numbers = #tpu.dot_dimension_numbers<[1], [0], [0], [1], [0, 0, 1, 1], [], []>} : vector<8x768xbf16>, vector<768x512xbf16>, vector<8x512xf32> -> vector<8x512xf32>
    %c0_13 = arith.constant 0 : index
    %c0_14 = arith.constant 0 : index
    %13 = vector.load %arg10[%c0_13, %c0_14] : memref<1x512xf32, #tpu.memory_space<vmem>>, vector<1x512xf32>
    %14 = vector.broadcast %13 : vector<1x512xf32> to vector<8x512xf32>
    %15 = arith.addf %12, %14 : vector<8x512xf32>
    %cst_15 = arith.constant 0.000000e+00 : f32
    %16 = vector.broadcast %cst_15 : f32 to vector<8x512xf32>
    %17 = arith.maximumf %15, %16 : vector<8x512xf32>
    %c0_16 = arith.constant 0 : index
    %c0_17 = arith.constant 0 : index
    %c0_18 = arith.constant 0 : index
    %18 = vector.load %arg5[%c0_16, %c0_17, %c0_18] : memref<1x8x768xbf16, #tpu.memory_space<vmem>>, vector<1x8x768xbf16>
    %19 = vector.shape_cast %18 : vector<1x8x768xbf16> to vector<8x768xbf16>
    %c0_19 = arith.constant 0 : index
    %c0_20 = arith.constant 0 : index
    %20 = vector.load %arg9[%c0_19, %c0_20] : memref<768x512xbf16, #tpu.memory_space<vmem>>, vector<768x512xbf16>
    %cst_21 = arith.constant dense<0.000000e+00> : vector<8x512xf32>
    %21 = tpu.matmul %19, %20, %cst_21 {dimension_numbers = #tpu.dot_dimension_numbers<[1], [0], [0], [1], [0, 0, 1, 1], [], []>} : vector<8x768xbf16>, vector<768x512xbf16>, vector<8x512xf32> -> vector<8x512xf32>
    %c0_22 = arith.constant 0 : index
    %c0_23 = arith.constant 0 : index
    %22 = vector.load %arg10[%c0_22, %c0_23] : memref<1x512xf32, #tpu.memory_space<vmem>>, vector<1x512xf32>
    %23 = vector.broadcast %22 : vector<1x512xf32> to vector<8x512xf32>
    %24 = arith.addf %21, %23 : vector<8x512xf32>
    %cst_24 = arith.constant 0.000000e+00 : f32
    %25 = vector.broadcast %cst_24 : f32 to vector<8x512xf32>
    %26 = arith.maximumf %24, %25 : vector<8x512xf32>
    %c0_25 = arith.constant 0 : index
    %c0_26 = arith.constant 0 : index
    %c0_27 = arith.constant 0 : index
    %27 = vector.load %arg6[%c0_25, %c0_26, %c0_27] : memref<1x8x2048xbf16, #tpu.memory_space<vmem>>, vector<1x8x2048xbf16>
    %28 = vector.shape_cast %27 : vector<1x8x2048xbf16> to vector<8x2048xbf16>
    %c0_28 = arith.constant 0 : index
    %c0_29 = arith.constant 0 : index
    %29 = vector.load %arg11[%c0_28, %c0_29] : memref<2048x512xbf16, #tpu.memory_space<vmem>>, vector<2048x512xbf16>
    %cst_30 = arith.constant dense<0.000000e+00> : vector<8x512xf32>
    %30 = tpu.matmul %28, %29, %cst_30 {dimension_numbers = #tpu.dot_dimension_numbers<[1], [0], [0], [1], [0, 0, 1, 1], [], []>} : vector<8x2048xbf16>, vector<2048x512xbf16>, vector<8x512xf32> -> vector<8x512xf32>
    %c0_31 = arith.constant 0 : index
    %c0_32 = arith.constant 0 : index
    %31 = vector.load %arg12[%c0_31, %c0_32] : memref<1x512xf32, #tpu.memory_space<vmem>>, vector<1x512xf32>
    %32 = vector.broadcast %31 : vector<1x512xf32> to vector<8x512xf32>
    %33 = arith.addf %30, %32 : vector<8x512xf32>
    %cst_33 = arith.constant 0.000000e+00 : f32
    %34 = vector.broadcast %cst_33 : f32 to vector<8x512xf32>
    %35 = arith.maximumf %33, %34 : vector<8x512xf32>
    %36 = arith.truncf %8 : vector<8x512xf32> to vector<8x512xbf16>
    %37 = arith.truncf %17 : vector<8x512xf32> to vector<8x512xbf16>
    %38 = arith.truncf %26 : vector<8x512xf32> to vector<8x512xbf16>
    %39 = arith.truncf %35 : vector<8x512xf32> to vector<8x512xbf16>
    %40 = arith.mulf %8, %8 : vector<8x512xf32>
    %cst_34 = arith.constant dense<0.000000e+00> : vector<8xf32>
    %41 = vector.multi_reduction <add>, %40, %cst_34 [1] : vector<8x512xf32> to vector<8xf32>
    %42 = vector.shape_cast %41 : vector<8xf32> to vector<8x1xf32>
    %cst_35 = arith.constant 1.000000e-16 : f32
    %43 = vector.broadcast %cst_35 : f32 to vector<8x1xf32>
    %44 = arith.maximumf %42, %43 : vector<8x1xf32>
    %45 = math.rsqrt %44 : vector<8x1xf32>
    %46 = arith.mulf %17, %17 : vector<8x512xf32>
    %cst_36 = arith.constant dense<0.000000e+00> : vector<8xf32>
    %47 = vector.multi_reduction <add>, %46, %cst_36 [1] : vector<8x512xf32> to vector<8xf32>
    %48 = vector.shape_cast %47 : vector<8xf32> to vector<8x1xf32>
    %cst_37 = arith.constant 1.000000e-16 : f32
    %49 = vector.broadcast %cst_37 : f32 to vector<8x1xf32>
    %50 = arith.maximumf %48, %49 : vector<8x1xf32>
    %51 = math.rsqrt %50 : vector<8x1xf32>
    %52 = arith.mulf %26, %26 : vector<8x512xf32>
    %cst_38 = arith.constant dense<0.000000e+00> : vector<8xf32>
    %53 = vector.multi_reduction <add>, %52, %cst_38 [1] : vector<8x512xf32> to vector<8xf32>
    %54 = vector.shape_cast %53 : vector<8xf32> to vector<8x1xf32>
    %cst_39 = arith.constant 1.000000e-16 : f32
    %55 = vector.broadcast %cst_39 : f32 to vector<8x1xf32>
    %56 = arith.maximumf %54, %55 : vector<8x1xf32>
    %57 = math.rsqrt %56 : vector<8x1xf32>
    %58 = arith.mulf %35, %35 : vector<8x512xf32>
    %cst_40 = arith.constant dense<0.000000e+00> : vector<8xf32>
    %59 = vector.multi_reduction <add>, %58, %cst_40 [1] : vector<8x512xf32> to vector<8xf32>
    %60 = vector.shape_cast %59 : vector<8xf32> to vector<8x1xf32>
    %cst_41 = arith.constant 1.000000e-16 : f32
    %61 = vector.broadcast %cst_41 : f32 to vector<8x1xf32>
    %62 = arith.maximumf %60, %61 : vector<8x1xf32>
    %63 = math.rsqrt %62 : vector<8x1xf32>
    %cst_42 = arith.constant dense<0.000000e+00> : vector<8x8xf32>
    %64 = tpu.matmul %39, %36, %cst_42 {dimension_numbers = #tpu.dot_dimension_numbers<[1], [1], [0], [0], [0, 0, 1, 0], [], []>} : vector<8x512xbf16>, vector<8x512xbf16>, vector<8x8xf32> -> vector<8x8xf32>
    %65 = vector.broadcast %63 : vector<8x1xf32> to vector<8x8xf32>
    %66 = arith.mulf %64, %65 : vector<8x8xf32>
    %67 = tpu.transpose %45, [1, 0] : vector<8x1xf32> -> vector<1x8xf32>
    %68 = vector.broadcast %67 : vector<1x8xf32> to vector<8x8xf32>
    %69 = arith.mulf %66, %68 : vector<8x8xf32>
    %cst_43 = arith.constant dense<0.000000e+00> : vector<8x8xf32>
    %70 = tpu.matmul %37, %36, %cst_43 {dimension_numbers = #tpu.dot_dimension_numbers<[1], [1], [0], [0], [0, 0, 1, 0], [], []>} : vector<8x512xbf16>, vector<8x512xbf16>, vector<8x8xf32> -> vector<8x8xf32>
    %71 = vector.broadcast %51 : vector<8x1xf32> to vector<8x8xf32>
    %72 = arith.mulf %70, %71 : vector<8x8xf32>
    %73 = tpu.transpose %45, [1, 0] : vector<8x1xf32> -> vector<1x8xf32>
    %74 = vector.broadcast %73 : vector<1x8xf32> to vector<8x8xf32>
    %75 = arith.mulf %72, %74 : vector<8x8xf32>
    %cst_44 = arith.constant dense<0.000000e+00> : vector<8x8xf32>
    %76 = tpu.matmul %38, %36, %cst_44 {dimension_numbers = #tpu.dot_dimension_numbers<[1], [1], [0], [0], [0, 0, 1, 0], [], []>} : vector<8x512xbf16>, vector<8x512xbf16>, vector<8x8xf32> -> vector<8x8xf32>
    %77 = vector.broadcast %57 : vector<8x1xf32> to vector<8x8xf32>
    %78 = arith.mulf %76, %77 : vector<8x8xf32>
    %79 = tpu.transpose %45, [1, 0] : vector<8x1xf32> -> vector<1x8xf32>
    %80 = vector.broadcast %79 : vector<1x8xf32> to vector<8x8xf32>
    %81 = arith.mulf %78, %80 : vector<8x8xf32>
    %cst_45 = arith.constant dense<0.000000e+00> : vector<8x8xf32>
    %82 = tpu.matmul %39, %37, %cst_45 {dimension_numbers = #tpu.dot_dimension_numbers<[1], [1], [0], [0], [0, 0, 1, 0], [], []>} : vector<8x512xbf16>, vector<8x512xbf16>, vector<8x8xf32> -> vector<8x8xf32>
    %83 = vector.broadcast %63 : vector<8x1xf32> to vector<8x8xf32>
    %84 = arith.mulf %82, %83 : vector<8x8xf32>
    %85 = tpu.transpose %51, [1, 0] : vector<8x1xf32> -> vector<1x8xf32>
    %86 = vector.broadcast %85 : vector<1x8xf32> to vector<8x8xf32>
    %87 = arith.mulf %84, %86 : vector<8x8xf32>
    %cst_46 = arith.constant dense<0xFF800000> : vector<8xf32>
    %88 = vector.multi_reduction <maximumf>, %69, %cst_46 [0] : vector<8x8xf32> to vector<8xf32>
    %89 = vector.shape_cast %88 : vector<8xf32> to vector<1x8xf32>
    %90 = vector.broadcast %89 : vector<1x8xf32> to vector<8x8xf32>
    %91 = arith.subf %69, %90 : vector<8x8xf32>
    %92 = math.exp %91 : vector<8x8xf32>
    %cst_47 = arith.constant dense<0.000000e+00> : vector<8xf32>
    %93 = vector.multi_reduction <add>, %92, %cst_47 [0] : vector<8x8xf32> to vector<8xf32>
    %94 = vector.shape_cast %93 : vector<8xf32> to vector<1x8xf32>
    %95 = vector.broadcast %94 : vector<1x8xf32> to vector<8x8xf32>
    %96 = arith.divf %92, %95 : vector<8x8xf32>
    %cst_48 = arith.constant dense<0.000000e+00> : vector<8xf32>
    %97 = vector.multi_reduction <add>, %96, %cst_48 [1] : vector<8x8xf32> to vector<8xf32>
    %98 = vector.shape_cast %97 : vector<8xf32> to vector<8x1xf32>
    %99 = vector.broadcast %98 : vector<8x1xf32> to vector<8x512xf32>
    %100 = arith.mulf %99, %35 : vector<8x512xf32>
    %cst_49 = arith.constant dense<0.000000e+00> : vector<512xf32>
    %101 = vector.multi_reduction <add>, %100, %cst_49 [0] : vector<8x512xf32> to vector<512xf32>
    %102 = vector.shape_cast %101 : vector<512xf32> to vector<1x512xf32>
    %cst_50 = arith.constant dense<0xFF800000> : vector<8xf32>
    %103 = vector.multi_reduction <maximumf>, %75, %cst_50 [0] : vector<8x8xf32> to vector<8xf32>
    %104 = vector.shape_cast %103 : vector<8xf32> to vector<1x8xf32>
    %105 = vector.broadcast %104 : vector<1x8xf32> to vector<8x8xf32>
    %106 = arith.subf %75, %105 : vector<8x8xf32>
    %107 = math.exp %106 : vector<8x8xf32>
    %cst_51 = arith.constant dense<0.000000e+00> : vector<8xf32>
    %108 = vector.multi_reduction <add>, %107, %cst_51 [0] : vector<8x8xf32> to vector<8xf32>
    %109 = vector.shape_cast %108 : vector<8xf32> to vector<1x8xf32>
    %110 = vector.broadcast %109 : vector<1x8xf32> to vector<8x8xf32>
    %111 = arith.divf %107, %110 : vector<8x8xf32>
    %cst_52 = arith.constant dense<0.000000e+00> : vector<8xf32>
    %112 = vector.multi_reduction <add>, %111, %cst_52 [1] : vector<8x8xf32> to vector<8xf32>
    %113 = vector.shape_cast %112 : vector<8xf32> to vector<8x1xf32>
    %114 = vector.broadcast %113 : vector<8x1xf32> to vector<8x512xf32>
    %115 = arith.mulf %114, %17 : vector<8x512xf32>
    %cst_53 = arith.constant dense<0.000000e+00> : vector<512xf32>
    %116 = vector.multi_reduction <add>, %115, %cst_53 [0] : vector<8x512xf32> to vector<512xf32>
    %117 = vector.shape_cast %116 : vector<512xf32> to vector<1x512xf32>
    %cst_54 = arith.constant dense<0xFF800000> : vector<8xf32>
    %118 = vector.multi_reduction <maximumf>, %81, %cst_54 [0] : vector<8x8xf32> to vector<8xf32>
    %119 = vector.shape_cast %118 : vector<8xf32> to vector<1x8xf32>
    %120 = vector.broadcast %119 : vector<1x8xf32> to vector<8x8xf32>
    %121 = arith.subf %81, %120 : vector<8x8xf32>
    %122 = math.exp %121 : vector<8x8xf32>
    %cst_55 = arith.constant dense<0.000000e+00> : vector<8xf32>
    %123 = vector.multi_reduction <add>, %122, %cst_55 [0] : vector<8x8xf32> to vector<8xf32>
    %124 = vector.shape_cast %123 : vector<8xf32> to vector<1x8xf32>
    %125 = vector.broadcast %124 : vector<1x8xf32> to vector<8x8xf32>
    %126 = arith.divf %122, %125 : vector<8x8xf32>
    %cst_56 = arith.constant dense<0.000000e+00> : vector<8xf32>
    %127 = vector.multi_reduction <add>, %126, %cst_56 [1] : vector<8x8xf32> to vector<8xf32>
    %128 = vector.shape_cast %127 : vector<8xf32> to vector<8x1xf32>
    %129 = vector.broadcast %128 : vector<8x1xf32> to vector<8x512xf32>
    %130 = arith.mulf %129, %26 : vector<8x512xf32>
    %cst_57 = arith.constant dense<0.000000e+00> : vector<512xf32>
    %131 = vector.multi_reduction <add>, %130, %cst_57 [0] : vector<8x512xf32> to vector<512xf32>
    %132 = vector.shape_cast %131 : vector<512xf32> to vector<1x512xf32>
    %cst_58 = arith.constant dense<0xFF800000> : vector<8xf32>
    %133 = vector.multi_reduction <maximumf>, %87, %cst_58 [0] : vector<8x8xf32> to vector<8xf32>
    %134 = vector.shape_cast %133 : vector<8xf32> to vector<1x8xf32>
    %135 = vector.broadcast %134 : vector<1x8xf32> to vector<8x8xf32>
    %136 = arith.subf %87, %135 : vector<8x8xf32>
    %137 = math.exp %136 : vector<8x8xf32>
    %cst_59 = arith.constant dense<0.000000e+00> : vector<8xf32>
    %138 = vector.multi_reduction <add>, %137, %cst_59 [0] : vector<8x8xf32> to vector<8xf32>
    %139 = vector.shape_cast %138 : vector<8xf32> to vector<1x8xf32>
    %140 = vector.broadcast %139 : vector<1x8xf32> to vector<8x8xf32>
    %141 = arith.divf %137, %140 : vector<8x8xf32>
    %cst_60 = arith.constant dense<0.000000e+00> : vector<8xf32>
    %142 = vector.multi_reduction <add>, %141, %cst_60 [1] : vector<8x8xf32> to vector<8xf32>
    %143 = vector.shape_cast %142 : vector<8xf32> to vector<8x1xf32>
    %144 = vector.broadcast %143 : vector<8x1xf32> to vector<8x512xf32>
    %145 = arith.mulf %144, %35 : vector<8x512xf32>
    %cst_61 = arith.constant dense<0.000000e+00> : vector<512xf32>
    %146 = vector.multi_reduction <add>, %145, %cst_61 [0] : vector<8x512xf32> to vector<512xf32>
    %147 = vector.shape_cast %146 : vector<512xf32> to vector<1x512xf32>
    %148 = arith.index_cast %arg0 : i32 to index
    %c0_62 = arith.constant 0 : index
    %149 = memref.load %arg1[%148, %c0_62] : memref<2x3xf32, #tpu.memory_space<smem>>
    %150 = arith.index_cast %arg0 : i32 to index
    %c1 = arith.constant 1 : index
    %151 = memref.load %arg1[%150, %c1] : memref<2x3xf32, #tpu.memory_space<smem>>
    %152 = arith.index_cast %arg0 : i32 to index
    %c2 = arith.constant 2 : index
    %153 = memref.load %arg1[%152, %c2] : memref<2x3xf32, #tpu.memory_space<smem>>
    %cst_63 = arith.constant dense<0.000000e+00> : vector<512xf32>
    %154 = vector.multi_reduction <add>, %8, %cst_63 [0] : vector<8x512xf32> to vector<512xf32>
    %155 = vector.shape_cast %154 : vector<512xf32> to vector<1x512xf32>
    %156 = vector.broadcast %149 : f32 to vector<1x512xf32>
    %157 = arith.divf %155, %156 : vector<1x512xf32>
    %cst_64 = arith.constant dense<0.000000e+00> : vector<512xf32>
    %158 = vector.multi_reduction <add>, %35, %cst_64 [0] : vector<8x512xf32> to vector<512xf32>
    %159 = vector.shape_cast %158 : vector<512xf32> to vector<1x512xf32>
    %cst_65 = arith.constant 1.250000e-01 : f32
    %160 = vector.broadcast %cst_65 : f32 to vector<1x512xf32>
    %161 = arith.mulf %159, %160 : vector<1x512xf32>
    %cst_66 = arith.constant dense<0.000000e+00> : vector<512xf32>
    %162 = vector.multi_reduction <add>, %17, %cst_66 [0] : vector<8x512xf32> to vector<512xf32>
    %163 = vector.shape_cast %162 : vector<512xf32> to vector<1x512xf32>
    %164 = vector.broadcast %151 : f32 to vector<1x512xf32>
    %165 = arith.divf %163, %164 : vector<1x512xf32>
    %cst_67 = arith.constant dense<0.000000e+00> : vector<512xf32>
    %166 = vector.multi_reduction <add>, %26, %cst_67 [0] : vector<8x512xf32> to vector<512xf32>
    %167 = vector.shape_cast %166 : vector<512xf32> to vector<1x512xf32>
    %168 = vector.broadcast %153 : f32 to vector<1x512xf32>
    %169 = arith.divf %167, %168 : vector<1x512xf32>
    %c0_68 = arith.constant 0 : index
    %c0_69 = arith.constant 0 : index
    %c0_70 = arith.constant 0 : index
    %170 = vector.load %arg21[%c0_68, %c0_69, %c0_70] : memref<1x4x512xf32, #tpu.memory_space<vmem>>, vector<1x1x512xf32>
    %171 = vector.shape_cast %170 : vector<1x1x512xf32> to vector<1x512xf32>
    %172 = vector.shape_cast %157 : vector<1x512xf32> to vector<1x1x512xf32>
    tpu.vector_store %arg21[%c0_68, %c0_69, %c0_70], %172 {strides = array<i32>} : memref<1x4x512xf32, #tpu.memory_space<vmem>>, vector<1x1x512xf32>,
    %c0_71 = arith.constant 0 : index
    %c1_72 = arith.constant 1 : index
    %c0_73 = arith.constant 0 : index
    %173 = vector.load %arg21[%c0_71, %c1_72, %c0_73] : memref<1x4x512xf32, #tpu.memory_space<vmem>>, vector<1x1x512xf32>
    %174 = vector.shape_cast %173 : vector<1x1x512xf32> to vector<1x512xf32>
    %175 = vector.shape_cast %161 : vector<1x512xf32> to vector<1x1x512xf32>
    tpu.vector_store %arg21[%c0_71, %c1_72, %c0_73], %175 {strides = array<i32>} : memref<1x4x512xf32, #tpu.memory_space<vmem>>, vector<1x1x512xf32>,
    %c0_74 = arith.constant 0 : index
    %c2_75 = arith.constant 2 : index
    %c0_76 = arith.constant 0 : index
    %176 = vector.load %arg21[%c0_74, %c2_75, %c0_76] : memref<1x4x512xf32, #tpu.memory_space<vmem>>, vector<1x1x512xf32>
    %177 = vector.shape_cast %176 : vector<1x1x512xf32> to vector<1x512xf32>
    %178 = vector.shape_cast %165 : vector<1x512xf32> to vector<1x1x512xf32>
    tpu.vector_store %arg21[%c0_74, %c2_75, %c0_76], %178 {strides = array<i32>} : memref<1x4x512xf32, #tpu.memory_space<vmem>>, vector<1x1x512xf32>,
    %c0_77 = arith.constant 0 : index
    %c3 = arith.constant 3 : index
    %c0_78 = arith.constant 0 : index
    %179 = vector.load %arg21[%c0_77, %c3, %c0_78] : memref<1x4x512xf32, #tpu.memory_space<vmem>>, vector<1x1x512xf32>
    %180 = vector.shape_cast %179 : vector<1x1x512xf32> to vector<1x512xf32>
    %181 = vector.shape_cast %169 : vector<1x512xf32> to vector<1x1x512xf32>
    tpu.vector_store %arg21[%c0_77, %c3, %c0_78], %181 {strides = array<i32>} : memref<1x4x512xf32, #tpu.memory_space<vmem>>, vector<1x1x512xf32>,
    %182 = vector.broadcast %149 : f32 to vector<1x512xf32>
    %183 = arith.divf %102, %182 : vector<1x512xf32>
    %c0_79 = arith.constant 0 : index
    %c0_80 = arith.constant 0 : index
    %c0_81 = arith.constant 0 : index
    %184 = vector.load %arg22[%c0_79, %c0_80, %c0_81] : memref<1x4x512xf32, #tpu.memory_space<vmem>>, vector<1x1x512xf32>
    %185 = vector.shape_cast %184 : vector<1x1x512xf32> to vector<1x512xf32>
    %186 = vector.shape_cast %183 : vector<1x512xf32> to vector<1x1x512xf32>
    tpu.vector_store %arg22[%c0_79, %c0_80, %c0_81], %186 {strides = array<i32>} : memref<1x4x512xf32, #tpu.memory_space<vmem>>, vector<1x1x512xf32>,
    %187 = vector.broadcast %149 : f32 to vector<1x512xf32>
    %188 = arith.divf %117, %187 : vector<1x512xf32>
    %c0_82 = arith.constant 0 : index
    %c1_83 = arith.constant 1 : index
    %c0_84 = arith.constant 0 : index
    %189 = vector.load %arg22[%c0_82, %c1_83, %c0_84] : memref<1x4x512xf32, #tpu.memory_space<vmem>>, vector<1x1x512xf32>
    %190 = vector.shape_cast %189 : vector<1x1x512xf32> to vector<1x512xf32>
    %191 = vector.shape_cast %188 : vector<1x512xf32> to vector<1x1x512xf32>
    tpu.vector_store %arg22[%c0_82, %c1_83, %c0_84], %191 {strides = array<i32>} : memref<1x4x512xf32, #tpu.memory_space<vmem>>, vector<1x1x512xf32>,
    %192 = vector.broadcast %151 : f32 to vector<1x512xf32>
    %193 = arith.divf %147, %192 : vector<1x512xf32>
    %c0_85 = arith.constant 0 : index
    %c2_86 = arith.constant 2 : index
    %c0_87 = arith.constant 0 : index
    %194 = vector.load %arg22[%c0_85, %c2_86, %c0_87] : memref<1x4x512xf32, #tpu.memory_space<vmem>>, vector<1x1x512xf32>
    %195 = vector.shape_cast %194 : vector<1x1x512xf32> to vector<1x512xf32>
    %196 = vector.shape_cast %193 : vector<1x512xf32> to vector<1x1x512xf32>
    tpu.vector_store %arg22[%c0_85, %c2_86, %c0_87], %196 {strides = array<i32>} : memref<1x4x512xf32, #tpu.memory_space<vmem>>, vector<1x1x512xf32>,
    %197 = vector.broadcast %149 : f32 to vector<1x512xf32>
    %198 = arith.divf %132, %197 : vector<1x512xf32>
    %c0_88 = arith.constant 0 : index
    %c3_89 = arith.constant 3 : index
    %c0_90 = arith.constant 0 : index
    %199 = vector.load %arg22[%c0_88, %c3_89, %c0_90] : memref<1x4x512xf32, #tpu.memory_space<vmem>>, vector<1x1x512xf32>
    %200 = vector.shape_cast %199 : vector<1x1x512xf32> to vector<1x512xf32>
    %201 = vector.shape_cast %198 : vector<1x512xf32> to vector<1x1x512xf32>
    tpu.vector_store %arg22[%c0_88, %c3_89, %c0_90], %201 {strides = array<i32>} : memref<1x4x512xf32, #tpu.memory_space<vmem>>, vector<1x1x512xf32>,
    %202 = arith.maximumf %157, %161 : vector<1x512xf32>
    %203 = arith.maximumf %165, %169 : vector<1x512xf32>
    %204 = arith.maximumf %202, %203 : vector<1x512xf32>
    %cst_91 = arith.constant 0.000000e+00 : f32
    %205 = vector.broadcast %cst_91 : f32 to vector<1x512xf32>
    %206 = arith.maximumf %204, %205 : vector<1x512xf32>
    %207 = vector.shape_cast %206 : vector<1x512xf32> to vector<1x512xf32>
    %208 = vector.broadcast %207 : vector<1x512xf32> to vector<8x512xf32>
    %209 = arith.truncf %208 : vector<8x512xf32> to vector<8x512xbf16>
    %c0_92 = arith.constant 0 : index
    %c0_93 = arith.constant 0 : index
    %210 = vector.load %arg13[%c0_92, %c0_93] : memref<512x512xbf16, #tpu.memory_space<vmem>>, vector<512x512xbf16>
    %cst_94 = arith.constant dense<0.000000e+00> : vector<8x512xf32>
    %211 = tpu.matmul %209, %210, %cst_94 {dimension_numbers = #tpu.dot_dimension_numbers<[1], [0], [0], [1], [0, 0, 1, 1], [], []>} : vector<8x512xbf16>, vector<512x512xbf16>, vector<8x512xf32> -> vector<8x512xf32>
    %c0_95 = arith.constant 0 : index
    %c0_96 = arith.constant 0 : index
    %212 = vector.load %arg15[%c0_95, %c0_96] : memref<1x512xf32, #tpu.memory_space<vmem>>, vector<1x512xf32>
    %213 = vector.broadcast %212 : vector<1x512xf32> to vector<8x512xf32>
    %214 = arith.addf %211, %213 : vector<8x512xf32>
    %215 = arith.index_cast %arg0 : i32 to index
    %c0_97 = arith.constant 0 : index
    %216 = memref.load %arg2[%215, %c0_97] : memref<2x3xf32, #tpu.memory_space<smem>>
    %cst_98 = arith.constant 0.000000e+00 : f32
    %217 = arith.maximumf %216, %cst_98 : f32
    %c0_99 = arith.constant 0 : index
    %c0_100 = arith.constant 0 : index
    %218 = vector.load %arg14[%c0_99, %c0_100] : memref<3x512xf32, #tpu.memory_space<vmem>>, vector<1x512xf32>
    %219 = vector.broadcast %217 : f32 to vector<1x512xf32>
    %220 = arith.mulf %219, %218 : vector<1x512xf32>
    %221 = vector.broadcast %220 : vector<1x512xf32> to vector<8x512xf32>
    %222 = arith.addf %214, %221 : vector<8x512xf32>
    %223 = arith.index_cast %arg0 : i32 to index
    %c1_101 = arith.constant 1 : index
    %224 = memref.load %arg2[%223, %c1_101] : memref<2x3xf32, #tpu.memory_space<smem>>
    %cst_102 = arith.constant 0.000000e+00 : f32
    %225 = arith.maximumf %224, %cst_102 : f32
    %c1_103 = arith.constant 1 : index
    %c0_104 = arith.constant 0 : index
    %226 = vector.load %arg14[%c1_103, %c0_104] : memref<3x512xf32, #tpu.memory_space<vmem>>, vector<1x512xf32>
    %227 = vector.broadcast %225 : f32 to vector<1x512xf32>
    %228 = arith.mulf %227, %226 : vector<1x512xf32>
    %229 = vector.broadcast %228 : vector<1x512xf32> to vector<8x512xf32>
    %230 = arith.addf %222, %229 : vector<8x512xf32>
    %231 = arith.index_cast %arg0 : i32 to index
    %c2_105 = arith.constant 2 : index
    %232 = memref.load %arg2[%231, %c2_105] : memref<2x3xf32, #tpu.memory_space<smem>>
    %cst_106 = arith.constant 0.000000e+00 : f32
    %233 = arith.maximumf %232, %cst_106 : f32
    %c2_107 = arith.constant 2 : index
    %c0_108 = arith.constant 0 : index
    %234 = vector.load %arg14[%c2_107, %c0_108] : memref<3x512xf32, #tpu.memory_space<vmem>>, vector<1x512xf32>
    %235 = vector.broadcast %233 : f32 to vector<1x512xf32>
    %236 = arith.mulf %235, %234 : vector<1x512xf32>
    %237 = vector.broadcast %236 : vector<1x512xf32> to vector<8x512xf32>
    %238 = arith.addf %230, %237 : vector<8x512xf32>
    %cst_109 = arith.constant 0.000000e+00 : f32
    %239 = vector.broadcast %cst_109 : f32 to vector<8x512xf32>
    %240 = arith.maximumf %238, %239 : vector<8x512xf32>
    %241 = arith.truncf %240 : vector<8x512xf32> to vector<8x512xbf16>
    %c0_110 = arith.constant 0 : index
    %c0_111 = arith.constant 0 : index
    %242 = vector.load %arg16[%c0_110, %c0_111] : memref<512x56xbf16, #tpu.memory_space<vmem>>, vector<512x56xbf16>
    %cst_112 = arith.constant dense<0.000000e+00> : vector<8x56xf32>
    %243 = tpu.matmul %241, %242, %cst_112 {dimension_numbers = #tpu.dot_dimension_numbers<[1], [0], [0], [1], [0, 0, 1, 1], [], []>} : vector<8x512xbf16>, vector<512x56xbf16>, vector<8x56xf32> -> vector<8x56xf32>
    %c0_113 = arith.constant 0 : index
    %c0_114 = arith.constant 0 : index
    %244 = vector.load %arg17[%c0_113, %c0_114] : memref<1x56xf32, #tpu.memory_space<vmem>>, vector<1x56xf32>
    %245 = vector.broadcast %244 : vector<1x56xf32> to vector<8x56xf32>
    %246 = arith.addf %243, %245 : vector<8x56xf32>
    %cst_115 = arith.constant 0.000000e+00 : f32
    %247 = vector.broadcast %cst_115 : f32 to vector<8x56xf32>
    %248 = arith.maximumf %246, %247 : vector<8x56xf32>
    %249 = arith.truncf %248 : vector<8x56xf32> to vector<8x56xbf16>
    %c0_116 = arith.constant 0 : index
    %c0_117 = arith.constant 0 : index
    %250 = vector.load %arg18[%c0_116, %c0_117] : memref<56x2xbf16, #tpu.memory_space<vmem>>, vector<56x2xbf16>
    %cst_118 = arith.constant dense<0.000000e+00> : vector<8x2xf32>
    %251 = tpu.matmul %249, %250, %cst_118 {dimension_numbers = #tpu.dot_dimension_numbers<[1], [0], [0], [1], [0, 0, 1, 1], [], []>} : vector<8x56xbf16>, vector<56x2xbf16>, vector<8x2xf32> -> vector<8x2xf32>
    %c0_119 = arith.constant 0 : index
    %c0_120 = arith.constant 0 : index
    %252 = vector.load %arg19[%c0_119, %c0_120] : memref<1x2xf32, #tpu.memory_space<vmem>>, vector<1x2xf32>
    %253 = vector.broadcast %252 : vector<1x2xf32> to vector<8x2xf32>
    %254 = arith.addf %251, %253 : vector<8x2xf32>
    %255 = vector.extract_strided_slice %254 {offsets = [0, 0], sizes = [1, 2], strides = [1, 1]} : vector<8x2xf32> to vector<1x2xf32>
    %c0_121 = arith.constant 0 : index
    %c0_122 = arith.constant 0 : index
    %c0_123 = arith.constant 0 : index
    %256 = vector.load %arg20[%c0_121, %c0_122, %c0_123] : memref<1x1x2xf32, #tpu.memory_space<vmem>>, vector<1x1x2xf32>
    %257 = vector.shape_cast %256 : vector<1x1x2xf32> to vector<1x2xf32>
    %258 = vector.shape_cast %255 : vector<1x2xf32> to vector<1x1x2xf32>
    tpu.vector_store %arg20[%c0_121, %c0_122, %c0_123], %258 {strides = array<i32>} : memref<1x1x2xf32, #tpu.memory_space<vmem>>, vector<1x1x2xf32>,
    return
  }
  func.func @transform_0(%arg0: i32) -> (i32, i32) {
    %c0_i32 = arith.constant 0 : i32
    %c0_i32_0 = arith.constant 0 : i32
    %c0_i32_1 = arith.constant 0 : i32
    return %c0_i32, %c0_i32_0 : i32, i32
  }
  func.func @transform_1(%arg0: i32) -> (i32, i32) {
    %c0_i32 = arith.constant 0 : i32
    %c0_i32_0 = arith.constant 0 : i32
    %c0_i32_1 = arith.constant 0 : i32
    return %c0_i32, %c0_i32_0 : i32, i32
  }
  func.func @transform_2(%arg0: i32) -> (i32, i32, i32) {
    %c0_i32 = arith.constant 0 : i32
    %c0_i32_0 = arith.constant 0 : i32
    %c0_i32_1 = arith.constant 0 : i32
    return %arg0, %c0_i32, %c0_i32_0 : i32, i32, i32
  }
  func.func @transform_3(%arg0: i32) -> (i32, i32, i32) {
    %c0_i32 = arith.constant 0 : i32
    %c0_i32_0 = arith.constant 0 : i32
    %c0_i32_1 = arith.constant 0 : i32
    return %arg0, %c0_i32, %c0_i32_0 : i32, i32, i32
  }
  func.func @transform_4(%arg0: i32) -> (i32, i32, i32) {
    %c0_i32 = arith.constant 0 : i32
    %c0_i32_0 = arith.constant 0 : i32
    %c0_i32_1 = arith.constant 0 : i32
    return %arg0, %c0_i32, %c0_i32_0 : i32, i32, i32
  }
  func.func @transform_5(%arg0: i32) -> (i32, i32, i32) {
    %c0_i32 = arith.constant 0 : i32
    %c0_i32_0 = arith.constant 0 : i32
    %c0_i32_1 = arith.constant 0 : i32
    return %arg0, %c0_i32, %c0_i32_0 : i32, i32, i32
  }
  func.func @transform_6(%arg0: i32) -> (i32, i32) {
    %c0_i32 = arith.constant 0 : i32
    %c0_i32_0 = arith.constant 0 : i32
    %c0_i32_1 = arith.constant 0 : i32
    return %c0_i32, %c0_i32_0 : i32, i32
  }
  func.func @transform_7(%arg0: i32) -> (i32, i32) {
    %c0_i32 = arith.constant 0 : i32
    %c0_i32_0 = arith.constant 0 : i32
    %c0_i32_1 = arith.constant 0 : i32
    return %c0_i32, %c0_i32_0 : i32, i32
  }
  func.func @transform_8(%arg0: i32) -> (i32, i32) {
    %c0_i32 = arith.constant 0 : i32
    %c0_i32_0 = arith.constant 0 : i32
    %c0_i32_1 = arith.constant 0 : i32
    return %c0_i32, %c0_i32_0 : i32, i32
  }
  func.func @transform_9(%arg0: i32) -> (i32, i32) {
    %c0_i32 = arith.constant 0 : i32
    %c0_i32_0 = arith.constant 0 : i32
    %c0_i32_1 = arith.constant 0 : i32
    return %c0_i32, %c0_i32_0 : i32, i32
  }
  func.func @transform_10(%arg0: i32) -> (i32, i32) {
    %c0_i32 = arith.constant 0 : i32
    %c0_i32_0 = arith.constant 0 : i32
    %c0_i32_1 = arith.constant 0 : i32
    return %c0_i32, %c0_i32_0 : i32, i32
  }
  func.func @transform_11(%arg0: i32) -> (i32, i32) {
    %c0_i32 = arith.constant 0 : i32
    %c0_i32_0 = arith.constant 0 : i32
    %c0_i32_1 = arith.constant 0 : i32
    return %c0_i32, %c0_i32_0 : i32, i32
  }
  func.func @transform_12(%arg0: i32) -> (i32, i32) {
    %c0_i32 = arith.constant 0 : i32
    %c0_i32_0 = arith.constant 0 : i32
    %c0_i32_1 = arith.constant 0 : i32
    return %c0_i32, %c0_i32_0 : i32, i32
  }
  func.func @transform_13(%arg0: i32) -> (i32, i32) {
    %c0_i32 = arith.constant 0 : i32
    %c0_i32_0 = arith.constant 0 : i32
    %c0_i32_1 = arith.constant 0 : i32
    return %c0_i32, %c0_i32_0 : i32, i32
  }
  func.func @transform_14(%arg0: i32) -> (i32, i32) {
    %c0_i32 = arith.constant 0 : i32
    %c0_i32_0 = arith.constant 0 : i32
    %c0_i32_1 = arith.constant 0 : i32
    return %c0_i32, %c0_i32_0 : i32, i32
  }
  func.func @transform_15(%arg0: i32) -> (i32, i32) {
    %c0_i32 = arith.constant 0 : i32
    %c0_i32_0 = arith.constant 0 : i32
    %c0_i32_1 = arith.constant 0 : i32
    return %c0_i32, %c0_i32_0 : i32, i32
  }
  func.func @transform_16(%arg0: i32) -> (i32, i32) {
    %c0_i32 = arith.constant 0 : i32
    %c0_i32_0 = arith.constant 0 : i32
    %c0_i32_1 = arith.constant 0 : i32
    return %c0_i32, %c0_i32_0 : i32, i32
  }
  func.func @transform_17(%arg0: i32) -> (i32, i32) {
    %c0_i32 = arith.constant 0 : i32
    %c0_i32_0 = arith.constant 0 : i32
    %c0_i32_1 = arith.constant 0 : i32
    return %c0_i32, %c0_i32_0 : i32, i32
  }
  func.func @transform_18(%arg0: i32) -> (i32, i32) {
    %c0_i32 = arith.constant 0 : i32
    %c0_i32_0 = arith.constant 0 : i32
    %c0_i32_1 = arith.constant 0 : i32
    return %c0_i32, %c0_i32_0 : i32, i32
  }
  func.func @transform_19(%arg0: i32) -> (i32, i32, i32) {
    %c0_i32 = arith.constant 0 : i32
    %c0_i32_0 = arith.constant 0 : i32
    %c0_i32_1 = arith.constant 0 : i32
    return %arg0, %c0_i32, %c0_i32_0 : i32, i32, i32
  }
  func.func @transform_20(%arg0: i32) -> (i32, i32, i32) {
    %c0_i32 = arith.constant 0 : i32
    %c0_i32_0 = arith.constant 0 : i32
    %c0_i32_1 = arith.constant 0 : i32
    return %arg0, %c0_i32, %c0_i32_0 : i32, i32, i32
  }
  func.func @transform_21(%arg0: i32) -> (i32, i32, i32) {
    %c0_i32 = arith.constant 0 : i32
    %c0_i32_0 = arith.constant 0 : i32
    %c0_i32_1 = arith.constant 0 : i32
    return %arg0, %c0_i32, %c0_i32_0 : i32, i32, i32
  }
}

</mosaic_0001>

<llo_original>
// kernel: infosurgeon_forward.1
$region0: #{infosurgeon_forward.1}
  #allocation0 [shape = 'u32[]', space=smem, size = 0x4, offset = 0x4, fixed_abs, tag = 'smem constant byte address 0x4 - core index']
  #allocation1 [shape = 'u32[144,128]{1,0:T(1,128)}', space=vmem, size = 0x12000, scoped, tag = 'internal scratch']
  %s0 = inlined_call_operand.vmem [shape: f32[2,3], index: 0, kind: input, shape index: {}]
  %s1 = inlined_call_operand.hbm [shape: f32[2,3], index: 1, kind: input, shape index: {}]
  %s2 = inlined_call_operand.vmem [shape: bf16[2,8,768], index: 2, kind: input, shape index: {}]
  %s3 = inlined_call_operand.vmem [shape: bf16[2,8,768], index: 3, kind: input, shape index: {}]
  %s4 = inlined_call_operand.vmem [shape: bf16[2,8,768], index: 4, kind: input, shape index: {}]
  %s5 = inlined_call_operand.vmem [shape: bf16[2,8,2048], index: 5, kind: input, shape index: {}]
  %s6 = inlined_call_operand.vmem [shape: bf16[768,512], index: 6, kind: input, shape index: {}]
  %s7 = inlined_call_operand.hbm [shape: f32[1,512], index: 7, kind: input, shape index: {}]
  %s8 = inlined_call_operand.hbm [shape: bf16[768,512], index: 8, kind: input, shape index: {}]
  %s9 = inlined_call_operand.hbm [shape: f32[1,512], index: 9, kind: input, shape index: {}]
  %s10 = inlined_call_operand.hbm [shape: bf16[2048,512], index: 10, kind: input, shape index: {}]
  %s11 = inlined_call_operand.hbm [shape: f32[1,512], index: 11, kind: input, shape index: {}]
  %s12 = inlined_call_operand.vmem [shape: bf16[512,512], index: 12, kind: input, shape index: {}]
  %s13 = inlined_call_operand.vmem [shape: f32[3,512], index: 13, kind: input, shape index: {}]
  %s14 = inlined_call_operand.hbm [shape: f32[1,512], index: 14, kind: input, shape index: {}]
  %s15 = inlined_call_operand.vmem [shape: bf16[512,56], index: 15, kind: input, shape index: {}]
  %s16 = inlined_call_operand.hbm [shape: f32[1,56], index: 16, kind: input, shape index: {}]
  %s17 = inlined_call_operand.vmem [shape: bf16[56,2], index: 17, kind: input, shape index: {}]
  %s18 = inlined_call_operand.hbm [shape: f32[1,2], index: 18, kind: input, shape index: {}]
  %s19 = inlined_call_operand.hbm [shape: f32[2,1,2], index: 19, kind: output, shape index: {0}]
  %s20 = inlined_call_operand.hbm [shape: f32[2,4,512], index: 20, kind: output, shape index: {1}]
  %s21 = inlined_call_operand.hbm [shape: f32[2,4,512], index: 21, kind: output, shape index: {2}]
  %22 = xla_tuple %s19, %s20, %s21
  %s23 = sld [smem:[#allocation0]]
  $region165: #{infosurgeon_forward.1} parent=0
    _
  %s25 = ssub.s32 1, %s23
  %s26 = scalar_select 0, %s25, %s23
  $region1: #{infosurgeon_forward.1} parent=0
    #allocation2 [shape = 'u8[1024]{0}', space=smem, size = 0x400, scoped, tag = 'input window, operand 0, single buffered']
    #allocation3 [shape = 's32[2]{0}', space=sflag, size = 0x8, scoped, tag = 'scoped memory for infosurgeon_forward.1']
    #allocation4 [shape = 's32[2]{0}', space=sflag, size = 0x8, scoped, tag = 'scoped memory for infosurgeon_forward.1']
    #allocation5 [shape = 's32[2]{0}', space=sflag, size = 0x8, scoped, tag = 'scoped memory for infosurgeon_forward.1']
    #allocation6 [shape = 's32[2]{0}', space=sflag, size = 0x8, scoped, tag = 'scoped memory for infosurgeon_forward.1']
    #allocation7 [shape = 'u8[1024]{0}', space=smem, size = 0x400, scoped, tag = 'input window, operand 1, single buffered']
    #allocation8 [shape = 'u8[2048]{0}', space=vmem, size = 0x800, scoped, tag = 'input window, operand 7, single buffered']
    #allocation9 [shape = 'u8[786432]{0}', space=vmem, size = 0xc0000, scoped, tag = 'input window, operand 8, single buffered']
    #allocation10 [shape = 's32[1]{0}', space=sflag, size = 0x4, scoped, tag = 'scoped memory for infosurgeon_forward.1']
    #allocation11 [shape = 'u8[2048]{0}', space=vmem, size = 0x800, scoped, tag = 'input window, operand 9, single buffered']
    #allocation12 [shape = 'u8[2097152]{0}', space=vmem, size = 0x200000, scoped, tag = 'input window, operand 10, single buffered']
    #allocation13 [shape = 's32[1]{0}', space=sflag, size = 0x4, scoped, tag = 'scoped memory for infosurgeon_forward.1']
    #allocation14 [shape = 'u8[2048]{0}', space=vmem, size = 0x800, scoped, tag = 'input window, operand 11, single buffered']
    #allocation15 [shape = 'u8[2048]{0}', space=vmem, size = 0x800, scoped, tag = 'input window, operand 14, single buffered']
    #allocation16 [shape = 's32[1]{0}', space=sflag, size = 0x4, scoped, tag = 'scoped memory for infosurgeon_forward.1']
    #allocation17 [shape = 'u8[512]{0}', space=vmem, size = 0x400, scoped, tag = 'input window, operand 16, single buffered']
    #allocation18 [shape = 'u8[512]{0}', space=vmem, size = 0x400, scoped, tag = 'input window, operand 18, single buffered']
    #allocation19 [shape = 's32[1]{0}', space=sflag, size = 0x4, scoped, tag = 'scoped memory for infosurgeon_forward.1']
    #allocation20 [shape = 'u8[1024]{0}', space=vmem, size = 0x400, scoped, tag = 'output window, operand 0']
    #allocation21 [shape = 'u8[16384]{0}', space=vmem, size = 0x4000, scoped, tag = 'output window, operand 1']
    #allocation22 [shape = 's32[2]{0}', space=sflag, size = 0x8, scoped, tag = 'scoped memory for infosurgeon_forward.1']
    #allocation23 [shape = 'u8[16384]{0}', space=vmem, size = 0x4000, scoped, tag = 'output window, operand 2']
    %27 = vsyncpa [#allocation6], 0
    %28 = vsyncpa [#allocation5], 0
    %29 = vsyncpa [#allocation3], 0
    %30 = vsyncpa [#allocation10], 0
    %31 = vsyncpa [#allocation13], 0
    %32 = vsyncpa [#allocation16], 0
    %33 = vsyncpa [#allocation19], 0
    %34 = vsyncpa [#allocation4], 0
    %s35 = scalar_lea.sflag [#allocation4], 1
    %36 = vsyncpa %s35, 0
    %37 = vsyncpa [#allocation22], 0
    %s38 = scalar_lea.sflag [#allocation22], 1
    %39 = vsyncpa %s38, 0
    loop: start=0, step=1, limit=4
    $region2: #{infosurgeon_forward.1} parent=1 // loop_pre_header
      _
    $region3: #{infosurgeon_forward.1} parent=1 // loop_header
      %s41 = sphi 0, %s45
      %p42 = scmp.ge.s32.totalorder %s41, 4
      %s49 = sphi 0, %s49
      %s51 = sphi 0, %s49
      %s52 = sphi 0, %s51
      %s66 = sphi 0, %s52
      %s70 = sphi 0, %s70
      %s72 = sphi 0, %s70
      %s73 = sphi 0, %s72
      %s87 = sphi 0, %s73
      %s93 = sphi 0, %s95
      %s96 = sphi 0, %s93
      %s97 = sphi 0, %s96
      %s113 = sphi 0, %s97
      %s119 = sphi 0, %s121
      %s122 = sphi 0, %s119
      %s123 = sphi 0, %s122
      %s139 = sphi 0, %s123
      %s145 = sphi 0, %s147
      %s148 = sphi 0, %s145
      %s149 = sphi 0, %s148
      %s165 = sphi 0, %s149
      %s171 = sphi 0, %s173
      %s174 = sphi 0, %s171
      %s175 = sphi 0, %s174
      %s191 = sphi 0, %s175
      %s195 = sphi 0, %s195
      %s197 = sphi 0, %s195
      %s198 = sphi 0, %s197
      %s212 = sphi 0, %s198
      %s216 = sphi 0, %s216
      %s218 = sphi 0, %s216
      %s219 = sphi 0, %s218
      %s233 = sphi 0, %s219
      %s237 = sphi 0, %s237
      %s239 = sphi 0, %s237
      %s240 = sphi 0, %s239
      %s254 = sphi 0, %s240
      %s258 = sphi 0, %s258
      %s260 = sphi 0, %s258
      %s261 = sphi 0, %s260
      %s275 = sphi 0, %s261
      %s279 = sphi 0, %s279
      %s281 = sphi 0, %s279
      %s282 = sphi 0, %s281
      %s296 = sphi 0, %s282
      %s300 = sphi 0, %s300
      %s302 = sphi 0, %s300
      %s303 = sphi 0, %s302
      %s317 = sphi 0, %s303
      %s321 = sphi 0, %s321
      %s323 = sphi 0, %s321
      %s324 = sphi 0, %s323
      %s338 = sphi 0, %s324
      %s342 = sphi 0, %s342
      %s344 = sphi 0, %s342
      %s345 = sphi 0, %s344
      %s359 = sphi 0, %s345
      %s363 = sphi 0, %s363
      %s365 = sphi 0, %s363
      %s366 = sphi 0, %s365
      %s380 = sphi 0, %s366
      %s384 = sphi 0, %s384
      %s386 = sphi 0, %s384
      %s387 = sphi 0, %s386
      %s401 = sphi 0, %s387
      %s405 = sphi 0, %s405
      %s407 = sphi 0, %s405
      %s408 = sphi 0, %s407
      %s422 = sphi 0, %s408
      %s426 = sphi 0, %s426
      %s428 = sphi 0, %s426
      %s429 = sphi 0, %s428
      %s443 = sphi 0, %s429
      %s447 = sphi 0, %s447
      %s449 = sphi 0, %s447
      %s450 = sphi 0, %s449
      %s464 = sphi 0, %s450
      %s470 = sphi 0, %s472
      %s473 = sphi 0, %s470
      %s474 = sphi 0, %s473
      %s490 = sphi 0, %s474
      %s496 = sphi 0, %s498
      %s499 = sphi 0, %s496
      %s500 = sphi 0, %s499
      %s516 = sphi 0, %s500
      %s522 = sphi 0, %s524
      %s525 = sphi 0, %s522
      %s526 = sphi 0, %s525
      %s542 = sphi 0, %s526
    $region4: #{infosurgeon_forward.1} parent=1 // loop_header_branch
      %44 = sbr.rel (%p42) target = $region8
    $region5: #{infosurgeon_forward.1} parent=1 // loop_body
      %s46 = ssub.s32 %s41, 1
      %s47 = ssub.s32 %s41, 2
      %s48 = sadd.s32 %s41, 1
      %s50 = sadd.s32 %s49, 1
      %p53 = scmp.eq.s32.totalorder %s41, 1
      %p54 = scmp.ne.s32.totalorder %s49, %s51
      %p55 = scmp.eq.s32.totalorder %s41, 0
      %p56 = por %p54, %p55
      %p57 = scmp.ne.s32.totalorder %s49, %s51
      %p58 = scmp.eq.s32.totalorder %s46, 1
      %p59 = por %p57, %p58
      %p60 = scmp.ne.s32.totalorder %s51, %s52
      %p61 = scmp.eq.s32.totalorder %s46, 0
      %p62 = por %p60, %p61
      %p63 = scmp.ne.s32.totalorder %s51, %s52
      %p64 = scmp.eq.s32.totalorder %s47, 1
      %p65 = por %p63, %p64
      %p67 = scmp.ne.s32.totalorder %s52, %s66
      %p68 = scmp.eq.s32.totalorder %s47, 0
      %p69 = por %p67, %p68
      %s71 = sadd.s32 %s70, 1
      %p74 = scmp.eq.s32.totalorder %s41, 1
      %p75 = scmp.ne.s32.totalorder %s70, %s72
      %p76 = scmp.eq.s32.totalorder %s41, 0
      %p77 = por %p75, %p76
      %p78 = scmp.ne.s32.totalorder %s70, %s72
      %p79 = scmp.eq.s32.totalorder %s46, 1
      %p80 = por %p78, %p79
      %p81 = scmp.ne.s32.totalorder %s72, %s73
      %p82 = scmp.eq.s32.totalorder %s46, 0
      %p83 = por %p81, %p82
      %p84 = scmp.ne.s32.totalorder %s72, %s73
      %p85 = scmp.eq.s32.totalorder %s47, 1
      %p86 = por %p84, %p85
      %p88 = scmp.ne.s32.totalorder %s73, %s87
      %p89 = scmp.eq.s32.totalorder %s47, 0
      %p90 = por %p88, %p89
      %s91 = ssub.s32 %s41, %s48
      %p92 = scmp.eq.s32.totalorder %s91, 0
      %s94 = sadd.s32 %s93, 1
      %s95 = scalar_select %p92, %s93, %s94
      %p98 = pneg %p92
      %p99 = scmp.eq.s32.totalorder %s41, 1
      %p100 = por %p98, %p99
      %p101 = scmp.ne.s32.totalorder %s93, %s96
      %p102 = scmp.eq.s32.totalorder %s41, 0
      %p103 = por %p101, %p102
      %p104 = scmp.ne.s32.totalorder %s93, %s96
      %p105 = scmp.eq.s32.totalorder %s46, 1
      %p106 = por %p104, %p105
      %p107 = scmp.ne.s32.totalorder %s96, %s97
      %p108 = scmp.eq.s32.totalorder %s46, 0
      %p109 = por %p107, %p108
      %p110 = scmp.ne.s32.totalorder %s96, %s97
      %p111 = scmp.eq.s32.totalorder %s47, 1
      %p112 = por %p110, %p111
      %p114 = scmp.ne.s32.totalorder %s97, %s113
      %p115 = scmp.eq.s32.totalorder %s47, 0
      %p116 = por %p114, %p115
      %s117 = ssub.s32 %s41, %s48
      %p118 = scmp.eq.s32.totalorder %s117, 0
      %s120 = sadd.s32 %s119, 1
      %s121 = scalar_select %p118, %s119, %s120
      %p124 = pneg %p118
      %p125 = scmp.eq.s32.totalorder %s41, 1
      %p126 = por %p124, %p125
      %p127 = scmp.ne.s32.totalorder %s119, %s122
      %p128 = scmp.eq.s32.totalorder %s41, 0
      %p129 = por %p127, %p128
      %p130 = scmp.ne.s32.totalorder %s119, %s122
      %p131 = scmp.eq.s32.totalorder %s46, 1
      %p132 = por %p130, %p131
      %p133 = scmp.ne.s32.totalorder %s122, %s123
      %p134 = scmp.eq.s32.totalorder %s46, 0
      %p135 = por %p133, %p134
      %p136 = scmp.ne.s32.totalorder %s122, %s123
      %p137 = scmp.eq.s32.totalorder %s47, 1
      %p138 = por %p136, %p137
      %p140 = scmp.ne.s32.totalorder %s123, %s139
      %p141 = scmp.eq.s32.totalorder %s47, 0
      %p142 = por %p140, %p141
      %s143 = ssub.s32 %s41, %s48
      %p144 = scmp.eq.s32.totalorder %s143, 0
      %s146 = sadd.s32 %s145, 1
      %s147 = scalar_select %p144, %s145, %s146
      %p150 = pneg %p144
      %p151 = scmp.eq.s32.totalorder %s41, 1
      %p152 = por %p150, %p151
      %p153 = scmp.ne.s32.totalorder %s145, %s148
      %p154 = scmp.eq.s32.totalorder %s41, 0
      %p155 = por %p153, %p154
      %p156 = scmp.ne.s32.totalorder %s145, %s148
      %p157 = scmp.eq.s32.totalorder %s46, 1
      %p158 = por %p156, %p157
      %p159 = scmp.ne.s32.totalorder %s148, %s149
      %p160 = scmp.eq.s32.totalorder %s46, 0
      %p161 = por %p159, %p160
      %p162 = scmp.ne.s32.totalorder %s148, %s149
      %p163 = scmp.eq.s32.totalorder %s47, 1
      %p164 = por %p162, %p163
      %p166 = scmp.ne.s32.totalorder %s149, %s165
      %p167 = scmp.eq.s32.totalorder %s47, 0
      %p168 = por %p166, %p167
      %s169 = ssub.s32 %s41, %s48
      %p170 = scmp.eq.s32.totalorder %s169, 0
      %s172 = sadd.s32 %s171, 1
      %s173 = scalar_select %p170, %s171, %s172
      %p176 = pneg %p170
      %p177 = scmp.eq.s32.totalorder %s41, 1
      %p178 = por %p176, %p177
      %p179 = scmp.ne.s32.totalorder %s171, %s174
      %p180 = scmp.eq.s32.totalorder %s41, 0
      %p181 = por %p179, %p180
      %p182 = scmp.ne.s32.totalorder %s171, %s174
      %p183 = scmp.eq.s32.totalorder %s46, 1
      %p184 = por %p182, %p183
      %p185 = scmp.ne.s32.totalorder %s174, %s175
      %p186 = scmp.eq.s32.totalorder %s46, 0
      %p187 = por %p185, %p186
      %p188 = scmp.ne.s32.totalorder %s174, %s175
      %p189 = scmp.eq.s32.totalorder %s47, 1
      %p190 = por %p188, %p189
      %p192 = scmp.ne.s32.totalorder %s175, %s191
      %p193 = scmp.eq.s32.totalorder %s47, 0
      %p194 = por %p192, %p193
      %s196 = sadd.s32 %s195, 1
      %p199 = scmp.eq.s32.totalorder %s41, 1
      %p200 = scmp.ne.s32.totalorder %s195, %s197
      %p201 = scmp.eq.s32.totalorder %s41, 0
      %p202 = por %p200, %p201
      %p203 = scmp.ne.s32.totalorder %s195, %s197
      %p204 = scmp.eq.s32.totalorder %s46, 1
      %p205 = por %p203, %p204
      %p206 = scmp.ne.s32.totalorder %s197, %s198
      %p207 = scmp.eq.s32.totalorder %s46, 0
      %p208 = por %p206, %p207
      %p209 = scmp.ne.s32.totalorder %s197, %s198
      %p210 = scmp.eq.s32.totalorder %s47, 1
      %p211 = por %p209, %p210
      %p213 = scmp.ne.s32.totalorder %s198, %s212
      %p214 = scmp.eq.s32.totalorder %s47, 0
      %p215 = por %p213, %p214
      %s217 = sadd.s32 %s216, 1
      %p220 = scmp.eq.s32.totalorder %s41, 1
      %p221 = scmp.ne.s32.totalorder %s216, %s218
      %p222 = scmp.eq.s32.totalorder %s41, 0
      %p223 = por %p221, %p222
      %p224 = scmp.ne.s32.totalorder %s216, %s218
      %p225 = scmp.eq.s32.totalorder %s46, 1
      %p226 = por %p224, %p225
      %p227 = scmp.ne.s32.totalorder %s218, %s219
      %p228 = scmp.eq.s32.totalorder %s46, 0
      %p229 = por %p227, %p228
      %p230 = scmp.ne.s32.totalorder %s218, %s219
      %p231 = scmp.eq.s32.totalorder %s47, 1
      %p232 = por %p230, %p231
      %p234 = scmp.ne.s32.totalorder %s219, %s233
      %p235 = scmp.eq.s32.totalorder %s47, 0
      %p236 = por %p234, %p235
      %s238 = sadd.s32 %s237, 1
      %p241 = scmp.eq.s32.totalorder %s41, 1
      %p242 = scmp.ne.s32.totalorder %s237, %s239
      %p243 = scmp.eq.s32.totalorder %s41, 0
      %p244 = por %p242, %p243
      %p245 = scmp.ne.s32.totalorder %s237, %s239
      %p246 = scmp.eq.s32.totalorder %s46, 1
      %p247 = por %p245, %p246
      %p248 = scmp.ne.s32.totalorder %s239, %s240
      %p249 = scmp.eq.s32.totalorder %s46, 0
      %p250 = por %p248, %p249
      %p251 = scmp.ne.s32.totalorder %s239, %s240
      %p252 = scmp.eq.s32.totalorder %s47, 1
      %p253 = por %p251, %p252
      %p255 = scmp.ne.s32.totalorder %s240, %s254
      %p256 = scmp.eq.s32.totalorder %s47, 0
      %p257 = por %p255, %p256
      %s259 = sadd.s32 %s258, 1
      %p262 = scmp.eq.s32.totalorder %s41, 1
      %p263 = scmp.ne.s32.totalorder %s258, %s260
      %p264 = scmp.eq.s32.totalorder %s41, 0
      %p265 = por %p263, %p264
      %p266 = scmp.ne.s32.totalorder %s258, %s260
      %p267 = scmp.eq.s32.totalorder %s46, 1
      %p268 = por %p266, %p267
      %p269 = scmp.ne.s32.totalorder %s260, %s261
      %p270 = scmp.eq.s32.totalorder %s46, 0
      %p271 = por %p269, %p270
      %p272 = scmp.ne.s32.totalorder %s260, %s261
      %p273 = scmp.eq.s32.totalorder %s47, 1
      %p274 = por %p272, %p273
      %p276 = scmp.ne.s32.totalorder %s261, %s275
      %p277 = scmp.eq.s32.totalorder %s47, 0
      %p278 = por %p276, %p277
      %s280 = sadd.s32 %s279, 1
      %p283 = scmp.eq.s32.totalorder %s41, 1
      %p284 = scmp.ne.s32.totalorder %s279, %s281
      %p285 = scmp.eq.s32.totalorder %s41, 0
      %p286 = por %p284, %p285
      %p287 = scmp.ne.s32.totalorder %s279, %s281
      %p288 = scmp.eq.s32.totalorder %s46, 1
      %p289 = por %p287, %p288
      %p290 = scmp.ne.s32.totalorder %s281, %s282
      %p291 = scmp.eq.s32.totalorder %s46, 0
      %p292 = por %p290, %p291
      %p293 = scmp.ne.s32.totalorder %s281, %s282
      %p294 = scmp.eq.s32.totalorder %s47, 1
      %p295 = por %p293, %p294
      %p297 = scmp.ne.s32.totalorder %s282, %s296
      %p298 = scmp.eq.s32.totalorder %s47, 0
      %p299 = por %p297, %p298
      %s301 = sadd.s32 %s300, 1
      %p304 = scmp.eq.s32.totalorder %s41, 1
      %p305 = scmp.ne.s32.totalorder %s300, %s302
      %p306 = scmp.eq.s32.totalorder %s41, 0
      %p307 = por %p305, %p306
      %p308 = scmp.ne.s32.totalorder %s300, %s302
      %p309 = scmp.eq.s32.totalorder %s46, 1
      %p310 = por %p308, %p309
      %p311 = scmp.ne.s32.totalorder %s302, %s303
      %p312 = scmp.eq.s32.totalorder %s46, 0
      %p313 = por %p311, %p312
      %p314 = scmp.ne.s32.totalorder %s302, %s303
      %p315 = scmp.eq.s32.totalorder %s47, 1
      %p316 = por %p314, %p315
      %p318 = scmp.ne.s32.totalorder %s303, %s317
      %p319 = scmp.eq.s32.totalorder %s47, 0
      %p320 = por %p318, %p319
      %s322 = sadd.s32 %s321, 1
      %p325 = scmp.eq.s32.totalorder %s41, 1
      %p326 = scmp.ne.s32.totalorder %s321, %s323
      %p327 = scmp.eq.s32.totalorder %s41, 0
      %p328 = por %p326, %p327
      %p329 = scmp.ne.s32.totalorder %s321, %s323
      %p330 = scmp.eq.s32.totalorder %s46, 1
      %p331 = por %p329, %p330
      %p332 = scmp.ne.s32.totalorder %s323, %s324
      %p333 = scmp.eq.s32.totalorder %s46, 0
      %p334 = por %p332, %p333
      %p335 = scmp.ne.s32.totalorder %s323, %s324
      %p336 = scmp.eq.s32.totalorder %s47, 1
      %p337 = por %p335, %p336
      %p339 = scmp.ne.s32.totalorder %s324, %s338
      %p340 = scmp.eq.s32.totalorder %s47, 0
      %p341 = por %p339, %p340
      %s343 = sadd.s32 %s342, 1
      %p346 = scmp.eq.s32.totalorder %s41, 1
      %p347 = scmp.ne.s32.totalorder %s342, %s344
      %p348 = scmp.eq.s32.totalorder %s41, 0
      %p349 = por %p347, %p348
      %p350 = scmp.ne.s32.totalorder %s342, %s344
      %p351 = scmp.eq.s32.totalorder %s46, 1
      %p352 = por %p350, %p351
      %p353 = scmp.ne.s32.totalorder %s344, %s345
      %p354 = scmp.eq.s32.totalorder %s46, 0
      %p355 = por %p353, %p354
      %p356 = scmp.ne.s32.totalorder %s344, %s345
      %p357 = scmp.eq.s32.totalorder %s47, 1
      %p358 = por %p356, %p357
      %p360 = scmp.ne.s32.totalorder %s345, %s359
      %p361 = scmp.eq.s32.totalorder %s47, 0
      %p362 = por %p360, %p361
      %s364 = sadd.s32 %s363, 1
      %p367 = scmp.eq.s32.totalorder %s41, 1
      %p368 = scmp.ne.s32.totalorder %s363, %s365
      %p369 = scmp.eq.s32.totalorder %s41, 0
      %p370 = por %p368, %p369
      %p371 = scmp.ne.s32.totalorder %s363, %s365
      %p372 = scmp.eq.s32.totalorder %s46, 1
      %p373 = por %p371, %p372
      %p374 = scmp.ne.s32.totalorder %s365, %s366
      %p375 = scmp.eq.s32.totalorder %s46, 0
      %p376 = por %p374, %p375
      %p377 = scmp.ne.s32.totalorder %s365, %s366
      %p378 = scmp.eq.s32.totalorder %s47, 1
      %p379 = por %p377, %p378
      %p381 = scmp.ne.s32.totalorder %s366, %s380
      %p382 = scmp.eq.s32.totalorder %s47, 0
      %p383 = por %p381, %p382
      %s385 = sadd.s32 %s384, 1
      %p388 = scmp.eq.s32.totalorder %s41, 1
      %p389 = scmp.ne.s32.totalorder %s384, %s386
      %p390 = scmp.eq.s32.totalorder %s41, 0
      %p391 = por %p389, %p390
      %p392 = scmp.ne.s32.totalorder %s384, %s386
      %p393 = scmp.eq.s32.totalorder %s46, 1
      %p394 = por %p392, %p393
      %p395 = scmp.ne.s32.totalorder %s386, %s387
      %p396 = scmp.eq.s32.totalorder %s46, 0
      %p397 = por %p395, %p396
      %p398 = scmp.ne.s32.totalorder %s386, %s387
      %p399 = scmp.eq.s32.totalorder %s47, 1
      %p400 = por %p398, %p399
      %p402 = scmp.ne.s32.totalorder %s387, %s401
      %p403 = scmp.eq.s32.totalorder %s47, 0
      %p404 = por %p402, %p403
      %s406 = sadd.s32 %s405, 1
      %p409 = scmp.eq.s32.totalorder %s41, 1
      %p410 = scmp.ne.s32.totalorder %s405, %s407
      %p411 = scmp.eq.s32.totalorder %s41, 0
      %p412 = por %p410, %p411
      %p413 = scmp.ne.s32.totalorder %s405, %s407
      %p414 = scmp.eq.s32.totalorder %s46, 1
      %p415 = por %p413, %p414
      %p416 = scmp.ne.s32.totalorder %s407, %s408
      %p417 = scmp.eq.s32.totalorder %s46, 0
      %p418 = por %p416, %p417
      %p419 = scmp.ne.s32.totalorder %s407, %s408
      %p420 = scmp.eq.s32.totalorder %s47, 1
      %p421 = por %p419, %p420
      %p423 = scmp.ne.s32.totalorder %s408, %s422
      %p424 = scmp.eq.s32.totalorder %s47, 0
      %p425 = por %p423, %p424
      %s427 = sadd.s32 %s426, 1
      %p430 = scmp.eq.s32.totalorder %s41, 1
      %p431 = scmp.ne.s32.totalorder %s426, %s428
      %p432 = scmp.eq.s32.totalorder %s41, 0
      %p433 = por %p431, %p432
      %p434 = scmp.ne.s32.totalorder %s426, %s428
      %p435 = scmp.eq.s32.totalorder %s46, 1
      %p436 = por %p434, %p435
      %p437 = scmp.ne.s32.totalorder %s428, %s429
      %p438 = scmp.eq.s32.totalorder %s46, 0
      %p439 = por %p437, %p438
      %p440 = scmp.ne.s32.totalorder %s428, %s429
      %p441 = scmp.eq.s32.totalorder %s47, 1
      %p442 = por %p440, %p441
      %p444 = scmp.ne.s32.totalorder %s429, %s443
      %p445 = scmp.eq.s32.totalorder %s47, 0
      %p446 = por %p444, %p445
      %s448 = sadd.s32 %s447, 1
      %p451 = scmp.eq.s32.totalorder %s41, 1
      %p452 = scmp.ne.s32.totalorder %s447, %s449
      %p453 = scmp.eq.s32.totalorder %s41, 0
      %p454 = por %p452, %p453
      %p455 = scmp.ne.s32.totalorder %s447, %s449
      %p456 = scmp.eq.s32.totalorder %s46, 1
      %p457 = por %p455, %p456
      %p458 = scmp.ne.s32.totalorder %s449, %s450
      %p459 = scmp.eq.s32.totalorder %s46, 0
      %p460 = por %p458, %p459
      %p461 = scmp.ne.s32.totalorder %s449, %s450
      %p462 = scmp.eq.s32.totalorder %s47, 1
      %p463 = por %p461, %p462
      %p465 = scmp.ne.s32.totalorder %s450, %s464
      %p466 = scmp.eq.s32.totalorder %s47, 0
      %p467 = por %p465, %p466
      %s468 = ssub.s32 %s41, %s48
      %p469 = scmp.eq.s32.totalorder %s468, 0
      %s471 = sadd.s32 %s470, 1
      %s472 = scalar_select %p469, %s470, %s471
      %p475 = pneg %p469
      %p476 = scmp.eq.s32.totalorder %s41, 1
      %p477 = por %p475, %p476
      %p478 = scmp.ne.s32.totalorder %s470, %s473
      %p479 = scmp.eq.s32.totalorder %s41, 0
      %p480 = por %p478, %p479
      %p481 = scmp.ne.s32.totalorder %s470, %s473
      %p482 = scmp.eq.s32.totalorder %s46, 1
      %p483 = por %p481, %p482
      %p484 = scmp.ne.s32.totalorder %s473, %s474
      %p485 = scmp.eq.s32.totalorder %s46, 0
      %p486 = por %p484, %p485
      %p487 = scmp.ne.s32.totalorder %s473, %s474
      %p488 = scmp.eq.s32.totalorder %s47, 1
      %p489 = por %p487, %p488
      %p491 = scmp.ne.s32.totalorder %s474, %s490
      %p492 = scmp.eq.s32.totalorder %s47, 0
      %p493 = por %p491, %p492
      %s494 = ssub.s32 %s41, %s48
      %p495 = scmp.eq.s32.totalorder %s494, 0
      %s497 = sadd.s32 %s496, 1
      %s498 = scalar_select %p495, %s496, %s497
      %p501 = pneg %p495
      %p502 = scmp.eq.s32.totalorder %s41, 1
      %p503 = por %p501, %p502
      %p504 = scmp.ne.s32.totalorder %s496, %s499
      %p505 = scmp.eq.s32.totalorder %s41, 0
      %p506 = por %p504, %p505
      %p507 = scmp.ne.s32.totalorder %s496, %s499
      %p508 = scmp.eq.s32.totalorder %s46, 1
      %p509 = por %p507, %p508
      %p510 = scmp.ne.s32.totalorder %s499, %s500
      %p511 = scmp.eq.s32.totalorder %s46, 0
      %p512 = por %p510, %p511
      %p513 = scmp.ne.s32.totalorder %s499, %s500
      %p514 = scmp.eq.s32.totalorder %s47, 1
      %p515 = por %p513, %p514
      %p517 = scmp.ne.s32.totalorder %s500, %s516
      %p518 = scmp.eq.s32.totalorder %s47, 0
      %p519 = por %p517, %p518
      %s520 = ssub.s32 %s41, %s48
      %p521 = scmp.eq.s32.totalorder %s520, 0
      %s523 = sadd.s32 %s522, 1
      %s524 = scalar_select %p521, %s522, %s523
      %p527 = pneg %p521
      %p528 = scmp.eq.s32.totalorder %s41, 1
      %p529 = por %p527, %p528
      %p530 = scmp.ne.s32.totalorder %s522, %s525
      %p531 = scmp.eq.s32.totalorder %s41, 0
      %p532 = por %p530, %p531
      %p533 = scmp.ne.s32.totalorder %s522, %s525
      %p534 = scmp.eq.s32.totalorder %s46, 1
      %p535 = por %p533, %p534
      %p536 = scmp.ne.s32.totalorder %s525, %s526
      %p537 = scmp.eq.s32.totalorder %s46, 0
      %p538 = por %p536, %p537
      %p539 = scmp.ne.s32.totalorder %s525, %s526
      %p540 = scmp.eq.s32.totalorder %s47, 1
      %p541 = por %p539, %p540
      %p543 = scmp.ne.s32.totalorder %s526, %s542
      %p544 = scmp.eq.s32.totalorder %s47, 0
      %p545 = por %p543, %p544
      %p546 = scmp.le.s32.totalorder 1, %s41
      %p547 = scmp.lt.s32.totalorder %s41, 3
      %p548 = pnand %p546, %p547
      %p549 = pneg %p548
      // Predicated region
      $region9: #{infosurgeon_forward.1} parent=5 // pred_check
        _
      $region10: #{infosurgeon_forward.1} parent=5 // pred_check_branch
        %551 = sbr.rel (%p548) target = $region12
      $region11: #{infosurgeon_forward.1} parent=5 // pred_region
        %s552 = ssub.s32 %s41, 1
        // Predicated region
        $region13: #{infosurgeon_forward.1} parent=11 // pred_check
          %p553 = pneg %p62
        $region14: #{infosurgeon_forward.1} parent=11 // pred_check_branch
          %555 = sbr.rel (%p553) target = $region16
        $region15: #{infosurgeon_forward.1} parent=11 // pred_region
          %s557 = ssub.s32 32, 32
          %558 = vsyncadd [#allocation6], %s557
          %s560 = sshll.u32 %s0, 4
          %s561 = int_to_ptr.vmem [resolvable:$true] %s560
          %563 = dma.vmem_to_smem %s561, 32, [#allocation2], [#allocation6]
        $region16: #{infosurgeon_forward.1} parent=11 // pred_fallthru
          _
        // Predicated region
        $region17: #{infosurgeon_forward.1} parent=11 // pred_check
          %p564 = pneg %p83
        $region18: #{infosurgeon_forward.1} parent=11 // pred_check_branch
          %566 = sbr.rel (%p564) target = $region20
        $region19: #{infosurgeon_forward.1} parent=11 // pred_region
          %s568 = ssub.s32 32, 32
          %569 = vsyncadd [#allocation5], %s568
          %572 = dma.hbm_to_smem %s1, 32, [#allocation7], [#allocation5]
        $region20: #{infosurgeon_forward.1} parent=11 // pred_fallthru
          _
        // Predicated region
        $region21: #{infosurgeon_forward.1} parent=11 // pred_check
          %p573 = pneg %p208
        $region22: #{infosurgeon_forward.1} parent=11 // pred_check_branch
          %575 = sbr.rel (%p573) target = $region24
        $region23: #{infosurgeon_forward.1} parent=11 // pred_region
          _
        $region24: #{infosurgeon_forward.1} parent=11 // pred_fallthru
          _
        // Predicated region
        $region25: #{infosurgeon_forward.1} parent=11 // pred_check
          %p576 = pneg %p229
        $region26: #{infosurgeon_forward.1} parent=11 // pred_check_branch
          %578 = sbr.rel (%p576) target = $region28
        $region27: #{infosurgeon_forward.1} parent=11 // pred_region
          %s580 = ssub.s32 64, 64
          %581 = vsyncadd [#allocation3], %s580
          %s583 = sshll.u32 [#allocation8], 4
          %s584 = int_to_ptr.vmem [resolvable:$true] %s583
          %586 = dma.hbm_to_vmem [thread:$0]  %s7, 64, %s584, [#allocation3]
        $region28: #{infosurgeon_forward.1} parent=11 // pred_fallthru
          _
        // Predicated region
        $region29: #{infosurgeon_forward.1} parent=11 // pred_check
          %p587 = pneg %p250
        $region30: #{infosurgeon_forward.1} parent=11 // pred_check_branch
          %589 = sbr.rel (%p587) target = $region32
        $region31: #{infosurgeon_forward.1} parent=11 // pred_region
          %s591 = ssub.s32 24576, 24576
          %592 = vsyncadd [#allocation10], %s591
          %s593 = sshll.u32 [#allocation9], 4
          %s594 = int_to_ptr.vmem [resolvable:$true] %s593
          %599 = dma.hbm_to_vmem [thread:$0]  %s8, 24576, %s594, [#allocation10], 256, 256, 16
        $region32: #{infosurgeon_forward.1} parent=11 // pred_fallthru
          _
        // Predicated region
        $region33: #{infosurgeon_forward.1} parent=11 // pred_check
          %p600 = pneg %p271
        $region34: #{infosurgeon_forward.1} parent=11 // pred_check_branch
          %602 = sbr.rel (%p600) target = $region36
        $region35: #{infosurgeon_forward.1} parent=11 // pred_region
          %s604 = ssub.s32 64, 64
          %605 = vsyncadd [#allocation10], %s604
          %s607 = sshll.u32 [#allocation11], 4
          %s608 = int_to_ptr.vmem [resolvable:$true] %s607
          %610 = dma.hbm_to_vmem [thread:$0]  %s9, 64, %s608, [#allocation10]
        $region36: #{infosurgeon_forward.1} parent=11 // pred_fallthru
          _
        // Predicated region
        $region37: #{infosurgeon_forward.1} parent=11 // pred_check
          %p611 = pneg %p292
        $region38: #{infosurgeon_forward.1} parent=11 // pred_check_branch
          %613 = sbr.rel (%p611) target = $region40
        $region39: #{infosurgeon_forward.1} parent=11 // pred_region
          %s615 = ssub.s32 65536, 65536
          %616 = vsyncadd [#allocation13], %s615
          %s617 = sshll.u32 [#allocation12], 4
          %s618 = int_to_ptr.vmem [resolvable:$true] %s617
          %623 = dma.hbm_to_vmem [thread:$0]  %s10, 65536, %s618, [#allocation13], 256, 256, 16
        $region40: #{infosurgeon_forward.1} parent=11 // pred_fallthru
          _
        // Predicated region
        $region41: #{infosurgeon_forward.1} parent=11 // pred_check
          %p624 = pneg %p313
        $region42: #{infosurgeon_forward.1} parent=11 // pred_check_branch
          %626 = sbr.rel (%p624) target = $region44
        $region43: #{infosurgeon_forward.1} parent=11 // pred_region
          %s628 = ssub.s32 64, 64
          %629 = vsyncadd [#allocation13], %s628
          %s631 = sshll.u32 [#allocation14], 4
          %s632 = int_to_ptr.vmem [resolvable:$true] %s631
          %634 = dma.hbm_to_vmem [thread:$0]  %s11, 64, %s632, [#allocation13]
        $region44: #{infosurgeon_forward.1} parent=11 // pred_fallthru
          _
        // Predicated region
        $region45: #{infosurgeon_forward.1} parent=11 // pred_check
          %p635 = pneg %p334
        $region46: #{infosurgeon_forward.1} parent=11 // pred_check_branch
          %637 = sbr.rel (%p635) target = $region48
        $region47: #{infosurgeon_forward.1} parent=11 // pred_region
          _
        $region48: #{infosurgeon_forward.1} parent=11 // pred_fallthru
          _
        // Predicated region
        $region49: #{infosurgeon_forward.1} parent=11 // pred_check
          %p638 = pneg %p355
        $region50: #{infosurgeon_forward.1} parent=11 // pred_check_branch
          %640 = sbr.rel (%p638) target = $region52
        $region51: #{infosurgeon_forward.1} parent=11 // pred_region
          _
        $region52: #{infosurgeon_forward.1} parent=11 // pred_fallthru
          _
        // Predicated region
        $region53: #{infosurgeon_forward.1} parent=11 // pred_check
          %p641 = pneg %p376
        $region54: #{infosurgeon_forward.1} parent=11 // pred_check_branch
          %643 = sbr.rel (%p641) target = $region56
        $region55: #{infosurgeon_forward.1} parent=11 // pred_region
          %s645 = ssub.s32 64, 64
          %646 = vsyncadd [#allocation16], %s645
          %s648 = sshll.u32 [#allocation15], 4
          %s649 = int_to_ptr.vmem [resolvable:$true] %s648
          %651 = dma.hbm_to_vmem [thread:$0]  %s14, 64, %s649, [#allocation16]
        $region56: #{infosurgeon_forward.1} parent=11 // pred_fallthru
          _
        // Predicated region
        $region57: #{infosurgeon_forward.1} parent=11 // pred_check
          %p652 = pneg %p397
        $region58: #{infosurgeon_forward.1} parent=11 // pred_check_branch
          %654 = sbr.rel (%p652) target = $region60
        $region59: #{infosurgeon_forward.1} parent=11 // pred_region
          _
        $region60: #{infosurgeon_forward.1} parent=11 // pred_fallthru
          _
        // Predicated region
        $region61: #{infosurgeon_forward.1} parent=11 // pred_check
          %p655 = pneg %p418
        $region62: #{infosurgeon_forward.1} parent=11 // pred_check_branch
          %657 = sbr.rel (%p655) target = $region64
        $region63: #{infosurgeon_forward.1} parent=11 // pred_region
          %s659 = ssub.s32 16, 16
          %660 = vsyncadd [#allocation16], %s659
          %s662 = sshll.u32 [#allocation17], 4
          %s663 = int_to_ptr.vmem [resolvable:$true] %s662
          %665 = dma.hbm_to_vmem [thread:$0]  %s16, 16, %s663, [#allocation16]
        $region64: #{infosurgeon_forward.1} parent=11 // pred_fallthru
          _
        // Predicated region
        $region65: #{infosurgeon_forward.1} parent=11 // pred_check
          %p666 = pneg %p439
        $region66: #{infosurgeon_forward.1} parent=11 // pred_check_branch
          %668 = sbr.rel (%p666) target = $region68
        $region67: #{infosurgeon_forward.1} parent=11 // pred_region
          _
        $region68: #{infosurgeon_forward.1} parent=11 // pred_fallthru
          _
        // Predicated region
        $region69: #{infosurgeon_forward.1} parent=11 // pred_check
          %p669 = pneg %p460
        $region70: #{infosurgeon_forward.1} parent=11 // pred_check_branch
          %671 = sbr.rel (%p669) target = $region72
        $region71: #{infosurgeon_forward.1} parent=11 // pred_region
          %s673 = ssub.s32 16, 16
          %674 = vsyncadd [#allocation19], %s673
          %s676 = sshll.u32 [#allocation18], 4
          %s677 = int_to_ptr.vmem [resolvable:$true] %s676
          %679 = dma.hbm_to_vmem [thread:$0]  %s18, 16, %s677, [#allocation19]
        $region72: #{infosurgeon_forward.1} parent=11 // pred_fallthru
          _
      $region12: #{infosurgeon_forward.1} parent=5 // pred_fallthru
        _
      %p680 = scmp.lt.s32.totalorder %s41, 2
      // Predicated region
      $region73: #{infosurgeon_forward.1} parent=5 // pred_check
        %p681 = pneg %p680
      $region74: #{infosurgeon_forward.1} parent=5 // pred_check_branch
        %683 = sbr.rel (%p681) target = $region76
      $region75: #{infosurgeon_forward.1} parent=5 // pred_region
        // Predicated region
        $region77: #{infosurgeon_forward.1} parent=75 // pred_check
          %p684 = pneg %p103
        $region78: #{infosurgeon_forward.1} parent=75 // pred_check_branch
          %686 = sbr.rel (%p684) target = $region80
        $region79: #{infosurgeon_forward.1} parent=75 // pred_region
          %p687 = scmp.lt.s32.totalorder %s41, 1
          %s688 = scalar_select %p687, %s41, 1
          %s689 = smul.addr %s688, 6
          %s690 = smul.addr %s689, 4
          %s691 = scalar_lea.vmem %s2, %s690
        $region80: #{infosurgeon_forward.1} parent=75 // pred_fallthru
          _
        // Predicated region
        $region81: #{infosurgeon_forward.1} parent=75 // pred_check
          %p692 = pneg %p129
        $region82: #{infosurgeon_forward.1} parent=75 // pred_check_branch
          %694 = sbr.rel (%p692) target = $region84
        $region83: #{infosurgeon_forward.1} parent=75 // pred_region
          %p695 = scmp.lt.s32.totalorder %s41, 1
          %s696 = scalar_select %p695, %s41, 1
          %s697 = smul.addr %s696, 6
          %s698 = smul.addr %s697, 4
          %s699 = scalar_lea.vmem %s3, %s698
        $region84: #{infosurgeon_forward.1} parent=75 // pred_fallthru
          _
        // Predicated region
        $region85: #{infosurgeon_forward.1} parent=75 // pred_check
          %p700 = pneg %p155
        $region86: #{infosurgeon_forward.1} parent=75 // pred_check_branch
          %702 = sbr.rel (%p700) target = $region88
        $region87: #{infosurgeon_forward.1} parent=75 // pred_region
          %p703 = scmp.lt.s32.totalorder %s41, 1
          %s704 = scalar_select %p703, %s41, 1
          %s705 = smul.addr %s704, 6
          %s706 = smul.addr %s705, 4
          %s707 = scalar_lea.vmem %s4, %s706
        $region88: #{infosurgeon_forward.1} parent=75 // pred_fallthru
          _
        // Predicated region
        $region89: #{infosurgeon_forward.1} parent=75 // pred_check
          %p708 = pneg %p181
        $region90: #{infosurgeon_forward.1} parent=75 // pred_check_branch
          %710 = sbr.rel (%p708) target = $region92
        $region91: #{infosurgeon_forward.1} parent=75 // pred_region
          %p711 = scmp.lt.s32.totalorder %s41, 1
          %s712 = scalar_select %p711, %s41, 1
          %s713 = smul.addr %s712, 16
          %s714 = smul.addr %s713, 4
          %s715 = scalar_lea.vmem %s5, %s714
        $region92: #{infosurgeon_forward.1} parent=75 // pred_fallthru
          _
      $region76: #{infosurgeon_forward.1} parent=5 // pred_fallthru
        _
      %p716 = scmp.le.s32.totalorder 1, %s41
      %p717 = scmp.lt.s32.totalorder %s41, 3
      %p718 = pnand %p716, %p717
      %p719 = pneg %p718
      // Predicated region
      $region93: #{infosurgeon_forward.1} parent=5 // pred_check
        _
      $region94: #{infosurgeon_forward.1} parent=5 // pred_check_branch
        %721 = sbr.rel (%p718) target = $region96
      $region95: #{infosurgeon_forward.1} parent=5 // pred_region
        %s722 = ssub.s32 %s41, 1
        // Predicated region
        $region97: #{infosurgeon_forward.1} parent=95 // pred_check
          %p723 = pneg %p62
        $region98: #{infosurgeon_forward.1} parent=95 // pred_check_branch
          %725 = sbr.rel (%p723) target = $region100
        $region99: #{infosurgeon_forward.1} parent=95 // pred_region
          %726 = dma.done [#allocation6], 32
        $region100: #{infosurgeon_forward.1} parent=95 // pred_fallthru
          _
        // Predicated region
        $region101: #{infosurgeon_forward.1} parent=95 // pred_check
          %p727 = pneg %p83
        $region102: #{infosurgeon_forward.1} parent=95 // pred_check_branch
          %729 = sbr.rel (%p727) target = $region104
        $region103: #{infosurgeon_forward.1} parent=95 // pred_region
          %730 = dma.done [#allocation5], 32
        $region104: #{infosurgeon_forward.1} parent=95 // pred_fallthru
          _
        // Predicated region
        $region105: #{infosurgeon_forward.1} parent=95 // pred_check
          %p731 = pneg %p229
        $region106: #{infosurgeon_forward.1} parent=95 // pred_check_branch
          %733 = sbr.rel (%p731) target = $region108
        $region107: #{infosurgeon_forward.1} parent=95 // pred_region
          %734 = dma.done [#allocation3], 64
        $region108: #{infosurgeon_forward.1} parent=95 // pred_fallthru
          _
        // Predicated region
        $region109: #{infosurgeon_forward.1} parent=95 // pred_check
          %p735 = pneg %p250
        $region110: #{infosurgeon_forward.1} parent=95 // pred_check_branch
          %737 = sbr.rel (%p735) target = $region112
        $region111: #{infosurgeon_forward.1} parent=95 // pred_region
          %738 = dma.done [#allocation10], 24576
        $region112: #{infosurgeon_forward.1} parent=95 // pred_fallthru
          _
        // Predicated region
        $region113: #{infosurgeon_forward.1} parent=95 // pred_check
          %p739 = pneg %p271
        $region114: #{infosurgeon_forward.1} parent=95 // pred_check_branch
          %741 = sbr.rel (%p739) target = $region116
        $region115: #{infosurgeon_forward.1} parent=95 // pred_region
          %742 = dma.done [#allocation10], 64
        $region116: #{infosurgeon_forward.1} parent=95 // pred_fallthru
          _
        // Predicated region
        $region117: #{infosurgeon_forward.1} parent=95 // pred_check
          %p743 = pneg %p292
        $region118: #{infosurgeon_forward.1} parent=95 // pred_check_branch
          %745 = sbr.rel (%p743) target = $region120
        $region119: #{infosurgeon_forward.1} parent=95 // pred_region
          %746 = dma.done [#allocation13], 65536
        $region120: #{infosurgeon_forward.1} parent=95 // pred_fallthru
          _
        // Predicated region
        $region121: #{infosurgeon_forward.1} parent=95 // pred_check
          %p747 = pneg %p313
        $region122: #{infosurgeon_forward.1} parent=95 // pred_check_branch
          %749 = sbr.rel (%p747) target = $region124
        $region123: #{infosurgeon_forward.1} parent=95 // pred_region
          %750 = dma.done [#allocation13], 64
        $region124: #{infosurgeon_forward.1} parent=95 // pred_fallthru
          _
        // Predicated region
        $region125: #{infosurgeon_forward.1} parent=95 // pred_check
          %p751 = pneg %p376
        $region126: #{infosurgeon_forward.1} parent=95 // pred_check_branch
          %753 = sbr.rel (%p751) target = $region128
        $region127: #{infosurgeon_forward.1} parent=95 // pred_region
          %754 = dma.done [#allocation16], 64
        $region128: #{infosurgeon_forward.1} parent=95 // pred_fallthru
          _
        // Predicated region
        $region129: #{infosurgeon_forward.1} parent=95 // pred_check
          %p755 = pneg %p418
        $region130: #{infosurgeon_forward.1} parent=95 // pred_check_branch
          %757 = sbr.rel (%p755) target = $region132
        $region131: #{infosurgeon_forward.1} parent=95 // pred_region
          %758 = dma.done [#allocation16], 16
        $region132: #{infosurgeon_forward.1} parent=95 // pred_fallthru
          _
        // Predicated region
        $region133: #{infosurgeon_forward.1} parent=95 // pred_check
          %p759 = pneg %p460
        $region134: #{infosurgeon_forward.1} parent=95 // pred_check_branch
          %761 = sbr.rel (%p759) target = $region136
        $region135: #{infosurgeon_forward.1} parent=95 // pred_region
          %762 = dma.done [#allocation19], 16
        $region136: #{infosurgeon_forward.1} parent=95 // pred_fallthru
          _
        %763 = sfence
        %p764 = pneg %p62
        %p765 = pneg %p59
        %p766 = pneg %p83
        %p767 = pneg %p80
        %p768 = scmp.lt.s32.totalorder %s46, 1
        %s769 = scalar_select %p768, %s46, 1
        %s770 = smul.addr %s769, 6
        %s771 = smul.addr %s770, 4
        %s772 = scalar_lea.vmem %s2, %s771
        %p773 = pneg %p109
        %p774 = pneg %p106
        %p775 = scmp.lt.s32.totalorder %s46, 1
        %s776 = scalar_select %p775, %s46, 1
        %s777 = smul.addr %s776, 6
        %s778 = smul.addr %s777, 4
        %s779 = scalar_lea.vmem %s3, %s778
        %p780 = pneg %p135
        %p781 = pneg %p132
        %p782 = scmp.lt.s32.totalorder %s46, 1
        %s783 = scalar_select %p782, %s46, 1
        %s784 = smul.addr %s783, 6
        %s785 = smul.addr %s784, 4
        %s786 = scalar_lea.vmem %s4, %s785
        %p787 = pneg %p161
        %p788 = pneg %p158
        %p789 = scmp.lt.s32.totalorder %s46, 1
        %s790 = scalar_select %p789, %s46, 1
        %s791 = smul.addr %s790, 16
        %s792 = smul.addr %s791, 4
        %s793 = scalar_lea.vmem %s5, %s792
        %p794 = pneg %p187
        %p795 = pneg %p184
        %p796 = pneg %p208
        %p797 = pneg %p205
        %p798 = pneg %p229
        %p799 = pneg %p226
        %p800 = pneg %p250
        %p801 = pneg %p247
        %p802 = pneg %p271
        %p803 = pneg %p268
        %p804 = pneg %p292
        %p805 = pneg %p289
        %p806 = pneg %p313
        %p807 = pneg %p310
        %p808 = pneg %p334
        %p809 = pneg %p331
        %p810 = pneg %p355
        %p811 = pneg %p352
        %p812 = pneg %p376
        %p813 = pneg %p373
        %p814 = pneg %p397
        %p815 = pneg %p394
        %p816 = pneg %p418
        %p817 = pneg %p415
        %p818 = pneg %p439
        %p819 = pneg %p436
        %p820 = pneg %p460
        %p821 = pneg %p457
        %p822 = pneg %p486
        %p823 = pneg %p483
        %s824 = sand.u32 %s473, 1
        %s825 = scalar_lea.sflag [#allocation4], %s824
        %s826 = sand.u32 %s473, 1
        %s827 = scalar_lea.vmem [#allocation20], %s826
        %p828 = pneg %p512
        %p829 = pneg %p509
        %s830 = sand.u32 %s46, 1
        %s831 = scalar_lea.sflag [#allocation22], %s830
        %s832 = sand.u32 %s499, 1
        %s833 = smul.addr %s832, 16
        %s834 = scalar_lea.vmem [#allocation21], %s833
        %p835 = pneg %p538
        %p836 = pneg %p535
        %s837 = sand.u32 %s46, 1
        %s838 = scalar_lea.sflag [#allocation22], %s837
        %s839 = sand.u32 %s525, 1
        %s840 = smul.addr %s839, 16
        %s841 = scalar_lea.vmem [#allocation23], %s840
        %p842 = scmp.lt.s32.totalorder %s46, 1
        %s843 = scalar_select %p842, %s46, 1
        %s844 = smul.addr %s843, 6
        %s845 = smul.addr %s844, 4
        %s846 = scalar_lea.vmem %s2, %s845
        %p847 = scmp.lt.s32.totalorder %s46, 1
        %s848 = scalar_select %p847, %s46, 1
        %s849 = smul.addr %s848, 6
        %s850 = smul.addr %s849, 4
        %s851 = scalar_lea.vmem %s3, %s850
        %p852 = scmp.lt.s32.totalorder %s46, 1
        %s853 = scalar_select %p852, %s46, 1
        %s854 = smul.addr %s853, 6
        %s855 = smul.addr %s854, 4
        %s856 = scalar_lea.vmem %s4, %s855
        %p857 = scmp.lt.s32.totalorder %s46, 1
        %s858 = scalar_select %p857, %s46, 1
        %s859 = smul.addr %s858, 16
        %s860 = smul.addr %s859, 4
        %s861 = scalar_lea.vmem %s5, %s860
        %v863 = vld [vmem:[%s846] sm:$0xff]
        %v864 = vld [vmem:[%s846 + $0x8] sm:$0xff]
        %v865 = vld [vmem:[%s846 + $0x10] sm:$0xff]
        %v866 = vld [vmem:[%s6] sm:$0xff]
        %v867 = vld [vmem:[%s6 + $0x8] sm:$0xff]
        %v868 = vld [vmem:[%s6 + $0x10] sm:$0xff]
        %v869 = vld [vmem:[%s6 + $0x18] sm:$0xff]
        %v870 = vld [vmem:[%s6 + $0x20] sm:$0xff]
        %v871 = vld [vmem:[%s6 + $0x28] sm:$0xff]
        %v872 = vld [vmem:[%s6 + $0x30] sm:$0xff]
        %v873 = vld [vmem:[%s6 + $0x38] sm:$0xff]
        %v874 = vld [vmem:[%s6 + $0x40] sm:$0xff]
        %v875 = vld [vmem:[%s6 + $0x48] sm:$0xff]
        %v876 = vld [vmem:[%s6 + $0x50] sm:$0xff]
        %v877 = vld [vmem:[%s6 + $0x58] sm:$0xff]
        %v878 = vld [vmem:[%s6 + $0x60] sm:$0xff]
        %v879 = vld [vmem:[%s6 + $0x68] sm:$0xff]
        %v880 = vld [vmem:[%s6 + $0x70] sm:$0xff]
        %v881 = vld [vmem:[%s6 + $0x78] sm:$0xff]
        %v882 = vld [vmem:[%s6 + $0x80] sm:$0xff]
        %v883 = vld [vmem:[%s6 + $0x88] sm:$0xff]
        %v884 = vld [vmem:[%s6 + $0x90] sm:$0xff]
        %v885 = vld [vmem:[%s6 + $0x98] sm:$0xff]
        %v886 = vld [vmem:[%s6 + $0xa0] sm:$0xff]
        %v887 = vld [vmem:[%s6 + $0xa8] sm:$0xff]
        %v888 = vld [vmem:[%s6 + $0xb0] sm:$0xff]
        %v889 = vld [vmem:[%s6 + $0xb8] sm:$0xff]
        %v890 = vld [vmem:[%s6 + $0xc0] sm:$0xff]
        %v891 = vld [vmem:[%s6 + $0xc8] sm:$0xff]
        %v892 = vld [vmem:[%s6 + $0xd0] sm:$0xff]
        %v893 = vld [vmem:[%s6 + $0xd8] sm:$0xff]
        %v894 = vld [vmem:[%s6 + $0xe0] sm:$0xff]
        %v895 = vld [vmem:[%s6 + $0xe8] sm:$0xff]
        %v896 = vld [vmem:[%s6 + $0xf0] sm:$0xff]
        %v897 = vld [vmem:[%s6 + $0xf8] sm:$0xff]
        %v898 = vld [vmem:[%s6 + $0x100] sm:$0xff]
        %v899 = vld [vmem:[%s6 + $0x108] sm:$0xff]
        %v900 = vld [vmem:[%s6 + $0x110] sm:$0xff]
        %v901 = vld [vmem:[%s6 + $0x118] sm:$0xff]
        %v902 = vld [vmem:[%s6 + $0x120] sm:$0xff]
        %v903 = vld [vmem:[%s6 + $0x128] sm:$0xff]
        %v904 = vld [vmem:[%s6 + $0x130] sm:$0xff]
        %v905 = vld [vmem:[%s6 + $0x138] sm:$0xff]
        %v906 = vld [vmem:[%s6 + $0x140] sm:$0xff]
        %v907 = vld [vmem:[%s6 + $0x148] sm:$0xff]
        %v908 = vld [vmem:[%s6 + $0x150] sm:$0xff]
        %v909 = vld [vmem:[%s6 + $0x158] sm:$0xff]
        %v910 = vld [vmem:[%s6 + $0x160] sm:$0xff]
        %v911 = vld [vmem:[%s6 + $0x168] sm:$0xff]
        %v912 = vld [vmem:[%s6 + $0x170] sm:$0xff]
        %v913 = vld [vmem:[%s6 + $0x178] sm:$0xff]
        %v914 = vld [vmem:[%s6 + $0x180] sm:$0xff]
        %v915 = vld [vmem:[%s6 + $0x188] sm:$0xff]
        %v916 = vld [vmem:[%s6 + $0x190] sm:$0xff]
        %v917 = vld [vmem:[%s6 + $0x198] sm:$0xff]
        %v918 = vld [vmem:[%s6 + $0x1a0] sm:$0xff]
        %v919 = vld [vmem:[%s6 + $0x1a8] sm:$0xff]
        %v920 = vld [vmem:[%s6 + $0x1b0] sm:$0xff]
        %v921 = vld [vmem:[%s6 + $0x1b8] sm:$0xff]
        %v922 = vld [vmem:[%s6 + $0x1c0] sm:$0xff]
        %v923 = vld [vmem:[%s6 + $0x1c8] sm:$0xff]
        %v924 = vld [vmem:[%s6 + $0x1d0] sm:$0xff]
        %v925 = vld [vmem:[%s6 + $0x1d8] sm:$0xff]
        %v926 = vld [vmem:[%s6 + $0x1e0] sm:$0xff]
        %v927 = vld [vmem:[%s6 + $0x1e8] sm:$0xff]
        %v928 = vld [vmem:[%s6 + $0x1f0] sm:$0xff]
        %v929 = vld [vmem:[%s6 + $0x1f8] sm:$0xff]
        %v930 = vld [vmem:[%s6 + $0x200] sm:$0xff]
        %v931 = vld [vmem:[%s6 + $0x208] sm:$0xff]
        %v932 = vld [vmem:[%s6 + $0x210] sm:$0xff]
        %v933 = vld [vmem:[%s6 + $0x218] sm:$0xff]
        %v934 = vld [vmem:[%s6 + $0x220] sm:$0xff]
        %v935 = vld [vmem:[%s6 + $0x228] sm:$0xff]
        %v936 = vld [vmem:[%s6 + $0x230] sm:$0xff]
        %v937 = vld [vmem:[%s6 + $0x238] sm:$0xff]
        %v938 = vld [vmem:[%s6 + $0x240] sm:$0xff]
        %v939 = vld [vmem:[%s6 + $0x248] sm:$0xff]
        %v940 = vld [vmem:[%s6 + $0x250] sm:$0xff]
        %v941 = vld [vmem:[%s6 + $0x258] sm:$0xff]
        %v942 = vld [vmem:[%s6 + $0x260] sm:$0xff]
        %v943 = vld [vmem:[%s6 + $0x268] sm:$0xff]
        %v944 = vld [vmem:[%s6 + $0x270] sm:$0xff]
        %v945 = vld [vmem:[%s6 + $0x278] sm:$0xff]
        %v946 = vld [vmem:[%s6 + $0x280] sm:$0xff]
        %v947 = vld [vmem:[%s6 + $0x288] sm:$0xff]
        %v948 = vld [vmem:[%s6 + $0x290] sm:$0xff]
        %v949 = vld [vmem:[%s6 + $0x298] sm:$0xff]
        %v950 = vld [vmem:[%s6 + $0x2a0] sm:$0xff]
        %v951 = vld [vmem:[%s6 + $0x2a8] sm:$0xff]
        %v952 = vld [vmem:[%s6 + $0x2b0] sm:$0xff]
        %v953 = vld [vmem:[%s6 + $0x2b8] sm:$0xff]
        %v954 = vld [vmem:[%s6 + $0x2c0] sm:$0xff]
        %v955 = vld [vmem:[%s6 + $0x2c8] sm:$0xff]
        %v956 = vld [vmem:[%s6 + $0x2d0] sm:$0xff]
        %v957 = vld [vmem:[%s6 + $0x2d8] sm:$0xff]
        %v958 = vld [vmem:[%s6 + $0x2e0] sm:$0xff]
        %v959 = vld [vmem:[%s6 + $0x2e8] sm:$0xff]
        %v960 = vld [vmem:[%s6 + $0x2f0] sm:$0xff]
        %v961 = vld [vmem:[%s6 + $0x2f8] sm:$0xff]
        %v962 = vld [vmem:[%s6 + $0x300] sm:$0xff]
        %v963 = vld [vmem:[%s6 + $0x308] sm:$0xff]
        %v964 = vld [vmem:[%s6 + $0x310] sm:$0xff]
        %v965 = vld [vmem:[%s6 + $0x318] sm:$0xff]
        %v966 = vld [vmem:[%s6 + $0x320] sm:$0xff]
        %v967 = vld [vmem:[%s6 + $0x328] sm:$0xff]
        %v968 = vld [vmem:[%s6 + $0x330] sm:$0xff]
        %v969 = vld [vmem:[%s6 + $0x338] sm:$0xff]
        %v970 = vld [vmem:[%s6 + $0x340] sm:$0xff]
        %v971 = vld [vmem:[%s6 + $0x348] sm:$0xff]
        %v972 = vld [vmem:[%s6 + $0x350] sm:$0xff]
        %v973 = vld [vmem:[%s6 + $0x358] sm:$0xff]
        %v974 = vld [vmem:[%s6 + $0x360] sm:$0xff]
        %v975 = vld [vmem:[%s6 + $0x368] sm:$0xff]
        %v976 = vld [vmem:[%s6 + $0x370] sm:$0xff]
        %v977 = vld [vmem:[%s6 + $0x378] sm:$0xff]
        %v978 = vld [vmem:[%s6 + $0x380] sm:$0xff]
        %v979 = vld [vmem:[%s6 + $0x388] sm:$0xff]
        %v980 = vld [vmem:[%s6 + $0x390] sm:$0xff]
        %v981 = vld [vmem:[%s6 + $0x398] sm:$0xff]
        %v982 = vld [vmem:[%s6 + $0x3a0] sm:$0xff]
        %v983 = vld [vmem:[%s6 + $0x3a8] sm:$0xff]
        %v984 = vld [vmem:[%s6 + $0x3b0] sm:$0xff]
        %v985 = vld [vmem:[%s6 + $0x3b8] sm:$0xff]
        %v986 = vld [vmem:[%s6 + $0x3c0] sm:$0xff]
        %v987 = vld [vmem:[%s6 + $0x3c8] sm:$0xff]
        %v988 = vld [vmem:[%s6 + $0x3d0] sm:$0xff]
        %v989 = vld [vmem:[%s6 + $0x3d8] sm:$0xff]
        %v990 = vld [vmem:[%s6 + $0x3e0] sm:$0xff]
        %v991 = vld [vmem:[%s6 + $0x3e8] sm:$0xff]
        %v992 = vld [vmem:[%s6 + $0x3f0] sm:$0xff]
        %v993 = vld [vmem:[%s6 + $0x3f8] sm:$0xff]
        %v994 = vld [vmem:[%s6 + $0x400] sm:$0xff]
        %v995 = vld [vmem:[%s6 + $0x408] sm:$0xff]
        %v996 = vld [vmem:[%s6 + $0x410] sm:$0xff]
        %v997 = vld [vmem:[%s6 + $0x418] sm:$0xff]
        %v998 = vld [vmem:[%s6 + $0x420] sm:$0xff]
        %v999 = vld [vmem:[%s6 + $0x428] sm:$0xff]
        %v1000 = vld [vmem:[%s6 + $0x430] sm:$0xff]
        %v1001 = vld [vmem:[%s6 + $0x438] sm:$0xff]
        %v1002 = vld [vmem:[%s6 + $0x440] sm:$0xff]
        %v1003 = vld [vmem:[%s6 + $0x448] sm:$0xff]
        %v1004 = vld [vmem:[%s6 + $0x450] sm:$0xff]
        %v1005 = vld [vmem:[%s6 + $0x458] sm:$0xff]
        %v1006 = vld [vmem:[%s6 + $0x460] sm:$0xff]
        %v1007 = vld [vmem:[%s6 + $0x468] sm:$0xff]
        %v1008 = vld [vmem:[%s6 + $0x470] sm:$0xff]
        %v1009 = vld [vmem:[%s6 + $0x478] sm:$0xff]
        %v1010 = vld [vmem:[%s6 + $0x480] sm:$0xff]
        %v1011 = vld [vmem:[%s6 + $0x488] sm:$0xff]
        %v1012 = vld [vmem:[%s6 + $0x490] sm:$0xff]
        %v1013 = vld [vmem:[%s6 + $0x498] sm:$0xff]
        %v1014 = vld [vmem:[%s6 + $0x4a0] sm:$0xff]
        %v1015 = vld [vmem:[%s6 + $0x4a8] sm:$0xff]
        %v1016 = vld [vmem:[%s6 + $0x4b0] sm:$0xff]
        %v1017 = vld [vmem:[%s6 + $0x4b8] sm:$0xff]
        %v1018 = vld [vmem:[%s6 + $0x4c0] sm:$0xff]
        %v1019 = vld [vmem:[%s6 + $0x4c8] sm:$0xff]
        %v1020 = vld [vmem:[%s6 + $0x4d0] sm:$0xff]
        %v1021 = vld [vmem:[%s6 + $0x4d8] sm:$0xff]
        %v1022 = vld [vmem:[%s6 + $0x4e0] sm:$0xff]
        %v1023 = vld [vmem:[%s6 + $0x4e8] sm:$0xff]
        %v1024 = vld [vmem:[%s6 + $0x4f0] sm:$0xff]
        %v1025 = vld [vmem:[%s6 + $0x4f8] sm:$0xff]
        %v1026 = vld [vmem:[%s6 + $0x500] sm:$0xff]
        %v1027 = vld [vmem:[%s6 + $0x508] sm:$0xff]
        %v1028 = vld [vmem:[%s6 + $0x510] sm:$0xff]
        %v1029 = vld [vmem:[%s6 + $0x518] sm:$0xff]
        %v1030 = vld [vmem:[%s6 + $0x520] sm:$0xff]
        %v1031 = vld [vmem:[%s6 + $0x528] sm:$0xff]
        %v1032 = vld [vmem:[%s6 + $0x530] sm:$0xff]
        %v1033 = vld [vmem:[%s6 + $0x538] sm:$0xff]
        %v1034 = vld [vmem:[%s6 + $0x540] sm:$0xff]
        %v1035 = vld [vmem:[%s6 + $0x548] sm:$0xff]
        %v1036 = vld [vmem:[%s6 + $0x550] sm:$0xff]
        %v1037 = vld [vmem:[%s6 + $0x558] sm:$0xff]
        %v1038 = vld [vmem:[%s6 + $0x560] sm:$0xff]
        %v1039 = vld [vmem:[%s6 + $0x568] sm:$0xff]
        %v1040 = vld [vmem:[%s6 + $0x570] sm:$0xff]
        %v1041 = vld [vmem:[%s6 + $0x578] sm:$0xff]
        %v1042 = vld [vmem:[%s6 + $0x580] sm:$0xff]
        %v1043 = vld [vmem:[%s6 + $0x588] sm:$0xff]
        %v1044 = vld [vmem:[%s6 + $0x590] sm:$0xff]
        %v1045 = vld [vmem:[%s6 + $0x598] sm:$0xff]
        %v1046 = vld [vmem:[%s6 + $0x5a0] sm:$0xff]
        %v1047 = vld [vmem:[%s6 + $0x5a8] sm:$0xff]
        %v1048 = vld [vmem:[%s6 + $0x5b0] sm:$0xff]
        %v1049 = vld [vmem:[%s6 + $0x5b8] sm:$0xff]
        %v1050 = vld [vmem:[%s6 + $0x5c0] sm:$0xff]
        %v1051 = vld [vmem:[%s6 + $0x5c8] sm:$0xff]
        %v1052 = vld [vmem:[%s6 + $0x5d0] sm:$0xff]
        %v1053 = vld [vmem:[%s6 + $0x5d8] sm:$0xff]
        %v1054 = vld [vmem:[%s6 + $0x5e0] sm:$0xff]
        %v1055 = vld [vmem:[%s6 + $0x5e8] sm:$0xff]
        %v1056 = vld [vmem:[%s6 + $0x5f0] sm:$0xff]
        %v1057 = vld [vmem:[%s6 + $0x5f8] sm:$0xff]
        %v1058 = vld [vmem:[#allocation8] sm:$0xf]
        %v1060 = vlaneseq
        %v1061 = vshrl.u32 %v1060, 7
        %v1062 = vsub.s32 0, %v1061
        %v1063 = vrot.slane %v1058, %v1062
        %v1064 = vlaneseq
        %v1065 = vshrl.u32 %v1064, 7
        %v1066 = vsub.s32 1, %v1065
        %v1067 = vrot.slane %v1058, %v1066
        %v1068 = vlaneseq
        %v1069 = vshrl.u32 %v1068, 7
        %v1070 = vsub.s32 2, %v1069
        %v1071 = vrot.slane %v1058, %v1070
        %v1072 = vlaneseq
        %v1073 = vshrl.u32 %v1072, 7
        %v1074 = vsub.s32 3, %v1073
        %v1075 = vrot.slane %v1058, %v1074
        %v1083 = vunpack.c.l.b16 %v863
        %v1084 = vunpack.c.h.b16 %v863
        %v1085 = vunpack.c.l.b16 %v864
        %v1086 = vunpack.c.h.b16 %v864
        %v1087 = vunpack.c.l.b16 %v865
        %v1088 = vunpack.c.h.b16 %v865
        %v1089 = vpack.c.b16 %v1083, %v1083
        %v1090 = vpack.c.b16 %v1084, %v1084
        %v1091 = vpack.c.b16 %v1085, %v1085
        %v1092 = vpack.c.b16 %v1086, %v1086
        %v1093 = vpack.c.b16 %v1087, %v1087
        %v1094 = vpack.c.b16 %v1088, %v1088
        %v1293 = vunpack.c.l.b16 %v866
        %v1294 = vunpack.c.h.b16 %v866
        %v1295 = vunpack.c.l.b16 %v867
        %v1296 = vunpack.c.h.b16 %v867
        %v1297 = vunpack.c.l.b16 %v868
        %v1298 = vunpack.c.h.b16 %v868
        %v1299 = vunpack.c.l.b16 %v869
        %v1300 = vunpack.c.h.b16 %v869
        %v1301 = vunpack.c.l.b16 %v870
        %v1302 = vunpack.c.h.b16 %v870
        %v1303 = vunpack.c.l.b16 %v871
        %v1304 = vunpack.c.h.b16 %v871
        %v1305 = vunpack.c.l.b16 %v872
        %v1306 = vunpack.c.h.b16 %v872
        %v1307 = vunpack.c.l.b16 %v873
        %v1308 = vunpack.c.h.b16 %v873
        %v1309 = vunpack.c.l.b16 %v874
        %v1310 = vunpack.c.h.b16 %v874
        %v1311 = vunpack.c.l.b16 %v875
        %v1312 = vunpack.c.h.b16 %v875
        %v1313 = vunpack.c.l.b16 %v876
        %v1314 = vunpack.c.h.b16 %v876
        %v1315 = vunpack.c.l.b16 %v877
        %v1316 = vunpack.c.h.b16 %v877
        %v1317 = vunpack.c.l.b16 %v878
        %v1318 = vunpack.c.h.b16 %v878
        %v1319 = vunpack.c.l.b16 %v879
        %v1320 = vunpack.c.h.b16 %v879
        %v1321 = vunpack.c.l.b16 %v880
        %v1322 = vunpack.c.h.b16 %v880
        %v1323 = vunpack.c.l.b16 %v881
        %v1324 = vunpack.c.h.b16 %v881
        %v1325 = vunpack.c.l.b16 %v882
        %v1326 = vunpack.c.h.b16 %v882
        %v1327 = vunpack.c.l.b16 %v883
        %v1328 = vunpack.c.h.b16 %v883
        %v1329 = vunpack.c.l.b16 %v884
        %v1330 = vunpack.c.h.b16 %v884
        %v1331 = vunpack.c.l.b16 %v885
        %v1332 = vunpack.c.h.b16 %v885
        %v1333 = vunpack.c.l.b16 %v886
        %v1334 = vunpack.c.h.b16 %v886
        %v1335 = vunpack.c.l.b16 %v887
        %v1336 = vunpack.c.h.b16 %v887
        %v1337 = vunpack.c.l.b16 %v888
        %v1338 = vunpack.c.h.b16 %v888
        %v1339 = vunpack.c.l.b16 %v889
        %v1340 = vunpack.c.h.b16 %v889
        %v1341 = vunpack.c.l.b16 %v890
        %v1342 = vunpack.c.h.b16 %v890
        %v1343 = vunpack.c.l.b16 %v891
        %v1344 = vunpack.c.h.b16 %v891
        %v1345 = vunpack.c.l.b16 %v892
        %v1346 = vunpack.c.h.b16 %v892
        %v1347 = vunpack.c.l.b16 %v893
        %v1348 = vunpack.c.h.b16 %v893
        %v1349 = vunpack.c.l.b16 %v894
        %v1350 = vunpack.c.h.b16 %v894
        %v1351 = vunpack.c.l.b16 %v895
        %v1352 = vunpack.c.h.b16 %v895
        %v1353 = vunpack.c.l.b16 %v896
        %v1354 = vunpack.c.h.b16 %v896
        %v1355 = vunpack.c.l.b16 %v897
        %v1356 = vunpack.c.h.b16 %v897
        %v1357 = vunpack.c.l.b16 %v898
        %v1358 = vunpack.c.h.b16 %v898
        %v1359 = vunpack.c.l.b16 %v899
        %v1360 = vunpack.c.h.b16 %v899
        %v1361 = vunpack.c.l.b16 %v900
        %v1362 = vunpack.c.h.b16 %v900
        %v1363 = vunpack.c.l.b16 %v901
        %v1364 = vunpack.c.h.b16 %v901
        %v1365 = vunpack.c.l.b16 %v902
        %v1366 = vunpack.c.h.b16 %v902
        %v1367 = vunpack.c.l.b16 %v903
        %v1368 = vunpack.c.h.b16 %v903
        %v1369 = vunpack.c.l.b16 %v904
        %v1370 = vunpack.c.h.b16 %v904
        %v1371 = vunpack.c.l.b16 %v905
        %v1372 = vunpack.c.h.b16 %v905
        %v1373 = vunpack.c.l.b16 %v906
        %v1374 = vunpack.c.h.b16 %v906
        %v1375 = vunpack.c.l.b16 %v907
        %v1376 = vunpack.c.h.b16 %v907
        %v1377 = vunpack.c.l.b16 %v908
        %v1378 = vunpack.c.h.b16 %v908
        %v1379 = vunpack.c.l.b16 %v909
        %v1380 = vunpack.c.h.b16 %v909
        %v1381 = vunpack.c.l.b16 %v910
        %v1382 = vunpack.c.h.b16 %v910
        %v1383 = vunpack.c.l.b16 %v911
        %v1384 = vunpack.c.h.b16 %v911
        %v1385 = vunpack.c.l.b16 %v912
        %v1386 = vunpack.c.h.b16 %v912
        %v1387 = vunpack.c.l.b16 %v913
        %v1388 = vunpack.c.h.b16 %v913
        %v1389 = vunpack.c.l.b16 %v914
        %v1390 = vunpack.c.h.b16 %v914
        %v1391 = vunpack.c.l.b16 %v915
        %v1392 = vunpack.c.h.b16 %v915
        %v1393 = vunpack.c.l.b16 %v916
        %v1394 = vunpack.c.h.b16 %v916
        %v1395 = vunpack.c.l.b16 %v917
        %v1396 = vunpack.c.h.b16 %v917
        %v1397 = vunpack.c.l.b16 %v918
        %v1398 = vunpack.c.h.b16 %v918
        %v1399 = vunpack.c.l.b16 %v919
        %v1400 = vunpack.c.h.b16 %v919
        %v1401 = vunpack.c.l.b16 %v920
        %v1402 = vunpack.c.h.b16 %v920
        %v1403 = vunpack.c.l.b16 %v921
        %v1404 = vunpack.c.h.b16 %v921
        %v1405 = vunpack.c.l.b16 %v922
        %v1406 = vunpack.c.h.b16 %v922
        %v1407 = vunpack.c.l.b16 %v923
        %v1408 = vunpack.c.h.b16 %v923
        %v1409 = vunpack.c.l.b16 %v924
        %v1410 = vunpack.c.h.b16 %v924
        %v1411 = vunpack.c.l.b16 %v925
        %v1412 = vunpack.c.h.b16 %v925
        %v1413 = vunpack.c.l.b16 %v926
        %v1414 = vunpack.c.h.b16 %v926
        %v1415 = vunpack.c.l.b16 %v927
        %v1416 = vunpack.c.h.b16 %v927
        %v1417 = vunpack.c.l.b16 %v928
        %v1418 = vunpack.c.h.b16 %v928
        %v1419 = vunpack.c.l.b16 %v929
        %v1420 = vunpack.c.h.b16 %v929
        %v1421 = vunpack.c.l.b16 %v930
        %v1422 = vunpack.c.h.b16 %v930
        %v1423 = vunpack.c.l.b16 %v931
        %v1424 = vunpack.c.h.b16 %v931
        %v1425 = vunpack.c.l.b16 %v932
        %v1426 = vunpack.c.h.b16 %v932
        %v1427 = vunpack.c.l.b16 %v933
        %v1428 = vunpack.c.h.b16 %v933
        %v1429 = vunpack.c.l.b16 %v934
        %v1430 = vunpack.c.h.b16 %v934
        %v1431 = vunpack.c.l.b16 %v935
        %v1432 = vunpack.c.h.b16 %v935
        %v1433 = vunpack.c.l.b16 %v936
        %v1434 = vunpack.c.h.b16 %v936
        %v1435 = vunpack.c.l.b16 %v937
        %v1436 = vunpack.c.h.b16 %v937
        %v1437 = vunpack.c.l.b16 %v938
        %v1438 = vunpack.c.h.b16 %v938
        %v1439 = vunpack.c.l.b16 %v939
        %v1440 = vunpack.c.h.b16 %v939
        %v1441 = vunpack.c.l.b16 %v940
        %v1442 = vunpack.c.h.b16 %v940
        %v1443 = vunpack.c.l.b16 %v941
        %v1444 = vunpack.c.h.b16 %v941
        %v1445 = vunpack.c.l.b16 %v942
        %v1446 = vunpack.c.h.b16 %v942
        %v1447 = vunpack.c.l.b16 %v943
        %v1448 = vunpack.c.h.b16 %v943
        %v1449 = vunpack.c.l.b16 %v944
        %v1450 = vunpack.c.h.b16 %v944
        %v1451 = vunpack.c.l.b16 %v945
        %v1452 = vunpack.c.h.b16 %v945
        %v1453 = vunpack.c.l.b16 %v946
        %v1454 = vunpack.c.h.b16 %v946
        %v1455 = vunpack.c.l.b16 %v947
        %v1456 = vunpack.c.h.b16 %v947
        %v1457 = vunpack.c.l.b16 %v948
        %v1458 = vunpack.c.h.b16 %v948
        %v1459 = vunpack.c.l.b16 %v949
        %v1460 = vunpack.c.h.b16 %v949
        %v1461 = vunpack.c.l.b16 %v950
        %v1462 = vunpack.c.h.b16 %v950
        %v1463 = vunpack.c.l.b16 %v951
        %v1464 = vunpack.c.h.b16 %v951
        %v1465 = vunpack.c.l.b16 %v952
        %v1466 = vunpack.c.h.b16 %v952
        %v1467 = vunpack.c.l.b16 %v953
        %v1468 = vunpack.c.h.b16 %v953
        %v1469 = vunpack.c.l.b16 %v954
        %v1470 = vunpack.c.h.b16 %v954
        %v1471 = vunpack.c.l.b16 %v955
        %v1472 = vunpack.c.h.b16 %v955
        %v1473 = vunpack.c.l.b16 %v956
        %v1474 = vunpack.c.h.b16 %v956
        %v1475 = vunpack.c.l.b16 %v957
        %v1476 = vunpack.c.h.b16 %v957
        %v1477 = vunpack.c.l.b16 %v958
        %v1478 = vunpack.c.h.b16 %v958
        %v1479 = vunpack.c.l.b16 %v959
        %v1480 = vunpack.c.h.b16 %v959
        %v1481 = vunpack.c.l.b16 %v960
        %v1482 = vunpack.c.h.b16 %v960
        %v1483 = vunpack.c.l.b16 %v961
        %v1484 = vunpack.c.h.b16 %v961
        %v1485 = vunpack.c.l.b16 %v962
        %v1486 = vunpack.c.h.b16 %v962
        %v1487 = vunpack.c.l.b16 %v963
        %v1488 = vunpack.c.h.b16 %v963
        %v1489 = vunpack.c.l.b16 %v964
        %v1490 = vunpack.c.h.b16 %v964
        %v1491 = vunpack.c.l.b16 %v965
        %v1492 = vunpack.c.h.b16 %v965
        %v1493 = vunpack.c.l.b16 %v966
        %v1494 = vunpack.c.h.b16 %v966
        %v1495 = vunpack.c.l.b16 %v967
        %v1496 = vunpack.c.h.b16 %v967
        %v1497 = vunpack.c.l.b16 %v968
        %v1498 = vunpack.c.h.b16 %v968
        %v1499 = vunpack.c.l.b16 %v969
        %v1500 = vunpack.c.h.b16 %v969
        %v1501 = vunpack.c.l.b16 %v970
        %v1502 = vunpack.c.h.b16 %v970
        %v1503 = vunpack.c.l.b16 %v971
        %v1504 = vunpack.c.h.b16 %v971
        %v1505 = vunpack.c.l.b16 %v972
        %v1506 = vunpack.c.h.b16 %v972
        %v1507 = vunpack.c.l.b16 %v973
        %v1508 = vunpack.c.h.b16 %v973
        %v1509 = vunpack.c.l.b16 %v974
        %v1510 = vunpack.c.h.b16 %v974
        %v1511 = vunpack.c.l.b16 %v975
        %v1512 = vunpack.c.h.b16 %v975
        %v1513 = vunpack.c.l.b16 %v976
        %v1514 = vunpack.c.h.b16 %v976
        %v1515 = vunpack.c.l.b16 %v977
        %v1516 = vunpack.c.h.b16 %v977
        %v1517 = vunpack.c.l.b16 %v978
        %v1518 = vunpack.c.h.b16 %v978
        %v1519 = vunpack.c.l.b16 %v979
        %v1520 = vunpack.c.h.b16 %v979
        %v1521 = vunpack.c.l.b16 %v980
        %v1522 = vunpack.c.h.b16 %v980
        %v1523 = vunpack.c.l.b16 %v981
        %v1524 = vunpack.c.h.b16 %v981
        %v1525 = vunpack.c.l.b16 %v982
        %v1526 = vunpack.c.h.b16 %v982
        %v1527 = vunpack.c.l.b16 %v983
        %v1528 = vunpack.c.h.b16 %v983
        %v1529 = vunpack.c.l.b16 %v984
        %v1530 = vunpack.c.h.b16 %v984
        %v1531 = vunpack.c.l.b16 %v985
        %v1532 = vunpack.c.h.b16 %v985
        %v1533 = vunpack.c.l.b16 %v986
        %v1534 = vunpack.c.h.b16 %v986
        %v1535 = vunpack.c.l.b16 %v987
        %v1536 = vunpack.c.h.b16 %v987
        %v1537 = vunpack.c.l.b16 %v988
        %v1538 = vunpack.c.h.b16 %v988
        %v1539 = vunpack.c.l.b16 %v989
        %v1540 = vunpack.c.h.b16 %v989
        %v1541 = vunpack.c.l.b16 %v990
        %v1542 = vunpack.c.h.b16 %v990
        %v1543 = vunpack.c.l.b16 %v991
        %v1544 = vunpack.c.h.b16 %v991
        %v1545 = vunpack.c.l.b16 %v992
        %v1546 = vunpack.c.h.b16 %v992
        %v1547 = vunpack.c.l.b16 %v993
        %v1548 = vunpack.c.h.b16 %v993
        %v1549 = vunpack.c.l.b16 %v994
        %v1550 = vunpack.c.h.b16 %v994
        %v1551 = vunpack.c.l.b16 %v995
        %v1552 = vunpack.c.h.b16 %v995
        %v1553 = vunpack.c.l.b16 %v996
        %v1554 = vunpack.c.h.b16 %v996
        %v1555 = vunpack.c.l.b16 %v997
        %v1556 = vunpack.c.h.b16 %v997
        %v1557 = vunpack.c.l.b16 %v998
        %v1558 = vunpack.c.h.b16 %v998
        %v1559 = vunpack.c.l.b16 %v999
        %v1560 = vunpack.c.h.b16 %v999
        %v1561 = vunpack.c.l.b16 %v1000
        %v1562 = vunpack.c.h.b16 %v1000
        %v1563 = vunpack.c.l.b16 %v1001
        %v1564 = vunpack.c.h.b16 %v1001
        %v1565 = vunpack.c.l.b16 %v1002
        %v1566 = vunpack.c.h.b16 %v1002
        %v1567 = vunpack.c.l.b16 %v1003
        %v1568 = vunpack.c.h.b16 %v1003
        %v1569 = vunpack.c.l.b16 %v1004
        %v1570 = vunpack.c.h.b16 %v1004
        %v1571 = vunpack.c.l.b16 %v1005
        %v1572 = vunpack.c.h.b16 %v1005
        %v1573 = vunpack.c.l.b16 %v1006
        %v1574 = vunpack.c.h.b16 %v1006
        %v1575 = vunpack.c.l.b16 %v1007
        %v1576 = vunpack.c.h.b16 %v1007
        %v1577 = vunpack.c.l.b16 %v1008
        %v1578 = vunpack.c.h.b16 %v1008
        %v1579 = vunpack.c.l.b16 %v1009
        %v1580 = vunpack.c.h.b16 %v1009
        %v1581 = vunpack.c.l.b16 %v1010
        %v1582 = vunpack.c.h.b16 %v1010
        %v1583 = vunpack.c.l.b16 %v1011
        %v1584 = vunpack.c.h.b16 %v1011
        %v1585 = vunpack.c.l.b16 %v1012
        %v1586 = vunpack.c.h.b16 %v1012
        %v1587 = vunpack.c.l.b16 %v1013
        %v1588 = vunpack.c.h.b16 %v1013
        %v1589 = vunpack.c.l.b16 %v1014
        %v1590 = vunpack.c.h.b16 %v1014
        %v1591 = vunpack.c.l.b16 %v1015
        %v1592 = vunpack.c.h.b16 %v1015
        %v1593 = vunpack.c.l.b16 %v1016
        %v1594 = vunpack.c.h.b16 %v1016
        %v1595 = vunpack.c.l.b16 %v1017
        %v1596 = vunpack.c.h.b16 %v1017
        %v1597 = vunpack.c.l.b16 %v1018
        %v1598 = vunpack.c.h.b16 %v1018
        %v1599 = vunpack.c.l.b16 %v1019
        %v1600 = vunpack.c.h.b16 %v1019
        %v1601 = vunpack.c.l.b16 %v1020
        %v1602 = vunpack.c.h.b16 %v1020
        %v1603 = vunpack.c.l.b16 %v1021
        %v1604 = vunpack.c.h.b16 %v1021
        %v1605 = vunpack.c.l.b16 %v1022
        %v1606 = vunpack.c.h.b16 %v1022
        %v1607 = vunpack.c.l.b16 %v1023
        %v1608 = vunpack.c.h.b16 %v1023
        %v1609 = vunpack.c.l.b16 %v1024
        %v1610 = vunpack.c.h.b16 %v1024
        %v1611 = vunpack.c.l.b16 %v1025
        %v1612 = vunpack.c.h.b16 %v1025
        %v1613 = vunpack.c.l.b16 %v1026
        %v1614 = vunpack.c.h.b16 %v1026
        %v1615 = vunpack.c.l.b16 %v1027
        %v1616 = vunpack.c.h.b16 %v1027
        %v1617 = vunpack.c.l.b16 %v1028
        %v1618 = vunpack.c.h.b16 %v1028
        %v1619 = vunpack.c.l.b16 %v1029
        %v1620 = vunpack.c.h.b16 %v1029
        %v1621 = vunpack.c.l.b16 %v1030
        %v1622 = vunpack.c.h.b16 %v1030
        %v1623 = vunpack.c.l.b16 %v1031
        %v1624 = vunpack.c.h.b16 %v1031
        %v1625 = vunpack.c.l.b16 %v1032
        %v1626 = vunpack.c.h.b16 %v1032
        %v1627 = vunpack.c.l.b16 %v1033
        %v1628 = vunpack.c.h.b16 %v1033
        %v1629 = vunpack.c.l.b16 %v1034
        %v1630 = vunpack.c.h.b16 %v1034
        %v1631 = vunpack.c.l.b16 %v1035
        %v1632 = vunpack.c.h.b16 %v1035
        %v1633 = vunpack.c.l.b16 %v1036
        %v1634 = vunpack.c.h.b16 %v1036
        %v1635 = vunpack.c.l.b16 %v1037
        %v1636 = vunpack.c.h.b16 %v1037
        %v1637 = vunpack.c.l.b16 %v1038
        %v1638 = vunpack.c.h.b16 %v1038
        %v1639 = vunpack.c.l.b16 %v1039
        %v1640 = vunpack.c.h.b16 %v1039
        %v1641 = vunpack.c.l.b16 %v1040
        %v1642 = vunpack.c.h.b16 %v1040
        %v1643 = vunpack.c.l.b16 %v1041
        %v1644 = vunpack.c.h.b16 %v1041
        %v1645 = vunpack.c.l.b16 %v1042
        %v1646 = vunpack.c.h.b16 %v1042
        %v1647 = vunpack.c.l.b16 %v1043
        %v1648 = vunpack.c.h.b16 %v1043
        %v1649 = vunpack.c.l.b16 %v1044
        %v1650 = vunpack.c.h.b16 %v1044
        %v1651 = vunpack.c.l.b16 %v1045
        %v1652 = vunpack.c.h.b16 %v1045
        %v1653 = vunpack.c.l.b16 %v1046
        %v1654 = vunpack.c.h.b16 %v1046
        %v1655 = vunpack.c.l.b16 %v1047
        %v1656 = vunpack.c.h.b16 %v1047
        %v1657 = vunpack.c.l.b16 %v1048
        %v1658 = vunpack.c.h.b16 %v1048
        %v1659 = vunpack.c.l.b16 %v1049
        %v1660 = vunpack.c.h.b16 %v1049
        %v1661 = vunpack.c.l.b16 %v1050
        %v1662 = vunpack.c.h.b16 %v1050
        %v1663 = vunpack.c.l.b16 %v1051
        %v1664 = vunpack.c.h.b16 %v1051
        %v1665 = vunpack.c.l.b16 %v1052
        %v1666 = vunpack.c.h.b16 %v1052
        %v1667 = vunpack.c.l.b16 %v1053
        %v1668 = vunpack.c.h.b16 %v1053
        %v1669 = vunpack.c.l.b16 %v1054
        %v1670 = vunpack.c.h.b16 %v1054
        %v1671 = vunpack.c.l.b16 %v1055
        %v1672 = vunpack.c.h.b16 %v1055
        %v1673 = vunpack.c.l.b16 %v1056
        %v1674 = vunpack.c.h.b16 %v1056
        %v1675 = vunpack.c.l.b16 %v1057
        %v1676 = vunpack.c.h.b16 %v1057
        %v1677 = vpack.c.b16 %v1297, %v1293
        %v1678 = vpack.c.b16 %v1298, %v1294
        %v1679 = vpack.c.b16 %v1299, %v1295
        %v1680 = vpack.c.b16 %v1300, %v1296
        %v1681 = vpack.c.b16 %v1305, %v1301
        %v1682 = vpack.c.b16 %v1306, %v1302
        %v1683 = vpack.c.b16 %v1307, %v1303
        %v1684 = vpack.c.b16 %v1308, %v1304
        %v1685 = vpack.c.b16 %v1313, %v1309
        %v1686 = vpack.c.b16 %v1314, %v1310
        %v1687 = vpack.c.b16 %v1315, %v1311
        %v1688 = vpack.c.b16 %v1316, %v1312
        %v1689 = vpack.c.b16 %v1321, %v1317
        %v1690 = vpack.c.b16 %v1322, %v1318
        %v1691 = vpack.c.b16 %v1323, %v1319
        %v1692 = vpack.c.b16 %v1324, %v1320
        %v1693 = vpack.c.b16 %v1329, %v1325
        %v1694 = vpack.c.b16 %v1330, %v1326
        %v1695 = vpack.c.b16 %v1331, %v1327
        %v1696 = vpack.c.b16 %v1332, %v1328
        %v1697 = vpack.c.b16 %v1337, %v1333
        %v1698 = vpack.c.b16 %v1338, %v1334
        %v1699 = vpack.c.b16 %v1339, %v1335
        %v1700 = vpack.c.b16 %v1340, %v1336
        %v1701 = vpack.c.b16 %v1345, %v1341
        %v1702 = vpack.c.b16 %v1346, %v1342
        %v1703 = vpack.c.b16 %v1347, %v1343
        %v1704 = vpack.c.b16 %v1348, %v1344
        %v1705 = vpack.c.b16 %v1353, %v1349
        %v1706 = vpack.c.b16 %v1354, %v1350
        %v1707 = vpack.c.b16 %v1355, %v1351
        %v1708 = vpack.c.b16 %v1356, %v1352
        %v1709 = vpack.c.b16 %v1361, %v1357
        %v1710 = vpack.c.b16 %v1362, %v1358
        %v1711 = vpack.c.b16 %v1363, %v1359
        %v1712 = vpack.c.b16 %v1364, %v1360
        %v1713 = vpack.c.b16 %v1369, %v1365
        %v1714 = vpack.c.b16 %v1370, %v1366
        %v1715 = vpack.c.b16 %v1371, %v1367
        %v1716 = vpack.c.b16 %v1372, %v1368
        %v1717 = vpack.c.b16 %v1377, %v1373
        %v1718 = vpack.c.b16 %v1378, %v1374
        %v1719 = vpack.c.b16 %v1379, %v1375
        %v1720 = vpack.c.b16 %v1380, %v1376
        %v1721 = vpack.c.b16 %v1385, %v1381
        %v1722 = vpack.c.b16 %v1386, %v1382
        %v1723 = vpack.c.b16 %v1387, %v1383
        %v1724 = vpack.c.b16 %v1388, %v1384
        %v1725 = vpack.c.b16 %v1393, %v1389
        %v1726 = vpack.c.b16 %v1394, %v1390
        %v1727 = vpack.c.b16 %v1395, %v1391
        %v1728 = vpack.c.b16 %v1396, %v1392
        %v1729 = vpack.c.b16 %v1401, %v1397
        %v1730 = vpack.c.b16 %v1402, %v1398
        %v1731 = vpack.c.b16 %v1403, %v1399
        %v1732 = vpack.c.b16 %v1404, %v1400
        %v1733 = vpack.c.b16 %v1409, %v1405
        %v1734 = vpack.c.b16 %v1410, %v1406
        %v1735 = vpack.c.b16 %v1411, %v1407
        %v1736 = vpack.c.b16 %v1412, %v1408
        %v1737 = vpack.c.b16 %v1417, %v1413
        %v1738 = vpack.c.b16 %v1418, %v1414
        %v1739 = vpack.c.b16 %v1419, %v1415
        %v1740 = vpack.c.b16 %v1420, %v1416
        %v1741 = vpack.c.b16 %v1425, %v1421
        %v1742 = vpack.c.b16 %v1426, %v1422
        %v1743 = vpack.c.b16 %v1427, %v1423
        %v1744 = vpack.c.b16 %v1428, %v1424
        %v1745 = vpack.c.b16 %v1433, %v1429
        %v1746 = vpack.c.b16 %v1434, %v1430
        %v1747 = vpack.c.b16 %v1435, %v1431
        %v1748 = vpack.c.b16 %v1436, %v1432
        %v1749 = vpack.c.b16 %v1441, %v1437
        %v1750 = vpack.c.b16 %v1442, %v1438
        %v1751 = vpack.c.b16 %v1443, %v1439
        %v1752 = vpack.c.b16 %v1444, %v1440
        %v1753 = vpack.c.b16 %v1449, %v1445
        %v1754 = vpack.c.b16 %v1450, %v1446
        %v1755 = vpack.c.b16 %v1451, %v1447
        %v1756 = vpack.c.b16 %v1452, %v1448
        %v1757 = vpack.c.b16 %v1457, %v1453
        %v1758 = vpack.c.b16 %v1458, %v1454
        %v1759 = vpack.c.b16 %v1459, %v1455
        %v1760 = vpack.c.b16 %v1460, %v1456
        %v1761 = vpack.c.b16 %v1465, %v1461
        %v1762 = vpack.c.b16 %v1466, %v1462
        %v1763 = vpack.c.b16 %v1467, %v1463
        %v1764 = vpack.c.b16 %v1468, %v1464
        %v1765 = vpack.c.b16 %v1473, %v1469
        %v1766 = vpack.c.b16 %v1474, %v1470
        %v1767 = vpack.c.b16 %v1475, %v1471
        %v1768 = vpack.c.b16 %v1476, %v1472
        %v1769 = vpack.c.b16 %v1481, %v1477
        %v1770 = vpack.c.b16 %v1482, %v1478
        %v1771 = vpack.c.b16 %v1483, %v1479
        %v1772 = vpack.c.b16 %v1484, %v1480
        %v1773 = vpack.c.b16 %v1489, %v1485
        %v1774 = vpack.c.b16 %v1490, %v1486
        %v1775 = vpack.c.b16 %v1491, %v1487
        %v1776 = vpack.c.b16 %v1492, %v1488
        %v1777 = vpack.c.b16 %v1497, %v1493
        %v1778 = vpack.c.b16 %v1498, %v1494
        %v1779 = vpack.c.b16 %v1499, %v1495
        %v1780 = vpack.c.b16 %v1500, %v1496
        %v1781 = vpack.c.b16 %v1505, %v1501
        %v1782 = vpack.c.b16 %v1506, %v1502
        %v1783 = vpack.c.b16 %v1507, %v1503
        %v1784 = vpack.c.b16 %v1508, %v1504
        %v1785 = vpack.c.b16 %v1513, %v1509
        %v1786 = vpack.c.b16 %v1514, %v1510
        %v1787 = vpack.c.b16 %v1515, %v1511
        %v1788 = vpack.c.b16 %v1516, %v1512
        %v1789 = vpack.c.b16 %v1521, %v1517
        %v1790 = vpack.c.b16 %v1522, %v1518
        %v1791 = vpack.c.b16 %v1523, %v1519
        %v1792 = vpack.c.b16 %v1524, %v1520
        %v1793 = vpack.c.b16 %v1529, %v1525
        %v1794 = vpack.c.b16 %v1530, %v1526
        %v1795 = vpack.c.b16 %v1531, %v1527
        %v1796 = vpack.c.b16 %v1532, %v1528
        %v1797 = vpack.c.b16 %v1537, %v1533
        %v1798 = vpack.c.b16 %v1538, %v1534
        %v1799 = vpack.c.b16 %v1539, %v1535
        %v1800 = vpack.c.b16 %v1540, %v1536
        %v1801 = vpack.c.b16 %v1545, %v1541
        %v1802 = vpack.c.b16 %v1546, %v1542
        %v1803 = vpack.c.b16 %v1547, %v1543
        %v1804 = vpack.c.b16 %v1548, %v1544
        %v1805 = vpack.c.b16 %v1553, %v1549
        %v1806 = vpack.c.b16 %v1554, %v1550
        %v1807 = vpack.c.b16 %v1555, %v1551
        %v1808 = vpack.c.b16 %v1556, %v1552
        %v1809 = vpack.c.b16 %v1561, %v1557
        %v1810 = vpack.c.b16 %v1562, %v1558
        %v1811 = vpack.c.b16 %v1563, %v1559
        %v1812 = vpack.c.b16 %v1564, %v1560
        %v1813 = vpack.c.b16 %v1569, %v1565
        %v1814 = vpack.c.b16 %v1570, %v1566
        %v1815 = vpack.c.b16 %v1571, %v1567
        %v1816 = vpack.c.b16 %v1572, %v1568
        %v1817 = vpack.c.b16 %v1577, %v1573
        %v1818 = vpack.c.b16 %v1578, %v1574
        %v1819 = vpack.c.b16 %v1579, %v1575
        %v1820 = vpack.c.b16 %v1580, %v1576
        %v1821 = vpack.c.b16 %v1585, %v1581
        %v1822 = vpack.c.b16 %v1586, %v1582
        %v1823 = vpack.c.b16 %v1587, %v1583
        %v1824 = vpack.c.b16 %v1588, %v1584
        %v1825 = vpack.c.b16 %v1593, %v1589
        %v1826 = vpack.c.b16 %v1594, %v1590
        %v1827 = vpack.c.b16 %v1595, %v1591
        %v1828 = vpack.c.b16 %v1596, %v1592
        %v1829 = vpack.c.b16 %v1601, %v1597
        %v1830 = vpack.c.b16 %v1602, %v1598
        %v1831 = vpack.c.b16 %v1603, %v1599
        %v1832 = vpack.c.b16 %v1604, %v1600
        %v1833 = vpack.c.b16 %v1609, %v1605
        %v1834 = vpack.c.b16 %v1610, %v1606
        %v1835 = vpack.c.b16 %v1611, %v1607
        %v1836 = vpack.c.b16 %v1612, %v1608
        %v1837 = vpack.c.b16 %v1617, %v1613
        %v1838 = vpack.c.b16 %v1618, %v1614
        %v1839 = vpack.c.b16 %v1619, %v1615
        %v1840 = vpack.c.b16 %v1620, %v1616
        %v1841 = vpack.c.b16 %v1625, %v1621
        %v1842 = vpack.c.b16 %v1626, %v1622
        %v1843 = vpack.c.b16 %v1627, %v1623
        %v1844 = vpack.c.b16 %v1628, %v1624
        %v1845 = vpack.c.b16 %v1633, %v1629
        %v1846 = vpack.c.b16 %v1634, %v1630
        %v1847 = vpack.c.b16 %v1635, %v1631
        %v1848 = vpack.c.b16 %v1636, %v1632
        %v1849 = vpack.c.b16 %v1641, %v1637
        %v1850 = vpack.c.b16 %v1642, %v1638
        %v1851 = vpack.c.b16 %v1643, %v1639
        %v1852 = vpack.c.b16 %v1644, %v1640
        %v1853 = vpack.c.b16 %v1649, %v1645
        %v1854 = vpack.c.b16 %v1650, %v1646
        %v1855 = vpack.c.b16 %v1651, %v1647
        %v1856 = vpack.c.b16 %v1652, %v1648
        %v1857 = vpack.c.b16 %v1657, %v1653
        %v1858 = vpack.c.b16 %v1658, %v1654
        %v1859 = vpack.c.b16 %v1659, %v1655
        %v1860 = vpack.c.b16 %v1660, %v1656
        %v1861 = vpack.c.b16 %v1665, %v1661
        %v1862 = vpack.c.b16 %v1666, %v1662
        %v1863 = vpack.c.b16 %v1667, %v1663
        %v1864 = vpack.c.b16 %v1668, %v1664
        %v1865 = vpack.c.b16 %v1673, %v1669
        %v1866 = vpack.c.b16 %v1674, %v1670
        %v1867 = vpack.c.b16 %v1675, %v1671
        %v1868 = vpack.c.b16 %v1676, %v1672
        %2061 = vmatprep.subr.bf16.mxu0 %v1706
        %2062 = vmatpush1.bf16.msra.mxu0 %v1705
        %2063 = vmatprep.subr.bf16.mxu0 %v1702
        %2064 = vmatpush1.bf16.msra.mxu0 %v1701
        %2065 = vmatprep.subr.bf16.mxu0 %v1698
        %2066 = vmatpush1.bf16.msra.mxu0 %v1697
        %2067 = vmatprep.subr.bf16.mxu0 %v1694
        %2068 = vmatpush1.bf16.msra.mxu0 %v1693
        %2069 = vmatprep.subr.bf16.mxu0 %v1690
        %2070 = vmatpush1.bf16.msra.mxu0 %v1689
        %2071 = vmatprep.subr.bf16.mxu0 %v1686
        %2072 = vmatpush1.bf16.msra.mxu0 %v1685
        %2073 = vmatprep.subr.bf16.mxu0 %v1682
        %2074 = vmatpush1.bf16.msra.mxu0 %v1681
        %2075 = vmatprep.subr.bf16.mxu0 %v1678
        %2076 = vmatpush1.bf16.msra.mxu0 %v1677
        %2077 = vmatprep.subr.bf16.mxu0 %v1738
        %2078 = vmatpush2.bf16.msra.mxu0 %v1737
        %2079 = vmatprep.subr.bf16.mxu0 %v1734
        %2080 = vmatpush2.bf16.msra.mxu0 %v1733
        %2081 = vmatprep.subr.bf16.mxu0 %v1730
        %2082 = vmatpush2.bf16.msra.mxu0 %v1729
        %2083 = vmatprep.subr.bf16.mxu0 %v1726
        %2084 = vmatpush2.bf16.msra.mxu0 %v1725
        %2085 = vmatprep.subr.bf16.mxu0 %v1722
        %2086 = vmatpush2.bf16.msra.mxu0 %v1721
        %2087 = vmatprep.subr.bf16.mxu0 %v1718
        %2088 = vmatpush2.bf16.msra.mxu0 %v1717
        %2089 = vmatprep.subr.bf16.mxu0 %v1714
        %2090 = vmatpush2.bf16.msra.mxu0 %v1713
        %2091 = vmatprep.subr.bf16.mxu0 %v1710
        %2092 = vmatpush2.bf16.msra.mxu0 %v1709
        %2093 = vmatprep.mubr.bf16.mxu0 %v1090
        %2094 = vmatmul.mubr.bf16.gmra.mxu0 %v1089
        %v2095 = vpop.f32.mrf.mxu0
        %v2096 = vadd.f32 %v1063, %v2095
        %v2097 = vpop.f32.mrf.mxu0
        %v2098 = vadd.f32 %v1067, %v2097
        %v2099 = vpop.f32.mrf.mxu0
        %v2100 = vpop.f32.mrf.mxu0
        %2101 = vdwg.mxu0
        %2102 = vmatprep.subr.bf16.mxu0 %v1770
        %2103 = vmatpush1.bf16.msra.mxu0 %v1769
        %2104 = vmatprep.subr.bf16.mxu0 %v1766
        %2105 = vmatpush1.bf16.msra.mxu0 %v1765
        %2106 = vmatprep.subr.bf16.mxu0 %v1762
        %2107 = vmatpush1.bf16.msra.mxu0 %v1761
        %2108 = vmatprep.subr.bf16.mxu0 %v1758
        %2109 = vmatpush1.bf16.msra.mxu0 %v1757
        %2110 = vmatprep.subr.bf16.mxu0 %v1754
        %2111 = vmatpush1.bf16.msra.mxu0 %v1753
        %2112 = vmatprep.subr.bf16.mxu0 %v1750
        %2113 = vmatpush1.bf16.msra.mxu0 %v1749
        %2114 = vmatprep.subr.bf16.mxu0 %v1746
        %2115 = vmatpush1.bf16.msra.mxu0 %v1745
        %2116 = vmatprep.subr.bf16.mxu0 %v1742
        %2117 = vmatpush1.bf16.msra.mxu0 %v1741
        %2118 = vmatprep.subr.bf16.mxu0 %v1802
        %2119 = vmatpush2.bf16.msra.mxu0 %v1801
        %2120 = vmatprep.subr.bf16.mxu0 %v1798
        %2121 = vmatpush2.bf16.msra.mxu0 %v1797
        %2122 = vmatprep.subr.bf16.mxu0 %v1794
        %2123 = vmatpush2.bf16.msra.mxu0 %v1793
        %2124 = vmatprep.subr.bf16.mxu0 %v1790
        %2125 = vmatpush2.bf16.msra.mxu0 %v1789
        %2126 = vmatprep.subr.bf16.mxu0 %v1786
        %2127 = vmatpush2.bf16.msra.mxu0 %v1785
        %2128 = vmatprep.subr.bf16.mxu0 %v1782
        %2129 = vmatpush2.bf16.msra.mxu0 %v1781
        %2130 = vmatprep.subr.bf16.mxu0 %v1778
        %2131 = vmatpush2.bf16.msra.mxu0 %v1777
        %2132 = vmatprep.subr.bf16.mxu0 %v1774
        %2133 = vmatpush2.bf16.msra.mxu0 %v1773
        %2134 = vmatprep.mubr.bf16.mxu0 %v1092
        %2135 = vmatmul.mubr.bf16.gmra.mxu0 %v1091
        %v2136 = vpop.f32.mrf.mxu0
        %v2137 = vadd.f32 %v2096, %v2136
        %v2138 = vpop.f32.mrf.mxu0
        %v2139 = vadd.f32 %v2098, %v2138
        %v2140 = vpop.f32.mrf.mxu0
        %v2141 = vpop.f32.mrf.mxu0
        %2142 = vdwg.mxu0
        %2143 = vmatprep.subr.bf16.mxu0 %v1834
        %2144 = vmatpush1.bf16.msra.mxu0 %v1833
        %2145 = vmatprep.subr.bf16.mxu0 %v1830
        %2146 = vmatpush1.bf16.msra.mxu0 %v1829
        %2147 = vmatprep.subr.bf16.mxu0 %v1826
        %2148 = vmatpush1.bf16.msra.mxu0 %v1825
        %2149 = vmatprep.subr.bf16.mxu0 %v1822
        %2150 = vmatpush1.bf16.msra.mxu0 %v1821
        %2151 = vmatprep.subr.bf16.mxu0 %v1818
        %2152 = vmatpush1.bf16.msra.mxu0 %v1817
        %2153 = vmatprep.subr.bf16.mxu0 %v1814
        %2154 = vmatpush1.bf16.msra.mxu0 %v1813
        %2155 = vmatprep.subr.bf16.mxu0 %v1810
        %2156 = vmatpush1.bf16.msra.mxu0 %v1809
        %2157 = vmatprep.subr.bf16.mxu0 %v1806
        %2158 = vmatpush1.bf16.msra.mxu0 %v1805
        %2159 = vmatprep.subr.bf16.mxu0 %v1866
        %2160 = vmatpush2.bf16.msra.mxu0 %v1865
        %2161 = vmatprep.subr.bf16.mxu0 %v1862
        %2162 = vmatpush2.bf16.msra.mxu0 %v1861
        %2163 = vmatprep.subr.bf16.mxu0 %v1858
        %2164 = vmatpush2.bf16.msra.mxu0 %v1857
        %2165 = vmatprep.subr.bf16.mxu0 %v1854
        %2166 = vmatpush2.bf16.msra.mxu0 %v1853
        %2167 = vmatprep.subr.bf16.mxu0 %v1850
        %2168 = vmatpush2.bf16.msra.mxu0 %v1849
        %2169 = vmatprep.subr.bf16.mxu0 %v1846
        %2170 = vmatpush2.bf16.msra.mxu0 %v1845
        %2171 = vmatprep.subr.bf16.mxu0 %v1842
        %2172 = vmatpush2.bf16.msra.mxu0 %v1841
        %2173 = vmatprep.subr.bf16.mxu0 %v1838
        %2174 = vmatpush2.bf16.msra.mxu0 %v1837
        %2175 = vmatprep.mubr.bf16.mxu0 %v1094
        %2176 = vmatmul.mubr.bf16.gmra.mxu0 %v1093
        %v2177 = vpop.f32.mrf.mxu0
        %v2178 = vadd.f32 %v2137, %v2177
        %v2179 = vpop.f32.mrf.mxu0
        %v2180 = vadd.f32 %v2139, %v2179
        %v2181 = vpop.f32.mrf.mxu0
        %v2182 = vpop.f32.mrf.mxu0
        %2183 = vdwg.mxu0
        %2184 = vmatprep.subr.bf16.mxu0 %v1708
        %2185 = vmatpush1.bf16.msra.mxu0 %v1707
        %2186 = vmatprep.subr.bf16.mxu0 %v1704
        %2187 = vmatpush1.bf16.msra.mxu0 %v1703
        %2188 = vmatprep.subr.bf16.mxu0 %v1700
        %2189 = vmatpush1.bf16.msra.mxu0 %v1699
        %2190 = vmatprep.subr.bf16.mxu0 %v1696
        %2191 = vmatpush1.bf16.msra.mxu0 %v1695
        %2192 = vmatprep.subr.bf16.mxu0 %v1692
        %2193 = vmatpush1.bf16.msra.mxu0 %v1691
        %2194 = vmatprep.subr.bf16.mxu0 %v1688
        %2195 = vmatpush1.bf16.msra.mxu0 %v1687
        %2196 = vmatprep.subr.bf16.mxu0 %v1684
        %2197 = vmatpush1.bf16.msra.mxu0 %v1683
        %2198 = vmatprep.subr.bf16.mxu0 %v1680
        %2199 = vmatpush1.bf16.msra.mxu0 %v1679
        %2200 = vmatprep.subr.bf16.mxu0 %v1740
        %2201 = vmatpush2.bf16.msra.mxu0 %v1739
        %2202 = vmatprep.subr.bf16.mxu0 %v1736
        %2203 = vmatpush2.bf16.msra.mxu0 %v1735
        %2204 = vmatprep.subr.bf16.mxu0 %v1732
        %2205 = vmatpush2.bf16.msra.mxu0 %v1731
        %2206 = vmatprep.subr.bf16.mxu0 %v1728
        %2207 = vmatpush2.bf16.msra.mxu0 %v1727
        %2208 = vmatprep.subr.bf16.mxu0 %v1724
        %2209 = vmatpush2.bf16.msra.mxu0 %v1723
        %2210 = vmatprep.subr.bf16.mxu0 %v1720
        %2211 = vmatpush2.bf16.msra.mxu0 %v1719
        %2212 = vmatprep.subr.bf16.mxu0 %v1716
        %2213 = vmatpush2.bf16.msra.mxu0 %v1715
        %2214 = vmatprep.subr.bf16.mxu0 %v1712
        %2215 = vmatpush2.bf16.msra.mxu0 %v1711
        %2216 = vmatprep.mubr.bf16.mxu0 %v1090
        %2217 = vmatmul.mubr.bf16.gmra.mxu0 %v1089
        %v2218 = vpop.f32.mrf.mxu0
        %v2219 = vadd.f32 %v1071, %v2218
        %v2220 = vpop.f32.mrf.mxu0
        %v2221 = vadd.f32 %v1075, %v2220
        %v2222 = vpop.f32.mrf.mxu0
        %v2223 = vpop.f32.mrf.mxu0
        %2224 = vdwg.mxu0
        %2225 = vmatprep.subr.bf16.mxu0 %v1772
        %2226 = vmatpush1.bf16.msra.mxu0 %v1771
        %2227 = vmatprep.subr.bf16.mxu0 %v1768
        %2228 = vmatpush1.bf16.msra.mxu0 %v1767
        %2229 = vmatprep.subr.bf16.mxu0 %v1764
        %2230 = vmatpush1.bf16.msra.mxu0 %v1763
        %2231 = vmatprep.subr.bf16.mxu0 %v1760
        %2232 = vmatpush1.bf16.msra.mxu0 %v1759
        %2233 = vmatprep.subr.bf16.mxu0 %v1756
        %2234 = vmatpush1.bf16.msra.mxu0 %v1755
        %2235 = vmatprep.subr.bf16.mxu0 %v1752
        %2236 = vmatpush1.bf16.msra.mxu0 %v1751
        %2237 = vmatprep.subr.bf16.mxu0 %v1748
        %2238 = vmatpush1.bf16.msra.mxu0 %v1747
        %2239 = vmatprep.subr.bf16.mxu0 %v1744
        %2240 = vmatpush1.bf16.msra.mxu0 %v1743
        %2241 = vmatprep.subr.bf16.mxu0 %v1804
        %2242 = vmatpush2.bf16.msra.mxu0 %v1803
        %2243 = vmatprep.subr.bf16.mxu0 %v1800
        %2244 = vmatpush2.bf16.msra.mxu0 %v1799
        %2245 = vmatprep.subr.bf16.mxu0 %v1796
        %2246 = vmatpush2.bf16.msra.mxu0 %v1795
        %2247 = vmatprep.subr.bf16.mxu0 %v1792
        %2248 = vmatpush2.bf16.msra.mxu0 %v1791
        %2249 = vmatprep.subr.bf16.mxu0 %v1788
        %2250 = vmatpush2.bf16.msra.mxu0 %v1787
        %2251 = vmatprep.subr.bf16.mxu0 %v1784
        %2252 = vmatpush2.bf16.msra.mxu0 %v1783
        %2253 = vmatprep.subr.bf16.mxu0 %v1780
        %2254 = vmatpush2.bf16.msra.mxu0 %v1779
        %2255 = vmatprep.subr.bf16.mxu0 %v1776
        %2256 = vmatpush2.bf16.msra.mxu0 %v1775
        %2257 = vmatprep.mubr.bf16.mxu0 %v1092
        %2258 = vmatmul.mubr.bf16.gmra.mxu0 %v1091
        %v2259 = vpop.f32.mrf.mxu0
        %v2260 = vadd.f32 %v2219, %v2259
        %v2261 = vpop.f32.mrf.mxu0
        %v2262 = vadd.f32 %v2221, %v2261
        %v2263 = vpop.f32.mrf.mxu0
        %v2264 = vpop.f32.mrf.mxu0
        %2265 = vdwg.mxu0
        %2266 = vmatprep.subr.bf16.mxu0 %v1836
        %2267 = vmatpush1.bf16.msra.mxu0 %v1835
        %2268 = vmatprep.subr.bf16.mxu0 %v1832
        %2269 = vmatpush1.bf16.msra.mxu0 %v1831
        %2270 = vmatprep.subr.bf16.mxu0 %v1828
        %2271 = vmatpush1.bf16.msra.mxu0 %v1827
        %2272 = vmatprep.subr.bf16.mxu0 %v1824
        %2273 = vmatpush1.bf16.msra.mxu0 %v1823
        %2274 = vmatprep.subr.bf16.mxu0 %v1820
        %2275 = vmatpush1.bf16.msra.mxu0 %v1819
        %2276 = vmatprep.subr.bf16.mxu0 %v1816
        %2277 = vmatpush1.bf16.msra.mxu0 %v1815
        %2278 = vmatprep.subr.bf16.mxu0 %v1812
        %2279 = vmatpush1.bf16.msra.mxu0 %v1811
        %2280 = vmatprep.subr.bf16.mxu0 %v1808
        %2281 = vmatpush1.bf16.msra.mxu0 %v1807
        %2282 = vmatprep.subr.bf16.mxu0 %v1868
        %2283 = vmatpush2.bf16.msra.mxu0 %v1867
        %2284 = vmatprep.subr.bf16.mxu0 %v1864
        %2285 = vmatpush2.bf16.msra.mxu0 %v1863
        %2286 = vmatprep.subr.bf16.mxu0 %v1860
        %2287 = vmatpush2.bf16.msra.mxu0 %v1859
        %2288 = vmatprep.subr.bf16.mxu0 %v1856
        %2289 = vmatpush2.bf16.msra.mxu0 %v1855
        %2290 = vmatprep.subr.bf16.mxu0 %v1852
        %2291 = vmatpush2.bf16.msra.mxu0 %v1851
        %2292 = vmatprep.subr.bf16.mxu0 %v1848
        %2293 = vmatpush2.bf16.msra.mxu0 %v1847
        %2294 = vmatprep.subr.bf16.mxu0 %v1844
        %2295 = vmatpush2.bf16.msra.mxu0 %v1843
        %2296 = vmatprep.subr.bf16.mxu0 %v1840
        %2297 = vmatpush2.bf16.msra.mxu0 %v1839
        %2298 = vmatprep.mubr.bf16.mxu0 %v1094
        %2299 = vmatmul.mubr.bf16.gmra.mxu0 %v1093
        %v2300 = vpop.f32.mrf.mxu0
        %v2301 = vadd.f32 %v2260, %v2300
        %v2302 = vpop.f32.mrf.mxu0
        %v2303 = vadd.f32 %v2262, %v2302
        %v2304 = vpop.f32.mrf.mxu0
        %v2305 = vpop.f32.mrf.mxu0
        %2306 = vdwg.mxu0
        %v2307 = vmax.f32 %v2178, 0.0
        %v2308 = vmax.f32 %v2180, 0.0
        %v2309 = vmax.f32 %v2301, 0.0
        %v2310 = vmax.f32 %v2303, 0.0
        %v2311 = vld [vmem:[%s851] sm:$0xff]
        %v2312 = vld [vmem:[%s851 + $0x8] sm:$0xff]
        %v2313 = vld [vmem:[%s851 + $0x10] sm:$0xff]
        %v2314 = vld [vmem:[#allocation9] sm:$0xff]
        %v2315 = vld [vmem:[#allocation9 + $0x8] sm:$0xff]
        %v2316 = vld [vmem:[#allocation9 + $0x10] sm:$0xff]
        %v2317 = vld [vmem:[#allocation9 + $0x18] sm:$0xff]
        %v2318 = vld [vmem:[#allocation9 + $0x20] sm:$0xff]
        %v2319 = vld [vmem:[#allocation9 + $0x28] sm:$0xff]
        %v2320 = vld [vmem:[#allocation9 + $0x30] sm:$0xff]
        %v2321 = vld [vmem:[#allocation9 + $0x38] sm:$0xff]
        %v2322 = vld [vmem:[#allocation9 + $0x40] sm:$0xff]
        %v2323 = vld [vmem:[#allocation9 + $0x48] sm:$0xff]
        %v2324 = vld [vmem:[#allocation9 + $0x50] sm:$0xff]
        %v2325 = vld [vmem:[#allocation9 + $0x58] sm:$0xff]
        %v2326 = vld [vmem:[#allocation9 + $0x60] sm:$0xff]
        %v2327 = vld [vmem:[#allocation9 + $0x68] sm:$0xff]
        %v2328 = vld [vmem:[#allocation9 + $0x70] sm:$0xff]
        %v2329 = vld [vmem:[#allocation9 + $0x78] sm:$0xff]
        %v2330 = vld [vmem:[#allocation9 + $0x80] sm:$0xff]
        %v2331 = vld [vmem:[#allocation9 + $0x88] sm:$0xff]
        %v2332 = vld [vmem:[#allocation9 + $0x90] sm:$0xff]
        %v2333 = vld [vmem:[#allocation9 + $0x98] sm:$0xff]
        %v2334 = vld [vmem:[#allocation9 + $0xa0] sm:$0xff]
        %v2335 = vld [vmem:[#allocation9 + $0xa8] sm:$0xff]
        %v2336 = vld [vmem:[#allocation9 + $0xb0] sm:$0xff]
        %v2337 = vld [vmem:[#allocation9 + $0xb8] sm:$0xff]
        %v2338 = vld [vmem:[#allocation9 + $0xc0] sm:$0xff]
        %v2339 = vld [vmem:[#allocation9 + $0xc8] sm:$0xff]
        %v2340 = vld [vmem:[#allocation9 + $0xd0] sm:$0xff]
        %v2341 = vld [vmem:[#allocation9 + $0xd8] sm:$0xff]
        %v2342 = vld [vmem:[#allocation9 + $0xe0] sm:$0xff]
        %v2343 = vld [vmem:[#allocation9 + $0xe8] sm:$0xff]
        %v2344 = vld [vmem:[#allocation9 + $0xf0] sm:$0xff]
        %v2345 = vld [vmem:[#allocation9 + $0xf8] sm:$0xff]
        %v2346 = vld [vmem:[#allocation9 + $0x100] sm:$0xff]
        %v2347 = vld [vmem:[#allocation9 + $0x108] sm:$0xff]
        %v2348 = vld [vmem:[#allocation9 + $0x110] sm:$0xff]
        %v2349 = vld [vmem:[#allocation9 + $0x118] sm:$0xff]
        %v2350 = vld [vmem:[#allocation9 + $0x120] sm:$0xff]
        %v2351 = vld [vmem:[#allocation9 + $0x128] sm:$0xff]
        %v2352 = vld [vmem:[#allocation9 + $0x130] sm:$0xff]
        %v2353 = vld [vmem:[#allocation9 + $0x138] sm:$0xff]
        %v2354 = vld [vmem:[#allocation9 + $0x140] sm:$0xff]
        %v2355 = vld [vmem:[#allocation9 + $0x148] sm:$0xff]
        %v2356 = vld [vmem:[#allocation9 + $0x150] sm:$0xff]
        %v2357 = vld [vmem:[#allocation9 + $0x158] sm:$0xff]
        %v2358 = vld [vmem:[#allocation9 + $0x160] sm:$0xff]
        %v2359 = vld [vmem:[#allocation9 + $0x168] sm:$0xff]
        %v2360 = vld [vmem:[#allocation9 + $0x170] sm:$0xff]
        %v2361 = vld [vmem:[#allocation9 + $0x178] sm:$0xff]
        %v2362 = vld [vmem:[#allocation9 + $0x180] sm:$0xff]
        %v2363 = vld [vmem:[#allocation9 + $0x188] sm:$0xff]
        %v2364 = vld [vmem:[#allocation9 + $0x190] sm:$0xff]
        %v2365 = vld [vmem:[#allocation9 + $0x198] sm:$0xff]
        %v2366 = vld [vmem:[#allocation9 + $0x1a0] sm:$0xff]
        %v2367 = vld [vmem:[#allocation9 + $0x1a8] sm:$0xff]
        %v2368 = vld [vmem:[#allocation9 + $0x1b0] sm:$0xff]
        %v2369 = vld [vmem:[#allocation9 + $0x1b8] sm:$0xff]
        %v2370 = vld [vmem:[#allocation9 + $0x1c0] sm:$0xff]
        %v2371 = vld [vmem:[#allocation9 + $0x1c8] sm:$0xff]
        %v2372 = vld [vmem:[#allocation9 + $0x1d0] sm:$0xff]
        %v2373 = vld [vmem:[#allocation9 + $0x1d8] sm:$0xff]
        %v2374 = vld [vmem:[#allocation9 + $0x1e0] sm:$0xff]
        %v2375 = vld [vmem:[#allocation9 + $0x1e8] sm:$0xff]
        %v2376 = vld [vmem:[#allocation9 + $0x1f0] sm:$0xff]
        %v2377 = vld [vmem:[#allocation9 + $0x1f8] sm:$0xff]
        %v2378 = vld [vmem:[#allocation9 + $0x200] sm:$0xff]
        %v2379 = vld [vmem:[#allocation9 + $0x208] sm:$0xff]
        %v2380 = vld [vmem:[#allocation9 + $0x210] sm:$0xff]
        %v2381 = vld [vmem:[#allocation9 + $0x218] sm:$0xff]
        %v2382 = vld [vmem:[#allocation9 + $0x220] sm:$0xff]
        %v2383 = vld [vmem:[#allocation9 + $0x228] sm:$0xff]
        %v2384 = vld [vmem:[#allocation9 + $0x230] sm:$0xff]
        %v2385 = vld [vmem:[#allocation9 + $0x238] sm:$0xff]
        %v2386 = vld [vmem:[#allocation9 + $0x240] sm:$0xff]
        %v2387 = vld [vmem:[#allocation9 + $0x248] sm:$0xff]
        %v2388 = vld [vmem:[#allocation9 + $0x250] sm:$0xff]
        %v2389 = vld [vmem:[#allocation9 + $0x258] sm:$0xff]
        %v2390 = vld [vmem:[#allocation9 + $0x260] sm:$0xff]
        %v2391 = vld [vmem:[#allocation9 + $0x268] sm:$0xff]
        %v2392 = vld [vmem:[#allocation9 + $0x270] sm:$0xff]
        %v2393 = vld [vmem:[#allocation9 + $0x278] sm:$0xff]
        %v2394 = vld [vmem:[#allocation9 + $0x280] sm:$0xff]
        %v2395 = vld [vmem:[#allocation9 + $0x288] sm:$0xff]
        %v2396 = vld [vmem:[#allocation9 + $0x290] sm:$0xff]
        %v2397 = vld [vmem:[#allocation9 + $0x298] sm:$0xff]
        %v2398 = vld [vmem:[#allocation9 + $0x2a0] sm:$0xff]
        %v2399 = vld [vmem:[#allocation9 + $0x2a8] sm:$0xff]
        %v2400 = vld [vmem:[#allocation9 + $0x2b0] sm:$0xff]
        %v2401 = vld [vmem:[#allocation9 + $0x2b8] sm:$0xff]
        %v2402 = vld [vmem:[#allocation9 + $0x2c0] sm:$0xff]
        %v2403 = vld [vmem:[#allocation9 + $0x2c8] sm:$0xff]
        %v2404 = vld [vmem:[#allocation9 + $0x2d0] sm:$0xff]
        %v2405 = vld [vmem:[#allocation9 + $0x2d8] sm:$0xff]
        %v2406 = vld [vmem:[#allocation9 + $0x2e0] sm:$0xff]
        %v2407 = vld [vmem:[#allocation9 + $0x2e8] sm:$0xff]
        %v2408 = vld [vmem:[#allocation9 + $0x2f0] sm:$0xff]
        %v2409 = vld [vmem:[#allocation9 + $0x2f8] sm:$0xff]
        %v2410 = vld [vmem:[#allocation9 + $0x300] sm:$0xff]
        %v2411 = vld [vmem:[#allocation9 + $0x308] sm:$0xff]
        %v2412 = vld [vmem:[#allocation9 + $0x310] sm:$0xff]
        %v2413 = vld [vmem:[#allocation9 + $0x318] sm:$0xff]
        %v2414 = vld [vmem:[#allocation9 + $0x320] sm:$0xff]
        %v2415 = vld [vmem:[#allocation9 + $0x328] sm:$0xff]
        %v2416 = vld [vmem:[#allocation9 + $0x330] sm:$0xff]
        %v2417 = vld [vmem:[#allocation9 + $0x338] sm:$0xff]
        %v2418 = vld [vmem:[#allocation9 + $0x340] sm:$0xff]
        %v2419 = vld [vmem:[#allocation9 + $0x348] sm:$0xff]
        %v2420 = vld [vmem:[#allocation9 + $0x350] sm:$0xff]
        %v2421 = vld [vmem:[#allocation9 + $0x358] sm:$0xff]
        %v2422 = vld [vmem:[#allocation9 + $0x360] sm:$0xff]
        %v2423 = vld [vmem:[#allocation9 + $0x368] sm:$0xff]
        %v2424 = vld [vmem:[#allocation9 + $0x370] sm:$0xff]
        %v2425 = vld [vmem:[#allocation9 + $0x378] sm:$0xff]
        %v2426 = vld [vmem:[#allocation9 + $0x380] sm:$0xff]
        %v2427 = vld [vmem:[#allocation9 + $0x388] sm:$0xff]
        %v2428 = vld [vmem:[#allocation9 + $0x390] sm:$0xff]
        %v2429 = vld [vmem:[#allocation9 + $0x398] sm:$0xff]
        %v2430 = vld [vmem:[#allocation9 + $0x3a0] sm:$0xff]
        %v2431 = vld [vmem:[#allocation9 + $0x3a8] sm:$0xff]
        %v2432 = vld [vmem:[#allocation9 + $0x3b0] sm:$0xff]
        %v2433 = vld [vmem:[#allocation9 + $0x3b8] sm:$0xff]
        %v2434 = vld [vmem:[#allocation9 + $0x3c0] sm:$0xff]
        %v2435 = vld [vmem:[#allocation9 + $0x3c8] sm:$0xff]
        %v2436 = vld [vmem:[#allocation9 + $0x3d0] sm:$0xff]
        %v2437 = vld [vmem:[#allocation9 + $0x3d8] sm:$0xff]
        %v2438 = vld [vmem:[#allocation9 + $0x3e0] sm:$0xff]
        %v2439 = vld [vmem:[#allocation9 + $0x3e8] sm:$0xff]
        %v2440 = vld [vmem:[#allocation9 + $0x3f0] sm:$0xff]
        %v2441 = vld [vmem:[#allocation9 + $0x3f8] sm:$0xff]
        %v2442 = vld [vmem:[#allocation9 + $0x400] sm:$0xff]
        %v2443 = vld [vmem:[#allocation9 + $0x408] sm:$0xff]
        %v2444 = vld [vmem:[#allocation9 + $0x410] sm:$0xff]
        %v2445 = vld [vmem:[#allocation9 + $0x418] sm:$0xff]
        %v2446 = vld [vmem:[#allocation9 + $0x420] sm:$0xff]
        %v2447 = vld [vmem:[#allocation9 + $0x428] sm:$0xff]
        %v2448 = vld [vmem:[#allocation9 + $0x430] sm:$0xff]
        %v2449 = vld [vmem:[#allocation9 + $0x438] sm:$0xff]
        %v2450 = vld [vmem:[#allocation9 + $0x440] sm:$0xff]
        %v2451 = vld [vmem:[#allocation9 + $0x448] sm:$0xff]
        %v2452 = vld [vmem:[#allocation9 + $0x450] sm:$0xff]
        %v2453 = vld [vmem:[#allocation9 + $0x458] sm:$0xff]
        %v2454 = vld [vmem:[#allocation9 + $0x460] sm:$0xff]
        %v2455 = vld [vmem:[#allocation9 + $0x468] sm:$0xff]
        %v2456 = vld [vmem:[#allocation9 + $0x470] sm:$0xff]
        %v2457 = vld [vmem:[#allocation9 + $0x478] sm:$0xff]
        %v2458 = vld [vmem:[#allocation9 + $0x480] sm:$0xff]
        %v2459 = vld [vmem:[#allocation9 + $0x488] sm:$0xff]
        %v2460 = vld [vmem:[#allocation9 + $0x490] sm:$0xff]
        %v2461 = vld [vmem:[#allocation9 + $0x498] sm:$0xff]
        %v2462 = vld [vmem:[#allocation9 + $0x4a0] sm:$0xff]
        %v2463 = vld [vmem:[#allocation9 + $0x4a8] sm:$0xff]
        %v2464 = vld [vmem:[#allocation9 + $0x4b0] sm:$0xff]
        %v2465 = vld [vmem:[#allocation9 + $0x4b8] sm:$0xff]
        %v2466 = vld [vmem:[#allocation9 + $0x4c0] sm:$0xff]
        %v2467 = vld [vmem:[#allocation9 + $0x4c8] sm:$0xff]
        %v2468 = vld [vmem:[#allocation9 + $0x4d0] sm:$0xff]
        %v2469 = vld [vmem:[#allocation9 + $0x4d8] sm:$0xff]
        %v2470 = vld [vmem:[#allocation9 + $0x4e0] sm:$0xff]
        %v2471 = vld [vmem:[#allocation9 + $0x4e8] sm:$0xff]
        %v2472 = vld [vmem:[#allocation9 + $0x4f0] sm:$0xff]
        %v2473 = vld [vmem:[#allocation9 + $0x4f8] sm:$0xff]
        %v2474 = vld [vmem:[#allocation9 + $0x500] sm:$0xff]
        %v2475 = vld [vmem:[#allocation9 + $0x508] sm:$0xff]
        %v2476 = vld [vmem:[#allocation9 + $0x510] sm:$0xff]
        %v2477 = vld [vmem:[#allocation9 + $0x518] sm:$0xff]
        %v2478 = vld [vmem:[#allocation9 + $0x520] sm:$0xff]
        %v2479 = vld [vmem:[#allocation9 + $0x528] sm:$0xff]
        %v2480 = vld [vmem:[#allocation9 + $0x530] sm:$0xff]
        %v2481 = vld [vmem:[#allocation9 + $0x538] sm:$0xff]
        %v2482 = vld [vmem:[#allocation9 + $0x540] sm:$0xff]
        %v2483 = vld [vmem:[#allocation9 + $0x548] sm:$0xff]
        %v2484 = vld [vmem:[#allocation9 + $0x550] sm:$0xff]
        %v2485 = vld [vmem:[#allocation9 + $0x558] sm:$0xff]
        %v2486 = vld [vmem:[#allocation9 + $0x560] sm:$0xff]
        %v2487 = vld [vmem:[#allocation9 + $0x568] sm:$0xff]
        %v2488 = vld [vmem:[#allocation9 + $0x570] sm:$0xff]
        %v2489 = vld [vmem:[#allocation9 + $0x578] sm:$0xff]
        %v2490 = vld [vmem:[#allocation9 + $0x580] sm:$0xff]
        %v2491 = vld [vmem:[#allocation9 + $0x588] sm:$0xff]
        %v2492 = vld [vmem:[#allocation9 + $0x590] sm:$0xff]
        %v2493 = vld [vmem:[#allocation9 + $0x598] sm:$0xff]
        %v2494 = vld [vmem:[#allocation9 + $0x5a0] sm:$0xff]
        %v2495 = vld [vmem:[#allocation9 + $0x5a8] sm:$0xff]
        %v2496 = vld [vmem:[#allocation9 + $0x5b0] sm:$0xff]
        %v2497 = vld [vmem:[#allocation9 + $0x5b8] sm:$0xff]
        %v2498 = vld [vmem:[#allocation9 + $0x5c0] sm:$0xff]
        %v2499 = vld [vmem:[#allocation9 + $0x5c8] sm:$0xff]
        %v2500 = vld [vmem:[#allocation9 + $0x5d0] sm:$0xff]
        %v2501 = vld [vmem:[#allocation9 + $0x5d8] sm:$0xff]
        %v2502 = vld [vmem:[#allocation9 + $0x5e0] sm:$0xff]
        %v2503 = vld [vmem:[#allocation9 + $0x5e8] sm:$0xff]
        %v2504 = vld [vmem:[#allocation9 + $0x5f0] sm:$0xff]
        %v2505 = vld [vmem:[#allocation9 + $0x5f8] sm:$0xff]
        %v2506 = vld [vmem:[#allocation11] sm:$0xf]
        %v2508 = vlaneseq
        %v2509 = vshrl.u32 %v2508, 7
        %v2510 = vsub.s32 0, %v2509
        %v2511 = vrot.slane %v2506, %v2510
        %v2512 = vlaneseq
        %v2513 = vshrl.u32 %v2512, 7
        %v2514 = vsub.s32 1, %v2513
        %v2515 = vrot.slane %v2506, %v2514
        %v2516 = vlaneseq
        %v2517 = vshrl.u32 %v2516, 7
        %v2518 = vsub.s32 2, %v2517
        %v2519 = vrot.slane %v2506, %v2518
        %v2520 = vlaneseq
        %v2521 = vshrl.u32 %v2520, 7
        %v2522 = vsub.s32 3, %v2521
        %v2523 = vrot.slane %v2506, %v2522
        %v2531 = vunpack.c.l.b16 %v2311
        %v2532 = vunpack.c.h.b16 %v2311
        %v2533 = vunpack.c.l.b16 %v2312
        %v2534 = vunpack.c.h.b16 %v2312
        %v2535 = vunpack.c.l.b16 %v2313
        %v2536 = vunpack.c.h.b16 %v2313
        %v2537 = vpack.c.b16 %v2531, %v2531
        %v2538 = vpack.c.b16 %v2532, %v2532
        %v2539 = vpack.c.b16 %v2533, %v2533
        %v2540 = vpack.c.b16 %v2534, %v2534
        %v2541 = vpack.c.b16 %v2535, %v2535
        %v2542 = vpack.c.b16 %v2536, %v2536
        %v2741 = vunpack.c.l.b16 %v2314
        %v2742 = vunpack.c.h.b16 %v2314
        %v2743 = vunpack.c.l.b16 %v2315
        %v2744 = vunpack.c.h.b16 %v2315
        %v2745 = vunpack.c.l.b16 %v2316
        %v2746 = vunpack.c.h.b16 %v2316
        %v2747 = vunpack.c.l.b16 %v2317
        %v2748 = vunpack.c.h.b16 %v2317
        %v2749 = vunpack.c.l.b16 %v2318
        %v2750 = vunpack.c.h.b16 %v2318
        %v2751 = vunpack.c.l.b16 %v2319
        %v2752 = vunpack.c.h.b16 %v2319
        %v2753 = vunpack.c.l.b16 %v2320
        %v2754 = vunpack.c.h.b16 %v2320
        %v2755 = vunpack.c.l.b16 %v2321
        %v2756 = vunpack.c.h.b16 %v2321
        %v2757 = vunpack.c.l.b16 %v2322
        %v2758 = vunpack.c.h.b16 %v2322
        %v2759 = vunpack.c.l.b16 %v2323
        %v2760 = vunpack.c.h.b16 %v2323
        %v2761 = vunpack.c.l.b16 %v2324
        %v2762 = vunpack.c.h.b16 %v2324
        %v2763 = vunpack.c.l.b16 %v2325
        %v2764 = vunpack.c.h.b16 %v2325
        %v2765 = vunpack.c.l.b16 %v2326
        %v2766 = vunpack.c.h.b16 %v2326
        %v2767 = vunpack.c.l.b16 %v2327
        %v2768 = vunpack.c.h.b16 %v2327
        %v2769 = vunpack.c.l.b16 %v2328
        %v2770 = vunpack.c.h.b16 %v2328
        %v2771 = vunpack.c.l.b16 %v2329
        %v2772 = vunpack.c.h.b16 %v2329
        %v2773 = vunpack.c.l.b16 %v2330
        %v2774 = vunpack.c.h.b16 %v2330
        %v2775 = vunpack.c.l.b16 %v2331
        %v2776 = vunpack.c.h.b16 %v2331
        %v2777 = vunpack.c.l.b16 %v2332
        %v2778 = vunpack.c.h.b16 %v2332
        %v2779 = vunpack.c.l.b16 %v2333
        %v2780 = vunpack.c.h.b16 %v2333
        %v2781 = vunpack.c.l.b16 %v2334
        %v2782 = vunpack.c.h.b16 %v2334
        %v2783 = vunpack.c.l.b16 %v2335
        %v2784 = vunpack.c.h.b16 %v2335
        %v2785 = vunpack.c.l.b16 %v2336
        %v2786 = vunpack.c.h.b16 %v2336
        %v2787 = vunpack.c.l.b16 %v2337
        %v2788 = vunpack.c.h.b16 %v2337
        %v2789 = vunpack.c.l.b16 %v2338
        %v2790 = vunpack.c.h.b16 %v2338
        %v2791 = vunpack.c.l.b16 %v2339
        %v2792 = vunpack.c.h.b16 %v2339
        %v2793 = vunpack.c.l.b16 %v2340
        %v2794 = vunpack.c.h.b16 %v2340
        %v2795 = vunpack.c.l.b16 %v2341
        %v2796 = vunpack.c.h.b16 %v2341
        %v2797 = vunpack.c.l.b16 %v2342
        %v2798 = vunpack.c.h.b16 %v2342
        %v2799 = vunpack.c.l.b16 %v2343
        %v2800 = vunpack.c.h.b16 %v2343
        %v2801 = vunpack.c.l.b16 %v2344
        %v2802 = vunpack.c.h.b16 %v2344
        %v2803 = vunpack.c.l.b16 %v2345
        %v2804 = vunpack.c.h.b16 %v2345
        %v2805 = vunpack.c.l.b16 %v2346
        %v2806 = vunpack.c.h.b16 %v2346
        %v2807 = vunpack.c.l.b16 %v2347
        %v2808 = vunpack.c.h.b16 %v2347
        %v2809 = vunpack.c.l.b16 %v2348
        %v2810 = vunpack.c.h.b16 %v2348
        %v2811 = vunpack.c.l.b16 %v2349
        %v2812 = vunpack.c.h.b16 %v2349
        %v2813 = vunpack.c.l.b16 %v2350
        %v2814 = vunpack.c.h.b16 %v2350
        %v2815 = vunpack.c.l.b16 %v2351
        %v2816 = vunpack.c.h.b16 %v2351
        %v2817 = vunpack.c.l.b16 %v2352
        %v2818 = vunpack.c.h.b16 %v2352
        %v2819 = vunpack.c.l.b16 %v2353
        %v2820 = vunpack.c.h.b16 %v2353
        %v2821 = vunpack.c.l.b16 %v2354
        %v2822 = vunpack.c.h.b16 %v2354
        %v2823 = vunpack.c.l.b16 %v2355
        %v2824 = vunpack.c.h.b16 %v2355
        %v2825 = vunpack.c.l.b16 %v2356
        %v2826 = vunpack.c.h.b16 %v2356
        %v2827 = vunpack.c.l.b16 %v2357
        %v2828 = vunpack.c.h.b16 %v2357
        %v2829 = vunpack.c.l.b16 %v2358
        %v2830 = vunpack.c.h.b16 %v2358
        %v2831 = vunpack.c.l.b16 %v2359
        %v2832 = vunpack.c.h.b16 %v2359
        %v2833 = vunpack.c.l.b16 %v2360
        %v2834 = vunpack.c.h.b16 %v2360
        %v2835 = vunpack.c.l.b16 %v2361
        %v2836 = vunpack.c.h.b16 %v2361
        %v2837 = vunpack.c.l.b16 %v2362
        %v2838 = vunpack.c.h.b16 %v2362
        %v2839 = vunpack.c.l.b16 %v2363
        %v2840 = vunpack.c.h.b16 %v2363
        %v2841 = vunpack.c.l.b16 %v2364
        %v2842 = vunpack.c.h.b16 %v2364
        %v2843 = vunpack.c.l.b16 %v2365
        %v2844 = vunpack.c.h.b16 %v2365
        %v2845 = vunpack.c.l.b16 %v2366
        %v2846 = vunpack.c.h.b16 %v2366
        %v2847 = vunpack.c.l.b16 %v2367
        %v2848 = vunpack.c.h.b16 %v2367
        %v2849 = vunpack.c.l.b16 %v2368
        %v2850 = vunpack.c.h.b16 %v2368
        %v2851 = vunpack.c.l.b16 %v2369
        %v2852 = vunpack.c.h.b16 %v2369
        %v2853 = vunpack.c.l.b16 %v2370
        %v2854 = vunpack.c.h.b16 %v2370
        %v2855 = vunpack.c.l.b16 %v2371
        %v2856 = vunpack.c.h.b16 %v2371
        %v2857 = vunpack.c.l.b16 %v2372
        %v2858 = vunpack.c.h.b16 %v2372
        %v2859 = vunpack.c.l.b16 %v2373
        %v2860 = vunpack.c.h.b16 %v2373
        %v2861 = vunpack.c.l.b16 %v2374
        %v2862 = vunpack.c.h.b16 %v2374
        %v2863 = vunpack.c.l.b16 %v2375
        %v2864 = vunpack.c.h.b16 %v2375
        %v2865 = vunpack.c.l.b16 %v2376
        %v2866 = vunpack.c.h.b16 %v2376
        %v2867 = vunpack.c.l.b16 %v2377
        %v2868 = vunpack.c.h.b16 %v2377
        %v2869 = vunpack.c.l.b16 %v2378
        %v2870 = vunpack.c.h.b16 %v2378
        %v2871 = vunpack.c.l.b16 %v2379
        %v2872 = vunpack.c.h.b16 %v2379
        %v2873 = vunpack.c.l.b16 %v2380
        %v2874 = vunpack.c.h.b16 %v2380
        %v2875 = vunpack.c.l.b16 %v2381
        %v2876 = vunpack.c.h.b16 %v2381
        %v2877 = vunpack.c.l.b16 %v2382
        %v2878 = vunpack.c.h.b16 %v2382
        %v2879 = vunpack.c.l.b16 %v2383
        %v2880 = vunpack.c.h.b16 %v2383
        %v2881 = vunpack.c.l.b16 %v2384
        %v2882 = vunpack.c.h.b16 %v2384
        %v2883 = vunpack.c.l.b16 %v2385
        %v2884 = vunpack.c.h.b16 %v2385
        %v2885 = vunpack.c.l.b16 %v2386
        %v2886 = vunpack.c.h.b16 %v2386
        %v2887 = vunpack.c.l.b16 %v2387
        %v2888 = vunpack.c.h.b16 %v2387
        %v2889 = vunpack.c.l.b16 %v2388
        %v2890 = vunpack.c.h.b16 %v2388
        %v2891 = vunpack.c.l.b16 %v2389
        %v2892 = vunpack.c.h.b16 %v2389
        %v2893 = vunpack.c.l.b16 %v2390
        %v2894 = vunpack.c.h.b16 %v2390
        %v2895 = vunpack.c.l.b16 %v2391
        %v2896 = vunpack.c.h.b16 %v2391
        %v2897 = vunpack.c.l.b16 %v2392
        %v2898 = vunpack.c.h.b16 %v2392
        %v2899 = vunpack.c.l.b16 %v2393
        %v2900 = vunpack.c.h.b16 %v2393
        %v2901 = vunpack.c.l.b16 %v2394
        %v2902 = vunpack.c.h.b16 %v2394
        %v2903 = vunpack.c.l.b16 %v2395
        %v2904 = vunpack.c.h.b16 %v2395
        %v2905 = vunpack.c.l.b16 %v2396
        %v2906 = vunpack.c.h.b16 %v2396
        %v2907 = vunpack.c.l.b16 %v2397
        %v2908 = vunpack.c.h.b16 %v2397
        %v2909 = vunpack.c.l.b16 %v2398
        %v2910 = vunpack.c.h.b16 %v2398
        %v2911 = vunpack.c.l.b16 %v2399
        %v2912 = vunpack.c.h.b16 %v2399
        %v2913 = vunpack.c.l.b16 %v2400
        %v2914 = vunpack.c.h.b16 %v2400
        %v2915 = vunpack.c.l.b16 %v2401
        %v2916 = vunpack.c.h.b16 %v2401
        %v2917 = vunpack.c.l.b16 %v2402
        %v2918 = vunpack.c.h.b16 %v2402
        %v2919 = vunpack.c.l.b16 %v2403
        %v2920 = vunpack.c.h.b16 %v2403
        %v2921 = vunpack.c.l.b16 %v2404
        %v2922 = vunpack.c.h.b16 %v2404
        %v2923 = vunpack.c.l.b16 %v2405
        %v2924 = vunpack.c.h.b16 %v2405
        %v2925 = vunpack.c.l.b16 %v2406
        %v2926 = vunpack.c.h.b16 %v2406
        %v2927 = vunpack.c.l.b16 %v2407
        %v2928 = vunpack.c.h.b16 %v2407
        %v2929 = vunpack.c.l.b16 %v2408
        %v2930 = vunpack.c.h.b16 %v2408
        %v2931 = vunpack.c.l.b16 %v2409
        %v2932 = vunpack.c.h.b16 %v2409
        %v2933 = vunpack.c.l.b16 %v2410
        %v2934 = vunpack.c.h.b16 %v2410
        %v2935 = vunpack.c.l.b16 %v2411
        %v2936 = vunpack.c.h.b16 %v2411
        %v2937 = vunpack.c.l.b16 %v2412
        %v2938 = vunpack.c.h.b16 %v2412
        %v2939 = vunpack.c.l.b16 %v2413
        %v2940 = vunpack.c.h.b16 %v2413
        %v2941 = vunpack.c.l.b16 %v2414
        %v2942 = vunpack.c.h.b16 %v2414
        %v2943 = vunpack.c.l.b16 %v2415
        %v2944 = vunpack.c.h.b16 %v2415
        %v2945 = vunpack.c.l.b16 %v2416
        %v2946 = vunpack.c.h.b16 %v2416
        %v2947 = vunpack.c.l.b16 %v2417
        %v2948 = vunpack.c.h.b16 %v2417
        %v2949 = vunpack.c.l.b16 %v2418
        %v2950 = vunpack.c.h.b16 %v2418
        %v2951 = vunpack.c.l.b16 %v2419
        %v2952 = vunpack.c.h.b16 %v2419
        %v2953 = vunpack.c.l.b16 %v2420
        %v2954 = vunpack.c.h.b16 %v2420
        %v2955 = vunpack.c.l.b16 %v2421
        %v2956 = vunpack.c.h.b16 %v2421
        %v2957 = vunpack.c.l.b16 %v2422
        %v2958 = vunpack.c.h.b16 %v2422
        %v2959 = vunpack.c.l.b16 %v2423
        %v2960 = vunpack.c.h.b16 %v2423
        %v2961 = vunpack.c.l.b16 %v2424
        %v2962 = vunpack.c.h.b16 %v2424
        %v2963 = vunpack.c.l.b16 %v2425
        %v2964 = vunpack.c.h.b16 %v2425
        %v2965 = vunpack.c.l.b16 %v2426
        %v2966 = vunpack.c.h.b16 %v2426
        %v2967 = vunpack.c.l.b16 %v2427
        %v2968 = vunpack.c.h.b16 %v2427
        %v2969 = vunpack.c.l.b16 %v2428
        %v2970 = vunpack.c.h.b16 %v2428
        %v2971 = vunpack.c.l.b16 %v2429
        %v2972 = vunpack.c.h.b16 %v2429
        %v2973 = vunpack.c.l.b16 %v2430
        %v2974 = vunpack.c.h.b16 %v2430
        %v2975 = vunpack.c.l.b16 %v2431
        %v2976 = vunpack.c.h.b16 %v2431
        %v2977 = vunpack.c.l.b16 %v2432
        %v2978 = vunpack.c.h.b16 %v2432
        %v2979 = vunpack.c.l.b16 %v2433
        %v2980 = vunpack.c.h.b16 %v2433
        %v2981 = vunpack.c.l.b16 %v2434
        %v2982 = vunpack.c.h.b16 %v2434
        %v2983 = vunpack.c.l.b16 %v2435
        %v2984 = vunpack.c.h.b16 %v2435
        %v2985 = vunpack.c.l.b16 %v2436
        %v2986 = vunpack.c.h.b16 %v2436
        %v2987 = vunpack.c.l.b16 %v2437
        %v2988 = vunpack.c.h.b16 %v2437
        %v2989 = vunpack.c.l.b16 %v2438
        %v2990 = vunpack.c.h.b16 %v2438
        %v2991 = vunpack.c.l.b16 %v2439
        %v2992 = vunpack.c.h.b16 %v2439
        %v2993 = vunpack.c.l.b16 %v2440
        %v2994 = vunpack.c.h.b16 %v2440
        %v2995 = vunpack.c.l.b16 %v2441
        %v2996 = vunpack.c.h.b16 %v2441
        %v2997 = vunpack.c.l.b16 %v2442
        %v2998 = vunpack.c.h.b16 %v2442
        %v2999 = vunpack.c.l.b16 %v2443
        %v3000 = vunpack.c.h.b16 %v2443
        %v3001 = vunpack.c.l.b16 %v2444
        %v3002 = vunpack.c.h.b16 %v2444
        %v3003 = vunpack.c.l.b16 %v2445
        %v3004 = vunpack.c.h.b16 %v2445
        %v3005 = vunpack.c.l.b16 %v2446
        %v3006 = vunpack.c.h.b16 %v2446
        %v3007 = vunpack.c.l.b16 %v2447
        %v3008 = vunpack.c.h.b16 %v2447
        %v3009 = vunpack.c.l.b16 %v2448
        %v3010 = vunpack.c.h.b16 %v2448
        %v3011 = vunpack.c.l.b16 %v2449
        %v3012 = vunpack.c.h.b16 %v2449
        %v3013 = vunpack.c.l.b16 %v2450
        %v3014 = vunpack.c.h.b16 %v2450
        %v3015 = vunpack.c.l.b16 %v2451
        %v3016 = vunpack.c.h.b16 %v2451
        %v3017 = vunpack.c.l.b16 %v2452
        %v3018 = vunpack.c.h.b16 %v2452
        %v3019 = vunpack.c.l.b16 %v2453
        %v3020 = vunpack.c.h.b16 %v2453
        %v3021 = vunpack.c.l.b16 %v2454
        %v3022 = vunpack.c.h.b16 %v2454
        %v3023 = vunpack.c.l.b16 %v2455
        %v3024 = vunpack.c.h.b16 %v2455
        %v3025 = vunpack.c.l.b16 %v2456
        %v3026 = vunpack.c.h.b16 %v2456
        %v3027 = vunpack.c.l.b16 %v2457
        %v3028 = vunpack.c.h.b16 %v2457
        %v3029 = vunpack.c.l.b16 %v2458
        %v3030 = vunpack.c.h.b16 %v2458
        %v3031 = vunpack.c.l.b16 %v2459
        %v3032 = vunpack.c.h.b16 %v2459
        %v3033 = vunpack.c.l.b16 %v2460
        %v3034 = vunpack.c.h.b16 %v2460
        %v3035 = vunpack.c.l.b16 %v2461
        %v3036 = vunpack.c.h.b16 %v2461
        %v3037 = vunpack.c.l.b16 %v2462
        %v3038 = vunpack.c.h.b16 %v2462
        %v3039 = vunpack.c.l.b16 %v2463
        %v3040 = vunpack.c.h.b16 %v2463
        %v3041 = vunpack.c.l.b16 %v2464
        %v3042 = vunpack.c.h.b16 %v2464
        %v3043 = vunpack.c.l.b16 %v2465
        %v3044 = vunpack.c.h.b16 %v2465
        %v3045 = vunpack.c.l.b16 %v2466
        %v3046 = vunpack.c.h.b16 %v2466
        %v3047 = vunpack.c.l.b16 %v2467
        %v3048 = vunpack.c.h.b16 %v2467
        %v3049 = vunpack.c.l.b16 %v2468
        %v3050 = vunpack.c.h.b16 %v2468
        %v3051 = vunpack.c.l.b16 %v2469
        %v3052 = vunpack.c.h.b16 %v2469
        %v3053 = vunpack.c.l.b16 %v2470
        %v3054 = vunpack.c.h.b16 %v2470
        %v3055 = vunpack.c.l.b16 %v2471
        %v3056 = vunpack.c.h.b16 %v2471
        %v3057 = vunpack.c.l.b16 %v2472
        %v3058 = vunpack.c.h.b16 %v2472
        %v3059 = vunpack.c.l.b16 %v2473
        %v3060 = vunpack.c.h.b16 %v2473
        %v3061 = vunpack.c.l.b16 %v2474
        %v3062 = vunpack.c.h.b16 %v2474
        %v3063 = vunpack.c.l.b16 %v2475
        %v3064 = vunpack.c.h.b16 %v2475
        %v3065 = vunpack.c.l.b16 %v2476
        %v3066 = vunpack.c.h.b16 %v2476
        %v3067 = vunpack.c.l.b16 %v2477
        %v3068 = vunpack.c.h.b16 %v2477
        %v3069 = vunpack.c.l.b16 %v2478
        %v3070 = vunpack.c.h.b16 %v2478
        %v3071 = vunpack.c.l.b16 %v2479
        %v3072 = vunpack.c.h.b16 %v2479
        %v3073 = vunpack.c.l.b16 %v2480
        %v3074 = vunpack.c.h.b16 %v2480
        %v3075 = vunpack.c.l.b16 %v2481
        %v3076 = vunpack.c.h.b16 %v2481
        %v3077 = vunpack.c.l.b16 %v2482
        %v3078 = vunpack.c.h.b16 %v2482
        %v3079 = vunpack.c.l.b16 %v2483
        %v3080 = vunpack.c.h.b16 %v2483
        %v3081 = vunpack.c.l.b16 %v2484
        %v3082 = vunpack.c.h.b16 %v2484
        %v3083 = vunpack.c.l.b16 %v2485
        %v3084 = vunpack.c.h.b16 %v2485
        %v3085 = vunpack.c.l.b16 %v2486
        %v3086 = vunpack.c.h.b16 %v2486
        %v3087 = vunpack.c.l.b16 %v2487
        %v3088 = vunpack.c.h.b16 %v2487
        %v3089 = vunpack.c.l.b16 %v2488
        %v3090 = vunpack.c.h.b16 %v2488
        %v3091 = vunpack.c.l.b16 %v2489
        %v3092 = vunpack.c.h.b16 %v2489
        %v3093 = vunpack.c.l.b16 %v2490
        %v3094 = vunpack.c.h.b16 %v2490
        %v3095 = vunpack.c.l.b16 %v2491
        %v3096 = vunpack.c.h.b16 %v2491
        %v3097 = vunpack.c.l.b16 %v2492
        %v3098 = vunpack.c.h.b16 %v2492
        %v3099 = vunpack.c.l.b16 %v2493
        %v3100 = vunpack.c.h.b16 %v2493
        %v3101 = vunpack.c.l.b16 %v2494
        %v3102 = vunpack.c.h.b16 %v2494
        %v3103 = vunpack.c.l.b16 %v2495
        %v3104 = vunpack.c.h.b16 %v2495
        %v3105 = vunpack.c.l.b16 %v2496
        %v3106 = vunpack.c.h.b16 %v2496
        %v3107 = vunpack.c.l.b16 %v2497
        %v3108 = vunpack.c.h.b16 %v2497
        %v3109 = vunpack.c.l.b16 %v2498
        %v3110 = vunpack.c.h.b16 %v2498
        %v3111 = vunpack.c.l.b16 %v2499
        %v3112 = vunpack.c.h.b16 %v2499
        %v3113 = vunpack.c.l.b16 %v2500
        %v3114 = vunpack.c.h.b16 %v2500
        %v3115 = vunpack.c.l.b16 %v2501
        %v3116 = vunpack.c.h.b16 %v2501
        %v3117 = vunpack.c.l.b16 %v2502
        %v3118 = vunpack.c.h.b16 %v2502
        %v3119 = vunpack.c.l.b16 %v2503
        %v3120 = vunpack.c.h.b16 %v2503
        %v3121 = vunpack.c.l.b16 %v2504
        %v3122 = vunpack.c.h.b16 %v2504
        %v3123 = vunpack.c.l.b16 %v2505
        %v3124 = vunpack.c.h.b16 %v2505
        %v3125 = vpack.c.b16 %v2745, %v2741
        %v3126 = vpack.c.b16 %v2746, %v2742
        %v3127 = vpack.c.b16 %v2747, %v2743
        %v3128 = vpack.c.b16 %v2748, %v2744
        %v3129 = vpack.c.b16 %v2753, %v2749
        %v3130 = vpack.c.b16 %v2754, %v2750
        %v3131 = vpack.c.b16 %v2755, %v2751
        %v3132 = vpack.c.b16 %v2756, %v2752
        %v3133 = vpack.c.b16 %v2761, %v2757
        %v3134 = vpack.c.b16 %v2762, %v2758
        %v3135 = vpack.c.b16 %v2763, %v2759
        %v3136 = vpack.c.b16 %v2764, %v2760
        %v3137 = vpack.c.b16 %v2769, %v2765
        %v3138 = vpack.c.b16 %v2770, %v2766
        %v3139 = vpack.c.b16 %v2771, %v2767
        %v3140 = vpack.c.b16 %v2772, %v2768
        %v3141 = vpack.c.b16 %v2777, %v2773
        %v3142 = vpack.c.b16 %v2778, %v2774
        %v3143 = vpack.c.b16 %v2779, %v2775
        %v3144 = vpack.c.b16 %v2780, %v2776
        %v3145 = vpack.c.b16 %v2785, %v2781
        %v3146 = vpack.c.b16 %v2786, %v2782
        %v3147 = vpack.c.b16 %v2787, %v2783
        %v3148 = vpack.c.b16 %v2788, %v2784
        %v3149 = vpack.c.b16 %v2793, %v2789
        %v3150 = vpack.c.b16 %v2794, %v2790
        %v3151 = vpack.c.b16 %v2795, %v2791
        %v3152 = vpack.c.b16 %v2796, %v2792
        %v3153 = vpack.c.b16 %v2801, %v2797
        %v3154 = vpack.c.b16 %v2802, %v2798
        %v3155 = vpack.c.b16 %v2803, %v2799
        %v3156 = vpack.c.b16 %v2804, %v2800
        %v3157 = vpack.c.b16 %v2809, %v2805
        %v3158 = vpack.c.b16 %v2810, %v2806
        %v3159 = vpack.c.b16 %v2811, %v2807
        %v3160 = vpack.c.b16 %v2812, %v2808
        %v3161 = vpack.c.b16 %v2817, %v2813
        %v3162 = vpack.c.b16 %v2818, %v2814
        %v3163 = vpack.c.b16 %v2819, %v2815
        %v3164 = vpack.c.b16 %v2820, %v2816
        %v3165 = vpack.c.b16 %v2825, %v2821
        %v3166 = vpack.c.b16 %v2826, %v2822
        %v3167 = vpack.c.b16 %v2827, %v2823
        %v3168 = vpack.c.b16 %v2828, %v2824
        %v3169 = vpack.c.b16 %v2833, %v2829
        %v3170 = vpack.c.b16 %v2834, %v2830
        %v3171 = vpack.c.b16 %v2835, %v2831
        %v3172 = vpack.c.b16 %v2836, %v2832
        %v3173 = vpack.c.b16 %v2841, %v2837
        %v3174 = vpack.c.b16 %v2842, %v2838
        %v3175 = vpack.c.b16 %v2843, %v2839
        %v3176 = vpack.c.b16 %v2844, %v2840
        %v3177 = vpack.c.b16 %v2849, %v2845
        %v3178 = vpack.c.b16 %v2850, %v2846
        %v3179 = vpack.c.b16 %v2851, %v2847
        %v3180 = vpack.c.b16 %v2852, %v2848
        %v3181 = vpack.c.b16 %v2857, %v2853
        %v3182 = vpack.c.b16 %v2858, %v2854
        %v3183 = vpack.c.b16 %v2859, %v2855
        %v3184 = vpack.c.b16 %v2860, %v2856
        %v3185 = vpack.c.b16 %v2865, %v2861
        %v3186 = vpack.c.b16 %v2866, %v2862
        %v3187 = vpack.c.b16 %v2867, %v2863
        %v3188 = vpack.c.b16 %v2868, %v2864
        %v3189 = vpack.c.b16 %v2873, %v2869
        %v3190 = vpack.c.b16 %v2874, %v2870
        %v3191 = vpack.c.b16 %v2875, %v2871
        %v3192 = vpack.c.b16 %v2876, %v2872
        %v3193 = vpack.c.b16 %v2881, %v2877
        %v3194 = vpack.c.b16 %v2882, %v2878
        %v3195 = vpack.c.b16 %v2883, %v2879
        %v3196 = vpack.c.b16 %v2884, %v2880
        %v3197 = vpack.c.b16 %v2889, %v2885
        %v3198 = vpack.c.b16 %v2890, %v2886
        %v3199 = vpack.c.b16 %v2891, %v2887
        %v3200 = vpack.c.b16 %v2892, %v2888
        %v3201 = vpack.c.b16 %v2897, %v2893
        %v3202 = vpack.c.b16 %v2898, %v2894
        %v3203 = vpack.c.b16 %v2899, %v2895
        %v3204 = vpack.c.b16 %v2900, %v2896
        %v3205 = vpack.c.b16 %v2905, %v2901
        %v3206 = vpack.c.b16 %v2906, %v2902
        %v3207 = vpack.c.b16 %v2907, %v2903
        %v3208 = vpack.c.b16 %v2908, %v2904
        %v3209 = vpack.c.b16 %v2913, %v2909
        %v3210 = vpack.c.b16 %v2914, %v2910
        %v3211 = vpack.c.b16 %v2915, %v2911
        %v3212 = vpack.c.b16 %v2916, %v2912
        %v3213 = vpack.c.b16 %v2921, %v2917
        %v3214 = vpack.c.b16 %v2922, %v2918
        %v3215 = vpack.c.b16 %v2923, %v2919
        %v3216 = vpack.c.b16 %v2924, %v2920
        %v3217 = vpack.c.b16 %v2929, %v2925
        %v3218 = vpack.c.b16 %v2930, %v2926
        %v3219 = vpack.c.b16 %v2931, %v2927
        %v3220 = vpack.c.b16 %v2932, %v2928
        %v3221 = vpack.c.b16 %v2937, %v2933
        %v3222 = vpack.c.b16 %v2938, %v2934
        %v3223 = vpack.c.b16 %v2939, %v2935
        %v3224 = vpack.c.b16 %v2940, %v2936
        %v3225 = vpack.c.b16 %v2945, %v2941
        %v3226 = vpack.c.b16 %v2946, %v2942
        %v3227 = vpack.c.b16 %v2947, %v2943
        %v3228 = vpack.c.b16 %v2948, %v2944
        %v3229 = vpack.c.b16 %v2953, %v2949
        %v3230 = vpack.c.b16 %v2954, %v2950
        %v3231 = vpack.c.b16 %v2955, %v2951
        %v3232 = vpack.c.b16 %v2956, %v2952
        %v3233 = vpack.c.b16 %v2961, %v2957
        %v3234 = vpack.c.b16 %v2962, %v2958
        %v3235 = vpack.c.b16 %v2963, %v2959
        %v3236 = vpack.c.b16 %v2964, %v2960
        %v3237 = vpack.c.b16 %v2969, %v2965
        %v3238 = vpack.c.b16 %v2970, %v2966
        %v3239 = vpack.c.b16 %v2971, %v2967
        %v3240 = vpack.c.b16 %v2972, %v2968
        %v3241 = vpack.c.b16 %v2977, %v2973
        %v3242 = vpack.c.b16 %v2978, %v2974
        %v3243 = vpack.c.b16 %v2979, %v2975
        %v3244 = vpack.c.b16 %v2980, %v2976
        %v3245 = vpack.c.b16 %v2985, %v2981
        %v3246 = vpack.c.b16 %v2986, %v2982
        %v3247 = vpack.c.b16 %v2987, %v2983
        %v3248 = vpack.c.b16 %v2988, %v2984
        %v3249 = vpack.c.b16 %v2993, %v2989
        %v3250 = vpack.c.b16 %v2994, %v2990
        %v3251 = vpack.c.b16 %v2995, %v2991
        %v3252 = vpack.c.b16 %v2996, %v2992
        %v3253 = vpack.c.b16 %v3001, %v2997
        %v3254 = vpack.c.b16 %v3002, %v2998
        %v3255 = vpack.c.b16 %v3003, %v2999
        %v3256 = vpack.c.b16 %v3004, %v3000
        %v3257 = vpack.c.b16 %v3009, %v3005
        %v3258 = vpack.c.b16 %v3010, %v3006
        %v3259 = vpack.c.b16 %v3011, %v3007
        %v3260 = vpack.c.b16 %v3012, %v3008
        %v3261 = vpack.c.b16 %v3017, %v3013
        %v3262 = vpack.c.b16 %v3018, %v3014
        %v3263 = vpack.c.b16 %v3019, %v3015
        %v3264 = vpack.c.b16 %v3020, %v3016
        %v3265 = vpack.c.b16 %v3025, %v3021
        %v3266 = vpack.c.b16 %v3026, %v3022
        %v3267 = vpack.c.b16 %v3027, %v3023
        %v3268 = vpack.c.b16 %v3028, %v3024
        %v3269 = vpack.c.b16 %v3033, %v3029
        %v3270 = vpack.c.b16 %v3034, %v3030
        %v3271 = vpack.c.b16 %v3035, %v3031
        %v3272 = vpack.c.b16 %v3036, %v3032
        %v3273 = vpack.c.b16 %v3041, %v3037
        %v3274 = vpack.c.b16 %v3042, %v3038
        %v3275 = vpack.c.b16 %v3043, %v3039
        %v3276 = vpack.c.b16 %v3044, %v3040
        %v3277 = vpack.c.b16 %v3049, %v3045
        %v3278 = vpack.c.b16 %v3050, %v3046
        %v3279 = vpack.c.b16 %v3051, %v3047
        %v3280 = vpack.c.b16 %v3052, %v3048
        %v3281 = vpack.c.b16 %v3057, %v3053
        %v3282 = vpack.c.b16 %v3058, %v3054
        %v3283 = vpack.c.b16 %v3059, %v3055
        %v3284 = vpack.c.b16 %v3060, %v3056
        %v3285 = vpack.c.b16 %v3065, %v3061
        %v3286 = vpack.c.b16 %v3066, %v3062
        %v3287 = vpack.c.b16 %v3067, %v3063
        %v3288 = vpack.c.b16 %v3068, %v3064
        %v3289 = vpack.c.b16 %v3073, %v3069
        %v3290 = vpack.c.b16 %v3074, %v3070
        %v3291 = vpack.c.b16 %v3075, %v3071
        %v3292 = vpack.c.b16 %v3076, %v3072
        %v3293 = vpack.c.b16 %v3081, %v3077
        %v3294 = vpack.c.b16 %v3082, %v3078
        %v3295 = vpack.c.b16 %v3083, %v3079
        %v3296 = vpack.c.b16 %v3084, %v3080
        %v3297 = vpack.c.b16 %v3089, %v3085
        %v3298 = vpack.c.b16 %v3090, %v3086
        %v3299 = vpack.c.b16 %v3091, %v3087
        %v3300 = vpack.c.b16 %v3092, %v3088
        %v3301 = vpack.c.b16 %v3097, %v3093
        %v3302 = vpack.c.b16 %v3098, %v3094
        %v3303 = vpack.c.b16 %v3099, %v3095
        %v3304 = vpack.c.b16 %v3100, %v3096
        %v3305 = vpack.c.b16 %v3105, %v3101
        %v3306 = vpack.c.b16 %v3106, %v3102
        %v3307 = vpack.c.b16 %v3107, %v3103
        %v3308 = vpack.c.b16 %v3108, %v3104
        %v3309 = vpack.c.b16 %v3113, %v3109
        %v3310 = vpack.c.b16 %v3114, %v3110
        %v3311 = vpack.c.b16 %v3115, %v3111
        %v3312 = vpack.c.b16 %v3116, %v3112
        %v3313 = vpack.c.b16 %v3121, %v3117
        %v3314 = vpack.c.b16 %v3122, %v3118
        %v3315 = vpack.c.b16 %v3123, %v3119
        %v3316 = vpack.c.b16 %v3124, %v3120
        %3509 = vmatprep.subr.bf16.mxu0 %v3154
        %3510 = vmatpush1.bf16.msra.mxu0 %v3153
        %3511 = vmatprep.subr.bf16.mxu0 %v3150
        %3512 = vmatpush1.bf16.msra.mxu0 %v3149
        %3513 = vmatprep.subr.bf16.mxu0 %v3146
        %3514 = vmatpush1.bf16.msra.mxu0 %v3145
        %3515 = vmatprep.subr.bf16.mxu0 %v3142
        %3516 = vmatpush1.bf16.msra.mxu0 %v3141
        %3517 = vmatprep.subr.bf16.mxu0 %v3138
        %3518 = vmatpush1.bf16.msra.mxu0 %v3137
        %3519 = vmatprep.subr.bf16.mxu0 %v3134
        %3520 = vmatpush1.bf16.msra.mxu0 %v3133
        %3521 = vmatprep.subr.bf16.mxu0 %v3130
        %3522 = vmatpush1.bf16.msra.mxu0 %v3129
        %3523 = vmatprep.subr.bf16.mxu0 %v3126
        %3524 = vmatpush1.bf16.msra.mxu0 %v3125
        %3525 = vmatprep.subr.bf16.mxu0 %v3186
        %3526 = vmatpush2.bf16.msra.mxu0 %v3185
        %3527 = vmatprep.subr.bf16.mxu0 %v3182
        %3528 = vmatpush2.bf16.msra.mxu0 %v3181
        %3529 = vmatprep.subr.bf16.mxu0 %v3178
        %3530 = vmatpush2.bf16.msra.mxu0 %v3177
        %3531 = vmatprep.subr.bf16.mxu0 %v3174
        %3532 = vmatpush2.bf16.msra.mxu0 %v3173
        %3533 = vmatprep.subr.bf16.mxu0 %v3170
        %3534 = vmatpush2.bf16.msra.mxu0 %v3169
        %3535 = vmatprep.subr.bf16.mxu0 %v3166
        %3536 = vmatpush2.bf16.msra.mxu0 %v3165
        %3537 = vmatprep.subr.bf16.mxu0 %v3162
        %3538 = vmatpush2.bf16.msra.mxu0 %v3161
        %3539 = vmatprep.subr.bf16.mxu0 %v3158
        %3540 = vmatpush2.bf16.msra.mxu0 %v3157
        %3541 = vmatprep.mubr.bf16.mxu0 %v2538
        %3542 = vmatmul.mubr.bf16.gmra.mxu0 %v2537
        %v3543 = vpop.f32.mrf.mxu0
        %v3544 = vadd.f32 %v2511, %v3543
        %v3545 = vpop.f32.mrf.mxu0
        %v3546 = vadd.f32 %v2515, %v3545
        %v3547 = vpop.f32.mrf.mxu0
        %v3548 = vpop.f32.mrf.mxu0
        %3549 = vdwg.mxu0
        %3550 = vmatprep.subr.bf16.mxu0 %v3218
        %3551 = vmatpush1.bf16.msra.mxu0 %v3217
        %3552 = vmatprep.subr.bf16.mxu0 %v3214
        %3553 = vmatpush1.bf16.msra.mxu0 %v3213
        %3554 = vmatprep.subr.bf16.mxu0 %v3210
        %3555 = vmatpush1.bf16.msra.mxu0 %v3209
        %3556 = vmatprep.subr.bf16.mxu0 %v3206
        %3557 = vmatpush1.bf16.msra.mxu0 %v3205
        %3558 = vmatprep.subr.bf16.mxu0 %v3202
        %3559 = vmatpush1.bf16.msra.mxu0 %v3201
        %3560 = vmatprep.subr.bf16.mxu0 %v3198
        %3561 = vmatpush1.bf16.msra.mxu0 %v3197
        %3562 = vmatprep.subr.bf16.mxu0 %v3194
        %3563 = vmatpush1.bf16.msra.mxu0 %v3193
        %3564 = vmatprep.subr.bf16.mxu0 %v3190
        %3565 = vmatpush1.bf16.msra.mxu0 %v3189
        %3566 = vmatprep.subr.bf16.mxu0 %v3250
        %3567 = vmatpush2.bf16.msra.mxu0 %v3249
        %3568 = vmatprep.subr.bf16.mxu0 %v3246
        %3569 = vmatpush2.bf16.msra.mxu0 %v3245
        %3570 = vmatprep.subr.bf16.mxu0 %v3242
        %3571 = vmatpush2.bf16.msra.mxu0 %v3241
        %3572 = vmatprep.subr.bf16.mxu0 %v3238
        %3573 = vmatpush2.bf16.msra.mxu0 %v3237
        %3574 = vmatprep.subr.bf16.mxu0 %v3234
        %3575 = vmatpush2.bf16.msra.mxu0 %v3233
        %3576 = vmatprep.subr.bf16.mxu0 %v3230
        %3577 = vmatpush2.bf16.msra.mxu0 %v3229
        %3578 = vmatprep.subr.bf16.mxu0 %v3226
        %3579 = vmatpush2.bf16.msra.mxu0 %v3225
        %3580 = vmatprep.subr.bf16.mxu0 %v3222
        %3581 = vmatpush2.bf16.msra.mxu0 %v3221
        %3582 = vmatprep.mubr.bf16.mxu0 %v2540
        %3583 = vmatmul.mubr.bf16.gmra.mxu0 %v2539
        %v3584 = vpop.f32.mrf.mxu0
        %v3585 = vadd.f32 %v3544, %v3584
        %v3586 = vpop.f32.mrf.mxu0
        %v3587 = vadd.f32 %v3546, %v3586
        %v3588 = vpop.f32.mrf.mxu0
        %v3589 = vpop.f32.mrf.mxu0
        %3590 = vdwg.mxu0
        %3591 = vmatprep.subr.bf16.mxu0 %v3282
        %3592 = vmatpush1.bf16.msra.mxu0 %v3281
        %3593 = vmatprep.subr.bf16.mxu0 %v3278
        %3594 = vmatpush1.bf16.msra.mxu0 %v3277
        %3595 = vmatprep.subr.bf16.mxu0 %v3274
        %3596 = vmatpush1.bf16.msra.mxu0 %v3273
        %3597 = vmatprep.subr.bf16.mxu0 %v3270
        %3598 = vmatpush1.bf16.msra.mxu0 %v3269
        %3599 = vmatprep.subr.bf16.mxu0 %v3266
        %3600 = vmatpush1.bf16.msra.mxu0 %v3265
        %3601 = vmatprep.subr.bf16.mxu0 %v3262
        %3602 = vmatpush1.bf16.msra.mxu0 %v3261
        %3603 = vmatprep.subr.bf16.mxu0 %v3258
        %3604 = vmatpush1.bf16.msra.mxu0 %v3257
        %3605 = vmatprep.subr.bf16.mxu0 %v3254
        %3606 = vmatpush1.bf16.msra.mxu0 %v3253
        %3607 = vmatprep.subr.bf16.mxu0 %v3314
        %3608 = vmatpush2.bf16.msra.mxu0 %v3313
        %3609 = vmatprep.subr.bf16.mxu0 %v3310
        %3610 = vmatpush2.bf16.msra.mxu0 %v3309
        %3611 = vmatprep.subr.bf16.mxu0 %v3306
        %3612 = vmatpush2.bf16.msra.mxu0 %v3305
        %3613 = vmatprep.subr.bf16.mxu0 %v3302
        %3614 = vmatpush2.bf16.msra.mxu0 %v3301
        %3615 = vmatprep.subr.bf16.mxu0 %v3298
        %3616 = vmatpush2.bf16.msra.mxu0 %v3297
        %3617 = vmatprep.subr.bf16.mxu0 %v3294
        %3618 = vmatpush2.bf16.msra.mxu0 %v3293
        %3619 = vmatprep.subr.bf16.mxu0 %v3290
        %3620 = vmatpush2.bf16.msra.mxu0 %v3289
        %3621 = vmatprep.subr.bf16.mxu0 %v3286
        %3622 = vmatpush2.bf16.msra.mxu0 %v3285
        %3623 = vmatprep.mubr.bf16.mxu0 %v2542
        %3624 = vmatmul.mubr.bf16.gmra.mxu0 %v2541
        %v3625 = vpop.f32.mrf.mxu0
        %v3626 = vadd.f32 %v3585, %v3625
        %v3627 = vpop.f32.mrf.mxu0
        %v3628 = vadd.f32 %v3587, %v3627
        %v3629 = vpop.f32.mrf.mxu0
        %v3630 = vpop.f32.mrf.mxu0
        %3631 = vdwg.mxu0
        %3632 = vmatprep.subr.bf16.mxu0 %v3156
        %3633 = vmatpush1.bf16.msra.mxu0 %v3155
        %3634 = vmatprep.subr.bf16.mxu0 %v3152
        %3635 = vmatpush1.bf16.msra.mxu0 %v3151
        %3636 = vmatprep.subr.bf16.mxu0 %v3148
        %3637 = vmatpush1.bf16.msra.mxu0 %v3147
        %3638 = vmatprep.subr.bf16.mxu0 %v3144
        %3639 = vmatpush1.bf16.msra.mxu0 %v3143
        %3640 = vmatprep.subr.bf16.mxu0 %v3140
        %3641 = vmatpush1.bf16.msra.mxu0 %v3139
        %3642 = vmatprep.subr.bf16.mxu0 %v3136
        %3643 = vmatpush1.bf16.msra.mxu0 %v3135
        %3644 = vmatprep.subr.bf16.mxu0 %v3132
        %3645 = vmatpush1.bf16.msra.mxu0 %v3131
        %3646 = vmatprep.subr.bf16.mxu0 %v3128
        %3647 = vmatpush1.bf16.msra.mxu0 %v3127
        %3648 = vmatprep.subr.bf16.mxu0 %v3188
        %3649 = vmatpush2.bf16.msra.mxu0 %v3187
        %3650 = vmatprep.subr.bf16.mxu0 %v3184
        %3651 = vmatpush2.bf16.msra.mxu0 %v3183
        %3652 = vmatprep.subr.bf16.mxu0 %v3180
        %3653 = vmatpush2.bf16.msra.mxu0 %v3179
        %3654 = vmatprep.subr.bf16.mxu0 %v3176
        %3655 = vmatpush2.bf16.msra.mxu0 %v3175
        %3656 = vmatprep.subr.bf16.mxu0 %v3172
        %3657 = vmatpush2.bf16.msra.mxu0 %v3171
        %3658 = vmatprep.subr.bf16.mxu0 %v3168
        %3659 = vmatpush2.bf16.msra.mxu0 %v3167
        %3660 = vmatprep.subr.bf16.mxu0 %v3164
        %3661 = vmatpush2.bf16.msra.mxu0 %v3163
        %3662 = vmatprep.subr.bf16.mxu0 %v3160
        %3663 = vmatpush2.bf16.msra.mxu0 %v3159
        %3664 = vmatprep.mubr.bf16.mxu0 %v2538
        %3665 = vmatmul.mubr.bf16.gmra.mxu0 %v2537
        %v3666 = vpop.f32.mrf.mxu0
        %v3667 = vadd.f32 %v2519, %v3666
        %v3668 = vpop.f32.mrf.mxu0
        %v3669 = vadd.f32 %v2523, %v3668
        %v3670 = vpop.f32.mrf.mxu0
        %v3671 = vpop.f32.mrf.mxu0
        %3672 = vdwg.mxu0
        %3673 = vmatprep.subr.bf16.mxu0 %v3220
        %3674 = vmatpush1.bf16.msra.mxu0 %v3219
        %3675 = vmatprep.subr.bf16.mxu0 %v3216
        %3676 = vmatpush1.bf16.msra.mxu0 %v3215
        %3677 = vmatprep.subr.bf16.mxu0 %v3212
        %3678 = vmatpush1.bf16.msra.mxu0 %v3211
        %3679 = vmatprep.subr.bf16.mxu0 %v3208
        %3680 = vmatpush1.bf16.msra.mxu0 %v3207
        %3681 = vmatprep.subr.bf16.mxu0 %v3204
        %3682 = vmatpush1.bf16.msra.mxu0 %v3203
        %3683 = vmatprep.subr.bf16.mxu0 %v3200
        %3684 = vmatpush1.bf16.msra.mxu0 %v3199
        %3685 = vmatprep.subr.bf16.mxu0 %v3196
        %3686 = vmatpush1.bf16.msra.mxu0 %v3195
        %3687 = vmatprep.subr.bf16.mxu0 %v3192
        %3688 = vmatpush1.bf16.msra.mxu0 %v3191
        %3689 = vmatprep.subr.bf16.mxu0 %v3252
        %3690 = vmatpush2.bf16.msra.mxu0 %v3251
        %3691 = vmatprep.subr.bf16.mxu0 %v3248
        %3692 = vmatpush2.bf16.msra.mxu0 %v3247
        %3693 = vmatprep.subr.bf16.mxu0 %v3244
        %3694 = vmatpush2.bf16.msra.mxu0 %v3243
        %3695 = vmatprep.subr.bf16.mxu0 %v3240
        %3696 = vmatpush2.bf16.msra.mxu0 %v3239
        %3697 = vmatprep.subr.bf16.mxu0 %v3236
        %3698 = vmatpush2.bf16.msra.mxu0 %v3235
        %3699 = vmatprep.subr.bf16.mxu0 %v3232
        %3700 = vmatpush2.bf16.msra.mxu0 %v3231
        %3701 = vmatprep.subr.bf16.mxu0 %v3228
        %3702 = vmatpush2.bf16.msra.mxu0 %v3227
        %3703 = vmatprep.subr.bf16.mxu0 %v3224
        %3704 = vmatpush2.bf16.msra.mxu0 %v3223
        %3705 = vmatprep.mubr.bf16.mxu0 %v2540
        %3706 = vmatmul.mubr.bf16.gmra.mxu0 %v2539
        %v3707 = vpop.f32.mrf.mxu0
        %v3708 = vadd.f32 %v3667, %v3707
        %v3709 = vpop.f32.mrf.mxu0
        %v3710 = vadd.f32 %v3669, %v3709
        %v3711 = vpop.f32.mrf.mxu0
        %v3712 = vpop.f32.mrf.mxu0
        %3713 = vdwg.mxu0
        %3714 = vmatprep.subr.bf16.mxu0 %v3284
        %3715 = vmatpush1.bf16.msra.mxu0 %v3283
        %3716 = vmatprep.subr.bf16.mxu0 %v3280
        %3717 = vmatpush1.bf16.msra.mxu0 %v3279
        %3718 = vmatprep.subr.bf16.mxu0 %v3276
        %3719 = vmatpush1.bf16.msra.mxu0 %v3275
        %3720 = vmatprep.subr.bf16.mxu0 %v3272
        %3721 = vmatpush1.bf16.msra.mxu0 %v3271
        %3722 = vmatprep.subr.bf16.mxu0 %v3268
        %3723 = vmatpush1.bf16.msra.mxu0 %v3267
        %3724 = vmatprep.subr.bf16.mxu0 %v3264
        %3725 = vmatpush1.bf16.msra.mxu0 %v3263
        %3726 = vmatprep.subr.bf16.mxu0 %v3260
        %3727 = vmatpush1.bf16.msra.mxu0 %v3259
        %3728 = vmatprep.subr.bf16.mxu0 %v3256
        %3729 = vmatpush1.bf16.msra.mxu0 %v3255
        %3730 = vmatprep.subr.bf16.mxu0 %v3316
        %3731 = vmatpush2.bf16.msra.mxu0 %v3315
        %3732 = vmatprep.subr.bf16.mxu0 %v3312
        %3733 = vmatpush2.bf16.msra.mxu0 %v3311
        %3734 = vmatprep.subr.bf16.mxu0 %v3308
        %3735 = vmatpush2.bf16.msra.mxu0 %v3307
        %3736 = vmatprep.subr.bf16.mxu0 %v3304
        %3737 = vmatpush2.bf16.msra.mxu0 %v3303
        %3738 = vmatprep.subr.bf16.mxu0 %v3300
        %3739 = vmatpush2.bf16.msra.mxu0 %v3299
        %3740 = vmatprep.subr.bf16.mxu0 %v3296
        %3741 = vmatpush2.bf16.msra.mxu0 %v3295
        %3742 = vmatprep.subr.bf16.mxu0 %v3292
        %3743 = vmatpush2.bf16.msra.mxu0 %v3291
        %3744 = vmatprep.subr.bf16.mxu0 %v3288
        %3745 = vmatpush2.bf16.msra.mxu0 %v3287
        %3746 = vmatprep.mubr.bf16.mxu0 %v2542
        %3747 = vmatmul.mubr.bf16.gmra.mxu0 %v2541
        %v3748 = vpop.f32.mrf.mxu0
        %v3749 = vadd.f32 %v3708, %v3748
        %v3750 = vpop.f32.mrf.mxu0
        %v3751 = vadd.f32 %v3710, %v3750
        %v3752 = vpop.f32.mrf.mxu0
        %v3753 = vpop.f32.mrf.mxu0
        %3754 = vdwg.mxu0
        %v3755 = vmax.f32 %v3626, 0.0
        %v3756 = vmax.f32 %v3628, 0.0
        %v3757 = vmax.f32 %v3749, 0.0
        %v3758 = vmax.f32 %v3751, 0.0
        %v3759 = vld [vmem:[%s856] sm:$0xff]
        %v3760 = vld [vmem:[%s856 + $0x8] sm:$0xff]
        %v3761 = vld [vmem:[%s856 + $0x10] sm:$0xff]
        %v3765 = vunpack.c.l.b16 %v3759
        %v3766 = vunpack.c.h.b16 %v3759
        %v3767 = vunpack.c.l.b16 %v3760
        %v3768 = vunpack.c.h.b16 %v3760
        %v3769 = vunpack.c.l.b16 %v3761
        %v3770 = vunpack.c.h.b16 %v3761
        %v3771 = vpack.c.b16 %v3765, %v3765
        %v3772 = vpack.c.b16 %v3766, %v3766
        %v3773 = vpack.c.b16 %v3767, %v3767
        %v3774 = vpack.c.b16 %v3768, %v3768
        %v3775 = vpack.c.b16 %v3769, %v3769
        %v3776 = vpack.c.b16 %v3770, %v3770
        %3783 = vmatprep.subr.bf16.mxu0 %v3154
        %3784 = vmatpush1.bf16.msra.mxu0 %v3153
        %3785 = vmatprep.subr.bf16.mxu0 %v3150
        %3786 = vmatpush1.bf16.msra.mxu0 %v3149
        %3787 = vmatprep.subr.bf16.mxu0 %v3146
        %3788 = vmatpush1.bf16.msra.mxu0 %v3145
        %3789 = vmatprep.subr.bf16.mxu0 %v3142
        %3790 = vmatpush1.bf16.msra.mxu0 %v3141
        %3791 = vmatprep.subr.bf16.mxu0 %v3138
        %3792 = vmatpush1.bf16.msra.mxu0 %v3137
        %3793 = vmatprep.subr.bf16.mxu0 %v3134
        %3794 = vmatpush1.bf16.msra.mxu0 %v3133
        %3795 = vmatprep.subr.bf16.mxu0 %v3130
        %3796 = vmatpush1.bf16.msra.mxu0 %v3129
        %3797 = vmatprep.subr.bf16.mxu0 %v3126
        %3798 = vmatpush1.bf16.msra.mxu0 %v3125
        %3799 = vmatprep.subr.bf16.mxu0 %v3186
        %3800 = vmatpush2.bf16.msra.mxu0 %v3185
        %3801 = vmatprep.subr.bf16.mxu0 %v3182
        %3802 = vmatpush2.bf16.msra.mxu0 %v3181
        %3803 = vmatprep.subr.bf16.mxu0 %v3178
        %3804 = vmatpush2.bf16.msra.mxu0 %v3177
        %3805 = vmatprep.subr.bf16.mxu0 %v3174
        %3806 = vmatpush2.bf16.msra.mxu0 %v3173
        %3807 = vmatprep.subr.bf16.mxu0 %v3170
        %3808 = vmatpush2.bf16.msra.mxu0 %v3169
        %3809 = vmatprep.subr.bf16.mxu0 %v3166
        %3810 = vmatpush2.bf16.msra.mxu0 %v3165
        %3811 = vmatprep.subr.bf16.mxu0 %v3162
        %3812 = vmatpush2.bf16.msra.mxu0 %v3161
        %3813 = vmatprep.subr.bf16.mxu0 %v3158
        %3814 = vmatpush2.bf16.msra.mxu0 %v3157
        %3815 = vmatprep.mubr.bf16.mxu0 %v3772
        %3816 = vmatmul.mubr.bf16.gmra.mxu0 %v3771
        %v3817 = vpop.f32.mrf.mxu0
        %v3818 = vadd.f32 %v2511, %v3817
        %v3819 = vpop.f32.mrf.mxu0
        %v3820 = vadd.f32 %v2515, %v3819
        %v3821 = vpop.f32.mrf.mxu0
        %v3822 = vpop.f32.mrf.mxu0
        %3823 = vdwg.mxu0
        %3824 = vmatprep.subr.bf16.mxu0 %v3218
        %3825 = vmatpush1.bf16.msra.mxu0 %v3217
        %3826 = vmatprep.subr.bf16.mxu0 %v3214
        %3827 = vmatpush1.bf16.msra.mxu0 %v3213
        %3828 = vmatprep.subr.bf16.mxu0 %v3210
        %3829 = vmatpush1.bf16.msra.mxu0 %v3209
        %3830 = vmatprep.subr.bf16.mxu0 %v3206
        %3831 = vmatpush1.bf16.msra.mxu0 %v3205
        %3832 = vmatprep.subr.bf16.mxu0 %v3202
        %3833 = vmatpush1.bf16.msra.mxu0 %v3201
        %3834 = vmatprep.subr.bf16.mxu0 %v3198
        %3835 = vmatpush1.bf16.msra.mxu0 %v3197
        %3836 = vmatprep.subr.bf16.mxu0 %v3194
        %3837 = vmatpush1.bf16.msra.mxu0 %v3193
        %3838 = vmatprep.subr.bf16.mxu0 %v3190
        %3839 = vmatpush1.bf16.msra.mxu0 %v3189
        %3840 = vmatprep.subr.bf16.mxu0 %v3250
        %3841 = vmatpush2.bf16.msra.mxu0 %v3249
        %3842 = vmatprep.subr.bf16.mxu0 %v3246
        %3843 = vmatpush2.bf16.msra.mxu0 %v3245
        %3844 = vmatprep.subr.bf16.mxu0 %v3242
        %3845 = vmatpush2.bf16.msra.mxu0 %v3241
        %3846 = vmatprep.subr.bf16.mxu0 %v3238
        %3847 = vmatpush2.bf16.msra.mxu0 %v3237
        %3848 = vmatprep.subr.bf16.mxu0 %v3234
        %3849 = vmatpush2.bf16.msra.mxu0 %v3233
        %3850 = vmatprep.subr.bf16.mxu0 %v3230
        %3851 = vmatpush2.bf16.msra.mxu0 %v3229
        %3852 = vmatprep.subr.bf16.mxu0 %v3226
        %3853 = vmatpush2.bf16.msra.mxu0 %v3225
        %3854 = vmatprep.subr.bf16.mxu0 %v3222
        %3855 = vmatpush2.bf16.msra.mxu0 %v3221
        %3856 = vmatprep.mubr.bf16.mxu0 %v3774
        %3857 = vmatmul.mubr.bf16.gmra.mxu0 %v3773
        %v3858 = vpop.f32.mrf.mxu0
        %v3859 = vadd.f32 %v3818, %v3858
        %v3860 = vpop.f32.mrf.mxu0
        %v3861 = vadd.f32 %v3820, %v3860
        %v3862 = vpop.f32.mrf.mxu0
        %v3863 = vpop.f32.mrf.mxu0
        %3864 = vdwg.mxu0
        %3865 = vmatprep.subr.bf16.mxu0 %v3282
        %3866 = vmatpush1.bf16.msra.mxu0 %v3281
        %3867 = vmatprep.subr.bf16.mxu0 %v3278
        %3868 = vmatpush1.bf16.msra.mxu0 %v3277
        %3869 = vmatprep.subr.bf16.mxu0 %v3274
        %3870 = vmatpush1.bf16.msra.mxu0 %v3273
        %3871 = vmatprep.subr.bf16.mxu0 %v3270
        %3872 = vmatpush1.bf16.msra.mxu0 %v3269
        %3873 = vmatprep.subr.bf16.mxu0 %v3266
        %3874 = vmatpush1.bf16.msra.mxu0 %v3265
        %3875 = vmatprep.subr.bf16.mxu0 %v3262
        %3876 = vmatpush1.bf16.msra.mxu0 %v3261
        %3877 = vmatprep.subr.bf16.mxu0 %v3258
        %3878 = vmatpush1.bf16.msra.mxu0 %v3257
        %3879 = vmatprep.subr.bf16.mxu0 %v3254
        %3880 = vmatpush1.bf16.msra.mxu0 %v3253
        %3881 = vmatprep.subr.bf16.mxu0 %v3314
        %3882 = vmatpush2.bf16.msra.mxu0 %v3313
        %3883 = vmatprep.subr.bf16.mxu0 %v3310
        %3884 = vmatpush2.bf16.msra.mxu0 %v3309
        %3885 = vmatprep.subr.bf16.mxu0 %v3306
        %3886 = vmatpush2.bf16.msra.mxu0 %v3305
        %3887 = vmatprep.subr.bf16.mxu0 %v3302
        %3888 = vmatpush2.bf16.msra.mxu0 %v3301
        %3889 = vmatprep.subr.bf16.mxu0 %v3298
        %3890 = vmatpush2.bf16.msra.mxu0 %v3297
        %3891 = vmatprep.subr.bf16.mxu0 %v3294
        %3892 = vmatpush2.bf16.msra.mxu0 %v3293
        %3893 = vmatprep.subr.bf16.mxu0 %v3290
        %3894 = vmatpush2.bf16.msra.mxu0 %v3289
        %3895 = vmatprep.subr.bf16.mxu0 %v3286
        %3896 = vmatpush2.bf16.msra.mxu0 %v3285
        %3897 = vmatprep.mubr.bf16.mxu0 %v3776
        %3898 = vmatmul.mubr.bf16.gmra.mxu0 %v3775
        %v3899 = vpop.f32.mrf.mxu0
        %v3900 = vadd.f32 %v3859, %v3899
        %v3901 = vpop.f32.mrf.mxu0
        %v3902 = vadd.f32 %v3861, %v3901
        %v3903 = vpop.f32.mrf.mxu0
        %v3904 = vpop.f32.mrf.mxu0
        %3905 = vdwg.mxu0
        %3906 = vmatprep.subr.bf16.mxu0 %v3156
        %3907 = vmatpush1.bf16.msra.mxu0 %v3155
        %3908 = vmatprep.subr.bf16.mxu0 %v3152
        %3909 = vmatpush1.bf16.msra.mxu0 %v3151
        %3910 = vmatprep.subr.bf16.mxu0 %v3148
        %3911 = vmatpush1.bf16.msra.mxu0 %v3147
        %3912 = vmatprep.subr.bf16.mxu0 %v3144
        %3913 = vmatpush1.bf16.msra.mxu0 %v3143
        %3914 = vmatprep.subr.bf16.mxu0 %v3140
        %3915 = vmatpush1.bf16.msra.mxu0 %v3139
        %3916 = vmatprep.subr.bf16.mxu0 %v3136
        %3917 = vmatpush1.bf16.msra.mxu0 %v3135
        %3918 = vmatprep.subr.bf16.mxu0 %v3132
        %3919 = vmatpush1.bf16.msra.mxu0 %v3131
        %3920 = vmatprep.subr.bf16.mxu0 %v3128
        %3921 = vmatpush1.bf16.msra.mxu0 %v3127
        %3922 = vmatprep.subr.bf16.mxu0 %v3188
        %3923 = vmatpush2.bf16.msra.mxu0 %v3187
        %3924 = vmatprep.subr.bf16.mxu0 %v3184
        %3925 = vmatpush2.bf16.msra.mxu0 %v3183
        %3926 = vmatprep.subr.bf16.mxu0 %v3180
        %3927 = vmatpush2.bf16.msra.mxu0 %v3179
        %3928 = vmatprep.subr.bf16.mxu0 %v3176
        %3929 = vmatpush2.bf16.msra.mxu0 %v3175
        %3930 = vmatprep.subr.bf16.mxu0 %v3172
        %3931 = vmatpush2.bf16.msra.mxu0 %v3171
        %3932 = vmatprep.subr.bf16.mxu0 %v3168
        %3933 = vmatpush2.bf16.msra.mxu0 %v3167
        %3934 = vmatprep.subr.bf16.mxu0 %v3164
        %3935 = vmatpush2.bf16.msra.mxu0 %v3163
        %3936 = vmatprep.subr.bf16.mxu0 %v3160
        %3937 = vmatpush2.bf16.msra.mxu0 %v3159
        %3938 = vmatprep.mubr.bf16.mxu0 %v3772
        %3939 = vmatmul.mubr.bf16.gmra.mxu0 %v3771
        %v3940 = vpop.f32.mrf.mxu0
        %v3941 = vadd.f32 %v2519, %v3940
        %v3942 = vpop.f32.mrf.mxu0
        %v3943 = vadd.f32 %v2523, %v3942
        %v3944 = vpop.f32.mrf.mxu0
        %v3945 = vpop.f32.mrf.mxu0
        %3946 = vdwg.mxu0
        %3947 = vmatprep.subr.bf16.mxu0 %v3220
        %3948 = vmatpush1.bf16.msra.mxu0 %v3219
        %3949 = vmatprep.subr.bf16.mxu0 %v3216
        %3950 = vmatpush1.bf16.msra.mxu0 %v3215
        %3951 = vmatprep.subr.bf16.mxu0 %v3212
        %3952 = vmatpush1.bf16.msra.mxu0 %v3211
        %3953 = vmatprep.subr.bf16.mxu0 %v3208
        %3954 = vmatpush1.bf16.msra.mxu0 %v3207
        %3955 = vmatprep.subr.bf16.mxu0 %v3204
        %3956 = vmatpush1.bf16.msra.mxu0 %v3203
        %3957 = vmatprep.subr.bf16.mxu0 %v3200
        %3958 = vmatpush1.bf16.msra.mxu0 %v3199
        %3959 = vmatprep.subr.bf16.mxu0 %v3196
        %3960 = vmatpush1.bf16.msra.mxu0 %v3195
        %3961 = vmatprep.subr.bf16.mxu0 %v3192
        %3962 = vmatpush1.bf16.msra.mxu0 %v3191
        %3963 = vmatprep.subr.bf16.mxu0 %v3252
        %3964 = vmatpush2.bf16.msra.mxu0 %v3251
        %3965 = vmatprep.subr.bf16.mxu0 %v3248
        %3966 = vmatpush2.bf16.msra.mxu0 %v3247
        %3967 = vmatprep.subr.bf16.mxu0 %v3244
        %3968 = vmatpush2.bf16.msra.mxu0 %v3243
        %3969 = vmatprep.subr.bf16.mxu0 %v3240
        %3970 = vmatpush2.bf16.msra.mxu0 %v3239
        %3971 = vmatprep.subr.bf16.mxu0 %v3236
        %3972 = vmatpush2.bf16.msra.mxu0 %v3235
        %3973 = vmatprep.subr.bf16.mxu0 %v3232
        %3974 = vmatpush2.bf16.msra.mxu0 %v3231
        %3975 = vmatprep.subr.bf16.mxu0 %v3228
        %3976 = vmatpush2.bf16.msra.mxu0 %v3227
        %3977 = vmatprep.subr.bf16.mxu0 %v3224
        %3978 = vmatpush2.bf16.msra.mxu0 %v3223
        %3979 = vmatprep.mubr.bf16.mxu0 %v3774
        %3980 = vmatmul.mubr.bf16.gmra.mxu0 %v3773
        %v3981 = vpop.f32.mrf.mxu0
        %v3982 = vadd.f32 %v3941, %v3981
        %v3983 = vpop.f32.mrf.mxu0
        %v3984 = vadd.f32 %v3943, %v3983
        %v3985 = vpop.f32.mrf.mxu0
        %v3986 = vpop.f32.mrf.mxu0
        %3987 = vdwg.mxu0
        %3988 = vmatprep.subr.bf16.mxu0 %v3284
        %3989 = vmatpush1.bf16.msra.mxu0 %v3283
        %3990 = vmatprep.subr.bf16.mxu0 %v3280
        %3991 = vmatpush1.bf16.msra.mxu0 %v3279
        %3992 = vmatprep.subr.bf16.mxu0 %v3276
        %3993 = vmatpush1.bf16.msra.mxu0 %v3275
        %3994 = vmatprep.subr.bf16.mxu0 %v3272
        %3995 = vmatpush1.bf16.msra.mxu0 %v3271
        %3996 = vmatprep.subr.bf16.mxu0 %v3268
        %3997 = vmatpush1.bf16.msra.mxu0 %v3267
        %3998 = vmatprep.subr.bf16.mxu0 %v3264
        %3999 = vmatpush1.bf16.msra.mxu0 %v3263
        %4000 = vmatprep.subr.bf16.mxu0 %v3260
        %4001 = vmatpush1.bf16.msra.mxu0 %v3259
        %4002 = vmatprep.subr.bf16.mxu0 %v3256
        %4003 = vmatpush1.bf16.msra.mxu0 %v3255
        %4004 = vmatprep.subr.bf16.mxu0 %v3316
        %4005 = vmatpush2.bf16.msra.mxu0 %v3315
        %4006 = vmatprep.subr.bf16.mxu0 %v3312
        %4007 = vmatpush2.bf16.msra.mxu0 %v3311
        %4008 = vmatprep.subr.bf16.mxu0 %v3308
        %4009 = vmatpush2.bf16.msra.mxu0 %v3307
        %4010 = vmatprep.subr.bf16.mxu0 %v3304
        %4011 = vmatpush2.bf16.msra.mxu0 %v3303
        %4012 = vmatprep.subr.bf16.mxu0 %v3300
        %4013 = vmatpush2.bf16.msra.mxu0 %v3299
        %4014 = vmatprep.subr.bf16.mxu0 %v3296
        %4015 = vmatpush2.bf16.msra.mxu0 %v3295
        %4016 = vmatprep.subr.bf16.mxu0 %v3292
        %4017 = vmatpush2.bf16.msra.mxu0 %v3291
        %4018 = vmatprep.subr.bf16.mxu0 %v3288
        %4019 = vmatpush2.bf16.msra.mxu0 %v3287
        %4020 = vmatprep.mubr.bf16.mxu0 %v3776
        %4021 = vmatmul.mubr.bf16.gmra.mxu0 %v3775
        %v4022 = vpop.f32.mrf.mxu0
        %v4023 = vadd.f32 %v3982, %v4022
        %v4024 = vpop.f32.mrf.mxu0
        %v4025 = vadd.f32 %v3984, %v4024
        %v4026 = vpop.f32.mrf.mxu0
        %v4027 = vpop.f32.mrf.mxu0
        %4028 = vdwg.mxu0
        %v4029 = vmax.f32 %v3900, 0.0
        %v4030 = vmax.f32 %v3902, 0.0
        %v4031 = vmax.f32 %v4023, 0.0
        %v4032 = vmax.f32 %v4025, 0.0
        %v4033 = vld [vmem:[%s861] sm:$0xff]
        %v4034 = vld [vmem:[%s861 + $0x8] sm:$0xff]
        %v4035 = vld [vmem:[%s861 + $0x10] sm:$0xff]
        %v4036 = vld [vmem:[%s861 + $0x18] sm:$0xff]
        %v4037 = vld [vmem:[%s861 + $0x20] sm:$0xff]
        %v4038 = vld [vmem:[%s861 + $0x28] sm:$0xff]
        %v4039 = vld [vmem:[%s861 + $0x30] sm:$0xff]
        %v4040 = vld [vmem:[%s861 + $0x38] sm:$0xff]
        %v4041 = vld [vmem:[#allocation12] sm:$0xff]
        %v4042 = vld [vmem:[#allocation12 + $0x8] sm:$0xff]
        %v4043 = vld [vmem:[#allocation12 + $0x10] sm:$0xff]
        %v4044 = vld [vmem:[#allocation12 + $0x18] sm:$0xff]
        %v4045 = vld [vmem:[#allocation12 + $0x20] sm:$0xff]
        %v4046 = vld [vmem:[#allocation12 + $0x28] sm:$0xff]
        %v4047 = vld [vmem:[#allocation12 + $0x30] sm:$0xff]
        %v4048 = vld [vmem:[#allocation12 + $0x38] sm:$0xff]
        %v4049 = vld [vmem:[#allocation12 + $0x40] sm:$0xff]
        %v4050 = vld [vmem:[#allocation12 + $0x48] sm:$0xff]
        %v4051 = vld [vmem:[#allocation12 + $0x50] sm:$0xff]
        %v4052 = vld [vmem:[#allocation12 + $0x58] sm:$0xff]
        %v4053 = vld [vmem:[#allocation12 + $0x60] sm:$0xff]
        %v4054 = vld [vmem:[#allocation12 + $0x68] sm:$0xff]
        %v4055 = vld [vmem:[#allocation12 + $0x70] sm:$0xff]
        %v4056 = vld [vmem:[#allocation12 + $0x78] sm:$0xff]
        %v4057 = vld [vmem:[#allocation12 + $0x80] sm:$0xff]
        %v4058 = vld [vmem:[#allocation12 + $0x88] sm:$0xff]
        %v4059 = vld [vmem:[#allocation12 + $0x90] sm:$0xff]
        %v4060 = vld [vmem:[#allocation12 + $0x98] sm:$0xff]
        %v4061 = vld [vmem:[#allocation12 + $0xa0] sm:$0xff]
        %v4062 = vld [vmem:[#allocation12 + $0xa8] sm:$0xff]
        %v4063 = vld [vmem:[#allocation12 + $0xb0] sm:$0xff]
        %v4064 = vld [vmem:[#allocation12 + $0xb8] sm:$0xff]
        %v4065 = vld [vmem:[#allocation12 + $0xc0] sm:$0xff]
        %v4066 = vld [vmem:[#allocation12 + $0xc8] sm:$0xff]
        %v4067 = vld [vmem:[#allocation12 + $0xd0] sm:$0xff]
        %v4068 = vld [vmem:[#allocation12 + $0xd8] sm:$0xff]
        %v4069 = vld [vmem:[#allocation12 + $0xe0] sm:$0xff]
        %v4070 = vld [vmem:[#allocation12 + $0xe8] sm:$0xff]
        %v4071 = vld [vmem:[#allocation12 + $0xf0] sm:$0xff]
        %v4072 = vld [vmem:[#allocation12 + $0xf8] sm:$0xff]
        %v4073 = vld [vmem:[#allocation12 + $0x100] sm:$0xff]
        %v4074 = vld [vmem:[#allocation12 + $0x108] sm:$0xff]
        %v4075 = vld [vmem:[#allocation12 + $0x110] sm:$0xff]
        %v4076 = vld [vmem:[#allocation12 + $0x118] sm:$0xff]
        %v4077 = vld [vmem:[#allocation12 + $0x120] sm:$0xff]
        %v4078 = vld [vmem:[#allocation12 + $0x128] sm:$0xff]
        %v4079 = vld [vmem:[#allocation12 + $0x130] sm:$0xff]
        %v4080 = vld [vmem:[#allocation12 + $0x138] sm:$0xff]
        %v4081 = vld [vmem:[#allocation12 + $0x140] sm:$0xff]
        %v4082 = vld [vmem:[#allocation12 + $0x148] sm:$0xff]
        %v4083 = vld [vmem:[#allocation12 + $0x150] sm:$0xff]
        %v4084 = vld [vmem:[#allocation12 + $0x158] sm:$0xff]
        %v4085 = vld [vmem:[#allocation12 + $0x160] sm:$0xff]
        %v4086 = vld [vmem:[#allocation12 + $0x168] sm:$0xff]
        %v4087 = vld [vmem:[#allocation12 + $0x170] sm:$0xff]
        %v4088 = vld [vmem:[#allocation12 + $0x178] sm:$0xff]
        %v4089 = vld [vmem:[#allocation12 + $0x180] sm:$0xff]
        %v4090 = vld [vmem:[#allocation12 + $0x188] sm:$0xff]
        %v4091 = vld [vmem:[#allocation12 + $0x190] sm:$0xff]
        %v4092 = vld [vmem:[#allocation12 + $0x198] sm:$0xff]
        %v4093 = vld [vmem:[#allocation12 + $0x1a0] sm:$0xff]
        %v4094 = vld [vmem:[#allocation12 + $0x1a8] sm:$0xff]
        %v4095 = vld [vmem:[#allocation12 + $0x1b0] sm:$0xff]
        %v4096 = vld [vmem:[#allocation12 + $0x1b8] sm:$0xff]
        %v4097 = vld [vmem:[#allocation12 + $0x1c0] sm:$0xff]
        %v4098 = vld [vmem:[#allocation12 + $0x1c8] sm:$0xff]
        %v4099 = vld [vmem:[#allocation12 + $0x1d0] sm:$0xff]
        %v4100 = vld [vmem:[#allocation12 + $0x1d8] sm:$0xff]
        %v4101 = vld [vmem:[#allocation12 + $0x1e0] sm:$0xff]
        %v4102 = vld [vmem:[#allocation12 + $0x1e8] sm:$0xff]
        %v4103 = vld [vmem:[#allocation12 + $0x1f0] sm:$0xff]
        %v4104 = vld [vmem:[#allocation12 + $0x1f8] sm:$0xff]
        %v4105 = vld [vmem:[#allocation12 + $0x200] sm:$0xff]
        %v4106 = vld [vmem:[#allocation12 + $0x208] sm:$0xff]
        %v4107 = vld [vmem:[#allocation12 + $0x210] sm:$0xff]
        %v4108 = vld [vmem:[#allocation12 + $0x218] sm:$0xff]
        %v4109 = vld [vmem:[#allocation12 + $0x220] sm:$0xff]
        %v4110 = vld [vmem:[#allocation12 + $0x228] sm:$0xff]
        %v4111 = vld [vmem:[#allocation12 + $0x230] sm:$0xff]
        %v4112 = vld [vmem:[#allocation12 + $0x238] sm:$0xff]
        %v4113 = vld [vmem:[#allocation12 + $0x240] sm:$0xff]
        %v4114 = vld [vmem:[#allocation12 + $0x248] sm:$0xff]
        %v4115 = vld [vmem:[#allocation12 + $0x250] sm:$0xff]
        %v4116 = vld [vmem:[#allocation12 + $0x258] sm:$0xff]
        %v4117 = vld [vmem:[#allocation12 + $0x260] sm:$0xff]
        %v4118 = vld [vmem:[#allocation12 + $0x268] sm:$0xff]
        %v4119 = vld [vmem:[#allocation12 + $0x270] sm:$0xff]
        %v4120 = vld [vmem:[#allocation12 + $0x278] sm:$0xff]
        %v4121 = vld [vmem:[#allocation12 + $0x280] sm:$0xff]
        %v4122 = vld [vmem:[#allocation12 + $0x288] sm:$0xff]
        %v4123 = vld [vmem:[#allocation12 + $0x290] sm:$0xff]
        %v4124 = vld [vmem:[#allocation12 + $0x298] sm:$0xff]
        %v4125 = vld [vmem:[#allocation12 + $0x2a0] sm:$0xff]
        %v4126 = vld [vmem:[#allocation12 + $0x2a8] sm:$0xff]
        %v4127 = vld [vmem:[#allocation12 + $0x2b0] sm:$0xff]
        %v4128 = vld [vmem:[#allocation12 + $0x2b8] sm:$0xff]
        %v4129 = vld [vmem:[#allocation12 + $0x2c0] sm:$0xff]
        %v4130 = vld [vmem:[#allocation12 + $0x2c8] sm:$0xff]
        %v4131 = vld [vmem:[#allocation12 + $0x2d0] sm:$0xff]
        %v4132 = vld [vmem:[#allocation12 + $0x2d8] sm:$0xff]
        %v4133 = vld [vmem:[#allocation12 + $0x2e0] sm:$0xff]
        %v4134 = vld [vmem:[#allocation12 + $0x2e8] sm:$0xff]
        %v4135 = vld [vmem:[#allocation12 + $0x2f0] sm:$0xff]
        %v4136 = vld [vmem:[#allocation12 + $0x2f8] sm:$0xff]
        %v4137 = vld [vmem:[#allocation12 + $0x300] sm:$0xff]
        %v4138 = vld [vmem:[#allocation12 + $0x308] sm:$0xff]
        %v4139 = vld [vmem:[#allocation12 + $0x310] sm:$0xff]
        %v4140 = vld [vmem:[#allocation12 + $0x318] sm:$0xff]
        %v4141 = vld [vmem:[#allocation12 + $0x320] sm:$0xff]
        %v4142 = vld [vmem:[#allocation12 + $0x328] sm:$0xff]
        %v4143 = vld [vmem:[#allocation12 + $0x330] sm:$0xff]
        %v4144 = vld [vmem:[#allocation12 + $0x338] sm:$0xff]
        %v4145 = vld [vmem:[#allocation12 + $0x340] sm:$0xff]
        %v4146 = vld [vmem:[#allocation12 + $0x348] sm:$0xff]
        %v4147 = vld [vmem:[#allocation12 + $0x350] sm:$0xff]
        %v4148 = vld [vmem:[#allocation12 + $0x358] sm:$0xff]
        %v4149 = vld [vmem:[#allocation12 + $0x360] sm:$0xff]
        %v4150 = vld [vmem:[#allocation12 + $0x368] sm:$0xff]
        %v4151 = vld [vmem:[#allocation12 + $0x370] sm:$0xff]
        %v4152 = vld [vmem:[#allocation12 + $0x378] sm:$0xff]
        %v4153 = vld [vmem:[#allocation12 + $0x380] sm:$0xff]
        %v4154 = vld [vmem:[#allocation12 + $0x388] sm:$0xff]
        %v4155 = vld [vmem:[#allocation12 + $0x390] sm:$0xff]
        %v4156 = vld [vmem:[#allocation12 + $0x398] sm:$0xff]
        %v4157 = vld [vmem:[#allocation12 + $0x3a0] sm:$0xff]
        %v4158 = vld [vmem:[#allocation12 + $0x3a8] sm:$0xff]
        %v4159 = vld [vmem:[#allocation12 + $0x3b0] sm:$0xff]
        %v4160 = vld [vmem:[#allocation12 + $0x3b8] sm:$0xff]
        %v4161 = vld [vmem:[#allocation12 + $0x3c0] sm:$0xff]
        %v4162 = vld [vmem:[#allocation12 + $0x3c8] sm:$0xff]
        %v4163 = vld [vmem:[#allocation12 + $0x3d0] sm:$0xff]
        %v4164 = vld [vmem:[#allocation12 + $0x3d8] sm:$0xff]
        %v4165 = vld [vmem:[#allocation12 + $0x3e0] sm:$0xff]
        %v4166 = vld [vmem:[#allocation12 + $0x3e8] sm:$0xff]
        %v4167 = vld [vmem:[#allocation12 + $0x3f0] sm:$0xff]
        %v4168 = vld [vmem:[#allocation12 + $0x3f8] sm:$0xff]
        %v4169 = vld [vmem:[#allocation12 + $0x400] sm:$0xff]
        %v4170 = vld [vmem:[#allocation12 + $0x408] sm:$0xff]
        %v4171 = vld [vmem:[#allocation12 + $0x410] sm:$0xff]
        %v4172 = vld [vmem:[#allocation12 + $0x418] sm:$0xff]
        %v4173 = vld [vmem:[#allocation12 + $0x420] sm:$0xff]
        %v4174 = vld [vmem:[#allocation12 + $0x428] sm:$0xff]
        %v4175 = vld [vmem:[#allocation12 + $0x430] sm:$0xff]
        %v4176 = vld [vmem:[#allocation12 + $0x438] sm:$0xff]
        %v4177 = vld [vmem:[#allocation12 + $0x440] sm:$0xff]
        %v4178 = vld [vmem:[#allocation12 + $0x448] sm:$0xff]
        %v4179 = vld [vmem:[#allocation12 + $0x450] sm:$0xff]
        %v4180 = vld [vmem:[#allocation12 + $0x458] sm:$0xff]
        %v4181 = vld [vmem:[#allocation12 + $0x460] sm:$0xff]
        %v4182 = vld [vmem:[#allocation12 + $0x468] sm:$0xff]
        %v4183 = vld [vmem:[#allocation12 + $0x470] sm:$0xff]
        %v4184 = vld [vmem:[#allocation12 + $0x478] sm:$0xff]
        %v4185 = vld [vmem:[#allocation12 + $0x480] sm:$0xff]
        %v4186 = vld [vmem:[#allocation12 + $0x488] sm:$0xff]
        %v4187 = vld [vmem:[#allocation12 + $0x490] sm:$0xff]
        %v4188 = vld [vmem:[#allocation12 + $0x498] sm:$0xff]
        %v4189 = vld [vmem:[#allocation12 + $0x4a0] sm:$0xff]
        %v4190 = vld [vmem:[#allocation12 + $0x4a8] sm:$0xff]
        %v4191 = vld [vmem:[#allocation12 + $0x4b0] sm:$0xff]
        %v4192 = vld [vmem:[#allocation12 + $0x4b8] sm:$0xff]
        %v4193 = vld [vmem:[#allocation12 + $0x4c0] sm:$0xff]
        %v4194 = vld [vmem:[#allocation12 + $0x4c8] sm:$0xff]
        %v4195 = vld [vmem:[#allocation12 + $0x4d0] sm:$0xff]
        %v4196 = vld [vmem:[#allocation12 + $0x4d8] sm:$0xff]
        %v4197 = vld [vmem:[#allocation12 + $0x4e0] sm:$0xff]
        %v4198 = vld [vmem:[#allocation12 + $0x4e8] sm:$0xff]
        %v4199 = vld [vmem:[#allocation12 + $0x4f0] sm:$0xff]
        %v4200 = vld [vmem:[#allocation12 + $0x4f8] sm:$0xff]
        %v4201 = vld [vmem:[#allocation12 + $0x500] sm:$0xff]
        %v4202 = vld [vmem:[#allocation12 + $0x508] sm:$0xff]
        %v4203 = vld [vmem:[#allocation12 + $0x510] sm:$0xff]
        %v4204 = vld [vmem:[#allocation12 + $0x518] sm:$0xff]
        %v4205 = vld [vmem:[#allocation12 + $0x520] sm:$0xff]
        %v4206 = vld [vmem:[#allocation12 + $0x528] sm:$0xff]
        %v4207 = vld [vmem:[#allocation12 + $0x530] sm:$0xff]
        %v4208 = vld [vmem:[#allocation12 + $0x538] sm:$0xff]
        %v4209 = vld [vmem:[#allocation12 + $0x540] sm:$0xff]
        %v4210 = vld [vmem:[#allocation12 + $0x548] sm:$0xff]
        %v4211 = vld [vmem:[#allocation12 + $0x550] sm:$0xff]
        %v4212 = vld [vmem:[#allocation12 + $0x558] sm:$0xff]
        %v4213 = vld [vmem:[#allocation12 + $0x560] sm:$0xff]
        %v4214 = vld [vmem:[#allocation12 + $0x568] sm:$0xff]
        %v4215 = vld [vmem:[#allocation12 + $0x570] sm:$0xff]
        %v4216 = vld [vmem:[#allocation12 + $0x578] sm:$0xff]
        %v4217 = vld [vmem:[#allocation12 + $0x580] sm:$0xff]
        %v4218 = vld [vmem:[#allocation12 + $0x588] sm:$0xff]
        %v4219 = vld [vmem:[#allocation12 + $0x590] sm:$0xff]
        %v4220 = vld [vmem:[#allocation12 + $0x598] sm:$0xff]
        %v4221 = vld [vmem:[#allocation12 + $0x5a0] sm:$0xff]
        %v4222 = vld [vmem:[#allocation12 + $0x5a8] sm:$0xff]
        %v4223 = vld [vmem:[#allocation12 + $0x5b0] sm:$0xff]
        %v4224 = vld [vmem:[#allocation12 + $0x5b8] sm:$0xff]
        %v4225 = vld [vmem:[#allocation12 + $0x5c0] sm:$0xff]
        %v4226 = vld [vmem:[#allocation12 + $0x5c8] sm:$0xff]
        %v4227 = vld [vmem:[#allocation12 + $0x5d0] sm:$0xff]
        %v4228 = vld [vmem:[#allocation12 + $0x5d8] sm:$0xff]
        %v4229 = vld [vmem:[#allocation12 + $0x5e0] sm:$0xff]
        %v4230 = vld [vmem:[#allocation12 + $0x5e8] sm:$0xff]
        %v4231 = vld [vmem:[#allocation12 + $0x5f0] sm:$0xff]
        %v4232 = vld [vmem:[#allocation12 + $0x5f8] sm:$0xff]
        %v4233 = vld [vmem:[#allocation12 + $0x600] sm:$0xff]
        %v4234 = vld [vmem:[#allocation12 + $0x608] sm:$0xff]
        %v4235 = vld [vmem:[#allocation12 + $0x610] sm:$0xff]
        %v4236 = vld [vmem:[#allocation12 + $0x618] sm:$0xff]
        %v4237 = vld [vmem:[#allocation12 + $0x620] sm:$0xff]
        %v4238 = vld [vmem:[#allocation12 + $0x628] sm:$0xff]
        %v4239 = vld [vmem:[#allocation12 + $0x630] sm:$0xff]
        %v4240 = vld [vmem:[#allocation12 + $0x638] sm:$0xff]
        %v4241 = vld [vmem:[#allocation12 + $0x640] sm:$0xff]
        %v4242 = vld [vmem:[#allocation12 + $0x648] sm:$0xff]
        %v4243 = vld [vmem:[#allocation12 + $0x650] sm:$0xff]
        %v4244 = vld [vmem:[#allocation12 + $0x658] sm:$0xff]
        %v4245 = vld [vmem:[#allocation12 + $0x660] sm:$0xff]
        %v4246 = vld [vmem:[#allocation12 + $0x668] sm:$0xff]
        %v4247 = vld [vmem:[#allocation12 + $0x670] sm:$0xff]
        %v4248 = vld [vmem:[#allocation12 + $0x678] sm:$0xff]
        %v4249 = vld [vmem:[#allocation12 + $0x680] sm:$0xff]
        %v4250 = vld [vmem:[#allocation12 + $0x688] sm:$0xff]
        %v4251 = vld [vmem:[#allocation12 + $0x690] sm:$0xff]
        %v4252 = vld [vmem:[#allocation12 + $0x698] sm:$0xff]
        %v4253 = vld [vmem:[#allocation12 + $0x6a0] sm:$0xff]
        %v4254 = vld [vmem:[#allocation12 + $0x6a8] sm:$0xff]
        %v4255 = vld [vmem:[#allocation12 + $0x6b0] sm:$0xff]
        %v4256 = vld [vmem:[#allocation12 + $0x6b8] sm:$0xff]
        %v4257 = vld [vmem:[#allocation12 + $0x6c0] sm:$0xff]
        %v4258 = vld [vmem:[#allocation12 + $0x6c8] sm:$0xff]
        %v4259 = vld [vmem:[#allocation12 + $0x6d0] sm:$0xff]
        %v4260 = vld [vmem:[#allocation12 + $0x6d8] sm:$0xff]
        %v4261 = vld [vmem:[#allocation12 + $0x6e0] sm:$0xff]
        %v4262 = vld [vmem:[#allocation12 + $0x6e8] sm:$0xff]
        %v4263 = vld [vmem:[#allocation12 + $0x6f0] sm:$0xff]
        %v4264 = vld [vmem:[#allocation12 + $0x6f8] sm:$0xff]
        %v4265 = vld [vmem:[#allocation12 + $0x700] sm:$0xff]
        %v4266 = vld [vmem:[#allocation12 + $0x708] sm:$0xff]
        %v4267 = vld [vmem:[#allocation12 + $0x710] sm:$0xff]
        %v4268 = vld [vmem:[#allocation12 + $0x718] sm:$0xff]
        %v4269 = vld [vmem:[#allocation12 + $0x720] sm:$0xff]
        %v4270 = vld [vmem:[#allocation12 + $0x728] sm:$0xff]
        %v4271 = vld [vmem:[#allocation12 + $0x730] sm:$0xff]
        %v4272 = vld [vmem:[#allocation12 + $0x738] sm:$0xff]
        %v4273 = vld [vmem:[#allocation12 + $0x740] sm:$0xff]
        %v4274 = vld [vmem:[#allocation12 + $0x748] sm:$0xff]
        %v4275 = vld [vmem:[#allocation12 + $0x750] sm:$0xff]
        %v4276 = vld [vmem:[#allocation12 + $0x758] sm:$0xff]
        %v4277 = vld [vmem:[#allocation12 + $0x760] sm:$0xff]
        %v4278 = vld [vmem:[#allocation12 + $0x768] sm:$0xff]
        %v4279 = vld [vmem:[#allocation12 + $0x770] sm:$0xff]
        %v4280 = vld [vmem:[#allocation12 + $0x778] sm:$0xff]
        %v4281 = vld [vmem:[#allocation12 + $0x780] sm:$0xff]
        %v4282 = vld [vmem:[#allocation12 + $0x788] sm:$0xff]
        %v4283 = vld [vmem:[#allocation12 + $0x790] sm:$0xff]
        %v4284 = vld [vmem:[#allocation12 + $0x798] sm:$0xff]
        %v4285 = vld [vmem:[#allocation12 + $0x7a0] sm:$0xff]
        %v4286 = vld [vmem:[#allocation12 + $0x7a8] sm:$0xff]
        %v4287 = vld [vmem:[#allocation12 + $0x7b0] sm:$0xff]
        %v4288 = vld [vmem:[#allocation12 + $0x7b8] sm:$0xff]
        %v4289 = vld [vmem:[#allocation12 + $0x7c0] sm:$0xff]
        %v4290 = vld [vmem:[#allocation12 + $0x7c8] sm:$0xff]
        %v4291 = vld [vmem:[#allocation12 + $0x7d0] sm:$0xff]
        %v4292 = vld [vmem:[#allocation12 + $0x7d8] sm:$0xff]
        %v4293 = vld [vmem:[#allocation12 + $0x7e0] sm:$0xff]
        %v4294 = vld [vmem:[#allocation12 + $0x7e8] sm:$0xff]
        %v4295 = vld [vmem:[#allocation12 + $0x7f0] sm:$0xff]
        %v4296 = vld [vmem:[#allocation12 + $0x7f8] sm:$0xff]
        %v4297 = vld [vmem:[#allocation12 + $0x800] sm:$0xff]
        %v4298 = vld [vmem:[#allocation12 + $0x808] sm:$0xff]
        %v4299 = vld [vmem:[#allocation12 + $0x810] sm:$0xff]
        %v4300 = vld [vmem:[#allocation12 + $0x818] sm:$0xff]
        %v4301 = vld [vmem:[#allocation12 + $0x820] sm:$0xff]
        %v4302 = vld [vmem:[#allocation12 + $0x828] sm:$0xff]
        %v4303 = vld [vmem:[#allocation12 + $0x830] sm:$0xff]
        %v4304 = vld [vmem:[#allocation12 + $0x838] sm:$0xff]
        %v4305 = vld [vmem:[#allocation12 + $0x840] sm:$0xff]
        %v4306 = vld [vmem:[#allocation12 + $0x848] sm:$0xff]
        %v4307 = vld [vmem:[#allocation12 + $0x850] sm:$0xff]
        %v4308 = vld [vmem:[#allocation12 + $0x858] sm:$0xff]
        %v4309 = vld [vmem:[#allocation12 + $0x860] sm:$0xff]
        %v4310 = vld [vmem:[#allocation12 + $0x868] sm:$0xff]
        %v4311 = vld [vmem:[#allocation12 + $0x870] sm:$0xff]
        %v4312 = vld [vmem:[#allocation12 + $0x878] sm:$0xff]
        %v4313 = vld [vmem:[#allocation12 + $0x880] sm:$0xff]
        %v4314 = vld [vmem:[#allocation12 + $0x888] sm:$0xff]
        %v4315 = vld [vmem:[#allocation12 + $0x890] sm:$0xff]
        %v4316 = vld [vmem:[#allocation12 + $0x898] sm:$0xff]
        %v4317 = vld [vmem:[#allocation12 + $0x8a0] sm:$0xff]
        %v4318 = vld [vmem:[#allocation12 + $0x8a8] sm:$0xff]
        %v4319 = vld [vmem:[#allocation12 + $0x8b0] sm:$0xff]
        %v4320 = vld [vmem:[#allocation12 + $0x8b8] sm:$0xff]
        %v4321 = vld [vmem:[#allocation12 + $0x8c0] sm:$0xff]
        %v4322 = vld [vmem:[#allocation12 + $0x8c8] sm:$0xff]
        %v4323 = vld [vmem:[#allocation12 + $0x8d0] sm:$0xff]
        %v4324 = vld [vmem:[#allocation12 + $0x8d8] sm:$0xff]
        %v4325 = vld [vmem:[#allocation12 + $0x8e0] sm:$0xff]
        %v4326 = vld [vmem:[#allocation12 + $0x8e8] sm:$0xff]
        %v4327 = vld [vmem:[#allocation12 + $0x8f0] sm:$0xff]
        %v4328 = vld [vmem:[#allocation12 + $0x8f8] sm:$0xff]
        %v4329 = vld [vmem:[#allocation12 + $0x900] sm:$0xff]
        %v4330 = vld [vmem:[#allocation12 + $0x908] sm:$0xff]
        %v4331 = vld [vmem:[#allocation12 + $0x910] sm:$0xff]
        %v4332 = vld [vmem:[#allocation12 + $0x918] sm:$0xff]
        %v4333 = vld [vmem:[#allocation12 + $0x920] sm:$0xff]
        %v4334 = vld [vmem:[#allocation12 + $0x928] sm:$0xff]
        %v4335 = vld [vmem:[#allocation12 + $0x930] sm:$0xff]
        %v4336 = vld [vmem:[#allocation12 + $0x938] sm:$0xff]
        %v4337 = vld [vmem:[#allocation12 + $0x940] sm:$0xff]
        %v4338 = vld [vmem:[#allocation12 + $0x948] sm:$0xff]
        %v4339 = vld [vmem:[#allocation12 + $0x950] sm:$0xff]
        %v4340 = vld [vmem:[#allocation12 + $0x958] sm:$0xff]
        %v4341 = vld [vmem:[#allocation12 + $0x960] sm:$0xff]
        %v4342 = vld [vmem:[#allocation12 + $0x968] sm:$0xff]
        %v4343 = vld [vmem:[#allocation12 + $0x970] sm:$0xff]
        %v4344 = vld [vmem:[#allocation12 + $0x978] sm:$0xff]
        %v4345 = vld [vmem:[#allocation12 + $0x980] sm:$0xff]
        %v4346 = vld [vmem:[#allocation12 + $0x988] sm:$0xff]
        %v4347 = vld [vmem:[#allocation12 + $0x990] sm:$0xff]
        %v4348 = vld [vmem:[#allocation12 + $0x998] sm:$0xff]
        %v4349 = vld [vmem:[#allocation12 + $0x9a0] sm:$0xff]
        %v4350 = vld [vmem:[#allocation12 + $0x9a8] sm:$0xff]
        %v4351 = vld [vmem:[#allocation12 + $0x9b0] sm:$0xff]
        %v4352 = vld [vmem:[#allocation12 + $0x9b8] sm:$0xff]
        %v4353 = vld [vmem:[#allocation12 + $0x9c0] sm:$0xff]
        %v4354 = vld [vmem:[#allocation12 + $0x9c8] sm:$0xff]
        %v4355 = vld [vmem:[#allocation12 + $0x9d0] sm:$0xff]
        %v4356 = vld [vmem:[#allocation12 + $0x9d8] sm:$0xff]
        %v4357 = vld [vmem:[#allocation12 + $0x9e0] sm:$0xff]
        %v4358 = vld [vmem:[#allocation12 + $0x9e8] sm:$0xff]
        %v4359 = vld [vmem:[#allocation12 + $0x9f0] sm:$0xff]
        %v4360 = vld [vmem:[#allocation12 + $0x9f8] sm:$0xff]
        %v4361 = vld [vmem:[#allocation12 + $0xa00] sm:$0xff]
        %v4362 = vld [vmem:[#allocation12 + $0xa08] sm:$0xff]
        %v4363 = vld [vmem:[#allocation12 + $0xa10] sm:$0xff]
        %v4364 = vld [vmem:[#allocation12 + $0xa18] sm:$0xff]
        %v4365 = vld [vmem:[#allocation12 + $0xa20] sm:$0xff]
        %v4366 = vld [vmem:[#allocation12 + $0xa28] sm:$0xff]
        %v4367 = vld [vmem:[#allocation12 + $0xa30] sm:$0xff]
        %v4368 = vld [vmem:[#allocation12 + $0xa38] sm:$0xff]
        %v4369 = vld [vmem:[#allocation12 + $0xa40] sm:$0xff]
        %v4370 = vld [vmem:[#allocation12 + $0xa48] sm:$0xff]
        %v4371 = vld [vmem:[#allocation12 + $0xa50] sm:$0xff]
        %v4372 = vld [vmem:[#allocation12 + $0xa58] sm:$0xff]
        %v4373 = vld [vmem:[#allocation12 + $0xa60] sm:$0xff]
        %v4374 = vld [vmem:[#allocation12 + $0xa68] sm:$0xff]
        %v4375 = vld [vmem:[#allocation12 + $0xa70] sm:$0xff]
        %v4376 = vld [vmem:[#allocation12 + $0xa78] sm:$0xff]
        %v4377 = vld [vmem:[#allocation12 + $0xa80] sm:$0xff]
        %v4378 = vld [vmem:[#allocation12 + $0xa88] sm:$0xff]
        %v4379 = vld [vmem:[#allocation12 + $0xa90] sm:$0xff]
        %v4380 = vld [vmem:[#allocation12 + $0xa98] sm:$0xff]
        %v4381 = vld [vmem:[#allocation12 + $0xaa0] sm:$0xff]
        %v4382 = vld [vmem:[#allocation12 + $0xaa8] sm:$0xff]
        %v4383 = vld [vmem:[#allocation12 + $0xab0] sm:$0xff]
        %v4384 = vld [vmem:[#allocation12 + $0xab8] sm:$0xff]
        %v4385 = vld [vmem:[#allocation12 + $0xac0] sm:$0xff]
        %v4386 = vld [vmem:[#allocation12 + $0xac8] sm:$0xff]
        %v4387 = vld [vmem:[#allocation12 + $0xad0] sm:$0xff]
        %v4388 = vld [vmem:[#allocation12 + $0xad8] sm:$0xff]
        %v4389 = vld [vmem:[#allocation12 + $0xae0] sm:$0xff]
        %v4390 = vld [vmem:[#allocation12 + $0xae8] sm:$0xff]
        %v4391 = vld [vmem:[#allocation12 + $0xaf0] sm:$0xff]
        %v4392 = vld [vmem:[#allocation12 + $0xaf8] sm:$0xff]
        %v4393 = vld [vmem:[#allocation12 + $0xb00] sm:$0xff]
        %v4394 = vld [vmem:[#allocation12 + $0xb08] sm:$0xff]
        %v4395 = vld [vmem:[#allocation12 + $0xb10] sm:$0xff]
        %v4396 = vld [vmem:[#allocation12 + $0xb18] sm:$0xff]
        %v4397 = vld [vmem:[#allocation12 + $0xb20] sm:$0xff]
        %v4398 = vld [vmem:[#allocation12 + $0xb28] sm:$0xff]
        %v4399 = vld [vmem:[#allocation12 + $0xb30] sm:$0xff]
        %v4400 = vld [vmem:[#allocation12 + $0xb38] sm:$0xff]
        %v4401 = vld [vmem:[#allocation12 + $0xb40] sm:$0xff]
        %v4402 = vld [vmem:[#allocation12 + $0xb48] sm:$0xff]
        %v4403 = vld [vmem:[#allocation12 + $0xb50] sm:$0xff]
        %v4404 = vld [vmem:[#allocation12 + $0xb58] sm:$0xff]
        %v4405 = vld [vmem:[#allocation12 + $0xb60] sm:$0xff]
        %v4406 = vld [vmem:[#allocation12 + $0xb68] sm:$0xff]
        %v4407 = vld [vmem:[#allocation12 + $0xb70] sm:$0xff]
        %v4408 = vld [vmem:[#allocation12 + $0xb78] sm:$0xff]
        %v4409 = vld [vmem:[#allocation12 + $0xb80] sm:$0xff]
        %v4410 = vld [vmem:[#allocation12 + $0xb88] sm:$0xff]
        %v4411 = vld [vmem:[#allocation12 + $0xb90] sm:$0xff]
        %v4412 = vld [vmem:[#allocation12 + $0xb98] sm:$0xff]
        %v4413 = vld [vmem:[#allocation12 + $0xba0] sm:$0xff]
        %v4414 = vld [vmem:[#allocation12 + $0xba8] sm:$0xff]
        %v4415 = vld [vmem:[#allocation12 + $0xbb0] sm:$0xff]
        %v4416 = vld [vmem:[#allocation12 + $0xbb8] sm:$0xff]
        %v4417 = vld [vmem:[#allocation12 + $0xbc0] sm:$0xff]
        %v4418 = vld [vmem:[#allocation12 + $0xbc8] sm:$0xff]
        %v4419 = vld [vmem:[#allocation12 + $0xbd0] sm:$0xff]
        %v4420 = vld [vmem:[#allocation12 + $0xbd8] sm:$0xff]
        %v4421 = vld [vmem:[#allocation12 + $0xbe0] sm:$0xff]
        %v4422 = vld [vmem:[#allocation12 + $0xbe8] sm:$0xff]
        %v4423 = vld [vmem:[#allocation12 + $0xbf0] sm:$0xff]
        %v4424 = vld [vmem:[#allocation12 + $0xbf8] sm:$0xff]
        %v4425 = vld [vmem:[#allocation12 + $0xc00] sm:$0xff]
        %v4426 = vld [vmem:[#allocation12 + $0xc08] sm:$0xff]
        %v4427 = vld [vmem:[#allocation12 + $0xc10] sm:$0xff]
        %v4428 = vld [vmem:[#allocation12 + $0xc18] sm:$0xff]
        %v4429 = vld [vmem:[#allocation12 + $0xc20] sm:$0xff]
        %v4430 = vld [vmem:[#allocation12 + $0xc28] sm:$0xff]
        %v4431 = vld [vmem:[#allocation12 + $0xc30] sm:$0xff]
        %v4432 = vld [vmem:[#allocation12 + $0xc38] sm:$0xff]
        %v4433 = vld [vmem:[#allocation12 + $0xc40] sm:$0xff]
        %v4434 = vld [vmem:[#allocation12 + $0xc48] sm:$0xff]
        %v4435 = vld [vmem:[#allocation12 + $0xc50] sm:$0xff]
        %v4436 = vld [vmem:[#allocation12 + $0xc58] sm:$0xff]
        %v4437 = vld [vmem:[#allocation12 + $0xc60] sm:$0xff]
        %v4438 = vld [vmem:[#allocation12 + $0xc68] sm:$0xff]
        %v4439 = vld [vmem:[#allocation12 + $0xc70] sm:$0xff]
        %v4440 = vld [vmem:[#allocation12 + $0xc78] sm:$0xff]
        %v4441 = vld [vmem:[#allocation12 + $0xc80] sm:$0xff]
        %v4442 = vld [vmem:[#allocation12 + $0xc88] sm:$0xff]
        %v4443 = vld [vmem:[#allocation12 + $0xc90] sm:$0xff]
        %v4444 = vld [vmem:[#allocation12 + $0xc98] sm:$0xff]
        %v4445 = vld [vmem:[#allocation12 + $0xca0] sm:$0xff]
        %v4446 = vld [vmem:[#allocation12 + $0xca8] sm:$0xff]
        %v4447 = vld [vmem:[#allocation12 + $0xcb0] sm:$0xff]
        %v4448 = vld [vmem:[#allocation12 + $0xcb8] sm:$0xff]
        %v4449 = vld [vmem:[#allocation12 + $0xcc0] sm:$0xff]
        %v4450 = vld [vmem:[#allocation12 + $0xcc8] sm:$0xff]
        %v4451 = vld [vmem:[#allocation12 + $0xcd0] sm:$0xff]
        %v4452 = vld [vmem:[#allocation12 + $0xcd8] sm:$0xff]
        %v4453 = vld [vmem:[#allocation12 + $0xce0] sm:$0xff]
        %v4454 = vld [vmem:[#allocation12 + $0xce8] sm:$0xff]
        %v4455 = vld [vmem:[#allocation12 + $0xcf0] sm:$0xff]
        %v4456 = vld [vmem:[#allocation12 + $0xcf8] sm:$0xff]
        %v4457 = vld [vmem:[#allocation12 + $0xd00] sm:$0xff]
        %v4458 = vld [vmem:[#allocation12 + $0xd08] sm:$0xff]
        %v4459 = vld [vmem:[#allocation12 + $0xd10] sm:$0xff]
        %v4460 = vld [vmem:[#allocation12 + $0xd18] sm:$0xff]
        %v4461 = vld [vmem:[#allocation12 + $0xd20] sm:$0xff]
        %v4462 = vld [vmem:[#allocation12 + $0xd28] sm:$0xff]
        %v4463 = vld [vmem:[#allocation12 + $0xd30] sm:$0xff]
        %v4464 = vld [vmem:[#allocation12 + $0xd38] sm:$0xff]
        %v4465 = vld [vmem:[#allocation12 + $0xd40] sm:$0xff]
        %v4466 = vld [vmem:[#allocation12 + $0xd48] sm:$0xff]
        %v4467 = vld [vmem:[#allocation12 + $0xd50] sm:$0xff]
        %v4468 = vld [vmem:[#allocation12 + $0xd58] sm:$0xff]
        %v4469 = vld [vmem:[#allocation12 + $0xd60] sm:$0xff]
        %v4470 = vld [vmem:[#allocation12 + $0xd68] sm:$0xff]
        %v4471 = vld [vmem:[#allocation12 + $0xd70] sm:$0xff]
        %v4472 = vld [vmem:[#allocation12 + $0xd78] sm:$0xff]
        %v4473 = vld [vmem:[#allocation12 + $0xd80] sm:$0xff]
        %v4474 = vld [vmem:[#allocation12 + $0xd88] sm:$0xff]
        %v4475 = vld [vmem:[#allocation12 + $0xd90] sm:$0xff]
        %v4476 = vld [vmem:[#allocation12 + $0xd98] sm:$0xff]
        %v4477 = vld [vmem:[#allocation12 + $0xda0] sm:$0xff]
        %v4478 = vld [vmem:[#allocation12 + $0xda8] sm:$0xff]
        %v4479 = vld [vmem:[#allocation12 + $0xdb0] sm:$0xff]
        %v4480 = vld [vmem:[#allocation12 + $0xdb8] sm:$0xff]
        %v4481 = vld [vmem:[#allocation12 + $0xdc0] sm:$0xff]
        %v4482 = vld [vmem:[#allocation12 + $0xdc8] sm:$0xff]
        %v4483 = vld [vmem:[#allocation12 + $0xdd0] sm:$0xff]
        %v4484 = vld [vmem:[#allocation12 + $0xdd8] sm:$0xff]
        %v4485 = vld [vmem:[#allocation12 + $0xde0] sm:$0xff]
        %v4486 = vld [vmem:[#allocation12 + $0xde8] sm:$0xff]
        %v4487 = vld [vmem:[#allocation12 + $0xdf0] sm:$0xff]
        %v4488 = vld [vmem:[#allocation12 + $0xdf8] sm:$0xff]
        %v4489 = vld [vmem:[#allocation12 + $0xe00] sm:$0xff]
        %v4490 = vld [vmem:[#allocation12 + $0xe08] sm:$0xff]
        %v4491 = vld [vmem:[#allocation12 + $0xe10] sm:$0xff]
        %v4492 = vld [vmem:[#allocation12 + $0xe18] sm:$0xff]
        %v4493 = vld [vmem:[#allocation12 + $0xe20] sm:$0xff]
        %v4494 = vld [vmem:[#allocation12 + $0xe28] sm:$0xff]
        %v4495 = vld [vmem:[#allocation12 + $0xe30] sm:$0xff]
        %v4496 = vld [vmem:[#allocation12 + $0xe38] sm:$0xff]
        %v4497 = vld [vmem:[#allocation12 + $0xe40] sm:$0xff]
        %v4498 = vld [vmem:[#allocation12 + $0xe48] sm:$0xff]
        %v4499 = vld [vmem:[#allocation12 + $0xe50] sm:$0xff]
        %v4500 = vld [vmem:[#allocation12 + $0xe58] sm:$0xff]
        %v4501 = vld [vmem:[#allocation12 + $0xe60] sm:$0xff]
        %v4502 = vld [vmem:[#allocation12 + $0xe68] sm:$0xff]
        %v4503 = vld [vmem:[#allocation12 + $0xe70] sm:$0xff]
        %v4504 = vld [vmem:[#allocation12 + $0xe78] sm:$0xff]
        %v4505 = vld [vmem:[#allocation12 + $0xe80] sm:$0xff]
        %v4506 = vld [vmem:[#allocation12 + $0xe88] sm:$0xff]
        %v4507 = vld [vmem:[#allocation12 + $0xe90] sm:$0xff]
        %v4508 = vld [vmem:[#allocation12 + $0xe98] sm:$0xff]
        %v4509 = vld [vmem:[#allocation12 + $0xea0] sm:$0xff]
        %v4510 = vld [vmem:[#allocation12 + $0xea8] sm:$0xff]
        %v4511 = vld [vmem:[#allocation12 + $0xeb0] sm:$0xff]
        %v4512 = vld [vmem:[#allocation12 + $0xeb8] sm:$0xff]
        %v4513 = vld [vmem:[#allocation12 + $0xec0] sm:$0xff]
        %v4514 = vld [vmem:[#allocation12 + $0xec8] sm:$0xff]
        %v4515 = vld [vmem:[#allocation12 + $0xed0] sm:$0xff]
        %v4516 = vld [vmem:[#allocation12 + $0xed8] sm:$0xff]
        %v4517 = vld [vmem:[#allocation12 + $0xee0] sm:$0xff]
        %v4518 = vld [vmem:[#allocation12 + $0xee8] sm:$0xff]
        %v4519 = vld [vmem:[#allocation12 + $0xef0] sm:$0xff]
        %v4520 = vld [vmem:[#allocation12 + $0xef8] sm:$0xff]
        %v4521 = vld [vmem:[#allocation12 + $0xf00] sm:$0xff]
        %v4522 = vld [vmem:[#allocation12 + $0xf08] sm:$0xff]
        %v4523 = vld [vmem:[#allocation12 + $0xf10] sm:$0xff]
        %v4524 = vld [vmem:[#allocation12 + $0xf18] sm:$0xff]
        %v4525 = vld [vmem:[#allocation12 + $0xf20] sm:$0xff]
        %v4526 = vld [vmem:[#allocation12 + $0xf28] sm:$0xff]
        %v4527 = vld [vmem:[#allocation12 + $0xf30] sm:$0xff]
        %v4528 = vld [vmem:[#allocation12 + $0xf38] sm:$0xff]
        %v4529 = vld [vmem:[#allocation12 + $0xf40] sm:$0xff]
        %v4530 = vld [vmem:[#allocation12 + $0xf48] sm:$0xff]
        %v4531 = vld [vmem:[#allocation12 + $0xf50] sm:$0xff]
        %v4532 = vld [vmem:[#allocation12 + $0xf58] sm:$0xff]
        %v4533 = vld [vmem:[#allocation12 + $0xf60] sm:$0xff]
        %v4534 = vld [vmem:[#allocation12 + $0xf68] sm:$0xff]
        %v4535 = vld [vmem:[#allocation12 + $0xf70] sm:$0xff]
        %v4536 = vld [vmem:[#allocation12 + $0xf78] sm:$0xff]
        %v4537 = vld [vmem:[#allocation12 + $0xf80] sm:$0xff]
        %v4538 = vld [vmem:[#allocation12 + $0xf88] sm:$0xff]
        %v4539 = vld [vmem:[#allocation12 + $0xf90] sm:$0xff]
        %v4540 = vld [vmem:[#allocation12 + $0xf98] sm:$0xff]
        %v4541 = vld [vmem:[#allocation12 + $0xfa0] sm:$0xff]
        %v4542 = vld [vmem:[#allocation12 + $0xfa8] sm:$0xff]
        %v4543 = vld [vmem:[#allocation12 + $0xfb0] sm:$0xff]
        %v4544 = vld [vmem:[#allocation12 + $0xfb8] sm:$0xff]
        %v4545 = vld [vmem:[#allocation12 + $0xfc0] sm:$0xff]
        %v4546 = vld [vmem:[#allocation12 + $0xfc8] sm:$0xff]
        %v4547 = vld [vmem:[#allocation12 + $0xfd0] sm:$0xff]
        %v4548 = vld [vmem:[#allocation12 + $0xfd8] sm:$0xff]
        %v4549 = vld [vmem:[#allocation12 + $0xfe0] sm:$0xff]
        %v4550 = vld [vmem:[#allocation12 + $0xfe8] sm:$0xff]
        %v4551 = vld [vmem:[#allocation12 + $0xff0] sm:$0xff]
        %v4552 = vld [vmem:[#allocation12 + $0xff8] sm:$0xff]
        %v4553 = vld [vmem:[#allocation14] sm:$0xf]
        %v4555 = vlaneseq
        %v4556 = vshrl.u32 %v4555, 7
        %v4557 = vsub.s32 0, %v4556
        %v4558 = vrot.slane %v4553, %v4557
        %v4559 = vlaneseq
        %v4560 = vshrl.u32 %v4559, 7
        %v4561 = vsub.s32 1, %v4560
        %v4562 = vrot.slane %v4553, %v4561
        %v4563 = vlaneseq
        %v4564 = vshrl.u32 %v4563, 7
        %v4565 = vsub.s32 2, %v4564
        %v4566 = vrot.slane %v4553, %v4565
        %v4567 = vlaneseq
        %v4568 = vshrl.u32 %v4567, 7
        %v4569 = vsub.s32 3, %v4568
        %v4570 = vrot.slane %v4553, %v4569
        %v4583 = vunpack.c.l.b16 %v4033
        %v4584 = vunpack.c.h.b16 %v4033
        %v4585 = vunpack.c.l.b16 %v4034
        %v4586 = vunpack.c.h.b16 %v4034
        %v4587 = vunpack.c.l.b16 %v4035
        %v4588 = vunpack.c.h.b16 %v4035
        %v4589 = vunpack.c.l.b16 %v4036
        %v4590 = vunpack.c.h.b16 %v4036
        %v4591 = vunpack.c.l.b16 %v4037
        %v4592 = vunpack.c.h.b16 %v4037
        %v4593 = vunpack.c.l.b16 %v4038
        %v4594 = vunpack.c.h.b16 %v4038
        %v4595 = vunpack.c.l.b16 %v4039
        %v4596 = vunpack.c.h.b16 %v4039
        %v4597 = vunpack.c.l.b16 %v4040
        %v4598 = vunpack.c.h.b16 %v4040
        %v4599 = vpack.c.b16 %v4583, %v4583
        %v4600 = vpack.c.b16 %v4584, %v4584
        %v4601 = vpack.c.b16 %v4585, %v4585
        %v4602 = vpack.c.b16 %v4586, %v4586
        %v4603 = vpack.c.b16 %v4587, %v4587
        %v4604 = vpack.c.b16 %v4588, %v4588
        %v4605 = vpack.c.b16 %v4589, %v4589
        %v4606 = vpack.c.b16 %v4590, %v4590
        %v4607 = vpack.c.b16 %v4591, %v4591
        %v4608 = vpack.c.b16 %v4592, %v4592
        %v4609 = vpack.c.b16 %v4593, %v4593
        %v4610 = vpack.c.b16 %v4594, %v4594
        %v4611 = vpack.c.b16 %v4595, %v4595
        %v4612 = vpack.c.b16 %v4596, %v4596
        %v4613 = vpack.c.b16 %v4597, %v4597
        %v4614 = vpack.c.b16 %v4598, %v4598
        %v5143 = vunpack.c.l.b16 %v4041
        %v5144 = vunpack.c.h.b16 %v4041
        %v5145 = vunpack.c.l.b16 %v4042
        %v5146 = vunpack.c.h.b16 %v4042
        %v5147 = vunpack.c.l.b16 %v4043
        %v5148 = vunpack.c.h.b16 %v4043
        %v5149 = vunpack.c.l.b16 %v4044
        %v5150 = vunpack.c.h.b16 %v4044
        %v5151 = vunpack.c.l.b16 %v4045
        %v5152 = vunpack.c.h.b16 %v4045
        %v5153 = vunpack.c.l.b16 %v4046
        %v5154 = vunpack.c.h.b16 %v4046
        %v5155 = vunpack.c.l.b16 %v4047
        %v5156 = vunpack.c.h.b16 %v4047
        %v5157 = vunpack.c.l.b16 %v4048
        %v5158 = vunpack.c.h.b16 %v4048
        %v5159 = vunpack.c.l.b16 %v4049
        %v5160 = vunpack.c.h.b16 %v4049
        %v5161 = vunpack.c.l.b16 %v4050
        %v5162 = vunpack.c.h.b16 %v4050
        %v5163 = vunpack.c.l.b16 %v4051
        %v5164 = vunpack.c.h.b16 %v4051
        %v5165 = vunpack.c.l.b16 %v4052
        %v5166 = vunpack.c.h.b16 %v4052
        %v5167 = vunpack.c.l.b16 %v4053
        %v5168 = vunpack.c.h.b16 %v4053
        %v5169 = vunpack.c.l.b16 %v4054
        %v5170 = vunpack.c.h.b16 %v4054
        %v5171 = vunpack.c.l.b16 %v4055
        %v5172 = vunpack.c.h.b16 %v4055
        %v5173 = vunpack.c.l.b16 %v4056
        %v5174 = vunpack.c.h.b16 %v4056
        %v5175 = vunpack.c.l.b16 %v4057
        %v5176 = vunpack.c.h.b16 %v4057
        %v5177 = vunpack.c.l.b16 %v4058
        %v5178 = vunpack.c.h.b16 %v4058
        %v5179 = vunpack.c.l.b16 %v4059
        %v5180 = vunpack.c.h.b16 %v4059
        %v5181 = vunpack.c.l.b16 %v4060
        %v5182 = vunpack.c.h.b16 %v4060
        %v5183 = vunpack.c.l.b16 %v4061
        %v5184 = vunpack.c.h.b16 %v4061
        %v5185 = vunpack.c.l.b16 %v4062
        %v5186 = vunpack.c.h.b16 %v4062
        %v5187 = vunpack.c.l.b16 %v4063
        %v5188 = vunpack.c.h.b16 %v4063
        %v5189 = vunpack.c.l.b16 %v4064
        %v5190 = vunpack.c.h.b16 %v4064
        %v5191 = vunpack.c.l.b16 %v4065
        %v5192 = vunpack.c.h.b16 %v4065
        %v5193 = vunpack.c.l.b16 %v4066
        %v5194 = vunpack.c.h.b16 %v4066
        %v5195 = vunpack.c.l.b16 %v4067
        %v5196 = vunpack.c.h.b16 %v4067
        %v5197 = vunpack.c.l.b16 %v4068
        %v5198 = vunpack.c.h.b16 %v4068
        %v5199 = vunpack.c.l.b16 %v4069
        %v5200 = vunpack.c.h.b16 %v4069
        %v5201 = vunpack.c.l.b16 %v4070
        %v5202 = vunpack.c.h.b16 %v4070
        %v5203 = vunpack.c.l.b16 %v4071
        %v5204 = vunpack.c.h.b16 %v4071
        %v5205 = vunpack.c.l.b16 %v4072
        %v5206 = vunpack.c.h.b16 %v4072
        %v5207 = vunpack.c.l.b16 %v4073
        %v5208 = vunpack.c.h.b16 %v4073
        %v5209 = vunpack.c.l.b16 %v4074
        %v5210 = vunpack.c.h.b16 %v4074
        %v5211 = vunpack.c.l.b16 %v4075
        %v5212 = vunpack.c.h.b16 %v4075
        %v5213 = vunpack.c.l.b16 %v4076
        %v5214 = vunpack.c.h.b16 %v4076
        %v5215 = vunpack.c.l.b16 %v4077
        %v5216 = vunpack.c.h.b16 %v4077
        %v5217 = vunpack.c.l.b16 %v4078
        %v5218 = vunpack.c.h.b16 %v4078
        %v5219 = vunpack.c.l.b16 %v4079
        %v5220 = vunpack.c.h.b16 %v4079
        %v5221 = vunpack.c.l.b16 %v4080
        %v5222 = vunpack.c.h.b16 %v4080
        %v5223 = vunpack.c.l.b16 %v4081
        %v5224 = vunpack.c.h.b16 %v4081
        %v5225 = vunpack.c.l.b16 %v4082
        %v5226 = vunpack.c.h.b16 %v4082
        %v5227 = vunpack.c.l.b16 %v4083
        %v5228 = vunpack.c.h.b16 %v4083
        %v5229 = vunpack.c.l.b16 %v4084
        %v5230 = vunpack.c.h.b16 %v4084
        %v5231 = vunpack.c.l.b16 %v4085
        %v5232 = vunpack.c.h.b16 %v4085
        %v5233 = vunpack.c.l.b16 %v4086
        %v5234 = vunpack.c.h.b16 %v4086
        %v5235 = vunpack.c.l.b16 %v4087
        %v5236 = vunpack.c.h.b16 %v4087
        %v5237 = vunpack.c.l.b16 %v4088
        %v5238 = vunpack.c.h.b16 %v4088
        %v5239 = vunpack.c.l.b16 %v4089
        %v5240 = vunpack.c.h.b16 %v4089
        %v5241 = vunpack.c.l.b16 %v4090
        %v5242 = vunpack.c.h.b16 %v4090
        %v5243 = vunpack.c.l.b16 %v4091
        %v5244 = vunpack.c.h.b16 %v4091
        %v5245 = vunpack.c.l.b16 %v4092
        %v5246 = vunpack.c.h.b16 %v4092
        %v5247 = vunpack.c.l.b16 %v4093
        %v5248 = vunpack.c.h.b16 %v4093
        %v5249 = vunpack.c.l.b16 %v4094
        %v5250 = vunpack.c.h.b16 %v4094
        %v5251 = vunpack.c.l.b16 %v4095
        %v5252 = vunpack.c.h.b16 %v4095
        %v5253 = vunpack.c.l.b16 %v4096
        %v5254 = vunpack.c.h.b16 %v4096
        %v5255 = vunpack.c.l.b16 %v4097
        %v5256 = vunpack.c.h.b16 %v4097
        %v5257 = vunpack.c.l.b16 %v4098
        %v5258 = vunpack.c.h.b16 %v4098
        %v5259 = vunpack.c.l.b16 %v4099
        %v5260 = vunpack.c.h.b16 %v4099
        %v5261 = vunpack.c.l.b16 %v4100
        %v5262 = vunpack.c.h.b16 %v4100
        %v5263 = vunpack.c.l.b16 %v4101
        %v5264 = vunpack.c.h.b16 %v4101
        %v5265 = vunpack.c.l.b16 %v4102
        %v5266 = vunpack.c.h.b16 %v4102
        %v5267 = vunpack.c.l.b16 %v4103
        %v5268 = vunpack.c.h.b16 %v4103
        %v5269 = vunpack.c.l.b16 %v4104
        %v5270 = vunpack.c.h.b16 %v4104
        %v5271 = vunpack.c.l.b16 %v4105
        %v5272 = vunpack.c.h.b16 %v4105
        %v5273 = vunpack.c.l.b16 %v4106
        %v5274 = vunpack.c.h.b16 %v4106
        %v5275 = vunpack.c.l.b16 %v4107
        %v5276 = vunpack.c.h.b16 %v4107
        %v5277 = vunpack.c.l.b16 %v4108
        %v5278 = vunpack.c.h.b16 %v4108
        %v5279 = vunpack.c.l.b16 %v4109
        %v5280 = vunpack.c.h.b16 %v4109
        %v5281 = vunpack.c.l.b16 %v4110
        %v5282 = vunpack.c.h.b16 %v4110
        %v5283 = vunpack.c.l.b16 %v4111
        %v5284 = vunpack.c.h.b16 %v4111
        %v5285 = vunpack.c.l.b16 %v4112
        %v5286 = vunpack.c.h.b16 %v4112
        %v5287 = vunpack.c.l.b16 %v4113
        %v5288 = vunpack.c.h.b16 %v4113
        %v5289 = vunpack.c.l.b16 %v4114
        %v5290 = vunpack.c.h.b16 %v4114
        %v5291 = vunpack.c.l.b16 %v4115
        %v5292 = vunpack.c.h.b16 %v4115
        %v5293 = vunpack.c.l.b16 %v4116
        %v5294 = vunpack.c.h.b16 %v4116
        %v5295 = vunpack.c.l.b16 %v4117
        %v5296 = vunpack.c.h.b16 %v4117
        %v5297 = vunpack.c.l.b16 %v4118
        %v5298 = vunpack.c.h.b16 %v4118
        %v5299 = vunpack.c.l.b16 %v4119
        %v5300 = vunpack.c.h.b16 %v4119
        %v5301 = vunpack.c.l.b16 %v4120
        %v5302 = vunpack.c.h.b16 %v4120
        %v5303 = vunpack.c.l.b16 %v4121
        %v5304 = vunpack.c.h.b16 %v4121
        %v5305 = vunpack.c.l.b16 %v4122
        %v5306 = vunpack.c.h.b16 %v4122
        %v5307 = vunpack.c.l.b16 %v4123
        %v5308 = vunpack.c.h.b16 %v4123
        %v5309 = vunpack.c.l.b16 %v4124
        %v5310 = vunpack.c.h.b16 %v4124
        %v5311 = vunpack.c.l.b16 %v4125
        %v5312 = vunpack.c.h.b16 %v4125
        %v5313 = vunpack.c.l.b16 %v4126
        %v5314 = vunpack.c.h.b16 %v4126
        %v5315 = vunpack.c.l.b16 %v4127
        %v5316 = vunpack.c.h.b16 %v4127
        %v5317 = vunpack.c.l.b16 %v4128
        %v5318 = vunpack.c.h.b16 %v4128
        %v5319 = vunpack.c.l.b16 %v4129
        %v5320 = vunpack.c.h.b16 %v4129
        %v5321 = vunpack.c.l.b16 %v4130
        %v5322 = vunpack.c.h.b16 %v4130
        %v5323 = vunpack.c.l.b16 %v4131
        %v5324 = vunpack.c.h.b16 %v4131
        %v5325 = vunpack.c.l.b16 %v4132
        %v5326 = vunpack.c.h.b16 %v4132
        %v5327 = vunpack.c.l.b16 %v4133
        %v5328 = vunpack.c.h.b16 %v4133
        %v5329 = vunpack.c.l.b16 %v4134
        %v5330 = vunpack.c.h.b16 %v4134
        %v5331 = vunpack.c.l.b16 %v4135
        %v5332 = vunpack.c.h.b16 %v4135
        %v5333 = vunpack.c.l.b16 %v4136
        %v5334 = vunpack.c.h.b16 %v4136
        %v5335 = vunpack.c.l.b16 %v4137
        %v5336 = vunpack.c.h.b16 %v4137
        %v5337 = vunpack.c.l.b16 %v4138
        %v5338 = vunpack.c.h.b16 %v4138
        %v5339 = vunpack.c.l.b16 %v4139
        %v5340 = vunpack.c.h.b16 %v4139
        %v5341 = vunpack.c.l.b16 %v4140
        %v5342 = vunpack.c.h.b16 %v4140
        %v5343 = vunpack.c.l.b16 %v4141
        %v5344 = vunpack.c.h.b16 %v4141
        %v5345 = vunpack.c.l.b16 %v4142
        %v5346 = vunpack.c.h.b16 %v4142
        %v5347 = vunpack.c.l.b16 %v4143
        %v5348 = vunpack.c.h.b16 %v4143
        %v5349 = vunpack.c.l.b16 %v4144
        %v5350 = vunpack.c.h.b16 %v4144
        %v5351 = vunpack.c.l.b16 %v4145
        %v5352 = vunpack.c.h.b16 %v4145
        %v5353 = vunpack.c.l.b16 %v4146
        %v5354 = vunpack.c.h.b16 %v4146
        %v5355 = vunpack.c.l.b16 %v4147
        %v5356 = vunpack.c.h.b16 %v4147
        %v5357 = vunpack.c.l.b16 %v4148
        %v5358 = vunpack.c.h.b16 %v4148
        %v5359 = vunpack.c.l.b16 %v4149
        %v5360 = vunpack.c.h.b16 %v4149
        %v5361 = vunpack.c.l.b16 %v4150
        %v5362 = vunpack.c.h.b16 %v4150
        %v5363 = vunpack.c.l.b16 %v4151
        %v5364 = vunpack.c.h.b16 %v4151
        %v5365 = vunpack.c.l.b16 %v4152
        %v5366 = vunpack.c.h.b16 %v4152
        %v5367 = vunpack.c.l.b16 %v4153
        %v5368 = vunpack.c.h.b16 %v4153
        %v5369 = vunpack.c.l.b16 %v4154
        %v5370 = vunpack.c.h.b16 %v4154
        %v5371 = vunpack.c.l.b16 %v4155
        %v5372 = vunpack.c.h.b16 %v4155
        %v5373 = vunpack.c.l.b16 %v4156
        %v5374 = vunpack.c.h.b16 %v4156
        %v5375 = vunpack.c.l.b16 %v4157
        %v5376 = vunpack.c.h.b16 %v4157
        %v5377 = vunpack.c.l.b16 %v4158
        %v5378 = vunpack.c.h.b16 %v4158
        %v5379 = vunpack.c.l.b16 %v4159
        %v5380 = vunpack.c.h.b16 %v4159
        %v5381 = vunpack.c.l.b16 %v4160
        %v5382 = vunpack.c.h.b16 %v4160
        %v5383 = vunpack.c.l.b16 %v4161
        %v5384 = vunpack.c.h.b16 %v4161
        %v5385 = vunpack.c.l.b16 %v4162
        %v5386 = vunpack.c.h.b16 %v4162
        %v5387 = vunpack.c.l.b16 %v4163
        %v5388 = vunpack.c.h.b16 %v4163
        %v5389 = vunpack.c.l.b16 %v4164
        %v5390 = vunpack.c.h.b16 %v4164
        %v5391 = vunpack.c.l.b16 %v4165
        %v5392 = vunpack.c.h.b16 %v4165
        %v5393 = vunpack.c.l.b16 %v4166
        %v5394 = vunpack.c.h.b16 %v4166
        %v5395 = vunpack.c.l.b16 %v4167
        %v5396 = vunpack.c.h.b16 %v4167
        %v5397 = vunpack.c.l.b16 %v4168
        %v5398 = vunpack.c.h.b16 %v4168
        %v5399 = vunpack.c.l.b16 %v4169
        %v5400 = vunpack.c.h.b16 %v4169
        %v5401 = vunpack.c.l.b16 %v4170
        %v5402 = vunpack.c.h.b16 %v4170
        %v5403 = vunpack.c.l.b16 %v4171
        %v5404 = vunpack.c.h.b16 %v4171
        %v5405 = vunpack.c.l.b16 %v4172
        %v5406 = vunpack.c.h.b16 %v4172
        %v5407 = vunpack.c.l.b16 %v4173
        %v5408 = vunpack.c.h.b16 %v4173
        %v5409 = vunpack.c.l.b16 %v4174
        %v5410 = vunpack.c.h.b16 %v4174
        %v5411 = vunpack.c.l.b16 %v4175
        %v5412 = vunpack.c.h.b16 %v4175
        %v5413 = vunpack.c.l.b16 %v4176
        %v5414 = vunpack.c.h.b16 %v4176
        %v5415 = vunpack.c.l.b16 %v4177
        %v5416 = vunpack.c.h.b16 %v4177
        %v5417 = vunpack.c.l.b16 %v4178
        %v5418 = vunpack.c.h.b16 %v4178
        %v5419 = vunpack.c.l.b16 %v4179
        %v5420 = vunpack.c.h.b16 %v4179
        %v5421 = vunpack.c.l.b16 %v4180
        %v5422 = vunpack.c.h.b16 %v4180
        %v5423 = vunpack.c.l.b16 %v4181
        %v5424 = vunpack.c.h.b16 %v4181
        %v5425 = vunpack.c.l.b16 %v4182
        %v5426 = vunpack.c.h.b16 %v4182
        %v5427 = vunpack.c.l.b16 %v4183
        %v5428 = vunpack.c.h.b16 %v4183
        %v5429 = vunpack.c.l.b16 %v4184
        %v5430 = vunpack.c.h.b16 %v4184
        %v5431 = vunpack.c.l.b16 %v4185
        %v5432 = vunpack.c.h.b16 %v4185
        %v5433 = vunpack.c.l.b16 %v4186
        %v5434 = vunpack.c.h.b16 %v4186
        %v5435 = vunpack.c.l.b16 %v4187
        %v5436 = vunpack.c.h.b16 %v4187
        %v5437 = vunpack.c.l.b16 %v4188
        %v5438 = vunpack.c.h.b16 %v4188
        %v5439 = vunpack.c.l.b16 %v4189
        %v5440 = vunpack.c.h.b16 %v4189
        %v5441 = vunpack.c.l.b16 %v4190
        %v5442 = vunpack.c.h.b16 %v4190
        %v5443 = vunpack.c.l.b16 %v4191
        %v5444 = vunpack.c.h.b16 %v4191
        %v5445 = vunpack.c.l.b16 %v4192
        %v5446 = vunpack.c.h.b16 %v4192
        %v5447 = vunpack.c.l.b16 %v4193
        %v5448 = vunpack.c.h.b16 %v4193
        %v5449 = vunpack.c.l.b16 %v4194
        %v5450 = vunpack.c.h.b16 %v4194
        %v5451 = vunpack.c.l.b16 %v4195
        %v5452 = vunpack.c.h.b16 %v4195
        %v5453 = vunpack.c.l.b16 %v4196
        %v5454 = vunpack.c.h.b16 %v4196
        %v5455 = vunpack.c.l.b16 %v4197
        %v5456 = vunpack.c.h.b16 %v4197
        %v5457 = vunpack.c.l.b16 %v4198
        %v5458 = vunpack.c.h.b16 %v4198
        %v5459 = vunpack.c.l.b16 %v4199
        %v5460 = vunpack.c.h.b16 %v4199
        %v5461 = vunpack.c.l.b16 %v4200
        %v5462 = vunpack.c.h.b16 %v4200
        %v5463 = vunpack.c.l.b16 %v4201
        %v5464 = vunpack.c.h.b16 %v4201
        %v5465 = vunpack.c.l.b16 %v4202
        %v5466 = vunpack.c.h.b16 %v4202
        %v5467 = vunpack.c.l.b16 %v4203
        %v5468 = vunpack.c.h.b16 %v4203
        %v5469 = vunpack.c.l.b16 %v4204
        %v5470 = vunpack.c.h.b16 %v4204
        %v5471 = vunpack.c.l.b16 %v4205
        %v5472 = vunpack.c.h.b16 %v4205
        %v5473 = vunpack.c.l.b16 %v4206
        %v5474 = vunpack.c.h.b16 %v4206
        %v5475 = vunpack.c.l.b16 %v4207
        %v5476 = vunpack.c.h.b16 %v4207
        %v5477 = vunpack.c.l.b16 %v4208
        %v5478 = vunpack.c.h.b16 %v4208
        %v5479 = vunpack.c.l.b16 %v4209
        %v5480 = vunpack.c.h.b16 %v4209
        %v5481 = vunpack.c.l.b16 %v4210
        %v5482 = vunpack.c.h.b16 %v4210
        %v5483 = vunpack.c.l.b16 %v4211
        %v5484 = vunpack.c.h.b16 %v4211
        %v5485 = vunpack.c.l.b16 %v4212
        %v5486 = vunpack.c.h.b16 %v4212
        %v5487 = vunpack.c.l.b16 %v4213
        %v5488 = vunpack.c.h.b16 %v4213
        %v5489 = vunpack.c.l.b16 %v4214
        %v5490 = vunpack.c.h.b16 %v4214
        %v5491 = vunpack.c.l.b16 %v4215
        %v5492 = vunpack.c.h.b16 %v4215
        %v5493 = vunpack.c.l.b16 %v4216
        %v5494 = vunpack.c.h.b16 %v4216
        %v5495 = vunpack.c.l.b16 %v4217
        %v5496 = vunpack.c.h.b16 %v4217
        %v5497 = vunpack.c.l.b16 %v4218
        %v5498 = vunpack.c.h.b16 %v4218
        %v5499 = vunpack.c.l.b16 %v4219
        %v5500 = vunpack.c.h.b16 %v4219
        %v5501 = vunpack.c.l.b16 %v4220
        %v5502 = vunpack.c.h.b16 %v4220
        %v5503 = vunpack.c.l.b16 %v4221
        %v5504 = vunpack.c.h.b16 %v4221
        %v5505 = vunpack.c.l.b16 %v4222
        %v5506 = vunpack.c.h.b16 %v4222
        %v5507 = vunpack.c.l.b16 %v4223
        %v5508 = vunpack.c.h.b16 %v4223
        %v5509 = vunpack.c.l.b16 %v4224
        %v5510 = vunpack.c.h.b16 %v4224
        %v5511 = vunpack.c.l.b16 %v4225
        %v5512 = vunpack.c.h.b16 %v4225
        %v5513 = vunpack.c.l.b16 %v4226
        %v5514 = vunpack.c.h.b16 %v4226
        %v5515 = vunpack.c.l.b16 %v4227
        %v5516 = vunpack.c.h.b16 %v4227
        %v5517 = vunpack.c.l.b16 %v4228
        %v5518 = vunpack.c.h.b16 %v4228
        %v5519 = vunpack.c.l.b16 %v4229
        %v5520 = vunpack.c.h.b16 %v4229
        %v5521 = vunpack.c.l.b16 %v4230
        %v5522 = vunpack.c.h.b16 %v4230
        %v5523 = vunpack.c.l.b16 %v4231
        %v5524 = vunpack.c.h.b16 %v4231
        %v5525 = vunpack.c.l.b16 %v4232
        %v5526 = vunpack.c.h.b16 %v4232
        %v5527 = vunpack.c.l.b16 %v4233
        %v5528 = vunpack.c.h.b16 %v4233
        %v5529 = vunpack.c.l.b16 %v4234
        %v5530 = vunpack.c.h.b16 %v4234
        %v5531 = vunpack.c.l.b16 %v4235
        %v5532 = vunpack.c.h.b16 %v4235
        %v5533 = vunpack.c.l.b16 %v4236
        %v5534 = vunpack.c.h.b16 %v4236
        %v5535 = vunpack.c.l.b16 %v4237
        %v5536 = vunpack.c.h.b16 %v4237
        %v5537 = vunpack.c.l.b16 %v4238
        %v5538 = vunpack.c.h.b16 %v4238
        %v5539 = vunpack.c.l.b16 %v4239
        %v5540 = vunpack.c.h.b16 %v4239
        %v5541 = vunpack.c.l.b16 %v4240
        %v5542 = vunpack.c.h.b16 %v4240
        %v5543 = vunpack.c.l.b16 %v4241
        %v5544 = vunpack.c.h.b16 %v4241
        %v5545 = vunpack.c.l.b16 %v4242
        %v5546 = vunpack.c.h.b16 %v4242
        %v5547 = vunpack.c.l.b16 %v4243
        %v5548 = vunpack.c.h.b16 %v4243
        %v5549 = vunpack.c.l.b16 %v4244
        %v5550 = vunpack.c.h.b16 %v4244
        %v5551 = vunpack.c.l.b16 %v4245
        %v5552 = vunpack.c.h.b16 %v4245
        %v5553 = vunpack.c.l.b16 %v4246
        %v5554 = vunpack.c.h.b16 %v4246
        %v5555 = vunpack.c.l.b16 %v4247
        %v5556 = vunpack.c.h.b16 %v4247
        %v5557 = vunpack.c.l.b16 %v4248
        %v5558 = vunpack.c.h.b16 %v4248
        %v5559 = vunpack.c.l.b16 %v4249
        %v5560 = vunpack.c.h.b16 %v4249
        %v5561 = vunpack.c.l.b16 %v4250
        %v5562 = vunpack.c.h.b16 %v4250
        %v5563 = vunpack.c.l.b16 %v4251
        %v5564 = vunpack.c.h.b16 %v4251
        %v5565 = vunpack.c.l.b16 %v4252
        %v5566 = vunpack.c.h.b16 %v4252
        %v5567 = vunpack.c.l.b16 %v4253
        %v5568 = vunpack.c.h.b16 %v4253
        %v5569 = vunpack.c.l.b16 %v4254
        %v5570 = vunpack.c.h.b16 %v4254
        %v5571 = vunpack.c.l.b16 %v4255
        %v5572 = vunpack.c.h.b16 %v4255
        %v5573 = vunpack.c.l.b16 %v4256
        %v5574 = vunpack.c.h.b16 %v4256
        %v5575 = vunpack.c.l.b16 %v4257
        %v5576 = vunpack.c.h.b16 %v4257
        %v5577 = vunpack.c.l.b16 %v4258
        %v5578 = vunpack.c.h.b16 %v4258
        %v5579 = vunpack.c.l.b16 %v4259
        %v5580 = vunpack.c.h.b16 %v4259
        %v5581 = vunpack.c.l.b16 %v4260
        %v5582 = vunpack.c.h.b16 %v4260
        %v5583 = vunpack.c.l.b16 %v4261
        %v5584 = vunpack.c.h.b16 %v4261
        %v5585 = vunpack.c.l.b16 %v4262
        %v5586 = vunpack.c.h.b16 %v4262
        %v5587 = vunpack.c.l.b16 %v4263
        %v5588 = vunpack.c.h.b16 %v4263
        %v5589 = vunpack.c.l.b16 %v4264
        %v5590 = vunpack.c.h.b16 %v4264
        %v5591 = vunpack.c.l.b16 %v4265
        %v5592 = vunpack.c.h.b16 %v4265
        %v5593 = vunpack.c.l.b16 %v4266
        %v5594 = vunpack.c.h.b16 %v4266
        %v5595 = vunpack.c.l.b16 %v4267
        %v5596 = vunpack.c.h.b16 %v4267
        %v5597 = vunpack.c.l.b16 %v4268
        %v5598 = vunpack.c.h.b16 %v4268
        %v5599 = vunpack.c.l.b16 %v4269
        %v5600 = vunpack.c.h.b16 %v4269
        %v5601 = vunpack.c.l.b16 %v4270
        %v5602 = vunpack.c.h.b16 %v4270
        %v5603 = vunpack.c.l.b16 %v4271
        %v5604 = vunpack.c.h.b16 %v4271
        %v5605 = vunpack.c.l.b16 %v4272
        %v5606 = vunpack.c.h.b16 %v4272
        %v5607 = vunpack.c.l.b16 %v4273
        %v5608 = vunpack.c.h.b16 %v4273
        %v5609 = vunpack.c.l.b16 %v4274
        %v5610 = vunpack.c.h.b16 %v4274
        %v5611 = vunpack.c.l.b16 %v4275
        %v5612 = vunpack.c.h.b16 %v4275
        %v5613 = vunpack.c.l.b16 %v4276
        %v5614 = vunpack.c.h.b16 %v4276
        %v5615 = vunpack.c.l.b16 %v4277
        %v5616 = vunpack.c.h.b16 %v4277
        %v5617 = vunpack.c.l.b16 %v4278
        %v5618 = vunpack.c.h.b16 %v4278
        %v5619 = vunpack.c.l.b16 %v4279
        %v5620 = vunpack.c.h.b16 %v4279
        %v5621 = vunpack.c.l.b16 %v4280
        %v5622 = vunpack.c.h.b16 %v4280
        %v5623 = vunpack.c.l.b16 %v4281
        %v5624 = vunpack.c.h.b16 %v4281
        %v5625 = vunpack.c.l.b16 %v4282
        %v5626 = vunpack.c.h.b16 %v4282
        %v5627 = vunpack.c.l.b16 %v4283
        %v5628 = vunpack.c.h.b16 %v4283
        %v5629 = vunpack.c.l.b16 %v4284
        %v5630 = vunpack.c.h.b16 %v4284
        %v5631 = vunpack.c.l.b16 %v4285
        %v5632 = vunpack.c.h.b16 %v4285
        %v5633 = vunpack.c.l.b16 %v4286
        %v5634 = vunpack.c.h.b16 %v4286
        %v5635 = vunpack.c.l.b16 %v4287
        %v5636 = vunpack.c.h.b16 %v4287
        %v5637 = vunpack.c.l.b16 %v4288
        %v5638 = vunpack.c.h.b16 %v4288
        %v5639 = vunpack.c.l.b16 %v4289
        %v5640 = vunpack.c.h.b16 %v4289
        %v5641 = vunpack.c.l.b16 %v4290
        %v5642 = vunpack.c.h.b16 %v4290
        %v5643 = vunpack.c.l.b16 %v4291
        %v5644 = vunpack.c.h.b16 %v4291
        %v5645 = vunpack.c.l.b16 %v4292
        %v5646 = vunpack.c.h.b16 %v4292
        %v5647 = vunpack.c.l.b16 %v4293
        %v5648 = vunpack.c.h.b16 %v4293
        %v5649 = vunpack.c.l.b16 %v4294
        %v5650 = vunpack.c.h.b16 %v4294
        %v5651 = vunpack.c.l.b16 %v4295
        %v5652 = vunpack.c.h.b16 %v4295
        %v5653 = vunpack.c.l.b16 %v4296
        %v5654 = vunpack.c.h.b16 %v4296
        %v5655 = vunpack.c.l.b16 %v4297
        %v5656 = vunpack.c.h.b16 %v4297
        %v5657 = vunpack.c.l.b16 %v4298
        %v5658 = vunpack.c.h.b16 %v4298
        %v5659 = vunpack.c.l.b16 %v4299
        %v5660 = vunpack.c.h.b16 %v4299
        %v5661 = vunpack.c.l.b16 %v4300
        %v5662 = vunpack.c.h.b16 %v4300
        %v5663 = vunpack.c.l.b16 %v4301
        %v5664 = vunpack.c.h.b16 %v4301
        %v5665 = vunpack.c.l.b16 %v4302
        %v5666 = vunpack.c.h.b16 %v4302
        %v5667 = vunpack.c.l.b16 %v4303
        %v5668 = vunpack.c.h.b16 %v4303
        %v5669 = vunpack.c.l.b16 %v4304
        %v5670 = vunpack.c.h.b16 %v4304
        %v5671 = vunpack.c.l.b16 %v4305
        %v5672 = vunpack.c.h.b16 %v4305
        %v5673 = vunpack.c.l.b16 %v4306
        %v5674 = vunpack.c.h.b16 %v4306
        %v5675 = vunpack.c.l.b16 %v4307
        %v5676 = vunpack.c.h.b16 %v4307
        %v5677 = vunpack.c.l.b16 %v4308
        %v5678 = vunpack.c.h.b16 %v4308
        %v5679 = vunpack.c.l.b16 %v4309
        %v5680 = vunpack.c.h.b16 %v4309
        %v5681 = vunpack.c.l.b16 %v4310
        %v5682 = vunpack.c.h.b16 %v4310
        %v5683 = vunpack.c.l.b16 %v4311
        %v5684 = vunpack.c.h.b16 %v4311
        %v5685 = vunpack.c.l.b16 %v4312
        %v5686 = vunpack.c.h.b16 %v4312
        %v5687 = vunpack.c.l.b16 %v4313
        %v5688 = vunpack.c.h.b16 %v4313
        %v5689 = vunpack.c.l.b16 %v4314
        %v5690 = vunpack.c.h.b16 %v4314
        %v5691 = vunpack.c.l.b16 %v4315
        %v5692 = vunpack.c.h.b16 %v4315
        %v5693 = vunpack.c.l.b16 %v4316
        %v5694 = vunpack.c.h.b16 %v4316
        %v5695 = vunpack.c.l.b16 %v4317
        %v5696 = vunpack.c.h.b16 %v4317
        %v5697 = vunpack.c.l.b16 %v4318
        %v5698 = vunpack.c.h.b16 %v4318
        %v5699 = vunpack.c.l.b16 %v4319
        %v5700 = vunpack.c.h.b16 %v4319
        %v5701 = vunpack.c.l.b16 %v4320
        %v5702 = vunpack.c.h.b16 %v4320
        %v5703 = vunpack.c.l.b16 %v4321
        %v5704 = vunpack.c.h.b16 %v4321
        %v5705 = vunpack.c.l.b16 %v4322
        %v5706 = vunpack.c.h.b16 %v4322
        %v5707 = vunpack.c.l.b16 %v4323
        %v5708 = vunpack.c.h.b16 %v4323
        %v5709 = vunpack.c.l.b16 %v4324
        %v5710 = vunpack.c.h.b16 %v4324
        %v5711 = vunpack.c.l.b16 %v4325
        %v5712 = vunpack.c.h.b16 %v4325
        %v5713 = vunpack.c.l.b16 %v4326
        %v5714 = vunpack.c.h.b16 %v4326
        %v5715 = vunpack.c.l.b16 %v4327
        %v5716 = vunpack.c.h.b16 %v4327
        %v5717 = vunpack.c.l.b16 %v4328
        %v5718 = vunpack.c.h.b16 %v4328
        %v5719 = vunpack.c.l.b16 %v4329
        %v5720 = vunpack.c.h.b16 %v4329
        %v5721 = vunpack.c.l.b16 %v4330
        %v5722 = vunpack.c.h.b16 %v4330
        %v5723 = vunpack.c.l.b16 %v4331
        %v5724 = vunpack.c.h.b16 %v4331
        %v5725 = vunpack.c.l.b16 %v4332
        %v5726 = vunpack.c.h.b16 %v4332
        %v5727 = vunpack.c.l.b16 %v4333
        %v5728 = vunpack.c.h.b16 %v4333
        %v5729 = vunpack.c.l.b16 %v4334
        %v5730 = vunpack.c.h.b16 %v4334
        %v5731 = vunpack.c.l.b16 %v4335
        %v5732 = vunpack.c.h.b16 %v4335
        %v5733 = vunpack.c.l.b16 %v4336
        %v5734 = vunpack.c.h.b16 %v4336
        %v5735 = vunpack.c.l.b16 %v4337
        %v5736 = vunpack.c.h.b16 %v4337
        %v5737 = vunpack.c.l.b16 %v4338
        %v5738 = vunpack.c.h.b16 %v4338
        %v5739 = vunpack.c.l.b16 %v4339
        %v5740 = vunpack.c.h.b16 %v4339
        %v5741 = vunpack.c.l.b16 %v4340
        %v5742 = vunpack.c.h.b16 %v4340
        %v5743 = vunpack.c.l.b16 %v4341
        %v5744 = vunpack.c.h.b16 %v4341
        %v5745 = vunpack.c.l.b16 %v4342
        %v5746 = vunpack.c.h.b16 %v4342
        %v5747 = vunpack.c.l.b16 %v4343
        %v5748 = vunpack.c.h.b16 %v4343
        %v5749 = vunpack.c.l.b16 %v4344
        %v5750 = vunpack.c.h.b16 %v4344
        %v5751 = vunpack.c.l.b16 %v4345
        %v5752 = vunpack.c.h.b16 %v4345
        %v5753 = vunpack.c.l.b16 %v4346
        %v5754 = vunpack.c.h.b16 %v4346
        %v5755 = vunpack.c.l.b16 %v4347
        %v5756 = vunpack.c.h.b16 %v4347
        %v5757 = vunpack.c.l.b16 %v4348
        %v5758 = vunpack.c.h.b16 %v4348
        %v5759 = vunpack.c.l.b16 %v4349
        %v5760 = vunpack.c.h.b16 %v4349
        %v5761 = vunpack.c.l.b16 %v4350
        %v5762 = vunpack.c.h.b16 %v4350
        %v5763 = vunpack.c.l.b16 %v4351
        %v5764 = vunpack.c.h.b16 %v4351
        %v5765 = vunpack.c.l.b16 %v4352
        %v5766 = vunpack.c.h.b16 %v4352
        %v5767 = vunpack.c.l.b16 %v4353
        %v5768 = vunpack.c.h.b16 %v4353
        %v5769 = vunpack.c.l.b16 %v4354
        %v5770 = vunpack.c.h.b16 %v4354
        %v5771 = vunpack.c.l.b16 %v4355
        %v5772 = vunpack.c.h.b16 %v4355
        %v5773 = vunpack.c.l.b16 %v4356
        %v5774 = vunpack.c.h.b16 %v4356
        %v5775 = vunpack.c.l.b16 %v4357
        %v5776 = vunpack.c.h.b16 %v4357
        %v5777 = vunpack.c.l.b16 %v4358
        %v5778 = vunpack.c.h.b16 %v4358
        %v5779 = vunpack.c.l.b16 %v4359
        %v5780 = vunpack.c.h.b16 %v4359
        %v5781 = vunpack.c.l.b16 %v4360
        %v5782 = vunpack.c.h.b16 %v4360
        %v5783 = vunpack.c.l.b16 %v4361
        %v5784 = vunpack.c.h.b16 %v4361
        %v5785 = vunpack.c.l.b16 %v4362
        %v5786 = vunpack.c.h.b16 %v4362
        %v5787 = vunpack.c.l.b16 %v4363
        %v5788 = vunpack.c.h.b16 %v4363
        %v5789 = vunpack.c.l.b16 %v4364
        %v5790 = vunpack.c.h.b16 %v4364
        %v5791 = vunpack.c.l.b16 %v4365
        %v5792 = vunpack.c.h.b16 %v4365
        %v5793 = vunpack.c.l.b16 %v4366
        %v5794 = vunpack.c.h.b16 %v4366
        %v5795 = vunpack.c.l.b16 %v4367
        %v5796 = vunpack.c.h.b16 %v4367
        %v5797 = vunpack.c.l.b16 %v4368
        %v5798 = vunpack.c.h.b16 %v4368
        %v5799 = vunpack.c.l.b16 %v4369
        %v5800 = vunpack.c.h.b16 %v4369
        %v5801 = vunpack.c.l.b16 %v4370
        %v5802 = vunpack.c.h.b16 %v4370
        %v5803 = vunpack.c.l.b16 %v4371
        %v5804 = vunpack.c.h.b16 %v4371
        %v5805 = vunpack.c.l.b16 %v4372
        %v5806 = vunpack.c.h.b16 %v4372
        %v5807 = vunpack.c.l.b16 %v4373
        %v5808 = vunpack.c.h.b16 %v4373
        %v5809 = vunpack.c.l.b16 %v4374
        %v5810 = vunpack.c.h.b16 %v4374
        %v5811 = vunpack.c.l.b16 %v4375
        %v5812 = vunpack.c.h.b16 %v4375
        %v5813 = vunpack.c.l.b16 %v4376
        %v5814 = vunpack.c.h.b16 %v4376
        %v5815 = vunpack.c.l.b16 %v4377
        %v5816 = vunpack.c.h.b16 %v4377
        %v5817 = vunpack.c.l.b16 %v4378
        %v5818 = vunpack.c.h.b16 %v4378
        %v5819 = vunpack.c.l.b16 %v4379
        %v5820 = vunpack.c.h.b16 %v4379
        %v5821 = vunpack.c.l.b16 %v4380
        %v5822 = vunpack.c.h.b16 %v4380
        %v5823 = vunpack.c.l.b16 %v4381
        %v5824 = vunpack.c.h.b16 %v4381
        %v5825 = vunpack.c.l.b16 %v4382
        %v5826 = vunpack.c.h.b16 %v4382
        %v5827 = vunpack.c.l.b16 %v4383
        %v5828 = vunpack.c.h.b16 %v4383
        %v5829 = vunpack.c.l.b16 %v4384
        %v5830 = vunpack.c.h.b16 %v4384
        %v5831 = vunpack.c.l.b16 %v4385
        %v5832 = vunpack.c.h.b16 %v4385
        %v5833 = vunpack.c.l.b16 %v4386
        %v5834 = vunpack.c.h.b16 %v4386
        %v5835 = vunpack.c.l.b16 %v4387
        %v5836 = vunpack.c.h.b16 %v4387
        %v5837 = vunpack.c.l.b16 %v4388
        %v5838 = vunpack.c.h.b16 %v4388
        %v5839 = vunpack.c.l.b16 %v4389
        %v5840 = vunpack.c.h.b16 %v4389
        %v5841 = vunpack.c.l.b16 %v4390
        %v5842 = vunpack.c.h.b16 %v4390
        %v5843 = vunpack.c.l.b16 %v4391
        %v5844 = vunpack.c.h.b16 %v4391
        %v5845 = vunpack.c.l.b16 %v4392
        %v5846 = vunpack.c.h.b16 %v4392
        %v5847 = vunpack.c.l.b16 %v4393
        %v5848 = vunpack.c.h.b16 %v4393
        %v5849 = vunpack.c.l.b16 %v4394
        %v5850 = vunpack.c.h.b16 %v4394
        %v5851 = vunpack.c.l.b16 %v4395
        %v5852 = vunpack.c.h.b16 %v4395
        %v5853 = vunpack.c.l.b16 %v4396
        %v5854 = vunpack.c.h.b16 %v4396
        %v5855 = vunpack.c.l.b16 %v4397
        %v5856 = vunpack.c.h.b16 %v4397
        %v5857 = vunpack.c.l.b16 %v4398
        %v5858 = vunpack.c.h.b16 %v4398
        %v5859 = vunpack.c.l.b16 %v4399
        %v5860 = vunpack.c.h.b16 %v4399
        %v5861 = vunpack.c.l.b16 %v4400
        %v5862 = vunpack.c.h.b16 %v4400
        %v5863 = vunpack.c.l.b16 %v4401
        %v5864 = vunpack.c.h.b16 %v4401
        %v5865 = vunpack.c.l.b16 %v4402
        %v5866 = vunpack.c.h.b16 %v4402
        %v5867 = vunpack.c.l.b16 %v4403
        %v5868 = vunpack.c.h.b16 %v4403
        %v5869 = vunpack.c.l.b16 %v4404
        %v5870 = vunpack.c.h.b16 %v4404
        %v5871 = vunpack.c.l.b16 %v4405
        %v5872 = vunpack.c.h.b16 %v4405
        %v5873 = vunpack.c.l.b16 %v4406
        %v5874 = vunpack.c.h.b16 %v4406
        %v5875 = vunpack.c.l.b16 %v4407
        %v5876 = vunpack.c.h.b16 %v4407
        %v5877 = vunpack.c.l.b16 %v4408
        %v5878 = vunpack.c.h.b16 %v4408
        %v5879 = vunpack.c.l.b16 %v4409
        %v5880 = vunpack.c.h.b16 %v4409
        %v5881 = vunpack.c.l.b16 %v4410
        %v5882 = vunpack.c.h.b16 %v4410
        %v5883 = vunpack.c.l.b16 %v4411
        %v5884 = vunpack.c.h.b16 %v4411
        %v5885 = vunpack.c.l.b16 %v4412
        %v5886 = vunpack.c.h.b16 %v4412
        %v5887 = vunpack.c.l.b16 %v4413
        %v5888 = vunpack.c.h.b16 %v4413
        %v5889 = vunpack.c.l.b16 %v4414
        %v5890 = vunpack.c.h.b16 %v4414
        %v5891 = vunpack.c.l.b16 %v4415
        %v5892 = vunpack.c.h.b16 %v4415
        %v5893 = vunpack.c.l.b16 %v4416
        %v5894 = vunpack.c.h.b16 %v4416
        %v5895 = vunpack.c.l.b16 %v4417
        %v5896 = vunpack.c.h.b16 %v4417
        %v5897 = vunpack.c.l.b16 %v4418
        %v5898 = vunpack.c.h.b16 %v4418
        %v5899 = vunpack.c.l.b16 %v4419
        %v5900 = vunpack.c.h.b16 %v4419
        %v5901 = vunpack.c.l.b16 %v4420
        %v5902 = vunpack.c.h.b16 %v4420
        %v5903 = vunpack.c.l.b16 %v4421
        %v5904 = vunpack.c.h.b16 %v4421
        %v5905 = vunpack.c.l.b16 %v4422
        %v5906 = vunpack.c.h.b16 %v4422
        %v5907 = vunpack.c.l.b16 %v4423
        %v5908 = vunpack.c.h.b16 %v4423
        %v5909 = vunpack.c.l.b16 %v4424
        %v5910 = vunpack.c.h.b16 %v4424
        %v5911 = vunpack.c.l.b16 %v4425
        %v5912 = vunpack.c.h.b16 %v4425
        %v5913 = vunpack.c.l.b16 %v4426
        %v5914 = vunpack.c.h.b16 %v4426
        %v5915 = vunpack.c.l.b16 %v4427
        %v5916 = vunpack.c.h.b16 %v4427
        %v5917 = vunpack.c.l.b16 %v4428
        %v5918 = vunpack.c.h.b16 %v4428
        %v5919 = vunpack.c.l.b16 %v4429
        %v5920 = vunpack.c.h.b16 %v4429
        %v5921 = vunpack.c.l.b16 %v4430
        %v5922 = vunpack.c.h.b16 %v4430
        %v5923 = vunpack.c.l.b16 %v4431
        %v5924 = vunpack.c.h.b16 %v4431
        %v5925 = vunpack.c.l.b16 %v4432
        %v5926 = vunpack.c.h.b16 %v4432
        %v5927 = vunpack.c.l.b16 %v4433
        %v5928 = vunpack.c.h.b16 %v4433
        %v5929 = vunpack.c.l.b16 %v4434
        %v5930 = vunpack.c.h.b16 %v4434
        %v5931 = vunpack.c.l.b16 %v4435
        %v5932 = vunpack.c.h.b16 %v4435
        %v5933 = vunpack.c.l.b16 %v4436
        %v5934 = vunpack.c.h.b16 %v4436
        %v5935 = vunpack.c.l.b16 %v4437
        %v5936 = vunpack.c.h.b16 %v4437
        %v5937 = vunpack.c.l.b16 %v4438
        %v5938 = vunpack.c.h.b16 %v4438
        %v5939 = vunpack.c.l.b16 %v4439
        %v5940 = vunpack.c.h.b16 %v4439
        %v5941 = vunpack.c.l.b16 %v4440
        %v5942 = vunpack.c.h.b16 %v4440
        %v5943 = vunpack.c.l.b16 %v4441
        %v5944 = vunpack.c.h.b16 %v4441
        %v5945 = vunpack.c.l.b16 %v4442
        %v5946 = vunpack.c.h.b16 %v4442
        %v5947 = vunpack.c.l.b16 %v4443
        %v5948 = vunpack.c.h.b16 %v4443
        %v5949 = vunpack.c.l.b16 %v4444
        %v5950 = vunpack.c.h.b16 %v4444
        %v5951 = vunpack.c.l.b16 %v4445
        %v5952 = vunpack.c.h.b16 %v4445
        %v5953 = vunpack.c.l.b16 %v4446
        %v5954 = vunpack.c.h.b16 %v4446
        %v5955 = vunpack.c.l.b16 %v4447
        %v5956 = vunpack.c.h.b16 %v4447
        %v5957 = vunpack.c.l.b16 %v4448
        %v5958 = vunpack.c.h.b16 %v4448
        %v5959 = vunpack.c.l.b16 %v4449
        %v5960 = vunpack.c.h.b16 %v4449
        %v5961 = vunpack.c.l.b16 %v4450
        %v5962 = vunpack.c.h.b16 %v4450
        %v5963 = vunpack.c.l.b16 %v4451
        %v5964 = vunpack.c.h.b16 %v4451
        %v5965 = vunpack.c.l.b16 %v4452
        %v5966 = vunpack.c.h.b16 %v4452
        %v5967 = vunpack.c.l.b16 %v4453
        %v5968 = vunpack.c.h.b16 %v4453
        %v5969 = vunpack.c.l.b16 %v4454
        %v5970 = vunpack.c.h.b16 %v4454
        %v5971 = vunpack.c.l.b16 %v4455
        %v5972 = vunpack.c.h.b16 %v4455
        %v5973 = vunpack.c.l.b16 %v4456
        %v5974 = vunpack.c.h.b16 %v4456
        %v5975 = vunpack.c.l.b16 %v4457
        %v5976 = vunpack.c.h.b16 %v4457
        %v5977 = vunpack.c.l.b16 %v4458
        %v5978 = vunpack.c.h.b16 %v4458
        %v5979 = vunpack.c.l.b16 %v4459
        %v5980 = vunpack.c.h.b16 %v4459
        %v5981 = vunpack.c.l.b16 %v4460
        %v5982 = vunpack.c.h.b16 %v4460
        %v5983 = vunpack.c.l.b16 %v4461
        %v5984 = vunpack.c.h.b16 %v4461
        %v5985 = vunpack.c.l.b16 %v4462
        %v5986 = vunpack.c.h.b16 %v4462
        %v5987 = vunpack.c.l.b16 %v4463
        %v5988 = vunpack.c.h.b16 %v4463
        %v5989 = vunpack.c.l.b16 %v4464
        %v5990 = vunpack.c.h.b16 %v4464
        %v5991 = vunpack.c.l.b16 %v4465
        %v5992 = vunpack.c.h.b16 %v4465
        %v5993 = vunpack.c.l.b16 %v4466
        %v5994 = vunpack.c.h.b16 %v4466
        %v5995 = vunpack.c.l.b16 %v4467
        %v5996 = vunpack.c.h.b16 %v4467
        %v5997 = vunpack.c.l.b16 %v4468
        %v5998 = vunpack.c.h.b16 %v4468
        %v5999 = vunpack.c.l.b16 %v4469
        %v6000 = vunpack.c.h.b16 %v4469
        %v6001 = vunpack.c.l.b16 %v4470
        %v6002 = vunpack.c.h.b16 %v4470
        %v6003 = vunpack.c.l.b16 %v4471
        %v6004 = vunpack.c.h.b16 %v4471
        %v6005 = vunpack.c.l.b16 %v4472
        %v6006 = vunpack.c.h.b16 %v4472
        %v6007 = vunpack.c.l.b16 %v4473
        %v6008 = vunpack.c.h.b16 %v4473
        %v6009 = vunpack.c.l.b16 %v4474
        %v6010 = vunpack.c.h.b16 %v4474
        %v6011 = vunpack.c.l.b16 %v4475
        %v6012 = vunpack.c.h.b16 %v4475
        %v6013 = vunpack.c.l.b16 %v4476
        %v6014 = vunpack.c.h.b16 %v4476
        %v6015 = vunpack.c.l.b16 %v4477
        %v6016 = vunpack.c.h.b16 %v4477
        %v6017 = vunpack.c.l.b16 %v4478
        %v6018 = vunpack.c.h.b16 %v4478
        %v6019 = vunpack.c.l.b16 %v4479
        %v6020 = vunpack.c.h.b16 %v4479
        %v6021 = vunpack.c.l.b16 %v4480
        %v6022 = vunpack.c.h.b16 %v4480
        %v6023 = vunpack.c.l.b16 %v4481
        %v6024 = vunpack.c.h.b16 %v4481
        %v6025 = vunpack.c.l.b16 %v4482
        %v6026 = vunpack.c.h.b16 %v4482
        %v6027 = vunpack.c.l.b16 %v4483
        %v6028 = vunpack.c.h.b16 %v4483
        %v6029 = vunpack.c.l.b16 %v4484
        %v6030 = vunpack.c.h.b16 %v4484
        %v6031 = vunpack.c.l.b16 %v4485
        %v6032 = vunpack.c.h.b16 %v4485
        %v6033 = vunpack.c.l.b16 %v4486
        %v6034 = vunpack.c.h.b16 %v4486
        %v6035 = vunpack.c.l.b16 %v4487
        %v6036 = vunpack.c.h.b16 %v4487
        %v6037 = vunpack.c.l.b16 %v4488
        %v6038 = vunpack.c.h.b16 %v4488
        %v6039 = vunpack.c.l.b16 %v4489
        %v6040 = vunpack.c.h.b16 %v4489
        %v6041 = vunpack.c.l.b16 %v4490
        %v6042 = vunpack.c.h.b16 %v4490
        %v6043 = vunpack.c.l.b16 %v4491
        %v6044 = vunpack.c.h.b16 %v4491
        %v6045 = vunpack.c.l.b16 %v4492
        %v6046 = vunpack.c.h.b16 %v4492
        %v6047 = vunpack.c.l.b16 %v4493
        %v6048 = vunpack.c.h.b16 %v4493
        %v6049 = vunpack.c.l.b16 %v4494
        %v6050 = vunpack.c.h.b16 %v4494
        %v6051 = vunpack.c.l.b16 %v4495
        %v6052 = vunpack.c.h.b16 %v4495
        %v6053 = vunpack.c.l.b16 %v4496
        %v6054 = vunpack.c.h.b16 %v4496
        %v6055 = vunpack.c.l.b16 %v4497
        %v6056 = vunpack.c.h.b16 %v4497
        %v6057 = vunpack.c.l.b16 %v4498
        %v6058 = vunpack.c.h.b16 %v4498
        %v6059 = vunpack.c.l.b16 %v4499
        %v6060 = vunpack.c.h.b16 %v4499
        %v6061 = vunpack.c.l.b16 %v4500
        %v6062 = vunpack.c.h.b16 %v4500
        %v6063 = vunpack.c.l.b16 %v4501
        %v6064 = vunpack.c.h.b16 %v4501
        %v6065 = vunpack.c.l.b16 %v4502
        %v6066 = vunpack.c.h.b16 %v4502
        %v6067 = vunpack.c.l.b16 %v4503
        %v6068 = vunpack.c.h.b16 %v4503
        %v6069 = vunpack.c.l.b16 %v4504
        %v6070 = vunpack.c.h.b16 %v4504
        %v6071 = vunpack.c.l.b16 %v4505
        %v6072 = vunpack.c.h.b16 %v4505
        %v6073 = vunpack.c.l.b16 %v4506
        %v6074 = vunpack.c.h.b16 %v4506
        %v6075 = vunpack.c.l.b16 %v4507
        %v6076 = vunpack.c.h.b16 %v4507
        %v6077 = vunpack.c.l.b16 %v4508
        %v6078 = vunpack.c.h.b16 %v4508
        %v6079 = vunpack.c.l.b16 %v4509
        %v6080 = vunpack.c.h.b16 %v4509
        %v6081 = vunpack.c.l.b16 %v4510
        %v6082 = vunpack.c.h.b16 %v4510
        %v6083 = vunpack.c.l.b16 %v4511
        %v6084 = vunpack.c.h.b16 %v4511
        %v6085 = vunpack.c.l.b16 %v4512
        %v6086 = vunpack.c.h.b16 %v4512
        %v6087 = vunpack.c.l.b16 %v4513
        %v6088 = vunpack.c.h.b16 %v4513
        %v6089 = vunpack.c.l.b16 %v4514
        %v6090 = vunpack.c.h.b16 %v4514
        %v6091 = vunpack.c.l.b16 %v4515
        %v6092 = vunpack.c.h.b16 %v4515
        %v6093 = vunpack.c.l.b16 %v4516
        %v6094 = vunpack.c.h.b16 %v4516
        %v6095 = vunpack.c.l.b16 %v4517
        %v6096 = vunpack.c.h.b16 %v4517
        %v6097 = vunpack.c.l.b16 %v4518
        %v6098 = vunpack.c.h.b16 %v4518
        %v6099 = vunpack.c.l.b16 %v4519
        %v6100 = vunpack.c.h.b16 %v4519
        %v6101 = vunpack.c.l.b16 %v4520
        %v6102 = vunpack.c.h.b16 %v4520
        %v6103 = vunpack.c.l.b16 %v4521
        %v6104 = vunpack.c.h.b16 %v4521
        %v6105 = vunpack.c.l.b16 %v4522
        %v6106 = vunpack.c.h.b16 %v4522
        %v6107 = vunpack.c.l.b16 %v4523
        %v6108 = vunpack.c.h.b16 %v4523
        %v6109 = vunpack.c.l.b16 %v4524
        %v6110 = vunpack.c.h.b16 %v4524
        %v6111 = vunpack.c.l.b16 %v4525
        %v6112 = vunpack.c.h.b16 %v4525
        %v6113 = vunpack.c.l.b16 %v4526
        %v6114 = vunpack.c.h.b16 %v4526
        %v6115 = vunpack.c.l.b16 %v4527
        %v6116 = vunpack.c.h.b16 %v4527
        %v6117 = vunpack.c.l.b16 %v4528
        %v6118 = vunpack.c.h.b16 %v4528
        %v6119 = vunpack.c.l.b16 %v4529
        %v6120 = vunpack.c.h.b16 %v4529
        %v6121 = vunpack.c.l.b16 %v4530
        %v6122 = vunpack.c.h.b16 %v4530
        %v6123 = vunpack.c.l.b16 %v4531
        %v6124 = vunpack.c.h.b16 %v4531
        %v6125 = vunpack.c.l.b16 %v4532
        %v6126 = vunpack.c.h.b16 %v4532
        %v6127 = vunpack.c.l.b16 %v4533
        %v6128 = vunpack.c.h.b16 %v4533
        %v6129 = vunpack.c.l.b16 %v4534
        %v6130 = vunpack.c.h.b16 %v4534
        %v6131 = vunpack.c.l.b16 %v4535
        %v6132 = vunpack.c.h.b16 %v4535
        %v6133 = vunpack.c.l.b16 %v4536
        %v6134 = vunpack.c.h.b16 %v4536
        %v6135 = vunpack.c.l.b16 %v4537
        %v6136 = vunpack.c.h.b16 %v4537
        %v6137 = vunpack.c.l.b16 %v4538
        %v6138 = vunpack.c.h.b16 %v4538
        %v6139 = vunpack.c.l.b16 %v4539
        %v6140 = vunpack.c.h.b16 %v4539
        %v6141 = vunpack.c.l.b16 %v4540
        %v6142 = vunpack.c.h.b16 %v4540
        %v6143 = vunpack.c.l.b16 %v4541
        %v6144 = vunpack.c.h.b16 %v4541
        %v6145 = vunpack.c.l.b16 %v4542
        %v6146 = vunpack.c.h.b16 %v4542
        %v6147 = vunpack.c.l.b16 %v4543
        %v6148 = vunpack.c.h.b16 %v4543
        %v6149 = vunpack.c.l.b16 %v4544
        %v6150 = vunpack.c.h.b16 %v4544
        %v6151 = vunpack.c.l.b16 %v4545
        %v6152 = vunpack.c.h.b16 %v4545
        %v6153 = vunpack.c.l.b16 %v4546
        %v6154 = vunpack.c.h.b16 %v4546
        %v6155 = vunpack.c.l.b16 %v4547
        %v6156 = vunpack.c.h.b16 %v4547
        %v6157 = vunpack.c.l.b16 %v4548
        %v6158 = vunpack.c.h.b16 %v4548
        %v6159 = vunpack.c.l.b16 %v4549
        %v6160 = vunpack.c.h.b16 %v4549
        %v6161 = vunpack.c.l.b16 %v4550
        %v6162 = vunpack.c.h.b16 %v4550
        %v6163 = vunpack.c.l.b16 %v4551
        %v6164 = vunpack.c.h.b16 %v4551
        %v6165 = vunpack.c.l.b16 %v4552
        %v6166 = vunpack.c.h.b16 %v4552
        %v6167 = vpack.c.b16 %v5147, %v5143
        %v6168 = vpack.c.b16 %v5148, %v5144
        %v6169 = vpack.c.b16 %v5149, %v5145
        %v6170 = vpack.c.b16 %v5150, %v5146
        %v6171 = vpack.c.b16 %v5155, %v5151
        %v6172 = vpack.c.b16 %v5156, %v5152
        %v6173 = vpack.c.b16 %v5157, %v5153
        %v6174 = vpack.c.b16 %v5158, %v5154
        %v6175 = vpack.c.b16 %v5163, %v5159
        %v6176 = vpack.c.b16 %v5164, %v5160
        %v6177 = vpack.c.b16 %v5165, %v5161
        %v6178 = vpack.c.b16 %v5166, %v5162
        %v6179 = vpack.c.b16 %v5171, %v5167
        %v6180 = vpack.c.b16 %v5172, %v5168
        %v6181 = vpack.c.b16 %v5173, %v5169
        %v6182 = vpack.c.b16 %v5174, %v5170
        %v6183 = vpack.c.b16 %v5179, %v5175
        %v6184 = vpack.c.b16 %v5180, %v5176
        %v6185 = vpack.c.b16 %v5181, %v5177
        %v6186 = vpack.c.b16 %v5182, %v5178
        %v6187 = vpack.c.b16 %v5187, %v5183
        %v6188 = vpack.c.b16 %v5188, %v5184
        %v6189 = vpack.c.b16 %v5189, %v5185
        %v6190 = vpack.c.b16 %v5190, %v5186
        %v6191 = vpack.c.b16 %v5195, %v5191
        %v6192 = vpack.c.b16 %v5196, %v5192
        %v6193 = vpack.c.b16 %v5197, %v5193
        %v6194 = vpack.c.b16 %v5198, %v5194
        %v6195 = vpack.c.b16 %v5203, %v5199
        %v6196 = vpack.c.b16 %v5204, %v5200
        %v6197 = vpack.c.b16 %v5205, %v5201
        %v6198 = vpack.c.b16 %v5206, %v5202
        %v6199 = vpack.c.b16 %v5211, %v5207
        %v6200 = vpack.c.b16 %v5212, %v5208
        %v6201 = vpack.c.b16 %v5213, %v5209
        %v6202 = vpack.c.b16 %v5214, %v5210
        %v6203 = vpack.c.b16 %v5219, %v5215
        %v6204 = vpack.c.b16 %v5220, %v5216
        %v6205 = vpack.c.b16 %v5221, %v5217
        %v6206 = vpack.c.b16 %v5222, %v5218
        %v6207 = vpack.c.b16 %v5227, %v5223
        %v6208 = vpack.c.b16 %v5228, %v5224
        %v6209 = vpack.c.b16 %v5229, %v5225
        %v6210 = vpack.c.b16 %v5230, %v5226
        %v6211 = vpack.c.b16 %v5235, %v5231
        %v6212 = vpack.c.b16 %v5236, %v5232
        %v6213 = vpack.c.b16 %v5237, %v5233
        %v6214 = vpack.c.b16 %v5238, %v5234
        %v6215 = vpack.c.b16 %v5243, %v5239
        %v6216 = vpack.c.b16 %v5244, %v5240
        %v6217 = vpack.c.b16 %v5245, %v5241
        %v6218 = vpack.c.b16 %v5246, %v5242
        %v6219 = vpack.c.b16 %v5251, %v5247
        %v6220 = vpack.c.b16 %v5252, %v5248
        %v6221 = vpack.c.b16 %v5253, %v5249
        %v6222 = vpack.c.b16 %v5254, %v5250
        %v6223 = vpack.c.b16 %v5259, %v5255
        %v6224 = vpack.c.b16 %v5260, %v5256
        %v6225 = vpack.c.b16 %v5261, %v5257
        %v6226 = vpack.c.b16 %v5262, %v5258
        %v6227 = vpack.c.b16 %v5267, %v5263
        %v6228 = vpack.c.b16 %v5268, %v5264
        %v6229 = vpack.c.b16 %v5269, %v5265
        %v6230 = vpack.c.b16 %v5270, %v5266
        %v6231 = vpack.c.b16 %v5275, %v5271
        %v6232 = vpack.c.b16 %v5276, %v5272
        %v6233 = vpack.c.b16 %v5277, %v5273
        %v6234 = vpack.c.b16 %v5278, %v5274
        %v6235 = vpack.c.b16 %v5283, %v5279
        %v6236 = vpack.c.b16 %v5284, %v5280
        %v6237 = vpack.c.b16 %v5285, %v5281
        %v6238 = vpack.c.b16 %v5286, %v5282
        %v6239 = vpack.c.b16 %v5291, %v5287
        %v6240 = vpack.c.b16 %v5292, %v5288
        %v6241 = vpack.c.b16 %v5293, %v5289
        %v6242 = vpack.c.b16 %v5294, %v5290
        %v6243 = vpack.c.b16 %v5299, %v5295
        %v6244 = vpack.c.b16 %v5300, %v5296
        %v6245 = vpack.c.b16 %v5301, %v5297
        %v6246 = vpack.c.b16 %v5302, %v5298
        %v6247 = vpack.c.b16 %v5307, %v5303
        %v6248 = vpack.c.b16 %v5308, %v5304
        %v6249 = vpack.c.b16 %v5309, %v5305
        %v6250 = vpack.c.b16 %v5310, %v5306
        %v6251 = vpack.c.b16 %v5315, %v5311
        %v6252 = vpack.c.b16 %v5316, %v5312
        %v6253 = vpack.c.b16 %v5317, %v5313
        %v6254 = vpack.c.b16 %v5318, %v5314
        %v6255 = vpack.c.b16 %v5323, %v5319
        %v6256 = vpack.c.b16 %v5324, %v5320
        %v6257 = vpack.c.b16 %v5325, %v5321
        %v6258 = vpack.c.b16 %v5326, %v5322
        %v6259 = vpack.c.b16 %v5331, %v5327
        %v6260 = vpack.c.b16 %v5332, %v5328
        %v6261 = vpack.c.b16 %v5333, %v5329
        %v6262 = vpack.c.b16 %v5334, %v5330
        %v6263 = vpack.c.b16 %v5339, %v5335
        %v6264 = vpack.c.b16 %v5340, %v5336
        %v6265 = vpack.c.b16 %v5341, %v5337
        %v6266 = vpack.c.b16 %v5342, %v5338
        %v6267 = vpack.c.b16 %v5347, %v5343
        %v6268 = vpack.c.b16 %v5348, %v5344
        %v6269 = vpack.c.b16 %v5349, %v5345
        %v6270 = vpack.c.b16 %v5350, %v5346
        %v6271 = vpack.c.b16 %v5355, %v5351
        %v6272 = vpack.c.b16 %v5356, %v5352
        %v6273 = vpack.c.b16 %v5357, %v5353
        %v6274 = vpack.c.b16 %v5358, %v5354
        %v6275 = vpack.c.b16 %v5363, %v5359
        %v6276 = vpack.c.b16 %v5364, %v5360
        %v6277 = vpack.c.b16 %v5365, %v5361
        %v6278 = vpack.c.b16 %v5366, %v5362
        %v6279 = vpack.c.b16 %v5371, %v5367
        %v6280 = vpack.c.b16 %v5372, %v5368
        %v6281 = vpack.c.b16 %v5373, %v5369
        %v6282 = vpack.c.b16 %v5374, %v5370
        %v6283 = vpack.c.b16 %v5379, %v5375
        %v6284 = vpack.c.b16 %v5380, %v5376
        %v6285 = vpack.c.b16 %v5381, %v5377
        %v6286 = vpack.c.b16 %v5382, %v5378
        %v6287 = vpack.c.b16 %v5387, %v5383
        %v6288 = vpack.c.b16 %v5388, %v5384
        %v6289 = vpack.c.b16 %v5389, %v5385
        %v6290 = vpack.c.b16 %v5390, %v5386
        %v6291 = vpack.c.b16 %v5395, %v5391
        %v6292 = vpack.c.b16 %v5396, %v5392
        %v6293 = vpack.c.b16 %v5397, %v5393
        %v6294 = vpack.c.b16 %v5398, %v5394
        %v6295 = vpack.c.b16 %v5403, %v5399
        %v6296 = vpack.c.b16 %v5404, %v5400
        %v6297 = vpack.c.b16 %v5405, %v5401
        %v6298 = vpack.c.b16 %v5406, %v5402
        %v6299 = vpack.c.b16 %v5411, %v5407
        %v6300 = vpack.c.b16 %v5412, %v5408
        %v6301 = vpack.c.b16 %v5413, %v5409
        %v6302 = vpack.c.b16 %v5414, %v5410
        %v6303 = vpack.c.b16 %v5419, %v5415
        %v6304 = vpack.c.b16 %v5420, %v5416
        %v6305 = vpack.c.b16 %v5421, %v5417
        %v6306 = vpack.c.b16 %v5422, %v5418
        %v6307 = vpack.c.b16 %v5427, %v5423
        %v6308 = vpack.c.b16 %v5428, %v5424
        %v6309 = vpack.c.b16 %v5429, %v5425
        %v6310 = vpack.c.b16 %v5430, %v5426
        %v6311 = vpack.c.b16 %v5435, %v5431
        %v6312 = vpack.c.b16 %v5436, %v5432
        %v6313 = vpack.c.b16 %v5437, %v5433
        %v6314 = vpack.c.b16 %v5438, %v5434
        %v6315 = vpack.c.b16 %v5443, %v5439
        %v6316 = vpack.c.b16 %v5444, %v5440
        %v6317 = vpack.c.b16 %v5445, %v5441
        %v6318 = vpack.c.b16 %v5446, %v5442
        %v6319 = vpack.c.b16 %v5451, %v5447
        %v6320 = vpack.c.b16 %v5452, %v5448
        %v6321 = vpack.c.b16 %v5453, %v5449
        %v6322 = vpack.c.b16 %v5454, %v5450
        %v6323 = vpack.c.b16 %v5459, %v5455
        %v6324 = vpack.c.b16 %v5460, %v5456
        %v6325 = vpack.c.b16 %v5461, %v5457
        %v6326 = vpack.c.b16 %v5462, %v5458
        %v6327 = vpack.c.b16 %v5467, %v5463
        %v6328 = vpack.c.b16 %v5468, %v5464
        %v6329 = vpack.c.b16 %v5469, %v5465
        %v6330 = vpack.c.b16 %v5470, %v5466
        %v6331 = vpack.c.b16 %v5475, %v5471
        %v6332 = vpack.c.b16 %v5476, %v5472
        %v6333 = vpack.c.b16 %v5477, %v5473
        %v6334 = vpack.c.b16 %v5478, %v5474
        %v6335 = vpack.c.b16 %v5483, %v5479
        %v6336 = vpack.c.b16 %v5484, %v5480
        %v6337 = vpack.c.b16 %v5485, %v5481
        %v6338 = vpack.c.b16 %v5486, %v5482
        %v6339 = vpack.c.b16 %v5491, %v5487
        %v6340 = vpack.c.b16 %v5492, %v5488
        %v6341 = vpack.c.b16 %v5493, %v5489
        %v6342 = vpack.c.b16 %v5494, %v5490
        %v6343 = vpack.c.b16 %v5499, %v5495
        %v6344 = vpack.c.b16 %v5500, %v5496
        %v6345 = vpack.c.b16 %v5501, %v5497
        %v6346 = vpack.c.b16 %v5502, %v5498
        %v6347 = vpack.c.b16 %v5507, %v5503
        %v6348 = vpack.c.b16 %v5508, %v5504
        %v6349 = vpack.c.b16 %v5509, %v5505
        %v6350 = vpack.c.b16 %v5510, %v5506
        %v6351 = vpack.c.b16 %v5515, %v5511
        %v6352 = vpack.c.b16 %v5516, %v5512
        %v6353 = vpack.c.b16 %v5517, %v5513
        %v6354 = vpack.c.b16 %v5518, %v5514
        %v6355 = vpack.c.b16 %v5523, %v5519
        %v6356 = vpack.c.b16 %v5524, %v5520
        %v6357 = vpack.c.b16 %v5525, %v5521
        %v6358 = vpack.c.b16 %v5526, %v5522
        %v6359 = vpack.c.b16 %v5531, %v5527
        %v6360 = vpack.c.b16 %v5532, %v5528
        %v6361 = vpack.c.b16 %v5533, %v5529
        %v6362 = vpack.c.b16 %v5534, %v5530
        %v6363 = vpack.c.b16 %v5539, %v5535
        %v6364 = vpack.c.b16 %v5540, %v5536
        %v6365 = vpack.c.b16 %v5541, %v5537
        %v6366 = vpack.c.b16 %v5542, %v5538
        %v6367 = vpack.c.b16 %v5547, %v5543
        %v6368 = vpack.c.b16 %v5548, %v5544
        %v6369 = vpack.c.b16 %v5549, %v5545
        %v6370 = vpack.c.b16 %v5550, %v5546
        %v6371 = vpack.c.b16 %v5555, %v5551
        %v6372 = vpack.c.b16 %v5556, %v5552
        %v6373 = vpack.c.b16 %v5557, %v5553
        %v6374 = vpack.c.b16 %v5558, %v5554
        %v6375 = vpack.c.b16 %v5563, %v5559
        %v6376 = vpack.c.b16 %v5564, %v5560
        %v6377 = vpack.c.b16 %v5565, %v5561
        %v6378 = vpack.c.b16 %v5566, %v5562
        %v6379 = vpack.c.b16 %v5571, %v5567
        %v6380 = vpack.c.b16 %v5572, %v5568
        %v6381 = vpack.c.b16 %v5573, %v5569
        %v6382 = vpack.c.b16 %v5574, %v5570
        %v6383 = vpack.c.b16 %v5579, %v5575
        %v6384 = vpack.c.b16 %v5580, %v5576
        %v6385 = vpack.c.b16 %v5581, %v5577
        %v6386 = vpack.c.b16 %v5582, %v5578
        %v6387 = vpack.c.b16 %v5587, %v5583
        %v6388 = vpack.c.b16 %v5588, %v5584
        %v6389 = vpack.c.b16 %v5589, %v5585
        %v6390 = vpack.c.b16 %v5590, %v5586
        %v6391 = vpack.c.b16 %v5595, %v5591
        %v6392 = vpack.c.b16 %v5596, %v5592
        %v6393 = vpack.c.b16 %v5597, %v5593
        %v6394 = vpack.c.b16 %v5598, %v5594
        %v6395 = vpack.c.b16 %v5603, %v5599
        %v6396 = vpack.c.b16 %v5604, %v5600
        %v6397 = vpack.c.b16 %v5605, %v5601
        %v6398 = vpack.c.b16 %v5606, %v5602
        %v6399 = vpack.c.b16 %v5611, %v5607
        %v6400 = vpack.c.b16 %v5612, %v5608
        %v6401 = vpack.c.b16 %v5613, %v5609
        %v6402 = vpack.c.b16 %v5614, %v5610
        %v6403 = vpack.c.b16 %v5619, %v5615
        %v6404 = vpack.c.b16 %v5620, %v5616
        %v6405 = vpack.c.b16 %v5621, %v5617
        %v6406 = vpack.c.b16 %v5622, %v5618
        %v6407 = vpack.c.b16 %v5627, %v5623
        %v6408 = vpack.c.b16 %v5628, %v5624
        %v6409 = vpack.c.b16 %v5629, %v5625
        %v6410 = vpack.c.b16 %v5630, %v5626
        %v6411 = vpack.c.b16 %v5635, %v5631
        %v6412 = vpack.c.b16 %v5636, %v5632
        %v6413 = vpack.c.b16 %v5637, %v5633
        %v6414 = vpack.c.b16 %v5638, %v5634
        %v6415 = vpack.c.b16 %v5643, %v5639
        %v6416 = vpack.c.b16 %v5644, %v5640
        %v6417 = vpack.c.b16 %v5645, %v5641
        %v6418 = vpack.c.b16 %v5646, %v5642
        %v6419 = vpack.c.b16 %v5651, %v5647
        %v6420 = vpack.c.b16 %v5652, %v5648
        %v6421 = vpack.c.b16 %v5653, %v5649
        %v6422 = vpack.c.b16 %v5654, %v5650
        %v6423 = vpack.c.b16 %v5659, %v5655
        %v6424 = vpack.c.b16 %v5660, %v5656
        %v6425 = vpack.c.b16 %v5661, %v5657
        %v6426 = vpack.c.b16 %v5662, %v5658
        %v6427 = vpack.c.b16 %v5667, %v5663
        %v6428 = vpack.c.b16 %v5668, %v5664
        %v6429 = vpack.c.b16 %v5669, %v5665
        %v6430 = vpack.c.b16 %v5670, %v5666
        %v6431 = vpack.c.b16 %v5675, %v5671
        %v6432 = vpack.c.b16 %v5676, %v5672
        %v6433 = vpack.c.b16 %v5677, %v5673
        %v6434 = vpack.c.b16 %v5678, %v5674
        %v6435 = vpack.c.b16 %v5683, %v5679
        %v6436 = vpack.c.b16 %v5684, %v5680
        %v6437 = vpack.c.b16 %v5685, %v5681
        %v6438 = vpack.c.b16 %v5686, %v5682
        %v6439 = vpack.c.b16 %v5691, %v5687
        %v6440 = vpack.c.b16 %v5692, %v5688
        %v6441 = vpack.c.b16 %v5693, %v5689
        %v6442 = vpack.c.b16 %v5694, %v5690
        %v6443 = vpack.c.b16 %v5699, %v5695
        %v6444 = vpack.c.b16 %v5700, %v5696
        %v6445 = vpack.c.b16 %v5701, %v5697
        %v6446 = vpack.c.b16 %v5702, %v5698
        %v6447 = vpack.c.b16 %v5707, %v5703
        %v6448 = vpack.c.b16 %v5708, %v5704
        %v6449 = vpack.c.b16 %v5709, %v5705
        %v6450 = vpack.c.b16 %v5710, %v5706
        %v6451 = vpack.c.b16 %v5715, %v5711
        %v6452 = vpack.c.b16 %v5716, %v5712
        %v6453 = vpack.c.b16 %v5717, %v5713
        %v6454 = vpack.c.b16 %v5718, %v5714
        %v6455 = vpack.c.b16 %v5723, %v5719
        %v6456 = vpack.c.b16 %v5724, %v5720
        %v6457 = vpack.c.b16 %v5725, %v5721
        %v6458 = vpack.c.b16 %v5726, %v5722
        %v6459 = vpack.c.b16 %v5731, %v5727
        %v6460 = vpack.c.b16 %v5732, %v5728
        %v6461 = vpack.c.b16 %v5733, %v5729
        %v6462 = vpack.c.b16 %v5734, %v5730
        %v6463 = vpack.c.b16 %v5739, %v5735
        %v6464 = vpack.c.b16 %v5740, %v5736
        %v6465 = vpack.c.b16 %v5741, %v5737
        %v6466 = vpack.c.b16 %v5742, %v5738
        %v6467 = vpack.c.b16 %v5747, %v5743
        %v6468 = vpack.c.b16 %v5748, %v5744
        %v6469 = vpack.c.b16 %v5749, %v5745
        %v6470 = vpack.c.b16 %v5750, %v5746
        %v6471 = vpack.c.b16 %v5755, %v5751
        %v6472 = vpack.c.b16 %v5756, %v5752
        %v6473 = vpack.c.b16 %v5757, %v5753
        %v6474 = vpack.c.b16 %v5758, %v5754
        %v6475 = vpack.c.b16 %v5763, %v5759
        %v6476 = vpack.c.b16 %v5764, %v5760
        %v6477 = vpack.c.b16 %v5765, %v5761
        %v6478 = vpack.c.b16 %v5766, %v5762
        %v6479 = vpack.c.b16 %v5771, %v5767
        %v6480 = vpack.c.b16 %v5772, %v5768
        %v6481 = vpack.c.b16 %v5773, %v5769
        %v6482 = vpack.c.b16 %v5774, %v5770
        %v6483 = vpack.c.b16 %v5779, %v5775
        %v6484 = vpack.c.b16 %v5780, %v5776
        %v6485 = vpack.c.b16 %v5781, %v5777
        %v6486 = vpack.c.b16 %v5782, %v5778
        %v6487 = vpack.c.b16 %v5787, %v5783
        %v6488 = vpack.c.b16 %v5788, %v5784
        %v6489 = vpack.c.b16 %v5789, %v5785
        %v6490 = vpack.c.b16 %v5790, %v5786
        %v6491 = vpack.c.b16 %v5795, %v5791
        %v6492 = vpack.c.b16 %v5796, %v5792
        %v6493 = vpack.c.b16 %v5797, %v5793
        %v6494 = vpack.c.b16 %v5798, %v5794
        %v6495 = vpack.c.b16 %v5803, %v5799
        %v6496 = vpack.c.b16 %v5804, %v5800
        %v6497 = vpack.c.b16 %v5805, %v5801
        %v6498 = vpack.c.b16 %v5806, %v5802
        %v6499 = vpack.c.b16 %v5811, %v5807
        %v6500 = vpack.c.b16 %v5812, %v5808
        %v6501 = vpack.c.b16 %v5813, %v5809
        %v6502 = vpack.c.b16 %v5814, %v5810
        %v6503 = vpack.c.b16 %v5819, %v5815
        %v6504 = vpack.c.b16 %v5820, %v5816
        %v6505 = vpack.c.b16 %v5821, %v5817
        %v6506 = vpack.c.b16 %v5822, %v5818
        %v6507 = vpack.c.b16 %v5827, %v5823
        %v6508 = vpack.c.b16 %v5828, %v5824
        %v6509 = vpack.c.b16 %v5829, %v5825
        %v6510 = vpack.c.b16 %v5830, %v5826
        %v6511 = vpack.c.b16 %v5835, %v5831
        %v6512 = vpack.c.b16 %v5836, %v5832
        %v6513 = vpack.c.b16 %v5837, %v5833
        %v6514 = vpack.c.b16 %v5838, %v5834
        %v6515 = vpack.c.b16 %v5843, %v5839
        %v6516 = vpack.c.b16 %v5844, %v5840
        %v6517 = vpack.c.b16 %v5845, %v5841
        %v6518 = vpack.c.b16 %v5846, %v5842
        %v6519 = vpack.c.b16 %v5851, %v5847
        %v6520 = vpack.c.b16 %v5852, %v5848
        %v6521 = vpack.c.b16 %v5853, %v5849
        %v6522 = vpack.c.b16 %v5854, %v5850
        %v6523 = vpack.c.b16 %v5859, %v5855
        %v6524 = vpack.c.b16 %v5860, %v5856
        %v6525 = vpack.c.b16 %v5861, %v5857
        %v6526 = vpack.c.b16 %v5862, %v5858
        %v6527 = vpack.c.b16 %v5867, %v5863
        %v6528 = vpack.c.b16 %v5868, %v5864
        %v6529 = vpack.c.b16 %v5869, %v5865
        %v6530 = vpack.c.b16 %v5870, %v5866
        %v6531 = vpack.c.b16 %v5875, %v5871
        %v6532 = vpack.c.b16 %v5876, %v5872
        %v6533 = vpack.c.b16 %v5877, %v5873
        %v6534 = vpack.c.b16 %v5878, %v5874
        %v6535 = vpack.c.b16 %v5883, %v5879
        %v6536 = vpack.c.b16 %v5884, %v5880
        %v6537 = vpack.c.b16 %v5885, %v5881
        %v6538 = vpack.c.b16 %v5886, %v5882
        %v6539 = vpack.c.b16 %v5891, %v5887
        %v6540 = vpack.c.b16 %v5892, %v5888
        %v6541 = vpack.c.b16 %v5893, %v5889
        %v6542 = vpack.c.b16 %v5894, %v5890
        %v6543 = vpack.c.b16 %v5899, %v5895
        %v6544 = vpack.c.b16 %v5900, %v5896
        %v6545 = vpack.c.b16 %v5901, %v5897
        %v6546 = vpack.c.b16 %v5902, %v5898
        %v6547 = vpack.c.b16 %v5907, %v5903
        %v6548 = vpack.c.b16 %v5908, %v5904
        %v6549 = vpack.c.b16 %v5909, %v5905
        %v6550 = vpack.c.b16 %v5910, %v5906
        %v6551 = vpack.c.b16 %v5915, %v5911
        %v6552 = vpack.c.b16 %v5916, %v5912
        %v6553 = vpack.c.b16 %v5917, %v5913
        %v6554 = vpack.c.b16 %v5918, %v5914
        %v6555 = vpack.c.b16 %v5923, %v5919
        %v6556 = vpack.c.b16 %v5924, %v5920
        %v6557 = vpack.c.b16 %v5925, %v5921
        %v6558 = vpack.c.b16 %v5926, %v5922
        %v6559 = vpack.c.b16 %v5931, %v5927
        %v6560 = vpack.c.b16 %v5932, %v5928
        %v6561 = vpack.c.b16 %v5933, %v5929
        %v6562 = vpack.c.b16 %v5934, %v5930
        %v6563 = vpack.c.b16 %v5939, %v5935
        %v6564 = vpack.c.b16 %v5940, %v5936
        %v6565 = vpack.c.b16 %v5941, %v5937
        %v6566 = vpack.c.b16 %v5942, %v5938
        %v6567 = vpack.c.b16 %v5947, %v5943
        %v6568 = vpack.c.b16 %v5948, %v5944
        %v6569 = vpack.c.b16 %v5949, %v5945
        %v6570 = vpack.c.b16 %v5950, %v5946
        %v6571 = vpack.c.b16 %v5955, %v5951
        %v6572 = vpack.c.b16 %v5956, %v5952
        %v6573 = vpack.c.b16 %v5957, %v5953
        %v6574 = vpack.c.b16 %v5958, %v5954
        %v6575 = vpack.c.b16 %v5963, %v5959
        %v6576 = vpack.c.b16 %v5964, %v5960
        %v6577 = vpack.c.b16 %v5965, %v5961
        %v6578 = vpack.c.b16 %v5966, %v5962
        %v6579 = vpack.c.b16 %v5971, %v5967
        %v6580 = vpack.c.b16 %v5972, %v5968
        %v6581 = vpack.c.b16 %v5973, %v5969
        %v6582 = vpack.c.b16 %v5974, %v5970
        %v6583 = vpack.c.b16 %v5979, %v5975
        %v6584 = vpack.c.b16 %v5980, %v5976
        %v6585 = vpack.c.b16 %v5981, %v5977
        %v6586 = vpack.c.b16 %v5982, %v5978
        %v6587 = vpack.c.b16 %v5987, %v5983
        %v6588 = vpack.c.b16 %v5988, %v5984
        %v6589 = vpack.c.b16 %v5989, %v5985
        %v6590 = vpack.c.b16 %v5990, %v5986
        %v6591 = vpack.c.b16 %v5995, %v5991
        %v6592 = vpack.c.b16 %v5996, %v5992
        %v6593 = vpack.c.b16 %v5997, %v5993
        %v6594 = vpack.c.b16 %v5998, %v5994
        %v6595 = vpack.c.b16 %v6003, %v5999
        %v6596 = vpack.c.b16 %v6004, %v6000
        %v6597 = vpack.c.b16 %v6005, %v6001
        %v6598 = vpack.c.b16 %v6006, %v6002
        %v6599 = vpack.c.b16 %v6011, %v6007
        %v6600 = vpack.c.b16 %v6012, %v6008
        %v6601 = vpack.c.b16 %v6013, %v6009
        %v6602 = vpack.c.b16 %v6014, %v6010
        %v6603 = vpack.c.b16 %v6019, %v6015
        %v6604 = vpack.c.b16 %v6020, %v6016
        %v6605 = vpack.c.b16 %v6021, %v6017
        %v6606 = vpack.c.b16 %v6022, %v6018
        %v6607 = vpack.c.b16 %v6027, %v6023
        %v6608 = vpack.c.b16 %v6028, %v6024
        %v6609 = vpack.c.b16 %v6029, %v6025
        %v6610 = vpack.c.b16 %v6030, %v6026
        %v6611 = vpack.c.b16 %v6035, %v6031
        %v6612 = vpack.c.b16 %v6036, %v6032
        %v6613 = vpack.c.b16 %v6037, %v6033
        %v6614 = vpack.c.b16 %v6038, %v6034
        %v6615 = vpack.c.b16 %v6043, %v6039
        %v6616 = vpack.c.b16 %v6044, %v6040
        %v6617 = vpack.c.b16 %v6045, %v6041
        %v6618 = vpack.c.b16 %v6046, %v6042
        %v6619 = vpack.c.b16 %v6051, %v6047
        %v6620 = vpack.c.b16 %v6052, %v6048
        %v6621 = vpack.c.b16 %v6053, %v6049
        %v6622 = vpack.c.b16 %v6054, %v6050
        %v6623 = vpack.c.b16 %v6059, %v6055
        %v6624 = vpack.c.b16 %v6060, %v6056
        %v6625 = vpack.c.b16 %v6061, %v6057
        %v6626 = vpack.c.b16 %v6062, %v6058
        %v6627 = vpack.c.b16 %v6067, %v6063
        %v6628 = vpack.c.b16 %v6068, %v6064
        %v6629 = vpack.c.b16 %v6069, %v6065
        %v6630 = vpack.c.b16 %v6070, %v6066
        %v6631 = vpack.c.b16 %v6075, %v6071
        %v6632 = vpack.c.b16 %v6076, %v6072
        %v6633 = vpack.c.b16 %v6077, %v6073
        %v6634 = vpack.c.b16 %v6078, %v6074
        %v6635 = vpack.c.b16 %v6083, %v6079
        %v6636 = vpack.c.b16 %v6084, %v6080
        %v6637 = vpack.c.b16 %v6085, %v6081
        %v6638 = vpack.c.b16 %v6086, %v6082
        %v6639 = vpack.c.b16 %v6091, %v6087
        %v6640 = vpack.c.b16 %v6092, %v6088
        %v6641 = vpack.c.b16 %v6093, %v6089
        %v6642 = vpack.c.b16 %v6094, %v6090
        %v6643 = vpack.c.b16 %v6099, %v6095
        %v6644 = vpack.c.b16 %v6100, %v6096
        %v6645 = vpack.c.b16 %v6101, %v6097
        %v6646 = vpack.c.b16 %v6102, %v6098
        %v6647 = vpack.c.b16 %v6107, %v6103
        %v6648 = vpack.c.b16 %v6108, %v6104
        %v6649 = vpack.c.b16 %v6109, %v6105
        %v6650 = vpack.c.b16 %v6110, %v6106
        %v6651 = vpack.c.b16 %v6115, %v6111
        %v6652 = vpack.c.b16 %v6116, %v6112
        %v6653 = vpack.c.b16 %v6117, %v6113
        %v6654 = vpack.c.b16 %v6118, %v6114
        %v6655 = vpack.c.b16 %v6123, %v6119
        %v6656 = vpack.c.b16 %v6124, %v6120
        %v6657 = vpack.c.b16 %v6125, %v6121
        %v6658 = vpack.c.b16 %v6126, %v6122
        %v6659 = vpack.c.b16 %v6131, %v6127
        %v6660 = vpack.c.b16 %v6132, %v6128
        %v6661 = vpack.c.b16 %v6133, %v6129
        %v6662 = vpack.c.b16 %v6134, %v6130
        %v6663 = vpack.c.b16 %v6139, %v6135
        %v6664 = vpack.c.b16 %v6140, %v6136
        %v6665 = vpack.c.b16 %v6141, %v6137
        %v6666 = vpack.c.b16 %v6142, %v6138
        %v6667 = vpack.c.b16 %v6147, %v6143
        %v6668 = vpack.c.b16 %v6148, %v6144
        %v6669 = vpack.c.b16 %v6149, %v6145
        %v6670 = vpack.c.b16 %v6150, %v6146
        %v6671 = vpack.c.b16 %v6155, %v6151
        %v6672 = vpack.c.b16 %v6156, %v6152
        %v6673 = vpack.c.b16 %v6157, %v6153
        %v6674 = vpack.c.b16 %v6158, %v6154
        %v6675 = vpack.c.b16 %v6163, %v6159
        %v6676 = vpack.c.b16 %v6164, %v6160
        %v6677 = vpack.c.b16 %v6165, %v6161
        %v6678 = vpack.c.b16 %v6166, %v6162
        %7191 = vmatprep.subr.bf16.mxu0 %v6196
        %7192 = vmatpush1.bf16.msra.mxu0 %v6195
        %7193 = vmatprep.subr.bf16.mxu0 %v6192
        %7194 = vmatpush1.bf16.msra.mxu0 %v6191
        %7195 = vmatprep.subr.bf16.mxu0 %v6188
        %7196 = vmatpush1.bf16.msra.mxu0 %v6187
        %7197 = vmatprep.subr.bf16.mxu0 %v6184
        %7198 = vmatpush1.bf16.msra.mxu0 %v6183
        %7199 = vmatprep.subr.bf16.mxu0 %v6180
        %7200 = vmatpush1.bf16.msra.mxu0 %v6179
        %7201 = vmatprep.subr.bf16.mxu0 %v6176
        %7202 = vmatpush1.bf16.msra.mxu0 %v6175
        %7203 = vmatprep.subr.bf16.mxu0 %v6172
        %7204 = vmatpush1.bf16.msra.mxu0 %v6171
        %7205 = vmatprep.subr.bf16.mxu0 %v6168
        %7206 = vmatpush1.bf16.msra.mxu0 %v6167
        %7207 = vmatprep.subr.bf16.mxu0 %v6228
        %7208 = vmatpush2.bf16.msra.mxu0 %v6227
        %7209 = vmatprep.subr.bf16.mxu0 %v6224
        %7210 = vmatpush2.bf16.msra.mxu0 %v6223
        %7211 = vmatprep.subr.bf16.mxu0 %v6220
        %7212 = vmatpush2.bf16.msra.mxu0 %v6219
        %7213 = vmatprep.subr.bf16.mxu0 %v6216
        %7214 = vmatpush2.bf16.msra.mxu0 %v6215
        %7215 = vmatprep.subr.bf16.mxu0 %v6212
        %7216 = vmatpush2.bf16.msra.mxu0 %v6211
        %7217 = vmatprep.subr.bf16.mxu0 %v6208
        %7218 = vmatpush2.bf16.msra.mxu0 %v6207
        %7219 = vmatprep.subr.bf16.mxu0 %v6204
        %7220 = vmatpush2.bf16.msra.mxu0 %v6203
        %7221 = vmatprep.subr.bf16.mxu0 %v6200
        %7222 = vmatpush2.bf16.msra.mxu0 %v6199
        %7223 = vmatprep.mubr.bf16.mxu0 %v4600
        %7224 = vmatmul.mubr.bf16.gmra.mxu0 %v4599
        %v7225 = vpop.f32.mrf.mxu0
        %v7226 = vadd.f32 %v4558, %v7225
        %v7227 = vpop.f32.mrf.mxu0
        %v7228 = vadd.f32 %v4562, %v7227
        %v7229 = vpop.f32.mrf.mxu0
        %v7230 = vpop.f32.mrf.mxu0
        %7231 = vdwg.mxu0
        %7232 = vmatprep.subr.bf16.mxu0 %v6260
        %7233 = vmatpush1.bf16.msra.mxu0 %v6259
        %7234 = vmatprep.subr.bf16.mxu0 %v6256
        %7235 = vmatpush1.bf16.msra.mxu0 %v6255
        %7236 = vmatprep.subr.bf16.mxu0 %v6252
        %7237 = vmatpush1.bf16.msra.mxu0 %v6251
        %7238 = vmatprep.subr.bf16.mxu0 %v6248
        %7239 = vmatpush1.bf16.msra.mxu0 %v6247
        %7240 = vmatprep.subr.bf16.mxu0 %v6244
        %7241 = vmatpush1.bf16.msra.mxu0 %v6243
        %7242 = vmatprep.subr.bf16.mxu0 %v6240
        %7243 = vmatpush1.bf16.msra.mxu0 %v6239
        %7244 = vmatprep.subr.bf16.mxu0 %v6236
        %7245 = vmatpush1.bf16.msra.mxu0 %v6235
        %7246 = vmatprep.subr.bf16.mxu0 %v6232
        %7247 = vmatpush1.bf16.msra.mxu0 %v6231
        %7248 = vmatprep.subr.bf16.mxu0 %v6292
        %7249 = vmatpush2.bf16.msra.mxu0 %v6291
        %7250 = vmatprep.subr.bf16.mxu0 %v6288
        %7251 = vmatpush2.bf16.msra.mxu0 %v6287
        %7252 = vmatprep.subr.bf16.mxu0 %v6284
        %7253 = vmatpush2.bf16.msra.mxu0 %v6283
        %7254 = vmatprep.subr.bf16.mxu0 %v6280
        %7255 = vmatpush2.bf16.msra.mxu0 %v6279
        %7256 = vmatprep.subr.bf16.mxu0 %v6276
        %7257 = vmatpush2.bf16.msra.mxu0 %v6275
        %7258 = vmatprep.subr.bf16.mxu0 %v6272
        %7259 = vmatpush2.bf16.msra.mxu0 %v6271
        %7260 = vmatprep.subr.bf16.mxu0 %v6268
        %7261 = vmatpush2.bf16.msra.mxu0 %v6267
        %7262 = vmatprep.subr.bf16.mxu0 %v6264
        %7263 = vmatpush2.bf16.msra.mxu0 %v6263
        %7264 = vmatprep.mubr.bf16.mxu0 %v4602
        %7265 = vmatmul.mubr.bf16.gmra.mxu0 %v4601
        %v7266 = vpop.f32.mrf.mxu0
        %v7267 = vadd.f32 %v7226, %v7266
        %v7268 = vpop.f32.mrf.mxu0
        %v7269 = vadd.f32 %v7228, %v7268
        %v7270 = vpop.f32.mrf.mxu0
        %v7271 = vpop.f32.mrf.mxu0
        %7272 = vdwg.mxu0
        %7273 = vmatprep.subr.bf16.mxu0 %v6324
        %7274 = vmatpush1.bf16.msra.mxu0 %v6323
        %7275 = vmatprep.subr.bf16.mxu0 %v6320
        %7276 = vmatpush1.bf16.msra.mxu0 %v6319
        %7277 = vmatprep.subr.bf16.mxu0 %v6316
        %7278 = vmatpush1.bf16.msra.mxu0 %v6315
        %7279 = vmatprep.subr.bf16.mxu0 %v6312
        %7280 = vmatpush1.bf16.msra.mxu0 %v6311
        %7281 = vmatprep.subr.bf16.mxu0 %v6308
        %7282 = vmatpush1.bf16.msra.mxu0 %v6307
        %7283 = vmatprep.subr.bf16.mxu0 %v6304
        %7284 = vmatpush1.bf16.msra.mxu0 %v6303
        %7285 = vmatprep.subr.bf16.mxu0 %v6300
        %7286 = vmatpush1.bf16.msra.mxu0 %v6299
        %7287 = vmatprep.subr.bf16.mxu0 %v6296
        %7288 = vmatpush1.bf16.msra.mxu0 %v6295
        %7289 = vmatprep.subr.bf16.mxu0 %v6356
        %7290 = vmatpush2.bf16.msra.mxu0 %v6355
        %7291 = vmatprep.subr.bf16.mxu0 %v6352
        %7292 = vmatpush2.bf16.msra.mxu0 %v6351
        %7293 = vmatprep.subr.bf16.mxu0 %v6348
        %7294 = vmatpush2.bf16.msra.mxu0 %v6347
        %7295 = vmatprep.subr.bf16.mxu0 %v6344
        %7296 = vmatpush2.bf16.msra.mxu0 %v6343
        %7297 = vmatprep.subr.bf16.mxu0 %v6340
        %7298 = vmatpush2.bf16.msra.mxu0 %v6339
        %7299 = vmatprep.subr.bf16.mxu0 %v6336
        %7300 = vmatpush2.bf16.msra.mxu0 %v6335
        %7301 = vmatprep.subr.bf16.mxu0 %v6332
        %7302 = vmatpush2.bf16.msra.mxu0 %v6331
        %7303 = vmatprep.subr.bf16.mxu0 %v6328
        %7304 = vmatpush2.bf16.msra.mxu0 %v6327
        %7305 = vmatprep.mubr.bf16.mxu0 %v4604
        %7306 = vmatmul.mubr.bf16.gmra.mxu0 %v4603
        %v7307 = vpop.f32.mrf.mxu0
        %v7308 = vadd.f32 %v7267, %v7307
        %v7309 = vpop.f32.mrf.mxu0
        %v7310 = vadd.f32 %v7269, %v7309
        %v7311 = vpop.f32.mrf.mxu0
        %v7312 = vpop.f32.mrf.mxu0
        %7313 = vdwg.mxu0
        %7314 = vmatprep.subr.bf16.mxu0 %v6388
        %7315 = vmatpush1.bf16.msra.mxu0 %v6387
        %7316 = vmatprep.subr.bf16.mxu0 %v6384
        %7317 = vmatpush1.bf16.msra.mxu0 %v6383
        %7318 = vmatprep.subr.bf16.mxu0 %v6380
        %7319 = vmatpush1.bf16.msra.mxu0 %v6379
        %7320 = vmatprep.subr.bf16.mxu0 %v6376
        %7321 = vmatpush1.bf16.msra.mxu0 %v6375
        %7322 = vmatprep.subr.bf16.mxu0 %v6372
        %7323 = vmatpush1.bf16.msra.mxu0 %v6371
        %7324 = vmatprep.subr.bf16.mxu0 %v6368
        %7325 = vmatpush1.bf16.msra.mxu0 %v6367
        %7326 = vmatprep.subr.bf16.mxu0 %v6364
        %7327 = vmatpush1.bf16.msra.mxu0 %v6363
        %7328 = vmatprep.subr.bf16.mxu0 %v6360
        %7329 = vmatpush1.bf16.msra.mxu0 %v6359
        %7330 = vmatprep.subr.bf16.mxu0 %v6420
        %7331 = vmatpush2.bf16.msra.mxu0 %v6419
        %7332 = vmatprep.subr.bf16.mxu0 %v6416
        %7333 = vmatpush2.bf16.msra.mxu0 %v6415
        %7334 = vmatprep.subr.bf16.mxu0 %v6412
        %7335 = vmatpush2.bf16.msra.mxu0 %v6411
        %7336 = vmatprep.subr.bf16.mxu0 %v6408
        %7337 = vmatpush2.bf16.msra.mxu0 %v6407
        %7338 = vmatprep.subr.bf16.mxu0 %v6404
        %7339 = vmatpush2.bf16.msra.mxu0 %v6403
        %7340 = vmatprep.subr.bf16.mxu0 %v6400
        %7341 = vmatpush2.bf16.msra.mxu0 %v6399
        %7342 = vmatprep.subr.bf16.mxu0 %v6396
        %7343 = vmatpush2.bf16.msra.mxu0 %v6395
        %7344 = vmatprep.subr.bf16.mxu0 %v6392
        %7345 = vmatpush2.bf16.msra.mxu0 %v6391
        %7346 = vmatprep.mubr.bf16.mxu0 %v4606
        %7347 = vmatmul.mubr.bf16.gmra.mxu0 %v4605
        %v7348 = vpop.f32.mrf.mxu0
        %v7349 = vadd.f32 %v7308, %v7348
        %v7350 = vpop.f32.mrf.mxu0
        %v7351 = vadd.f32 %v7310, %v7350
        %v7352 = vpop.f32.mrf.mxu0
        %v7353 = vpop.f32.mrf.mxu0
        %7354 = vdwg.mxu0
        %7355 = vmatprep.subr.bf16.mxu0 %v6452
        %7356 = vmatpush1.bf16.msra.mxu0 %v6451
        %7357 = vmatprep.subr.bf16.mxu0 %v6448
        %7358 = vmatpush1.bf16.msra.mxu0 %v6447
        %7359 = vmatprep.subr.bf16.mxu0 %v6444
        %7360 = vmatpush1.bf16.msra.mxu0 %v6443
        %7361 = vmatprep.subr.bf16.mxu0 %v6440
        %7362 = vmatpush1.bf16.msra.mxu0 %v6439
        %7363 = vmatprep.subr.bf16.mxu0 %v6436
        %7364 = vmatpush1.bf16.msra.mxu0 %v6435
        %7365 = vmatprep.subr.bf16.mxu0 %v6432
        %7366 = vmatpush1.bf16.msra.mxu0 %v6431
        %7367 = vmatprep.subr.bf16.mxu0 %v6428
        %7368 = vmatpush1.bf16.msra.mxu0 %v6427
        %7369 = vmatprep.subr.bf16.mxu0 %v6424
        %7370 = vmatpush1.bf16.msra.mxu0 %v6423
        %7371 = vmatprep.subr.bf16.mxu0 %v6484
        %7372 = vmatpush2.bf16.msra.mxu0 %v6483
        %7373 = vmatprep.subr.bf16.mxu0 %v6480
        %7374 = vmatpush2.bf16.msra.mxu0 %v6479
        %7375 = vmatprep.subr.bf16.mxu0 %v6476
        %7376 = vmatpush2.bf16.msra.mxu0 %v6475
        %7377 = vmatprep.subr.bf16.mxu0 %v6472
        %7378 = vmatpush2.bf16.msra.mxu0 %v6471
        %7379 = vmatprep.subr.bf16.mxu0 %v6468
        %7380 = vmatpush2.bf16.msra.mxu0 %v6467
        %7381 = vmatprep.subr.bf16.mxu0 %v6464
        %7382 = vmatpush2.bf16.msra.mxu0 %v6463
        %7383 = vmatprep.subr.bf16.mxu0 %v6460
        %7384 = vmatpush2.bf16.msra.mxu0 %v6459
        %7385 = vmatprep.subr.bf16.mxu0 %v6456
        %7386 = vmatpush2.bf16.msra.mxu0 %v6455
        %7387 = vmatprep.mubr.bf16.mxu0 %v4608
        %7388 = vmatmul.mubr.bf16.gmra.mxu0 %v4607
        %v7389 = vpop.f32.mrf.mxu0
        %v7390 = vadd.f32 %v7349, %v7389
        %v7391 = vpop.f32.mrf.mxu0
        %v7392 = vadd.f32 %v7351, %v7391
        %v7393 = vpop.f32.mrf.mxu0
        %v7394 = vpop.f32.mrf.mxu0
        %7395 = vdwg.mxu0
        %7396 = vmatprep.subr.bf16.mxu0 %v6516
        %7397 = vmatpush1.bf16.msra.mxu0 %v6515
        %7398 = vmatprep.subr.bf16.mxu0 %v6512
        %7399 = vmatpush1.bf16.msra.mxu0 %v6511
        %7400 = vmatprep.subr.bf16.mxu0 %v6508
        %7401 = vmatpush1.bf16.msra.mxu0 %v6507
        %7402 = vmatprep.subr.bf16.mxu0 %v6504
        %7403 = vmatpush1.bf16.msra.mxu0 %v6503
        %7404 = vmatprep.subr.bf16.mxu0 %v6500
        %7405 = vmatpush1.bf16.msra.mxu0 %v6499
        %7406 = vmatprep.subr.bf16.mxu0 %v6496
        %7407 = vmatpush1.bf16.msra.mxu0 %v6495
        %7408 = vmatprep.subr.bf16.mxu0 %v6492
        %7409 = vmatpush1.bf16.msra.mxu0 %v6491
        %7410 = vmatprep.subr.bf16.mxu0 %v6488
        %7411 = vmatpush1.bf16.msra.mxu0 %v6487
        %7412 = vmatprep.subr.bf16.mxu0 %v6548
        %7413 = vmatpush2.bf16.msra.mxu0 %v6547
        %7414 = vmatprep.subr.bf16.mxu0 %v6544
        %7415 = vmatpush2.bf16.msra.mxu0 %v6543
        %7416 = vmatprep.subr.bf16.mxu0 %v6540
        %7417 = vmatpush2.bf16.msra.mxu0 %v6539
        %7418 = vmatprep.subr.bf16.mxu0 %v6536
        %7419 = vmatpush2.bf16.msra.mxu0 %v6535
        %7420 = vmatprep.subr.bf16.mxu0 %v6532
        %7421 = vmatpush2.bf16.msra.mxu0 %v6531
        %7422 = vmatprep.subr.bf16.mxu0 %v6528
        %7423 = vmatpush2.bf16.msra.mxu0 %v6527
        %7424 = vmatprep.subr.bf16.mxu0 %v6524
        %7425 = vmatpush2.bf16.msra.mxu0 %v6523
        %7426 = vmatprep.subr.bf16.mxu0 %v6520
        %7427 = vmatpush2.bf16.msra.mxu0 %v6519
        %7428 = vmatprep.mubr.bf16.mxu0 %v4610
        %7429 = vmatmul.mubr.bf16.gmra.mxu0 %v4609
        %v7430 = vpop.f32.mrf.mxu0
        %v7431 = vadd.f32 %v7390, %v7430
        %v7432 = vpop.f32.mrf.mxu0
        %v7433 = vadd.f32 %v7392, %v7432
        %v7434 = vpop.f32.mrf.mxu0
        %v7435 = vpop.f32.mrf.mxu0
        %7436 = vdwg.mxu0
        %7437 = vmatprep.subr.bf16.mxu0 %v6580
        %7438 = vmatpush1.bf16.msra.mxu0 %v6579
        %7439 = vmatprep.subr.bf16.mxu0 %v6576
        %7440 = vmatpush1.bf16.msra.mxu0 %v6575
        %7441 = vmatprep.subr.bf16.mxu0 %v6572
        %7442 = vmatpush1.bf16.msra.mxu0 %v6571
        %7443 = vmatprep.subr.bf16.mxu0 %v6568
        %7444 = vmatpush1.bf16.msra.mxu0 %v6567
        %7445 = vmatprep.subr.bf16.mxu0 %v6564
        %7446 = vmatpush1.bf16.msra.mxu0 %v6563
        %7447 = vmatprep.subr.bf16.mxu0 %v6560
        %7448 = vmatpush1.bf16.msra.mxu0 %v6559
        %7449 = vmatprep.subr.bf16.mxu0 %v6556
        %7450 = vmatpush1.bf16.msra.mxu0 %v6555
        %7451 = vmatprep.subr.bf16.mxu0 %v6552
        %7452 = vmatpush1.bf16.msra.mxu0 %v6551
        %7453 = vmatprep.subr.bf16.mxu0 %v6612
        %7454 = vmatpush2.bf16.msra.mxu0 %v6611
        %7455 = vmatprep.subr.bf16.mxu0 %v6608
        %7456 = vmatpush2.bf16.msra.mxu0 %v6607
        %7457 = vmatprep.subr.bf16.mxu0 %v6604
        %7458 = vmatpush2.bf16.msra.mxu0 %v6603
        %7459 = vmatprep.subr.bf16.mxu0 %v6600
        %7460 = vmatpush2.bf16.msra.mxu0 %v6599
        %7461 = vmatprep.subr.bf16.mxu0 %v6596
        %7462 = vmatpush2.bf16.msra.mxu0 %v6595
        %7463 = vmatprep.subr.bf16.mxu0 %v6592
        %7464 = vmatpush2.bf16.msra.mxu0 %v6591
        %7465 = vmatprep.subr.bf16.mxu0 %v6588
        %7466 = vmatpush2.bf16.msra.mxu0 %v6587
        %7467 = vmatprep.subr.bf16.mxu0 %v6584
        %7468 = vmatpush2.bf16.msra.mxu0 %v6583
        %7469 = vmatprep.mubr.bf16.mxu0 %v4612
        %7470 = vmatmul.mubr.bf16.gmra.mxu0 %v4611
        %v7471 = vpop.f32.mrf.mxu0
        %v7472 = vadd.f32 %v7431, %v7471
        %v7473 = vpop.f32.mrf.mxu0
        %v7474 = vadd.f32 %v7433, %v7473
        %v7475 = vpop.f32.mrf.mxu0
        %v7476 = vpop.f32.mrf.mxu0
        %7477 = vdwg.mxu0
        %7478 = vmatprep.subr.bf16.mxu0 %v6644
        %7479 = vmatpush1.bf16.msra.mxu0 %v6643
        %7480 = vmatprep.subr.bf16.mxu0 %v6640
        %7481 = vmatpush1.bf16.msra.mxu0 %v6639
        %7482 = vmatprep.subr.bf16.mxu0 %v6636
        %7483 = vmatpush1.bf16.msra.mxu0 %v6635
        %7484 = vmatprep.subr.bf16.mxu0 %v6632
        %7485 = vmatpush1.bf16.msra.mxu0 %v6631
        %7486 = vmatprep.subr.bf16.mxu0 %v6628
        %7487 = vmatpush1.bf16.msra.mxu0 %v6627
        %7488 = vmatprep.subr.bf16.mxu0 %v6624
        %7489 = vmatpush1.bf16.msra.mxu0 %v6623
        %7490 = vmatprep.subr.bf16.mxu0 %v6620
        %7491 = vmatpush1.bf16.msra.mxu0 %v6619
        %7492 = vmatprep.subr.bf16.mxu0 %v6616
        %7493 = vmatpush1.bf16.msra.mxu0 %v6615
        %7494 = vmatprep.subr.bf16.mxu0 %v6676
        %7495 = vmatpush2.bf16.msra.mxu0 %v6675
        %7496 = vmatprep.subr.bf16.mxu0 %v6672
        %7497 = vmatpush2.bf16.msra.mxu0 %v6671
        %7498 = vmatprep.subr.bf16.mxu0 %v6668
        %7499 = vmatpush2.bf16.msra.mxu0 %v6667
        %7500 = vmatprep.subr.bf16.mxu0 %v6664
        %7501 = vmatpush2.bf16.msra.mxu0 %v6663
        %7502 = vmatprep.subr.bf16.mxu0 %v6660
        %7503 = vmatpush2.bf16.msra.mxu0 %v6659
        %7504 = vmatprep.subr.bf16.mxu0 %v6656
        %7505 = vmatpush2.bf16.msra.mxu0 %v6655
        %7506 = vmatprep.subr.bf16.mxu0 %v6652
        %7507 = vmatpush2.bf16.msra.mxu0 %v6651
        %7508 = vmatprep.subr.bf16.mxu0 %v6648
        %7509 = vmatpush2.bf16.msra.mxu0 %v6647
        %7510 = vmatprep.mubr.bf16.mxu0 %v4614
        %7511 = vmatmul.mubr.bf16.gmra.mxu0 %v4613
        %v7512 = vpop.f32.mrf.mxu0
        %v7513 = vadd.f32 %v7472, %v7512
        %v7514 = vpop.f32.mrf.mxu0
        %v7515 = vadd.f32 %v7474, %v7514
        %v7516 = vpop.f32.mrf.mxu0
        %v7517 = vpop.f32.mrf.mxu0
        %7518 = vdwg.mxu0
        %7519 = vmatprep.subr.bf16.mxu0 %v6198
        %7520 = vmatpush1.bf16.msra.mxu0 %v6197
        %7521 = vmatprep.subr.bf16.mxu0 %v6194
        %7522 = vmatpush1.bf16.msra.mxu0 %v6193
        %7523 = vmatprep.subr.bf16.mxu0 %v6190
        %7524 = vmatpush1.bf16.msra.mxu0 %v6189
        %7525 = vmatprep.subr.bf16.mxu0 %v6186
        %7526 = vmatpush1.bf16.msra.mxu0 %v6185
        %7527 = vmatprep.subr.bf16.mxu0 %v6182
        %7528 = vmatpush1.bf16.msra.mxu0 %v6181
        %7529 = vmatprep.subr.bf16.mxu0 %v6178
        %7530 = vmatpush1.bf16.msra.mxu0 %v6177
        %7531 = vmatprep.subr.bf16.mxu0 %v6174
        %7532 = vmatpush1.bf16.msra.mxu0 %v6173
        %7533 = vmatprep.subr.bf16.mxu0 %v6170
        %7534 = vmatpush1.bf16.msra.mxu0 %v6169
        %7535 = vmatprep.subr.bf16.mxu0 %v6230
        %7536 = vmatpush2.bf16.msra.mxu0 %v6229
        %7537 = vmatprep.subr.bf16.mxu0 %v6226
        %7538 = vmatpush2.bf16.msra.mxu0 %v6225
        %7539 = vmatprep.subr.bf16.mxu0 %v6222
        %7540 = vmatpush2.bf16.msra.mxu0 %v6221
        %7541 = vmatprep.subr.bf16.mxu0 %v6218
        %7542 = vmatpush2.bf16.msra.mxu0 %v6217
        %7543 = vmatprep.subr.bf16.mxu0 %v6214
        %7544 = vmatpush2.bf16.msra.mxu0 %v6213
        %7545 = vmatprep.subr.bf16.mxu0 %v6210
        %7546 = vmatpush2.bf16.msra.mxu0 %v6209
        %7547 = vmatprep.subr.bf16.mxu0 %v6206
        %7548 = vmatpush2.bf16.msra.mxu0 %v6205
        %7549 = vmatprep.subr.bf16.mxu0 %v6202
        %7550 = vmatpush2.bf16.msra.mxu0 %v6201
        %7551 = vmatprep.mubr.bf16.mxu0 %v4600
        %7552 = vmatmul.mubr.bf16.gmra.mxu0 %v4599
        %v7553 = vpop.f32.mrf.mxu0
        %v7554 = vadd.f32 %v4566, %v7553
        %v7555 = vpop.f32.mrf.mxu0
        %v7556 = vadd.f32 %v4570, %v7555
        %v7557 = vpop.f32.mrf.mxu0
        %v7558 = vpop.f32.mrf.mxu0
        %7559 = vdwg.mxu0
        %7560 = vmatprep.subr.bf16.mxu0 %v6262
        %7561 = vmatpush1.bf16.msra.mxu0 %v6261
        %7562 = vmatprep.subr.bf16.mxu0 %v6258
        %7563 = vmatpush1.bf16.msra.mxu0 %v6257
        %7564 = vmatprep.subr.bf16.mxu0 %v6254
        %7565 = vmatpush1.bf16.msra.mxu0 %v6253
        %7566 = vmatprep.subr.bf16.mxu0 %v6250
        %7567 = vmatpush1.bf16.msra.mxu0 %v6249
        %7568 = vmatprep.subr.bf16.mxu0 %v6246
        %7569 = vmatpush1.bf16.msra.mxu0 %v6245
        %7570 = vmatprep.subr.bf16.mxu0 %v6242
        %7571 = vmatpush1.bf16.msra.mxu0 %v6241
        %7572 = vmatprep.subr.bf16.mxu0 %v6238
        %7573 = vmatpush1.bf16.msra.mxu0 %v6237
        %7574 = vmatprep.subr.bf16.mxu0 %v6234
        %7575 = vmatpush1.bf16.msra.mxu0 %v6233
        %7576 = vmatprep.subr.bf16.mxu0 %v6294
        %7577 = vmatpush2.bf16.msra.mxu0 %v6293
        %7578 = vmatprep.subr.bf16.mxu0 %v6290
        %7579 = vmatpush2.bf16.msra.mxu0 %v6289
        %7580 = vmatprep.subr.bf16.mxu0 %v6286
        %7581 = vmatpush2.bf16.msra.mxu0 %v6285
        %7582 = vmatprep.subr.bf16.mxu0 %v6282
        %7583 = vmatpush2.bf16.msra.mxu0 %v6281
        %7584 = vmatprep.subr.bf16.mxu0 %v6278
        %7585 = vmatpush2.bf16.msra.mxu0 %v6277
        %7586 = vmatprep.subr.bf16.mxu0 %v6274
        %7587 = vmatpush2.bf16.msra.mxu0 %v6273
        %7588 = vmatprep.subr.bf16.mxu0 %v6270
        %7589 = vmatpush2.bf16.msra.mxu0 %v6269
        %7590 = vmatprep.subr.bf16.mxu0 %v6266
        %7591 = vmatpush2.bf16.msra.mxu0 %v6265
        %7592 = vmatprep.mubr.bf16.mxu0 %v4602
        %7593 = vmatmul.mubr.bf16.gmra.mxu0 %v4601
        %v7594 = vpop.f32.mrf.mxu0
        %v7595 = vadd.f32 %v7554, %v7594
        %v7596 = vpop.f32.mrf.mxu0
        %v7597 = vadd.f32 %v7556, %v7596
        %v7598 = vpop.f32.mrf.mxu0
        %v7599 = vpop.f32.mrf.mxu0
        %7600 = vdwg.mxu0
        %7601 = vmatprep.subr.bf16.mxu0 %v6326
        %7602 = vmatpush1.bf16.msra.mxu0 %v6325
        %7603 = vmatprep.subr.bf16.mxu0 %v6322
        %7604 = vmatpush1.bf16.msra.mxu0 %v6321
        %7605 = vmatprep.subr.bf16.mxu0 %v6318
        %7606 = vmatpush1.bf16.msra.mxu0 %v6317
        %7607 = vmatprep.subr.bf16.mxu0 %v6314
        %7608 = vmatpush1.bf16.msra.mxu0 %v6313
        %7609 = vmatprep.subr.bf16.mxu0 %v6310
        %7610 = vmatpush1.bf16.msra.mxu0 %v6309
        %7611 = vmatprep.subr.bf16.mxu0 %v6306
        %7612 = vmatpush1.bf16.msra.mxu0 %v6305
        %7613 = vmatprep.subr.bf16.mxu0 %v6302
        %7614 = vmatpush1.bf16.msra.mxu0 %v6301
        %7615 = vmatprep.subr.bf16.mxu0 %v6298
        %7616 = vmatpush1.bf16.msra.mxu0 %v6297
        %7617 = vmatprep.subr.bf16.mxu0 %v6358
        %7618 = vmatpush2.bf16.msra.mxu0 %v6357
        %7619 = vmatprep.subr.bf16.mxu0 %v6354
        %7620 = vmatpush2.bf16.msra.mxu0 %v6353
        %7621 = vmatprep.subr.bf16.mxu0 %v6350
        %7622 = vmatpush2.bf16.msra.mxu0 %v6349
        %7623 = vmatprep.subr.bf16.mxu0 %v6346
        %7624 = vmatpush2.bf16.msra.mxu0 %v6345
        %7625 = vmatprep.subr.bf16.mxu0 %v6342
        %7626 = vmatpush2.bf16.msra.mxu0 %v6341
        %7627 = vmatprep.subr.bf16.mxu0 %v6338
        %7628 = vmatpush2.bf16.msra.mxu0 %v6337
        %7629 = vmatprep.subr.bf16.mxu0 %v6334
        %7630 = vmatpush2.bf16.msra.mxu0 %v6333
        %7631 = vmatprep.subr.bf16.mxu0 %v6330
        %7632 = vmatpush2.bf16.msra.mxu0 %v6329
        %7633 = vmatprep.mubr.bf16.mxu0 %v4604
        %7634 = vmatmul.mubr.bf16.gmra.mxu0 %v4603
        %v7635 = vpop.f32.mrf.mxu0
        %v7636 = vadd.f32 %v7595, %v7635
        %v7637 = vpop.f32.mrf.mxu0
        %v7638 = vadd.f32 %v7597, %v7637
        %v7639 = vpop.f32.mrf.mxu0
        %v7640 = vpop.f32.mrf.mxu0
        %7641 = vdwg.mxu0
        %7642 = vmatprep.subr.bf16.mxu0 %v6390
        %7643 = vmatpush1.bf16.msra.mxu0 %v6389
        %7644 = vmatprep.subr.bf16.mxu0 %v6386
        %7645 = vmatpush1.bf16.msra.mxu0 %v6385
        %7646 = vmatprep.subr.bf16.mxu0 %v6382
        %7647 = vmatpush1.bf16.msra.mxu0 %v6381
        %7648 = vmatprep.subr.bf16.mxu0 %v6378
        %7649 = vmatpush1.bf16.msra.mxu0 %v6377
        %7650 = vmatprep.subr.bf16.mxu0 %v6374
        %7651 = vmatpush1.bf16.msra.mxu0 %v6373
        %7652 = vmatprep.subr.bf16.mxu0 %v6370
        %7653 = vmatpush1.bf16.msra.mxu0 %v6369
        %7654 = vmatprep.subr.bf16.mxu0 %v6366
        %7655 = vmatpush1.bf16.msra.mxu0 %v6365
        %7656 = vmatprep.subr.bf16.mxu0 %v6362
        %7657 = vmatpush1.bf16.msra.mxu0 %v6361
        %7658 = vmatprep.subr.bf16.mxu0 %v6422
        %7659 = vmatpush2.bf16.msra.mxu0 %v6421
        %7660 = vmatprep.subr.bf16.mxu0 %v6418
        %7661 = vmatpush2.bf16.msra.mxu0 %v6417
        %7662 = vmatprep.subr.bf16.mxu0 %v6414
        %7663 = vmatpush2.bf16.msra.mxu0 %v6413
        %7664 = vmatprep.subr.bf16.mxu0 %v6410
        %7665 = vmatpush2.bf16.msra.mxu0 %v6409
        %7666 = vmatprep.subr.bf16.mxu0 %v6406
        %7667 = vmatpush2.bf16.msra.mxu0 %v6405
        %7668 = vmatprep.subr.bf16.mxu0 %v6402
        %7669 = vmatpush2.bf16.msra.mxu0 %v6401
        %7670 = vmatprep.subr.bf16.mxu0 %v6398
        %7671 = vmatpush2.bf16.msra.mxu0 %v6397
        %7672 = vmatprep.subr.bf16.mxu0 %v6394
        %7673 = vmatpush2.bf16.msra.mxu0 %v6393
        %7674 = vmatprep.mubr.bf16.mxu0 %v4606
        %7675 = vmatmul.mubr.bf16.gmra.mxu0 %v4605
        %v7676 = vpop.f32.mrf.mxu0
        %v7677 = vadd.f32 %v7636, %v7676
        %v7678 = vpop.f32.mrf.mxu0
        %v7679 = vadd.f32 %v7638, %v7678
        %v7680 = vpop.f32.mrf.mxu0
        %v7681 = vpop.f32.mrf.mxu0
        %7682 = vdwg.mxu0
        %7683 = vmatprep.subr.bf16.mxu0 %v6454
        %7684 = vmatpush1.bf16.msra.mxu0 %v6453
        %7685 = vmatprep.subr.bf16.mxu0 %v6450
        %7686 = vmatpush1.bf16.msra.mxu0 %v6449
        %7687 = vmatprep.subr.bf16.mxu0 %v6446
        %7688 = vmatpush1.bf16.msra.mxu0 %v6445
        %7689 = vmatprep.subr.bf16.mxu0 %v6442
        %7690 = vmatpush1.bf16.msra.mxu0 %v6441
        %7691 = vmatprep.subr.bf16.mxu0 %v6438
        %7692 = vmatpush1.bf16.msra.mxu0 %v6437
        %7693 = vmatprep.subr.bf16.mxu0 %v6434
        %7694 = vmatpush1.bf16.msra.mxu0 %v6433
        %7695 = vmatprep.subr.bf16.mxu0 %v6430
        %7696 = vmatpush1.bf16.msra.mxu0 %v6429
        %7697 = vmatprep.subr.bf16.mxu0 %v6426
        %7698 = vmatpush1.bf16.msra.mxu0 %v6425
        %7699 = vmatprep.subr.bf16.mxu0 %v6486
        %7700 = vmatpush2.bf16.msra.mxu0 %v6485
        %7701 = vmatprep.subr.bf16.mxu0 %v6482
        %7702 = vmatpush2.bf16.msra.mxu0 %v6481
        %7703 = vmatprep.subr.bf16.mxu0 %v6478
        %7704 = vmatpush2.bf16.msra.mxu0 %v6477
        %7705 = vmatprep.subr.bf16.mxu0 %v6474
        %7706 = vmatpush2.bf16.msra.mxu0 %v6473
        %7707 = vmatprep.subr.bf16.mxu0 %v6470
        %7708 = vmatpush2.bf16.msra.mxu0 %v6469
        %7709 = vmatprep.subr.bf16.mxu0 %v6466
        %7710 = vmatpush2.bf16.msra.mxu0 %v6465
        %7711 = vmatprep.subr.bf16.mxu0 %v6462
        %7712 = vmatpush2.bf16.msra.mxu0 %v6461
        %7713 = vmatprep.subr.bf16.mxu0 %v6458
        %7714 = vmatpush2.bf16.msra.mxu0 %v6457
        %7715 = vmatprep.mubr.bf16.mxu0 %v4608
        %7716 = vmatmul.mubr.bf16.gmra.mxu0 %v4607
        %v7717 = vpop.f32.mrf.mxu0
        %v7718 = vadd.f32 %v7677, %v7717
        %v7719 = vpop.f32.mrf.mxu0
        %v7720 = vadd.f32 %v7679, %v7719
        %v7721 = vpop.f32.mrf.mxu0
        %v7722 = vpop.f32.mrf.mxu0
        %7723 = vdwg.mxu0
        %7724 = vmatprep.subr.bf16.mxu0 %v6518
        %7725 = vmatpush1.bf16.msra.mxu0 %v6517
        %7726 = vmatprep.subr.bf16.mxu0 %v6514
        %7727 = vmatpush1.bf16.msra.mxu0 %v6513
        %7728 = vmatprep.subr.bf16.mxu0 %v6510
        %7729 = vmatpush1.bf16.msra.mxu0 %v6509
        %7730 = vmatprep.subr.bf16.mxu0 %v6506
        %7731 = vmatpush1.bf16.msra.mxu0 %v6505
        %7732 = vmatprep.subr.bf16.mxu0 %v6502
        %7733 = vmatpush1.bf16.msra.mxu0 %v6501
        %7734 = vmatprep.subr.bf16.mxu0 %v6498
        %7735 = vmatpush1.bf16.msra.mxu0 %v6497
        %7736 = vmatprep.subr.bf16.mxu0 %v6494
        %7737 = vmatpush1.bf16.msra.mxu0 %v6493
        %7738 = vmatprep.subr.bf16.mxu0 %v6490
        %7739 = vmatpush1.bf16.msra.mxu0 %v6489
        %7740 = vmatprep.subr.bf16.mxu0 %v6550
        %7741 = vmatpush2.bf16.msra.mxu0 %v6549
        %7742 = vmatprep.subr.bf16.mxu0 %v6546
        %7743 = vmatpush2.bf16.msra.mxu0 %v6545
        %7744 = vmatprep.subr.bf16.mxu0 %v6542
        %7745 = vmatpush2.bf16.msra.mxu0 %v6541
        %7746 = vmatprep.subr.bf16.mxu0 %v6538
        %7747 = vmatpush2.bf16.msra.mxu0 %v6537
        %7748 = vmatprep.subr.bf16.mxu0 %v6534
        %7749 = vmatpush2.bf16.msra.mxu0 %v6533
        %7750 = vmatprep.subr.bf16.mxu0 %v6530
        %7751 = vmatpush2.bf16.msra.mxu0 %v6529
        %7752 = vmatprep.subr.bf16.mxu0 %v6526
        %7753 = vmatpush2.bf16.msra.mxu0 %v6525
        %7754 = vmatprep.subr.bf16.mxu0 %v6522
        %7755 = vmatpush2.bf16.msra.mxu0 %v6521
        %7756 = vmatprep.mubr.bf16.mxu0 %v4610
        %7757 = vmatmul.mubr.bf16.gmra.mxu0 %v4609
        %v7758 = vpop.f32.mrf.mxu0
        %v7759 = vadd.f32 %v7718, %v7758
        %v7760 = vpop.f32.mrf.mxu0
        %v7761 = vadd.f32 %v7720, %v7760
        %v7762 = vpop.f32.mrf.mxu0
        %v7763 = vpop.f32.mrf.mxu0
        %7764 = vdwg.mxu0
        %7765 = vmatprep.subr.bf16.mxu0 %v6582
        %7766 = vmatpush1.bf16.msra.mxu0 %v6581
        %7767 = vmatprep.subr.bf16.mxu0 %v6578
        %7768 = vmatpush1.bf16.msra.mxu0 %v6577
        %7769 = vmatprep.subr.bf16.mxu0 %v6574
        %7770 = vmatpush1.bf16.msra.mxu0 %v6573
        %7771 = vmatprep.subr.bf16.mxu0 %v6570
        %7772 = vmatpush1.bf16.msra.mxu0 %v6569
        %7773 = vmatprep.subr.bf16.mxu0 %v6566
        %7774 = vmatpush1.bf16.msra.mxu0 %v6565
        %7775 = vmatprep.subr.bf16.mxu0 %v6562
        %7776 = vmatpush1.bf16.msra.mxu0 %v6561
        %7777 = vmatprep.subr.bf16.mxu0 %v6558
        %7778 = vmatpush1.bf16.msra.mxu0 %v6557
        %7779 = vmatprep.subr.bf16.mxu0 %v6554
        %7780 = vmatpush1.bf16.msra.mxu0 %v6553
        %7781 = vmatprep.subr.bf16.mxu0 %v6614
        %7782 = vmatpush2.bf16.msra.mxu0 %v6613
        %7783 = vmatprep.subr.bf16.mxu0 %v6610
        %7784 = vmatpush2.bf16.msra.mxu0 %v6609
        %7785 = vmatprep.subr.bf16.mxu0 %v6606
        %7786 = vmatpush2.bf16.msra.mxu0 %v6605
        %7787 = vmatprep.subr.bf16.mxu0 %v6602
        %7788 = vmatpush2.bf16.msra.mxu0 %v6601
        %7789 = vmatprep.subr.bf16.mxu0 %v6598
        %7790 = vmatpush2.bf16.msra.mxu0 %v6597
        %7791 = vmatprep.subr.bf16.mxu0 %v6594
        %7792 = vmatpush2.bf16.msra.mxu0 %v6593
        %7793 = vmatprep.subr.bf16.mxu0 %v6590
        %7794 = vmatpush2.bf16.msra.mxu0 %v6589
        %7795 = vmatprep.subr.bf16.mxu0 %v6586
        %7796 = vmatpush2.bf16.msra.mxu0 %v6585
        %7797 = vmatprep.mubr.bf16.mxu0 %v4612
        %7798 = vmatmul.mubr.bf16.gmra.mxu0 %v4611
        %v7799 = vpop.f32.mrf.mxu0
        %v7800 = vadd.f32 %v7759, %v7799
        %v7801 = vpop.f32.mrf.mxu0
        %v7802 = vadd.f32 %v7761, %v7801
        %v7803 = vpop.f32.mrf.mxu0
        %v7804 = vpop.f32.mrf.mxu0
        %7805 = vdwg.mxu0
        %7806 = vmatprep.subr.bf16.mxu0 %v6646
        %7807 = vmatpush1.bf16.msra.mxu0 %v6645
        %7808 = vmatprep.subr.bf16.mxu0 %v6642
        %7809 = vmatpush1.bf16.msra.mxu0 %v6641
        %7810 = vmatprep.subr.bf16.mxu0 %v6638
        %7811 = vmatpush1.bf16.msra.mxu0 %v6637
        %7812 = vmatprep.subr.bf16.mxu0 %v6634
        %7813 = vmatpush1.bf16.msra.mxu0 %v6633
        %7814 = vmatprep.subr.bf16.mxu0 %v6630
        %7815 = vmatpush1.bf16.msra.mxu0 %v6629
        %7816 = vmatprep.subr.bf16.mxu0 %v6626
        %7817 = vmatpush1.bf16.msra.mxu0 %v6625
        %7818 = vmatprep.subr.bf16.mxu0 %v6622
        %7819 = vmatpush1.bf16.msra.mxu0 %v6621
        %7820 = vmatprep.subr.bf16.mxu0 %v6618
        %7821 = vmatpush1.bf16.msra.mxu0 %v6617
        %7822 = vmatprep.subr.bf16.mxu0 %v6678
        %7823 = vmatpush2.bf16.msra.mxu0 %v6677
        %7824 = vmatprep.subr.bf16.mxu0 %v6674
        %7825 = vmatpush2.bf16.msra.mxu0 %v6673
        %7826 = vmatprep.subr.bf16.mxu0 %v6670
        %7827 = vmatpush2.bf16.msra.mxu0 %v6669
        %7828 = vmatprep.subr.bf16.mxu0 %v6666
        %7829 = vmatpush2.bf16.msra.mxu0 %v6665
        %7830 = vmatprep.subr.bf16.mxu0 %v6662
        %7831 = vmatpush2.bf16.msra.mxu0 %v6661
        %7832 = vmatprep.subr.bf16.mxu0 %v6658
        %7833 = vmatpush2.bf16.msra.mxu0 %v6657
        %7834 = vmatprep.subr.bf16.mxu0 %v6654
        %7835 = vmatpush2.bf16.msra.mxu0 %v6653
        %7836 = vmatprep.subr.bf16.mxu0 %v6650
        %7837 = vmatpush2.bf16.msra.mxu0 %v6649
        %7838 = vmatprep.mubr.bf16.mxu0 %v4614
        %7839 = vmatmul.mubr.bf16.gmra.mxu0 %v4613
        %v7840 = vpop.f32.mrf.mxu0
        %v7841 = vadd.f32 %v7800, %v7840
        %v7842 = vpop.f32.mrf.mxu0
        %v7843 = vadd.f32 %v7802, %v7842
        %v7844 = vpop.f32.mrf.mxu0
        %v7845 = vpop.f32.mrf.mxu0
        %7846 = vdwg.mxu0
        %v7847 = vmax.f32 %v7513, 0.0
        %v7848 = vmax.f32 %v7515, 0.0
        %v7849 = vmax.f32 %v7841, 0.0
        %v7850 = vmax.f32 %v7843, 0.0
        %v7851 = vpack.c.bf16 %v2307, %v2307
        %v7852 = vpack.c.bf16 %v2308, %v2308
        %v7853 = vpack.c.bf16 %v2309, %v2309
        %v7854 = vpack.c.bf16 %v2310, %v2310
        %v7855 = vpack.c.bf16 %v3755, %v3755
        %v7856 = vpack.c.bf16 %v3756, %v3756
        %v7857 = vpack.c.bf16 %v3757, %v3757
        %v7858 = vpack.c.bf16 %v3758, %v3758
        %v7859 = vpack.c.bf16 %v4029, %v4029
        %v7860 = vpack.c.bf16 %v4030, %v4030
        %v7861 = vpack.c.bf16 %v4031, %v4031
        %v7862 = vpack.c.bf16 %v4032, %v4032
        %v7863 = vpack.c.bf16 %v7847, %v7847
        %v7864 = vpack.c.bf16 %v7848, %v7848
        %v7865 = vpack.c.bf16 %v7849, %v7849
        %v7866 = vpack.c.bf16 %v7850, %v7850
        %v7867 = vmul.f32 %v2307, %v2307
        %v7868 = vmul.f32 %v2308, %v2308
        %v7869 = vmul.f32 %v2309, %v2309
        %v7870 = vmul.f32 %v2310, %v2310
        %v7871 = vadd.f32 %v7867, %v7868
        %v7872 = vadd.f32 %v7871, %v7869
        %v7873 = vadd.f32 %v7872, %v7870
        %7874 = vadd.xlane.f32.xlu0 %v7873
        %v7875 = vpop.xlane.xlu0 %7874
        %v7876 = vmax.f32 %v7875, 1e-16
        %v7877 = vrsqrt.pop %v7876
        %v7878 = vmul.f32 %v3755, %v3755
        %v7879 = vmul.f32 %v3756, %v3756
        %v7880 = vmul.f32 %v3757, %v3757
        %v7881 = vmul.f32 %v3758, %v3758
        %v7882 = vadd.f32 %v7878, %v7879
        %v7883 = vadd.f32 %v7882, %v7880
        %v7884 = vadd.f32 %v7883, %v7881
        %7885 = vadd.xlane.f32.xlu0 %v7884
        %v7886 = vpop.xlane.xlu0 %7885
        %v7887 = vmax.f32 %v7886, 1e-16
        %v7888 = vrsqrt.pop %v7887
        %v7889 = vmul.f32 %v4029, %v4029
        %v7890 = vmul.f32 %v4030, %v4030
        %v7891 = vmul.f32 %v4031, %v4031
        %v7892 = vmul.f32 %v4032, %v4032
        %v7893 = vadd.f32 %v7889, %v7890
        %v7894 = vadd.f32 %v7893, %v7891
        %v7895 = vadd.f32 %v7894, %v7892
        %7896 = vadd.xlane.f32.xlu0 %v7895
        %v7897 = vpop.xlane.xlu0 %7896
        %v7898 = vmax.f32 %v7897, 1e-16
        %v7899 = vrsqrt.pop %v7898
        %v7900 = vmul.f32 %v7847, %v7847
        %v7901 = vmul.f32 %v7848, %v7848
        %v7902 = vmul.f32 %v7849, %v7849
        %v7903 = vmul.f32 %v7850, %v7850
        %v7904 = vadd.f32 %v7900, %v7901
        %v7905 = vadd.f32 %v7904, %v7902
        %v7906 = vadd.f32 %v7905, %v7903
        %7907 = vadd.xlane.f32.xlu0 %v7906
        %v7908 = vpop.xlane.xlu0 %7907
        %v7909 = vmax.f32 %v7908, 1e-16
        %v7910 = vrsqrt.pop %v7909
        %7911 = vmatprep.subr.bf16.mxu0 0
        %7912 = vmatpush1.bf16.xpose.msra.mxu0 0
        %7913 = vmatprep.subr.bf16.mxu0 0
        %7914 = vmatpush1.bf16.xpose.msra.mxu0 0
        %7915 = vmatprep.subr.bf16.mxu0 0
        %7916 = vmatpush1.bf16.xpose.msra.mxu0 0
        %7917 = vmatprep.subr.bf16.mxu0 0
        %7918 = vmatpush1.bf16.xpose.msra.mxu0 0
        %7919 = vmatprep.subr.bf16.mxu0 0
        %7920 = vmatpush1.bf16.xpose.msra.mxu0 0
        %7921 = vmatprep.subr.bf16.mxu0 0
        %7922 = vmatpush1.bf16.xpose.msra.mxu0 0
        %7923 = vmatprep.subr.bf16.mxu0 0
        %7924 = vmatpush1.bf16.xpose.msra.mxu0 0
        %7925 = vmatprep.subr.bf16.mxu0 %v7852
        %7926 = vmatpush1.bf16.xpose.msra.mxu0 %v7851
        %7927 = vmatprep.subr.bf16.mxu0 0
        %7928 = vmatpush2.bf16.xpose.msra.mxu0 0
        %7929 = vmatprep.subr.bf16.mxu0 0
        %7930 = vmatpush2.bf16.xpose.msra.mxu0 0
        %7931 = vmatprep.subr.bf16.mxu0 0
        %7932 = vmatpush2.bf16.xpose.msra.mxu0 0
        %7933 = vmatprep.subr.bf16.mxu0 0
        %7934 = vmatpush2.bf16.xpose.msra.mxu0 0
        %7935 = vmatprep.subr.bf16.mxu0 0
        %7936 = vmatpush2.bf16.xpose.msra.mxu0 0
        %7937 = vmatprep.subr.bf16.mxu0 0
        %7938 = vmatpush2.bf16.xpose.msra.mxu0 0
        %7939 = vmatprep.subr.bf16.mxu0 0
        %7940 = vmatpush2.bf16.xpose.msra.mxu0 0
        %7941 = vmatprep.subr.bf16.mxu0 0
        %7942 = vmatpush2.bf16.xpose.msra.mxu0 0
        %7943 = vmatprep.mubr.bf16.mxu0 %v7864
        %7944 = vmatmul.mubr.bf16.gmra.mxu0 %v7863
        %v7945 = vpop.f32.mrf.mxu0
        %v7946 = vadd.f32 0.0, %v7945
        %v7947 = vpop.f32.mrf.mxu0
        %v7948 = vpop.f32.mrf.mxu0
        %v7949 = vpop.f32.mrf.mxu0
        %7950 = vdwg.mxu0
        %7951 = vmatprep.subr.bf16.mxu0 0
        %7952 = vmatpush1.bf16.xpose.msra.mxu0 0
        %7953 = vmatprep.subr.bf16.mxu0 0
        %7954 = vmatpush1.bf16.xpose.msra.mxu0 0
        %7955 = vmatprep.subr.bf16.mxu0 0
        %7956 = vmatpush1.bf16.xpose.msra.mxu0 0
        %7957 = vmatprep.subr.bf16.mxu0 0
        %7958 = vmatpush1.bf16.xpose.msra.mxu0 0
        %7959 = vmatprep.subr.bf16.mxu0 0
        %7960 = vmatpush1.bf16.xpose.msra.mxu0 0
        %7961 = vmatprep.subr.bf16.mxu0 0
        %7962 = vmatpush1.bf16.xpose.msra.mxu0 0
        %7963 = vmatprep.subr.bf16.mxu0 0
        %7964 = vmatpush1.bf16.xpose.msra.mxu0 0
        %7965 = vmatprep.subr.bf16.mxu0 %v7854
        %7966 = vmatpush1.bf16.xpose.msra.mxu0 %v7853
        %7967 = vmatprep.subr.bf16.mxu0 0
        %7968 = vmatpush2.bf16.xpose.msra.mxu0 0
        %7969 = vmatprep.subr.bf16.mxu0 0
        %7970 = vmatpush2.bf16.xpose.msra.mxu0 0
        %7971 = vmatprep.subr.bf16.mxu0 0
        %7972 = vmatpush2.bf16.xpose.msra.mxu0 0
        %7973 = vmatprep.subr.bf16.mxu0 0
        %7974 = vmatpush2.bf16.xpose.msra.mxu0 0
        %7975 = vmatprep.subr.bf16.mxu0 0
        %7976 = vmatpush2.bf16.xpose.msra.mxu0 0
        %7977 = vmatprep.subr.bf16.mxu0 0
        %7978 = vmatpush2.bf16.xpose.msra.mxu0 0
        %7979 = vmatprep.subr.bf16.mxu0 0
        %7980 = vmatpush2.bf16.xpose.msra.mxu0 0
        %7981 = vmatprep.subr.bf16.mxu0 0
        %7982 = vmatpush2.bf16.xpose.msra.mxu0 0
        %7983 = vmatprep.mubr.bf16.mxu0 %v7866
        %7984 = vmatmul.mubr.bf16.gmra.mxu0 %v7865
        %v7985 = vpop.f32.mrf.mxu0
        %v7986 = vadd.f32 %v7946, %v7985
        %v7987 = vpop.f32.mrf.mxu0
        %v7988 = vpop.f32.mrf.mxu0
        %v7989 = vpop.f32.mrf.mxu0
        %7990 = vdwg.mxu0
        %v7991 = vmul.f32 %v7986, %v7910
        %7992 = vxpose.xlu0.b32.start [1/16] %v7877, 128
        %7993 = vxpose.xlu0.b32.cont [2/16] 0.0, 128
        %7994 = vxpose.xlu0.b32.cont [3/16] 0.0, 128
        %7995 = vxpose.xlu0.b32.cont [4/16] 0.0, 128
        %7996 = vxpose.xlu0.b32.cont [5/16] 0.0, 128
        %7997 = vxpose.xlu0.b32.cont [6/16] 0.0, 128
        %7998 = vxpose.xlu0.b32.cont [7/16] 0.0, 128
        %7999 = vxpose.xlu0.b32.cont [8/16] 0.0, 128
        %8000 = vxpose.xlu0.b32.cont [9/16] 0.0, 128
        %8001 = vxpose.xlu0.b32.cont [10/16] 0.0, 128
        %8002 = vxpose.xlu0.b32.cont [11/16] 0.0, 128
        %8003 = vxpose.xlu0.b32.cont [12/16] 0.0, 128
        %8004 = vxpose.xlu0.b32.cont [13/16] 0.0, 128
        %8005 = vxpose.xlu0.b32.cont [14/16] 0.0, 128
        %8006 = vxpose.xlu0.b32.cont [15/16] 0.0, 128
        %8007 = vxpose.xlu0.b32.end [16/16] 0.0, 128
        %v8008 = vpop.trf.xlu0
        %v8009 = vpop.trf.xlu0
        %v8010 = vpop.trf.xlu0
        %v8011 = vpop.trf.xlu0
        %v8012 = vpop.trf.xlu0
        %v8013 = vpop.trf.xlu0
        %v8014 = vpop.trf.xlu0
        %v8015 = vpop.trf.xlu0
        %v8016 = vpop.trf.xlu0
        %v8017 = vpop.trf.xlu0
        %v8018 = vpop.trf.xlu0
        %v8019 = vpop.trf.xlu0
        %v8020 = vpop.trf.xlu0
        %v8021 = vpop.trf.xlu0
        %v8022 = vpop.trf.xlu0
        %v8023 = vpop.trf.xlu0
        %v8024 = vlaneseq
        %v8025 = vshrl.u32 %v8024, 7
        %v8026 = vsub.s32 0, %v8025
        %v8027 = vrot.slane %v8008, %v8026
        %v8028 = vmul.f32 %v7991, %v8027
        %8029 = vmatprep.subr.bf16.mxu0 0
        %8030 = vmatpush1.bf16.xpose.msra.mxu0 0
        %8031 = vmatprep.subr.bf16.mxu0 0
        %8032 = vmatpush1.bf16.xpose.msra.mxu0 0
        %8033 = vmatprep.subr.bf16.mxu0 0
        %8034 = vmatpush1.bf16.xpose.msra.mxu0 0
        %8035 = vmatprep.subr.bf16.mxu0 0
        %8036 = vmatpush1.bf16.xpose.msra.mxu0 0
        %8037 = vmatprep.subr.bf16.mxu0 0
        %8038 = vmatpush1.bf16.xpose.msra.mxu0 0
        %8039 = vmatprep.subr.bf16.mxu0 0
        %8040 = vmatpush1.bf16.xpose.msra.mxu0 0
        %8041 = vmatprep.subr.bf16.mxu0 0
        %8042 = vmatpush1.bf16.xpose.msra.mxu0 0
        %8043 = vmatprep.subr.bf16.mxu0 %v7852
        %8044 = vmatpush1.bf16.xpose.msra.mxu0 %v7851
        %8045 = vmatprep.subr.bf16.mxu0 0
        %8046 = vmatpush2.bf16.xpose.msra.mxu0 0
        %8047 = vmatprep.subr.bf16.mxu0 0
        %8048 = vmatpush2.bf16.xpose.msra.mxu0 0
        %8049 = vmatprep.subr.bf16.mxu0 0
        %8050 = vmatpush2.bf16.xpose.msra.mxu0 0
        %8051 = vmatprep.subr.bf16.mxu0 0
        %8052 = vmatpush2.bf16.xpose.msra.mxu0 0
        %8053 = vmatprep.subr.bf16.mxu0 0
        %8054 = vmatpush2.bf16.xpose.msra.mxu0 0
        %8055 = vmatprep.subr.bf16.mxu0 0
        %8056 = vmatpush2.bf16.xpose.msra.mxu0 0
        %8057 = vmatprep.subr.bf16.mxu0 0
        %8058 = vmatpush2.bf16.xpose.msra.mxu0 0
        %8059 = vmatprep.subr.bf16.mxu0 0
        %8060 = vmatpush2.bf16.xpose.msra.mxu0 0
        %8061 = vmatprep.mubr.bf16.mxu0 %v7856
        %8062 = vmatmul.mubr.bf16.gmra.mxu0 %v7855
        %v8063 = vpop.f32.mrf.mxu0
        %v8064 = vadd.f32 0.0, %v8063
        %v8065 = vpop.f32.mrf.mxu0
        %v8066 = vpop.f32.mrf.mxu0
        %v8067 = vpop.f32.mrf.mxu0
        %8068 = vdwg.mxu0
        %8069 = vmatprep.subr.bf16.mxu0 0
        %8070 = vmatpush1.bf16.xpose.msra.mxu0 0
        %8071 = vmatprep.subr.bf16.mxu0 0
        %8072 = vmatpush1.bf16.xpose.msra.mxu0 0
        %8073 = vmatprep.subr.bf16.mxu0 0
        %8074 = vmatpush1.bf16.xpose.msra.mxu0 0
        %8075 = vmatprep.subr.bf16.mxu0 0
        %8076 = vmatpush1.bf16.xpose.msra.mxu0 0
        %8077 = vmatprep.subr.bf16.mxu0 0
        %8078 = vmatpush1.bf16.xpose.msra.mxu0 0
        %8079 = vmatprep.subr.bf16.mxu0 0
        %8080 = vmatpush1.bf16.xpose.msra.mxu0 0
        %8081 = vmatprep.subr.bf16.mxu0 0
        %8082 = vmatpush1.bf16.xpose.msra.mxu0 0
        %8083 = vmatprep.subr.bf16.mxu0 %v7854
        %8084 = vmatpush1.bf16.xpose.msra.mxu0 %v7853
        %8085 = vmatprep.subr.bf16.mxu0 0
        %8086 = vmatpush2.bf16.xpose.msra.mxu0 0
        %8087 = vmatprep.subr.bf16.mxu0 0
        %8088 = vmatpush2.bf16.xpose.msra.mxu0 0
        %8089 = vmatprep.subr.bf16.mxu0 0
        %8090 = vmatpush2.bf16.xpose.msra.mxu0 0
        %8091 = vmatprep.subr.bf16.mxu0 0
        %8092 = vmatpush2.bf16.xpose.msra.mxu0 0
        %8093 = vmatprep.subr.bf16.mxu0 0
        %8094 = vmatpush2.bf16.xpose.msra.mxu0 0
        %8095 = vmatprep.subr.bf16.mxu0 0
        %8096 = vmatpush2.bf16.xpose.msra.mxu0 0
        %8097 = vmatprep.subr.bf16.mxu0 0
        %8098 = vmatpush2.bf16.xpose.msra.mxu0 0
        %8099 = vmatprep.subr.bf16.mxu0 0
        %8100 = vmatpush2.bf16.xpose.msra.mxu0 0
        %8101 = vmatprep.mubr.bf16.mxu0 %v7858
        %8102 = vmatmul.mubr.bf16.gmra.mxu0 %v7857
        %v8103 = vpop.f32.mrf.mxu0
        %v8104 = vadd.f32 %v8064, %v8103
        %v8105 = vpop.f32.mrf.mxu0
        %v8106 = vpop.f32.mrf.mxu0
        %v8107 = vpop.f32.mrf.mxu0
        %8108 = vdwg.mxu0
        %v8109 = vmul.f32 %v8104, %v7888
        %v8110 = vmul.f32 %v8109, %v8027
        %8111 = vmatprep.subr.bf16.mxu0 0
        %8112 = vmatpush1.bf16.xpose.msra.mxu0 0
        %8113 = vmatprep.subr.bf16.mxu0 0
        %8114 = vmatpush1.bf16.xpose.msra.mxu0 0
        %8115 = vmatprep.subr.bf16.mxu0 0
        %8116 = vmatpush1.bf16.xpose.msra.mxu0 0
        %8117 = vmatprep.subr.bf16.mxu0 0
        %8118 = vmatpush1.bf16.xpose.msra.mxu0 0
        %8119 = vmatprep.subr.bf16.mxu0 0
        %8120 = vmatpush1.bf16.xpose.msra.mxu0 0
        %8121 = vmatprep.subr.bf16.mxu0 0
        %8122 = vmatpush1.bf16.xpose.msra.mxu0 0
        %8123 = vmatprep.subr.bf16.mxu0 0
        %8124 = vmatpush1.bf16.xpose.msra.mxu0 0
        %8125 = vmatprep.subr.bf16.mxu0 %v7852
        %8126 = vmatpush1.bf16.xpose.msra.mxu0 %v7851
        %8127 = vmatprep.subr.bf16.mxu0 0
        %8128 = vmatpush2.bf16.xpose.msra.mxu0 0
        %8129 = vmatprep.subr.bf16.mxu0 0
        %8130 = vmatpush2.bf16.xpose.msra.mxu0 0
        %8131 = vmatprep.subr.bf16.mxu0 0
        %8132 = vmatpush2.bf16.xpose.msra.mxu0 0
        %8133 = vmatprep.subr.bf16.mxu0 0
        %8134 = vmatpush2.bf16.xpose.msra.mxu0 0
        %8135 = vmatprep.subr.bf16.mxu0 0
        %8136 = vmatpush2.bf16.xpose.msra.mxu0 0
        %8137 = vmatprep.subr.bf16.mxu0 0
        %8138 = vmatpush2.bf16.xpose.msra.mxu0 0
        %8139 = vmatprep.subr.bf16.mxu0 0
        %8140 = vmatpush2.bf16.xpose.msra.mxu0 0
        %8141 = vmatprep.subr.bf16.mxu0 0
        %8142 = vmatpush2.bf16.xpose.msra.mxu0 0
        %8143 = vmatprep.mubr.bf16.mxu0 %v7860
        %8144 = vmatmul.mubr.bf16.gmra.mxu0 %v7859
        %v8145 = vpop.f32.mrf.mxu0
        %v8146 = vadd.f32 0.0, %v8145
        %v8147 = vpop.f32.mrf.mxu0
        %v8148 = vpop.f32.mrf.mxu0
        %v8149 = vpop.f32.mrf.mxu0
        %8150 = vdwg.mxu0
        %8151 = vmatprep.subr.bf16.mxu0 0
        %8152 = vmatpush1.bf16.xpose.msra.mxu0 0
        %8153 = vmatprep.subr.bf16.mxu0 0
        %8154 = vmatpush1.bf16.xpose.msra.mxu0 0
        %8155 = vmatprep.subr.bf16.mxu0 0
        %8156 = vmatpush1.bf16.xpose.msra.mxu0 0
        %8157 = vmatprep.subr.bf16.mxu0 0
        %8158 = vmatpush1.bf16.xpose.msra.mxu0 0
        %8159 = vmatprep.subr.bf16.mxu0 0
        %8160 = vmatpush1.bf16.xpose.msra.mxu0 0
        %8161 = vmatprep.subr.bf16.mxu0 0
        %8162 = vmatpush1.bf16.xpose.msra.mxu0 0
        %8163 = vmatprep.subr.bf16.mxu0 0
        %8164 = vmatpush1.bf16.xpose.msra.mxu0 0
        %8165 = vmatprep.subr.bf16.mxu0 %v7854
        %8166 = vmatpush1.bf16.xpose.msra.mxu0 %v7853
        %8167 = vmatprep.subr.bf16.mxu0 0
        %8168 = vmatpush2.bf16.xpose.msra.mxu0 0
        %8169 = vmatprep.subr.bf16.mxu0 0
        %8170 = vmatpush2.bf16.xpose.msra.mxu0 0
        %8171 = vmatprep.subr.bf16.mxu0 0
        %8172 = vmatpush2.bf16.xpose.msra.mxu0 0
        %8173 = vmatprep.subr.bf16.mxu0 0
        %8174 = vmatpush2.bf16.xpose.msra.mxu0 0
        %8175 = vmatprep.subr.bf16.mxu0 0
        %8176 = vmatpush2.bf16.xpose.msra.mxu0 0
        %8177 = vmatprep.subr.bf16.mxu0 0
        %8178 = vmatpush2.bf16.xpose.msra.mxu0 0
        %8179 = vmatprep.subr.bf16.mxu0 0
        %8180 = vmatpush2.bf16.xpose.msra.mxu0 0
        %8181 = vmatprep.subr.bf16.mxu0 0
        %8182 = vmatpush2.bf16.xpose.msra.mxu0 0
        %8183 = vmatprep.mubr.bf16.mxu0 %v7862
        %8184 = vmatmul.mubr.bf16.gmra.mxu0 %v7861
        %v8185 = vpop.f32.mrf.mxu0
        %v8186 = vadd.f32 %v8146, %v8185
        %v8187 = vpop.f32.mrf.mxu0
        %v8188 = vpop.f32.mrf.mxu0
        %v8189 = vpop.f32.mrf.mxu0
        %8190 = vdwg.mxu0
        %v8191 = vmul.f32 %v8186, %v7899
        %v8192 = vmul.f32 %v8191, %v8027
        %8193 = vmatprep.subr.bf16.mxu0 0
        %8194 = vmatpush1.bf16.xpose.msra.mxu0 0
        %8195 = vmatprep.subr.bf16.mxu0 0
        %8196 = vmatpush1.bf16.xpose.msra.mxu0 0
        %8197 = vmatprep.subr.bf16.mxu0 0
        %8198 = vmatpush1.bf16.xpose.msra.mxu0 0
        %8199 = vmatprep.subr.bf16.mxu0 0
        %8200 = vmatpush1.bf16.xpose.msra.mxu0 0
        %8201 = vmatprep.subr.bf16.mxu0 0
        %8202 = vmatpush1.bf16.xpose.msra.mxu0 0
        %8203 = vmatprep.subr.bf16.mxu0 0
        %8204 = vmatpush1.bf16.xpose.msra.mxu0 0
        %8205 = vmatprep.subr.bf16.mxu0 0
        %8206 = vmatpush1.bf16.xpose.msra.mxu0 0
        %8207 = vmatprep.subr.bf16.mxu0 %v7856
        %8208 = vmatpush1.bf16.xpose.msra.mxu0 %v7855
        %8209 = vmatprep.subr.bf16.mxu0 0
        %8210 = vmatpush2.bf16.xpose.msra.mxu0 0
        %8211 = vmatprep.subr.bf16.mxu0 0
        %8212 = vmatpush2.bf16.xpose.msra.mxu0 0
        %8213 = vmatprep.subr.bf16.mxu0 0
        %8214 = vmatpush2.bf16.xpose.msra.mxu0 0
        %8215 = vmatprep.subr.bf16.mxu0 0
        %8216 = vmatpush2.bf16.xpose.msra.mxu0 0
        %8217 = vmatprep.subr.bf16.mxu0 0
        %8218 = vmatpush2.bf16.xpose.msra.mxu0 0
        %8219 = vmatprep.subr.bf16.mxu0 0
        %8220 = vmatpush2.bf16.xpose.msra.mxu0 0
        %8221 = vmatprep.subr.bf16.mxu0 0
        %8222 = vmatpush2.bf16.xpose.msra.mxu0 0
        %8223 = vmatprep.subr.bf16.mxu0 0
        %8224 = vmatpush2.bf16.xpose.msra.mxu0 0
        %8225 = vmatprep.mubr.bf16.mxu0 %v7864
        %8226 = vmatmul.mubr.bf16.gmra.mxu0 %v7863
        %v8227 = vpop.f32.mrf.mxu0
        %v8228 = vadd.f32 0.0, %v8227
        %v8229 = vpop.f32.mrf.mxu0
        %v8230 = vpop.f32.mrf.mxu0
        %v8231 = vpop.f32.mrf.mxu0
        %8232 = vdwg.mxu0
        %8233 = vmatprep.subr.bf16.mxu0 0
        %8234 = vmatpush1.bf16.xpose.msra.mxu0 0
        %8235 = vmatprep.subr.bf16.mxu0 0
        %8236 = vmatpush1.bf16.xpose.msra.mxu0 0
        %8237 = vmatprep.subr.bf16.mxu0 0
        %8238 = vmatpush1.bf16.xpose.msra.mxu0 0
        %8239 = vmatprep.subr.bf16.mxu0 0
        %8240 = vmatpush1.bf16.xpose.msra.mxu0 0
        %8241 = vmatprep.subr.bf16.mxu0 0
        %8242 = vmatpush1.bf16.xpose.msra.mxu0 0
        %8243 = vmatprep.subr.bf16.mxu0 0
        %8244 = vmatpush1.bf16.xpose.msra.mxu0 0
        %8245 = vmatprep.subr.bf16.mxu0 0
        %8246 = vmatpush1.bf16.xpose.msra.mxu0 0
        %8247 = vmatprep.subr.bf16.mxu0 %v7858
        %8248 = vmatpush1.bf16.xpose.msra.mxu0 %v7857
        %8249 = vmatprep.subr.bf16.mxu0 0
        %8250 = vmatpush2.bf16.xpose.msra.mxu0 0
        %8251 = vmatprep.subr.bf16.mxu0 0
        %8252 = vmatpush2.bf16.xpose.msra.mxu0 0
        %8253 = vmatprep.subr.bf16.mxu0 0
        %8254 = vmatpush2.bf16.xpose.msra.mxu0 0
        %8255 = vmatprep.subr.bf16.mxu0 0
        %8256 = vmatpush2.bf16.xpose.msra.mxu0 0
        %8257 = vmatprep.subr.bf16.mxu0 0
        %8258 = vmatpush2.bf16.xpose.msra.mxu0 0
        %8259 = vmatprep.subr.bf16.mxu0 0
        %8260 = vmatpush2.bf16.xpose.msra.mxu0 0
        %8261 = vmatprep.subr.bf16.mxu0 0
        %8262 = vmatpush2.bf16.xpose.msra.mxu0 0
        %8263 = vmatprep.subr.bf16.mxu0 0
        %8264 = vmatpush2.bf16.xpose.msra.mxu0 0
        %8265 = vmatprep.mubr.bf16.mxu0 %v7866
        %8266 = vmatmul.mubr.bf16.gmra.mxu0 %v7865
        %v8267 = vpop.f32.mrf.mxu0
        %v8268 = vadd.f32 %v8228, %v8267
        %v8269 = vpop.f32.mrf.mxu0
        %v8270 = vpop.f32.mrf.mxu0
        %v8271 = vpop.f32.mrf.mxu0
        %8272 = vdwg.mxu0
        %v8273 = vmul.f32 %v8268, %v7910
        %8274 = vxpose.xlu0.b32.start [1/16] %v7888, 128
        %8275 = vxpose.xlu0.b32.cont [2/16] 0.0, 128
        %8276 = vxpose.xlu0.b32.cont [3/16] 0.0, 128
        %8277 = vxpose.xlu0.b32.cont [4/16] 0.0, 128
        %8278 = vxpose.xlu0.b32.cont [5/16] 0.0, 128
        %8279 = vxpose.xlu0.b32.cont [6/16] 0.0, 128
        %8280 = vxpose.xlu0.b32.cont [7/16] 0.0, 128
        %8281 = vxpose.xlu0.b32.cont [8/16] 0.0, 128
        %8282 = vxpose.xlu0.b32.cont [9/16] 0.0, 128
        %8283 = vxpose.xlu0.b32.cont [10/16] 0.0, 128
        %8284 = vxpose.xlu0.b32.cont [11/16] 0.0, 128
        %8285 = vxpose.xlu0.b32.cont [12/16] 0.0, 128
        %8286 = vxpose.xlu0.b32.cont [13/16] 0.0, 128
        %8287 = vxpose.xlu0.b32.cont [14/16] 0.0, 128
        %8288 = vxpose.xlu0.b32.cont [15/16] 0.0, 128
        %8289 = vxpose.xlu0.b32.end [16/16] 0.0, 128
        %v8290 = vpop.trf.xlu0
        %v8291 = vpop.trf.xlu0
        %v8292 = vpop.trf.xlu0
        %v8293 = vpop.trf.xlu0
        %v8294 = vpop.trf.xlu0
        %v8295 = vpop.trf.xlu0
        %v8296 = vpop.trf.xlu0
        %v8297 = vpop.trf.xlu0
        %v8298 = vpop.trf.xlu0
        %v8299 = vpop.trf.xlu0
        %v8300 = vpop.trf.xlu0
        %v8301 = vpop.trf.xlu0
        %v8302 = vpop.trf.xlu0
        %v8303 = vpop.trf.xlu0
        %v8304 = vpop.trf.xlu0
        %v8305 = vpop.trf.xlu0
        %v8306 = vlaneseq
        %v8307 = vshrl.u32 %v8306, 7
        %v8308 = vsub.s32 0, %v8307
        %v8309 = vrot.slane %v8290, %v8308
        %v8310 = vmul.f32 %v8273, %v8309
        %vm8311 = vcmask 64512
        %v8312 = vsel %vm8311, %v8028, -inf
        %v8313 = vrot.slane %v8312, 4
        %v8314 = vmax.f32 %v8312, %v8313
        %v8315 = vrot.slane %v8314, 2
        %v8316 = vmax.f32 %v8314, %v8315
        %v8317 = vrot.slane %v8316, 1
        %v8318 = vmax.f32 %v8316, %v8317
        %v8319 = vsub.f32 %v8028, %v8318
        %v8320 = vmul.f32 %v8319, 1.442695
        %v8321 = vpow.pop %v8320
        %v8322 = vsel %vm8311, %v8321, 0.0
        %v8323 = vrot.slane %v8322, 4
        %v8324 = vadd.f32 %v8322, %v8323
        %v8325 = vrot.slane %v8324, 2
        %v8326 = vadd.f32 %v8324, %v8325
        %v8327 = vrot.slane %v8326, 1
        %v8328 = vadd.f32 %v8326, %v8327
        %v8329 = vrcp.pop %v8328
        %v8330 = vmul.f32 %v8321, %v8329
        %v8331 = vsel %vm8311, %v8330, 0.0
        %8332 = vadd.xlane.f32.xlu0 %v8331
        %v8333 = vpop.xlane.xlu0 %8332
        %v8334 = vmul.f32 %v8333, %v7847
        %v8335 = vmul.f32 %v8333, %v7848
        %v8336 = vmul.f32 %v8333, %v7849
        %v8337 = vmul.f32 %v8333, %v7850
        %v8338 = vrot.slane %v8334, 4
        %v8339 = vadd.f32 %v8334, %v8338
        %v8340 = vrot.slane %v8339, 2
        %v8341 = vadd.f32 %v8339, %v8340
        %v8342 = vrot.slane %v8341, 1
        %v8343 = vadd.f32 %v8341, %v8342
        %v8344 = vrot.slane %v8335, 4
        %v8345 = vadd.f32 %v8335, %v8344
        %v8346 = vrot.slane %v8345, 2
        %v8347 = vadd.f32 %v8345, %v8346
        %v8348 = vrot.slane %v8347, 1
        %v8349 = vadd.f32 %v8347, %v8348
        %v8350 = vrot.slane %v8336, 4
        %v8351 = vadd.f32 %v8336, %v8350
        %v8352 = vrot.slane %v8351, 2
        %v8353 = vadd.f32 %v8351, %v8352
        %v8354 = vrot.slane %v8353, 1
        %v8355 = vadd.f32 %v8353, %v8354
        %v8356 = vrot.slane %v8337, 4
        %v8357 = vadd.f32 %v8337, %v8356
        %v8358 = vrot.slane %v8357, 2
        %v8359 = vadd.f32 %v8357, %v8358
        %v8360 = vrot.slane %v8359, 1
        %v8361 = vadd.f32 %v8359, %v8360
        %v8362 = vsel %vm8311, %v8110, -inf
        %v8363 = vrot.slane %v8362, 4
        %v8364 = vmax.f32 %v8362, %v8363
        %v8365 = vrot.slane %v8364, 2
        %v8366 = vmax.f32 %v8364, %v8365
        %v8367 = vrot.slane %v8366, 1
        %v8368 = vmax.f32 %v8366, %v8367
        %v8369 = vsub.f32 %v8110, %v8368
        %v8370 = vmul.f32 %v8369, 1.442695
        %v8371 = vpow.pop %v8370
        %v8372 = vsel %vm8311, %v8371, 0.0
        %v8373 = vrot.slane %v8372, 4
        %v8374 = vadd.f32 %v8372, %v8373
        %v8375 = vrot.slane %v8374, 2
        %v8376 = vadd.f32 %v8374, %v8375
        %v8377 = vrot.slane %v8376, 1
        %v8378 = vadd.f32 %v8376, %v8377
        %v8379 = vrcp.pop %v8378
        %v8380 = vmul.f32 %v8371, %v8379
        %v8381 = vsel %vm8311, %v8380, 0.0
        %8382 = vadd.xlane.f32.xlu0 %v8381
        %v8383 = vpop.xlane.xlu0 %8382
        %v8384 = vmul.f32 %v8383, %v3755
        %v8385 = vmul.f32 %v8383, %v3756
        %v8386 = vmul.f32 %v8383, %v3757
        %v8387 = vmul.f32 %v8383, %v3758
        %v8388 = vrot.slane %v8384, 4
        %v8389 = vadd.f32 %v8384, %v8388
        %v8390 = vrot.slane %v8389, 2
        %v8391 = vadd.f32 %v8389, %v8390
        %v8392 = vrot.slane %v8391, 1
        %v8393 = vadd.f32 %v8391, %v8392
        %v8394 = vrot.slane %v8385, 4
        %v8395 = vadd.f32 %v8385, %v8394
        %v8396 = vrot.slane %v8395, 2
        %v8397 = vadd.f32 %v8395, %v8396
        %v8398 = vrot.slane %v8397, 1
        %v8399 = vadd.f32 %v8397, %v8398
        %v8400 = vrot.slane %v8386, 4
        %v8401 = vadd.f32 %v8386, %v8400
        %v8402 = vrot.slane %v8401, 2
        %v8403 = vadd.f32 %v8401, %v8402
        %v8404 = vrot.slane %v8403, 1
        %v8405 = vadd.f32 %v8403, %v8404
        %v8406 = vrot.slane %v8387, 4
        %v8407 = vadd.f32 %v8387, %v8406
        %v8408 = vrot.slane %v8407, 2
        %v8409 = vadd.f32 %v8407, %v8408
        %v8410 = vrot.slane %v8409, 1
        %v8411 = vadd.f32 %v8409, %v8410
        %v8412 = vsel %vm8311, %v8192, -inf
        %v8413 = vrot.slane %v8412, 4
        %v8414 = vmax.f32 %v8412, %v8413
        %v8415 = vrot.slane %v8414, 2
        %v8416 = vmax.f32 %v8414, %v8415
        %v8417 = vrot.slane %v8416, 1
        %v8418 = vmax.f32 %v8416, %v8417
        %v8419 = vsub.f32 %v8192, %v8418
        %v8420 = vmul.f32 %v8419, 1.442695
        %v8421 = vpow.pop %v8420
        %v8422 = vsel %vm8311, %v8421, 0.0
        %v8423 = vrot.slane %v8422, 4
        %v8424 = vadd.f32 %v8422, %v8423
        %v8425 = vrot.slane %v8424, 2
        %v8426 = vadd.f32 %v8424, %v8425
        %v8427 = vrot.slane %v8426, 1
        %v8428 = vadd.f32 %v8426, %v8427
        %v8429 = vrcp.pop %v8428
        %v8430 = vmul.f32 %v8421, %v8429
        %v8431 = vsel %vm8311, %v8430, 0.0
        %8432 = vadd.xlane.f32.xlu0 %v8431
        %v8433 = vpop.xlane.xlu0 %8432
        %v8434 = vmul.f32 %v8433, %v4029
        %v8435 = vmul.f32 %v8433, %v4030
        %v8436 = vmul.f32 %v8433, %v4031
        %v8437 = vmul.f32 %v8433, %v4032
        %v8438 = vrot.slane %v8434, 4
        %v8439 = vadd.f32 %v8434, %v8438
        %v8440 = vrot.slane %v8439, 2
        %v8441 = vadd.f32 %v8439, %v8440
        %v8442 = vrot.slane %v8441, 1
        %v8443 = vadd.f32 %v8441, %v8442
        %v8444 = vrot.slane %v8435, 4
        %v8445 = vadd.f32 %v8435, %v8444
        %v8446 = vrot.slane %v8445, 2
        %v8447 = vadd.f32 %v8445, %v8446
        %v8448 = vrot.slane %v8447, 1
        %v8449 = vadd.f32 %v8447, %v8448
        %v8450 = vrot.slane %v8436, 4
        %v8451 = vadd.f32 %v8436, %v8450
        %v8452 = vrot.slane %v8451, 2
        %v8453 = vadd.f32 %v8451, %v8452
        %v8454 = vrot.slane %v8453, 1
        %v8455 = vadd.f32 %v8453, %v8454
        %v8456 = vrot.slane %v8437, 4
        %v8457 = vadd.f32 %v8437, %v8456
        %v8458 = vrot.slane %v8457, 2
        %v8459 = vadd.f32 %v8457, %v8458
        %v8460 = vrot.slane %v8459, 1
        %v8461 = vadd.f32 %v8459, %v8460
        %v8462 = vsel %vm8311, %v8310, -inf
        %v8463 = vrot.slane %v8462, 4
        %v8464 = vmax.f32 %v8462, %v8463
        %v8465 = vrot.slane %v8464, 2
        %v8466 = vmax.f32 %v8464, %v8465
        %v8467 = vrot.slane %v8466, 1
        %v8468 = vmax.f32 %v8466, %v8467
        %v8469 = vsub.f32 %v8310, %v8468
        %v8470 = vmul.f32 %v8469, 1.442695
        %v8471 = vpow.pop %v8470
        %v8472 = vsel %vm8311, %v8471, 0.0
        %v8473 = vrot.slane %v8472, 4
        %v8474 = vadd.f32 %v8472, %v8473
        %v8475 = vrot.slane %v8474, 2
        %v8476 = vadd.f32 %v8474, %v8475
        %v8477 = vrot.slane %v8476, 1
        %v8478 = vadd.f32 %v8476, %v8477
        %v8479 = vrcp.pop %v8478
        %v8480 = vmul.f32 %v8471, %v8479
        %v8481 = vsel %vm8311, %v8480, 0.0
        %8482 = vadd.xlane.f32.xlu0 %v8481
        %v8483 = vpop.xlane.xlu0 %8482
        %v8484 = vmul.f32 %v8483, %v7847
        %v8485 = vmul.f32 %v8483, %v7848
        %v8486 = vmul.f32 %v8483, %v7849
        %v8487 = vmul.f32 %v8483, %v7850
        %v8488 = vrot.slane %v8484, 4
        %v8489 = vadd.f32 %v8484, %v8488
        %v8490 = vrot.slane %v8489, 2
        %v8491 = vadd.f32 %v8489, %v8490
        %v8492 = vrot.slane %v8491, 1
        %v8493 = vadd.f32 %v8491, %v8492
        %v8494 = vrot.slane %v8485, 4
        %v8495 = vadd.f32 %v8485, %v8494
        %v8496 = vrot.slane %v8495, 2
        %v8497 = vadd.f32 %v8495, %v8496
        %v8498 = vrot.slane %v8497, 1
        %v8499 = vadd.f32 %v8497, %v8498
        %v8500 = vrot.slane %v8486, 4
        %v8501 = vadd.f32 %v8486, %v8500
        %v8502 = vrot.slane %v8501, 2
        %v8503 = vadd.f32 %v8501, %v8502
        %v8504 = vrot.slane %v8503, 1
        %v8505 = vadd.f32 %v8503, %v8504
        %v8506 = vrot.slane %v8487, 4
        %v8507 = vadd.f32 %v8487, %v8506
        %v8508 = vrot.slane %v8507, 2
        %v8509 = vadd.f32 %v8507, %v8508
        %v8510 = vrot.slane %v8509, 1
        %v8511 = vadd.f32 %v8509, %v8510
        %s8512 = smul.u32 %s46, 128
        %s8513 = sld [smem:[#allocation2 + %s8512]]
        %s8514 = sadd.s32 %s8512, 1
        %s8515 = sld [smem:[#allocation2 + %s8514]]
        %s8516 = sadd.s32 %s8512, 2
        %s8517 = sld [smem:[#allocation2 + %s8516]]
        %v8518 = vrot.slane %v2307, 4
        %v8519 = vadd.f32 %v2307, %v8518
        %v8520 = vrot.slane %v8519, 2
        %v8521 = vadd.f32 %v8519, %v8520
        %v8522 = vrot.slane %v8521, 1
        %v8523 = vadd.f32 %v8521, %v8522
        %v8524 = vrot.slane %v2308, 4
        %v8525 = vadd.f32 %v2308, %v8524
        %v8526 = vrot.slane %v8525, 2
        %v8527 = vadd.f32 %v8525, %v8526
        %v8528 = vrot.slane %v8527, 1
        %v8529 = vadd.f32 %v8527, %v8528
        %v8530 = vrot.slane %v2309, 4
        %v8531 = vadd.f32 %v2309, %v8530
        %v8532 = vrot.slane %v8531, 2
        %v8533 = vadd.f32 %v8531, %v8532
        %v8534 = vrot.slane %v8533, 1
        %v8535 = vadd.f32 %v8533, %v8534
        %v8536 = vrot.slane %v2310, 4
        %v8537 = vadd.f32 %v2310, %v8536
        %v8538 = vrot.slane %v8537, 2
        %v8539 = vadd.f32 %v8537, %v8538
        %v8540 = vrot.slane %v8539, 1
        %v8541 = vadd.f32 %v8539, %v8540
        %v8542 = vstv %s8513
        %v8543 = vrcp.pop %v8542
        %v8544 = vmul.f32 %v8523, %v8543
        %v8545 = vmul.f32 %v8529, %v8543
        %v8546 = vmul.f32 %v8535, %v8543
        %v8547 = vmul.f32 %v8541, %v8543
        %v8548 = vrot.slane %v7847, 4
        %v8549 = vadd.f32 %v7847, %v8548
        %v8550 = vrot.slane %v8549, 2
        %v8551 = vadd.f32 %v8549, %v8550
        %v8552 = vrot.slane %v8551, 1
        %v8553 = vadd.f32 %v8551, %v8552
        %v8554 = vrot.slane %v7848, 4
        %v8555 = vadd.f32 %v7848, %v8554
        %v8556 = vrot.slane %v8555, 2
        %v8557 = vadd.f32 %v8555, %v8556
        %v8558 = vrot.slane %v8557, 1
        %v8559 = vadd.f32 %v8557, %v8558
        %v8560 = vrot.slane %v7849, 4
        %v8561 = vadd.f32 %v7849, %v8560
        %v8562 = vrot.slane %v8561, 2
        %v8563 = vadd.f32 %v8561, %v8562
        %v8564 = vrot.slane %v8563, 1
        %v8565 = vadd.f32 %v8563, %v8564
        %v8566 = vrot.slane %v7850, 4
        %v8567 = vadd.f32 %v7850, %v8566
        %v8568 = vrot.slane %v8567, 2
        %v8569 = vadd.f32 %v8567, %v8568
        %v8570 = vrot.slane %v8569, 1
        %v8571 = vadd.f32 %v8569, %v8570
        %v8572 = vmul.f32 %v8553, 0.125
        %v8573 = vmul.f32 %v8559, 0.125
        %v8574 = vmul.f32 %v8565, 0.125
        %v8575 = vmul.f32 %v8571, 0.125
        %v8576 = vrot.slane %v3755, 4
        %v8577 = vadd.f32 %v3755, %v8576
        %v8578 = vrot.slane %v8577, 2
        %v8579 = vadd.f32 %v8577, %v8578
        %v8580 = vrot.slane %v8579, 1
        %v8581 = vadd.f32 %v8579, %v8580
        %v8582 = vrot.slane %v3756, 4
        %v8583 = vadd.f32 %v3756, %v8582
        %v8584 = vrot.slane %v8583, 2
        %v8585 = vadd.f32 %v8583, %v8584
        %v8586 = vrot.slane %v8585, 1
        %v8587 = vadd.f32 %v8585, %v8586
        %v8588 = vrot.slane %v3757, 4
        %v8589 = vadd.f32 %v3757, %v8588
        %v8590 = vrot.slane %v8589, 2
        %v8591 = vadd.f32 %v8589, %v8590
        %v8592 = vrot.slane %v8591, 1
        %v8593 = vadd.f32 %v8591, %v8592
        %v8594 = vrot.slane %v3758, 4
        %v8595 = vadd.f32 %v3758, %v8594
        %v8596 = vrot.slane %v8595, 2
        %v8597 = vadd.f32 %v8595, %v8596
        %v8598 = vrot.slane %v8597, 1
        %v8599 = vadd.f32 %v8597, %v8598
        %v8600 = vstv %s8515
        %v8601 = vrcp.pop %v8600
        %v8602 = vmul.f32 %v8581, %v8601
        %v8603 = vmul.f32 %v8587, %v8601
        %v8604 = vmul.f32 %v8593, %v8601
        %v8605 = vmul.f32 %v8599, %v8601
        %v8606 = vrot.slane %v4029, 4
        %v8607 = vadd.f32 %v4029, %v8606
        %v8608 = vrot.slane %v8607, 2
        %v8609 = vadd.f32 %v8607, %v8608
        %v8610 = vrot.slane %v8609, 1
        %v8611 = vadd.f32 %v8609, %v8610
        %v8612 = vrot.slane %v4030, 4
        %v8613 = vadd.f32 %v4030, %v8612
        %v8614 = vrot.slane %v8613, 2
        %v8615 = vadd.f32 %v8613, %v8614
        %v8616 = vrot.slane %v8615, 1
        %v8617 = vadd.f32 %v8615, %v8616
        %v8618 = vrot.slane %v4031, 4
        %v8619 = vadd.f32 %v4031, %v8618
        %v8620 = vrot.slane %v8619, 2
        %v8621 = vadd.f32 %v8619, %v8620
        %v8622 = vrot.slane %v8621, 1
        %v8623 = vadd.f32 %v8621, %v8622
        %v8624 = vrot.slane %v4032, 4
        %v8625 = vadd.f32 %v4032, %v8624
        %v8626 = vrot.slane %v8625, 2
        %v8627 = vadd.f32 %v8625, %v8626
        %v8628 = vrot.slane %v8627, 1
        %v8629 = vadd.f32 %v8627, %v8628
        %v8630 = vstv %s8517
        %v8631 = vrcp.pop %v8630
        %v8632 = vmul.f32 %v8611, %v8631
        %v8633 = vmul.f32 %v8617, %v8631
        %v8634 = vmul.f32 %v8623, %v8631
        %v8635 = vmul.f32 %v8629, %v8631
        %v8640 = vcombine.low %v8544, %v8545
        %v8641 = vcombine.low %v8546, %v8547
        %v8643 = vunpack.c.l.s4 1966171168
        %v8644 = vunpack.c.0.s8 %v8643
        %v8645 = vlaneseq
        %v8646 = vshrl.u32 %v8645, 7
        %v8647 = vsub.s32 %v8644, %v8646
        %v8648 = vrot.slane %v8640, %v8647
        %v8650 = vunpack.c.l.s4 1966171168
        %v8651 = vunpack.c.0.s8 %v8650
        %v8652 = vlaneseq
        %v8653 = vshrl.u32 %v8652, 7
        %v8654 = vsub.s32 %v8651, %v8653
        %v8655 = vrot.slane %v8641, %v8654
        %v8656 = vcombine.low %v8648, %v8655
        %v8658 = vunpack.c.l.s4 1966171168
        %v8659 = vunpack.c.0.s8 %v8658
        %v8660 = vlaneseq
        %v8661 = vshrl.u32 %v8660, 7
        %v8662 = vsub.s32 %v8659, %v8661
        %v8663 = vrot.slane %v8656, %v8662
        %v8665 = vlaneseq
        %vm8666 = vcmp.ge.s32.totalorder %v8665, 0
        %vm8667 = vcmp.lt.s32.totalorder %v8665, 512
        %vm8668 = vmand %vm8666, %vm8667
        %8669 = vst.msk [vmem:[%s834] ss:$4 sm:$0xf] %vm8668, %v8663
        %v8674 = vcombine.low %v8572, %v8573
        %v8675 = vcombine.low %v8574, %v8575
        %v8677 = vunpack.c.l.s4 1966171168
        %v8678 = vunpack.c.0.s8 %v8677
        %v8679 = vlaneseq
        %v8680 = vshrl.u32 %v8679, 7
        %v8681 = vsub.s32 %v8678, %v8680
        %v8682 = vrot.slane %v8674, %v8681
        %v8684 = vunpack.c.l.s4 1966171168
        %v8685 = vunpack.c.0.s8 %v8684
        %v8686 = vlaneseq
        %v8687 = vshrl.u32 %v8686, 7
        %v8688 = vsub.s32 %v8685, %v8687
        %v8689 = vrot.slane %v8675, %v8688
        %v8690 = vcombine.low %v8682, %v8689
        %v8692 = vunpack.c.l.s4 1966171168
        %v8693 = vunpack.c.0.s8 %v8692
        %v8694 = vlaneseq
        %v8695 = vshrl.u32 %v8694, 7
        %v8696 = vsub.s32 %v8693, %v8695
        %v8697 = vrot.slane %v8690, %v8696
        %s8699 = scalar_lea.vmem %s834, 1 [#allocation21]
        %8700 = vst.msk [vmem:[%s8699] ss:$4 sm:$0xf] %vm8668, %v8697
        %v8705 = vcombine.low %v8602, %v8603
        %v8706 = vcombine.low %v8604, %v8605
        %v8708 = vunpack.c.l.s4 1966171168
        %v8709 = vunpack.c.0.s8 %v8708
        %v8710 = vlaneseq
        %v8711 = vshrl.u32 %v8710, 7
        %v8712 = vsub.s32 %v8709, %v8711
        %v8713 = vrot.slane %v8705, %v8712
        %v8715 = vunpack.c.l.s4 1966171168
        %v8716 = vunpack.c.0.s8 %v8715
        %v8717 = vlaneseq
        %v8718 = vshrl.u32 %v8717, 7
        %v8719 = vsub.s32 %v8716, %v8718
        %v8720 = vrot.slane %v8706, %v8719
        %v8721 = vcombine.low %v8713, %v8720
        %v8723 = vunpack.c.l.s4 1966171168
        %v8724 = vunpack.c.0.s8 %v8723
        %v8725 = vlaneseq
        %v8726 = vshrl.u32 %v8725, 7
        %v8727 = vsub.s32 %v8724, %v8726
        %v8728 = vrot.slane %v8721, %v8727
        %s8730 = scalar_lea.vmem %s834, 2 [#allocation21]
        %8731 = vst.msk [vmem:[%s8730] ss:$4 sm:$0xf] %vm8668, %v8728
        %v8736 = vcombine.low %v8632, %v8633
        %v8737 = vcombine.low %v8634, %v8635
        %v8739 = vunpack.c.l.s4 1966171168
        %v8740 = vunpack.c.0.s8 %v8739
        %v8741 = vlaneseq
        %v8742 = vshrl.u32 %v8741, 7
        %v8743 = vsub.s32 %v8740, %v8742
        %v8744 = vrot.slane %v8736, %v8743
        %v8746 = vunpack.c.l.s4 1966171168
        %v8747 = vunpack.c.0.s8 %v8746
        %v8748 = vlaneseq
        %v8749 = vshrl.u32 %v8748, 7
        %v8750 = vsub.s32 %v8747, %v8749
        %v8751 = vrot.slane %v8737, %v8750
        %v8752 = vcombine.low %v8744, %v8751
        %v8754 = vunpack.c.l.s4 1966171168
        %v8755 = vunpack.c.0.s8 %v8754
        %v8756 = vlaneseq
        %v8757 = vshrl.u32 %v8756, 7
        %v8758 = vsub.s32 %v8755, %v8757
        %v8759 = vrot.slane %v8752, %v8758
        %s8761 = scalar_lea.vmem %s834, 3 [#allocation21]
        %8762 = vst.msk [vmem:[%s8761] ss:$4 sm:$0xf] %vm8668, %v8759
        %v8763 = vmul.f32 %v8343, %v8543
        %v8764 = vmul.f32 %v8349, %v8543
        %v8765 = vmul.f32 %v8355, %v8543
        %v8766 = vmul.f32 %v8361, %v8543
        %v8771 = vcombine.low %v8763, %v8764
        %v8772 = vcombine.low %v8765, %v8766
        %v8774 = vunpack.c.l.s4 1966171168
        %v8775 = vunpack.c.0.s8 %v8774
        %v8776 = vlaneseq
        %v8777 = vshrl.u32 %v8776, 7
        %v8778 = vsub.s32 %v8775, %v8777
        %v8779 = vrot.slane %v8771, %v8778
        %v8781 = vunpack.c.l.s4 1966171168
        %v8782 = vunpack.c.0.s8 %v8781
        %v8783 = vlaneseq
        %v8784 = vshrl.u32 %v8783, 7
        %v8785 = vsub.s32 %v8782, %v8784
        %v8786 = vrot.slane %v8772, %v8785
        %v8787 = vcombine.low %v8779, %v8786
        %v8789 = vunpack.c.l.s4 1966171168
        %v8790 = vunpack.c.0.s8 %v8789
        %v8791 = vlaneseq
        %v8792 = vshrl.u32 %v8791, 7
        %v8793 = vsub.s32 %v8790, %v8792
        %v8794 = vrot.slane %v8787, %v8793
        %8796 = vst.msk [vmem:[%s841] ss:$4 sm:$0xf] %vm8668, %v8794
        %v8797 = vmul.f32 %v8393, %v8543
        %v8798 = vmul.f32 %v8399, %v8543
        %v8799 = vmul.f32 %v8405, %v8543
        %v8800 = vmul.f32 %v8411, %v8543
        %v8805 = vcombine.low %v8797, %v8798
        %v8806 = vcombine.low %v8799, %v8800
        %v8808 = vunpack.c.l.s4 1966171168
        %v8809 = vunpack.c.0.s8 %v8808
        %v8810 = vlaneseq
        %v8811 = vshrl.u32 %v8810, 7
        %v8812 = vsub.s32 %v8809, %v8811
        %v8813 = vrot.slane %v8805, %v8812
        %v8815 = vunpack.c.l.s4 1966171168
        %v8816 = vunpack.c.0.s8 %v8815
        %v8817 = vlaneseq
        %v8818 = vshrl.u32 %v8817, 7
        %v8819 = vsub.s32 %v8816, %v8818
        %v8820 = vrot.slane %v8806, %v8819
        %v8821 = vcombine.low %v8813, %v8820
        %v8823 = vunpack.c.l.s4 1966171168
        %v8824 = vunpack.c.0.s8 %v8823
        %v8825 = vlaneseq
        %v8826 = vshrl.u32 %v8825, 7
        %v8827 = vsub.s32 %v8824, %v8826
        %v8828 = vrot.slane %v8821, %v8827
        %s8830 = scalar_lea.vmem %s841, 1 [#allocation23]
        %8831 = vst.msk [vmem:[%s8830] ss:$4 sm:$0xf] %vm8668, %v8828
        %v8832 = vmul.f32 %v8493, %v8601
        %v8833 = vmul.f32 %v8499, %v8601
        %v8834 = vmul.f32 %v8505, %v8601
        %v8835 = vmul.f32 %v8511, %v8601
        %v8840 = vcombine.low %v8832, %v8833
        %v8841 = vcombine.low %v8834, %v8835
        %v8843 = vunpack.c.l.s4 1966171168
        %v8844 = vunpack.c.0.s8 %v8843
        %v8845 = vlaneseq
        %v8846 = vshrl.u32 %v8845, 7
        %v8847 = vsub.s32 %v8844, %v8846
        %v8848 = vrot.slane %v8840, %v8847
        %v8850 = vunpack.c.l.s4 1966171168
        %v8851 = vunpack.c.0.s8 %v8850
        %v8852 = vlaneseq
        %v8853 = vshrl.u32 %v8852, 7
        %v8854 = vsub.s32 %v8851, %v8853
        %v8855 = vrot.slane %v8841, %v8854
        %v8856 = vcombine.low %v8848, %v8855
        %v8858 = vunpack.c.l.s4 1966171168
        %v8859 = vunpack.c.0.s8 %v8858
        %v8860 = vlaneseq
        %v8861 = vshrl.u32 %v8860, 7
        %v8862 = vsub.s32 %v8859, %v8861
        %v8863 = vrot.slane %v8856, %v8862
        %s8865 = scalar_lea.vmem %s841, 2 [#allocation23]
        %8866 = vst.msk [vmem:[%s8865] ss:$4 sm:$0xf] %vm8668, %v8863
        %v8867 = vmul.f32 %v8443, %v8543
        %v8868 = vmul.f32 %v8449, %v8543
        %v8869 = vmul.f32 %v8455, %v8543
        %v8870 = vmul.f32 %v8461, %v8543
        %v8875 = vcombine.low %v8867, %v8868
        %v8876 = vcombine.low %v8869, %v8870
        %v8878 = vunpack.c.l.s4 1966171168
        %v8879 = vunpack.c.0.s8 %v8878
        %v8880 = vlaneseq
        %v8881 = vshrl.u32 %v8880, 7
        %v8882 = vsub.s32 %v8879, %v8881
        %v8883 = vrot.slane %v8875, %v8882
        %v8885 = vunpack.c.l.s4 1966171168
        %v8886 = vunpack.c.0.s8 %v8885
        %v8887 = vlaneseq
        %v8888 = vshrl.u32 %v8887, 7
        %v8889 = vsub.s32 %v8886, %v8888
        %v8890 = vrot.slane %v8876, %v8889
        %v8891 = vcombine.low %v8883, %v8890
        %v8893 = vunpack.c.l.s4 1966171168
        %v8894 = vunpack.c.0.s8 %v8893
        %v8895 = vlaneseq
        %v8896 = vshrl.u32 %v8895, 7
        %v8897 = vsub.s32 %v8894, %v8896
        %v8898 = vrot.slane %v8891, %v8897
        %s8900 = scalar_lea.vmem %s841, 3 [#allocation23]
        %8901 = vst.msk [vmem:[%s8900] ss:$4 sm:$0xf] %vm8668, %v8898
        %v8902 = vmax.f32 %v8544, %v8572
        %v8903 = vmax.f32 %v8545, %v8573
        %v8904 = vmax.f32 %v8546, %v8574
        %v8905 = vmax.f32 %v8547, %v8575
        %v8906 = vmax.f32 %v8602, %v8632
        %v8907 = vmax.f32 %v8603, %v8633
        %v8908 = vmax.f32 %v8604, %v8634
        %v8909 = vmax.f32 %v8605, %v8635
        %v8910 = vmax.f32 %v8902, %v8906
        %v8911 = vmax.f32 %v8903, %v8907
        %v8912 = vmax.f32 %v8904, %v8908
        %v8913 = vmax.f32 %v8905, %v8909
        %v8914 = vmax.f32 %v8910, 0.0
        %v8915 = vmax.f32 %v8911, 0.0
        %v8916 = vmax.f32 %v8912, 0.0
        %v8917 = vmax.f32 %v8913, 0.0
        %v8918 = vpack.c.bf16 %v8914, %v8914
        %v8919 = vpack.c.bf16 %v8915, %v8915
        %v8920 = vpack.c.bf16 %v8916, %v8916
        %v8921 = vpack.c.bf16 %v8917, %v8917
        %v8922 = vld [vmem:[%s12] sm:$0xff]
        %v8923 = vld [vmem:[%s12 + $0x8] sm:$0xff]
        %v8924 = vld [vmem:[%s12 + $0x10] sm:$0xff]
        %v8925 = vld [vmem:[%s12 + $0x18] sm:$0xff]
        %v8926 = vld [vmem:[%s12 + $0x20] sm:$0xff]
        %v8927 = vld [vmem:[%s12 + $0x28] sm:$0xff]
        %v8928 = vld [vmem:[%s12 + $0x30] sm:$0xff]
        %v8929 = vld [vmem:[%s12 + $0x38] sm:$0xff]
        %v8930 = vld [vmem:[%s12 + $0x40] sm:$0xff]
        %v8931 = vld [vmem:[%s12 + $0x48] sm:$0xff]
        %v8932 = vld [vmem:[%s12 + $0x50] sm:$0xff]
        %v8933 = vld [vmem:[%s12 + $0x58] sm:$0xff]
        %v8934 = vld [vmem:[%s12 + $0x60] sm:$0xff]
        %v8935 = vld [vmem:[%s12 + $0x68] sm:$0xff]
        %v8936 = vld [vmem:[%s12 + $0x70] sm:$0xff]
        %v8937 = vld [vmem:[%s12 + $0x78] sm:$0xff]
        %v8938 = vld [vmem:[%s12 + $0x80] sm:$0xff]
        %v8939 = vld [vmem:[%s12 + $0x88] sm:$0xff]
        %v8940 = vld [vmem:[%s12 + $0x90] sm:$0xff]
        %v8941 = vld [vmem:[%s12 + $0x98] sm:$0xff]
        %v8942 = vld [vmem:[%s12 + $0xa0] sm:$0xff]
        %v8943 = vld [vmem:[%s12 + $0xa8] sm:$0xff]
        %v8944 = vld [vmem:[%s12 + $0xb0] sm:$0xff]
        %v8945 = vld [vmem:[%s12 + $0xb8] sm:$0xff]
        %v8946 = vld [vmem:[%s12 + $0xc0] sm:$0xff]
        %v8947 = vld [vmem:[%s12 + $0xc8] sm:$0xff]
        %v8948 = vld [vmem:[%s12 + $0xd0] sm:$0xff]
        %v8949 = vld [vmem:[%s12 + $0xd8] sm:$0xff]
        %v8950 = vld [vmem:[%s12 + $0xe0] sm:$0xff]
        %v8951 = vld [vmem:[%s12 + $0xe8] sm:$0xff]
        %v8952 = vld [vmem:[%s12 + $0xf0] sm:$0xff]
        %v8953 = vld [vmem:[%s12 + $0xf8] sm:$0xff]
        %v8954 = vld [vmem:[%s12 + $0x100] sm:$0xff]
        %v8955 = vld [vmem:[%s12 + $0x108] sm:$0xff]
        %v8956 = vld [vmem:[%s12 + $0x110] sm:$0xff]
        %v8957 = vld [vmem:[%s12 + $0x118] sm:$0xff]
        %v8958 = vld [vmem:[%s12 + $0x120] sm:$0xff]
        %v8959 = vld [vmem:[%s12 + $0x128] sm:$0xff]
        %v8960 = vld [vmem:[%s12 + $0x130] sm:$0xff]
        %v8961 = vld [vmem:[%s12 + $0x138] sm:$0xff]
        %v8962 = vld [vmem:[%s12 + $0x140] sm:$0xff]
        %v8963 = vld [vmem:[%s12 + $0x148] sm:$0xff]
        %v8964 = vld [vmem:[%s12 + $0x150] sm:$0xff]
        %v8965 = vld [vmem:[%s12 + $0x158] sm:$0xff]
        %v8966 = vld [vmem:[%s12 + $0x160] sm:$0xff]
        %v8967 = vld [vmem:[%s12 + $0x168] sm:$0xff]
        %v8968 = vld [vmem:[%s12 + $0x170] sm:$0xff]
        %v8969 = vld [vmem:[%s12 + $0x178] sm:$0xff]
        %v8970 = vld [vmem:[%s12 + $0x180] sm:$0xff]
        %v8971 = vld [vmem:[%s12 + $0x188] sm:$0xff]
        %v8972 = vld [vmem:[%s12 + $0x190] sm:$0xff]
        %v8973 = vld [vmem:[%s12 + $0x198] sm:$0xff]
        %v8974 = vld [vmem:[%s12 + $0x1a0] sm:$0xff]
        %v8975 = vld [vmem:[%s12 + $0x1a8] sm:$0xff]
        %v8976 = vld [vmem:[%s12 + $0x1b0] sm:$0xff]
        %v8977 = vld [vmem:[%s12 + $0x1b8] sm:$0xff]
        %v8978 = vld [vmem:[%s12 + $0x1c0] sm:$0xff]
        %v8979 = vld [vmem:[%s12 + $0x1c8] sm:$0xff]
        %v8980 = vld [vmem:[%s12 + $0x1d0] sm:$0xff]
        %v8981 = vld [vmem:[%s12 + $0x1d8] sm:$0xff]
        %v8982 = vld [vmem:[%s12 + $0x1e0] sm:$0xff]
        %v8983 = vld [vmem:[%s12 + $0x1e8] sm:$0xff]
        %v8984 = vld [vmem:[%s12 + $0x1f0] sm:$0xff]
        %v8985 = vld [vmem:[%s12 + $0x1f8] sm:$0xff]
        %v8986 = vld [vmem:[%s12 + $0x200] sm:$0xff]
        %v8987 = vld [vmem:[%s12 + $0x208] sm:$0xff]
        %v8988 = vld [vmem:[%s12 + $0x210] sm:$0xff]
        %v8989 = vld [vmem:[%s12 + $0x218] sm:$0xff]
        %v8990 = vld [vmem:[%s12 + $0x220] sm:$0xff]
        %v8991 = vld [vmem:[%s12 + $0x228] sm:$0xff]
        %v8992 = vld [vmem:[%s12 + $0x230] sm:$0xff]
        %v8993 = vld [vmem:[%s12 + $0x238] sm:$0xff]
        %v8994 = vld [vmem:[%s12 + $0x240] sm:$0xff]
        %v8995 = vld [vmem:[%s12 + $0x248] sm:$0xff]
        %v8996 = vld [vmem:[%s12 + $0x250] sm:$0xff]
        %v8997 = vld [vmem:[%s12 + $0x258] sm:$0xff]
        %v8998 = vld [vmem:[%s12 + $0x260] sm:$0xff]
        %v8999 = vld [vmem:[%s12 + $0x268] sm:$0xff]
        %v9000 = vld [vmem:[%s12 + $0x270] sm:$0xff]
        %v9001 = vld [vmem:[%s12 + $0x278] sm:$0xff]
        %v9002 = vld [vmem:[%s12 + $0x280] sm:$0xff]
        %v9003 = vld [vmem:[%s12 + $0x288] sm:$0xff]
        %v9004 = vld [vmem:[%s12 + $0x290] sm:$0xff]
        %v9005 = vld [vmem:[%s12 + $0x298] sm:$0xff]
        %v9006 = vld [vmem:[%s12 + $0x2a0] sm:$0xff]
        %v9007 = vld [vmem:[%s12 + $0x2a8] sm:$0xff]
        %v9008 = vld [vmem:[%s12 + $0x2b0] sm:$0xff]
        %v9009 = vld [vmem:[%s12 + $0x2b8] sm:$0xff]
        %v9010 = vld [vmem:[%s12 + $0x2c0] sm:$0xff]
        %v9011 = vld [vmem:[%s12 + $0x2c8] sm:$0xff]
        %v9012 = vld [vmem:[%s12 + $0x2d0] sm:$0xff]
        %v9013 = vld [vmem:[%s12 + $0x2d8] sm:$0xff]
        %v9014 = vld [vmem:[%s12 + $0x2e0] sm:$0xff]
        %v9015 = vld [vmem:[%s12 + $0x2e8] sm:$0xff]
        %v9016 = vld [vmem:[%s12 + $0x2f0] sm:$0xff]
        %v9017 = vld [vmem:[%s12 + $0x2f8] sm:$0xff]
        %v9018 = vld [vmem:[%s12 + $0x300] sm:$0xff]
        %v9019 = vld [vmem:[%s12 + $0x308] sm:$0xff]
        %v9020 = vld [vmem:[%s12 + $0x310] sm:$0xff]
        %v9021 = vld [vmem:[%s12 + $0x318] sm:$0xff]
        %v9022 = vld [vmem:[%s12 + $0x320] sm:$0xff]
        %v9023 = vld [vmem:[%s12 + $0x328] sm:$0xff]
        %v9024 = vld [vmem:[%s12 + $0x330] sm:$0xff]
        %v9025 = vld [vmem:[%s12 + $0x338] sm:$0xff]
        %v9026 = vld [vmem:[%s12 + $0x340] sm:$0xff]
        %v9027 = vld [vmem:[%s12 + $0x348] sm:$0xff]
        %v9028 = vld [vmem:[%s12 + $0x350] sm:$0xff]
        %v9029 = vld [vmem:[%s12 + $0x358] sm:$0xff]
        %v9030 = vld [vmem:[%s12 + $0x360] sm:$0xff]
        %v9031 = vld [vmem:[%s12 + $0x368] sm:$0xff]
        %v9032 = vld [vmem:[%s12 + $0x370] sm:$0xff]
        %v9033 = vld [vmem:[%s12 + $0x378] sm:$0xff]
        %v9034 = vld [vmem:[%s12 + $0x380] sm:$0xff]
        %v9035 = vld [vmem:[%s12 + $0x388] sm:$0xff]
        %v9036 = vld [vmem:[%s12 + $0x390] sm:$0xff]
        %v9037 = vld [vmem:[%s12 + $0x398] sm:$0xff]
        %v9038 = vld [vmem:[%s12 + $0x3a0] sm:$0xff]
        %v9039 = vld [vmem:[%s12 + $0x3a8] sm:$0xff]
        %v9040 = vld [vmem:[%s12 + $0x3b0] sm:$0xff]
        %v9041 = vld [vmem:[%s12 + $0x3b8] sm:$0xff]
        %v9042 = vld [vmem:[%s12 + $0x3c0] sm:$0xff]
        %v9043 = vld [vmem:[%s12 + $0x3c8] sm:$0xff]
        %v9044 = vld [vmem:[%s12 + $0x3d0] sm:$0xff]
        %v9045 = vld [vmem:[%s12 + $0x3d8] sm:$0xff]
        %v9046 = vld [vmem:[%s12 + $0x3e0] sm:$0xff]
        %v9047 = vld [vmem:[%s12 + $0x3e8] sm:$0xff]
        %v9048 = vld [vmem:[%s12 + $0x3f0] sm:$0xff]
        %v9049 = vld [vmem:[%s12 + $0x3f8] sm:$0xff]
        %v9050 = vld [vmem:[#allocation15] sm:$0xf]
        %v9052 = vlaneseq
        %v9053 = vshrl.u32 %v9052, 7
        %v9054 = vsub.s32 0, %v9053
        %v9055 = vrot.slane %v9050, %v9054
        %v9056 = vlaneseq
        %v9057 = vshrl.u32 %v9056, 7
        %v9058 = vsub.s32 1, %v9057
        %v9059 = vrot.slane %v9050, %v9058
        %v9060 = vlaneseq
        %v9061 = vshrl.u32 %v9060, 7
        %v9062 = vsub.s32 2, %v9061
        %v9063 = vrot.slane %v9050, %v9062
        %v9064 = vlaneseq
        %v9065 = vshrl.u32 %v9064, 7
        %v9066 = vsub.s32 3, %v9065
        %v9067 = vrot.slane %v9050, %v9066
        %v9200 = vunpack.c.l.b16 %v8922
        %v9201 = vunpack.c.h.b16 %v8922
        %v9202 = vunpack.c.l.b16 %v8923
        %v9203 = vunpack.c.h.b16 %v8923
        %v9204 = vunpack.c.l.b16 %v8924
        %v9205 = vunpack.c.h.b16 %v8924
        %v9206 = vunpack.c.l.b16 %v8925
        %v9207 = vunpack.c.h.b16 %v8925
        %v9208 = vunpack.c.l.b16 %v8926
        %v9209 = vunpack.c.h.b16 %v8926
        %v9210 = vunpack.c.l.b16 %v8927
        %v9211 = vunpack.c.h.b16 %v8927
        %v9212 = vunpack.c.l.b16 %v8928
        %v9213 = vunpack.c.h.b16 %v8928
        %v9214 = vunpack.c.l.b16 %v8929
        %v9215 = vunpack.c.h.b16 %v8929
        %v9216 = vunpack.c.l.b16 %v8930
        %v9217 = vunpack.c.h.b16 %v8930
        %v9218 = vunpack.c.l.b16 %v8931
        %v9219 = vunpack.c.h.b16 %v8931
        %v9220 = vunpack.c.l.b16 %v8932
        %v9221 = vunpack.c.h.b16 %v8932
        %v9222 = vunpack.c.l.b16 %v8933
        %v9223 = vunpack.c.h.b16 %v8933
        %v9224 = vunpack.c.l.b16 %v8934
        %v9225 = vunpack.c.h.b16 %v8934
        %v9226 = vunpack.c.l.b16 %v8935
        %v9227 = vunpack.c.h.b16 %v8935
        %v9228 = vunpack.c.l.b16 %v8936
        %v9229 = vunpack.c.h.b16 %v8936
        %v9230 = vunpack.c.l.b16 %v8937
        %v9231 = vunpack.c.h.b16 %v8937
        %v9232 = vunpack.c.l.b16 %v8938
        %v9233 = vunpack.c.h.b16 %v8938
        %v9234 = vunpack.c.l.b16 %v8939
        %v9235 = vunpack.c.h.b16 %v8939
        %v9236 = vunpack.c.l.b16 %v8940
        %v9237 = vunpack.c.h.b16 %v8940
        %v9238 = vunpack.c.l.b16 %v8941
        %v9239 = vunpack.c.h.b16 %v8941
        %v9240 = vunpack.c.l.b16 %v8942
        %v9241 = vunpack.c.h.b16 %v8942
        %v9242 = vunpack.c.l.b16 %v8943
        %v9243 = vunpack.c.h.b16 %v8943
        %v9244 = vunpack.c.l.b16 %v8944
        %v9245 = vunpack.c.h.b16 %v8944
        %v9246 = vunpack.c.l.b16 %v8945
        %v9247 = vunpack.c.h.b16 %v8945
        %v9248 = vunpack.c.l.b16 %v8946
        %v9249 = vunpack.c.h.b16 %v8946
        %v9250 = vunpack.c.l.b16 %v8947
        %v9251 = vunpack.c.h.b16 %v8947
        %v9252 = vunpack.c.l.b16 %v8948
        %v9253 = vunpack.c.h.b16 %v8948
        %v9254 = vunpack.c.l.b16 %v8949
        %v9255 = vunpack.c.h.b16 %v8949
        %v9256 = vunpack.c.l.b16 %v8950
        %v9257 = vunpack.c.h.b16 %v8950
        %v9258 = vunpack.c.l.b16 %v8951
        %v9259 = vunpack.c.h.b16 %v8951
        %v9260 = vunpack.c.l.b16 %v8952
        %v9261 = vunpack.c.h.b16 %v8952
        %v9262 = vunpack.c.l.b16 %v8953
        %v9263 = vunpack.c.h.b16 %v8953
        %v9264 = vunpack.c.l.b16 %v8954
        %v9265 = vunpack.c.h.b16 %v8954
        %v9266 = vunpack.c.l.b16 %v8955
        %v9267 = vunpack.c.h.b16 %v8955
        %v9268 = vunpack.c.l.b16 %v8956
        %v9269 = vunpack.c.h.b16 %v8956
        %v9270 = vunpack.c.l.b16 %v8957
        %v9271 = vunpack.c.h.b16 %v8957
        %v9272 = vunpack.c.l.b16 %v8958
        %v9273 = vunpack.c.h.b16 %v8958
        %v9274 = vunpack.c.l.b16 %v8959
        %v9275 = vunpack.c.h.b16 %v8959
        %v9276 = vunpack.c.l.b16 %v8960
        %v9277 = vunpack.c.h.b16 %v8960
        %v9278 = vunpack.c.l.b16 %v8961
        %v9279 = vunpack.c.h.b16 %v8961
        %v9280 = vunpack.c.l.b16 %v8962
        %v9281 = vunpack.c.h.b16 %v8962
        %v9282 = vunpack.c.l.b16 %v8963
        %v9283 = vunpack.c.h.b16 %v8963
        %v9284 = vunpack.c.l.b16 %v8964
        %v9285 = vunpack.c.h.b16 %v8964
        %v9286 = vunpack.c.l.b16 %v8965
        %v9287 = vunpack.c.h.b16 %v8965
        %v9288 = vunpack.c.l.b16 %v8966
        %v9289 = vunpack.c.h.b16 %v8966
        %v9290 = vunpack.c.l.b16 %v8967
        %v9291 = vunpack.c.h.b16 %v8967
        %v9292 = vunpack.c.l.b16 %v8968
        %v9293 = vunpack.c.h.b16 %v8968
        %v9294 = vunpack.c.l.b16 %v8969
        %v9295 = vunpack.c.h.b16 %v8969
        %v9296 = vunpack.c.l.b16 %v8970
        %v9297 = vunpack.c.h.b16 %v8970
        %v9298 = vunpack.c.l.b16 %v8971
        %v9299 = vunpack.c.h.b16 %v8971
        %v9300 = vunpack.c.l.b16 %v8972
        %v9301 = vunpack.c.h.b16 %v8972
        %v9302 = vunpack.c.l.b16 %v8973
        %v9303 = vunpack.c.h.b16 %v8973
        %v9304 = vunpack.c.l.b16 %v8974
        %v9305 = vunpack.c.h.b16 %v8974
        %v9306 = vunpack.c.l.b16 %v8975
        %v9307 = vunpack.c.h.b16 %v8975
        %v9308 = vunpack.c.l.b16 %v8976
        %v9309 = vunpack.c.h.b16 %v8976
        %v9310 = vunpack.c.l.b16 %v8977
        %v9311 = vunpack.c.h.b16 %v8977
        %v9312 = vunpack.c.l.b16 %v8978
        %v9313 = vunpack.c.h.b16 %v8978
        %v9314 = vunpack.c.l.b16 %v8979
        %v9315 = vunpack.c.h.b16 %v8979
        %v9316 = vunpack.c.l.b16 %v8980
        %v9317 = vunpack.c.h.b16 %v8980
        %v9318 = vunpack.c.l.b16 %v8981
        %v9319 = vunpack.c.h.b16 %v8981
        %v9320 = vunpack.c.l.b16 %v8982
        %v9321 = vunpack.c.h.b16 %v8982
        %v9322 = vunpack.c.l.b16 %v8983
        %v9323 = vunpack.c.h.b16 %v8983
        %v9324 = vunpack.c.l.b16 %v8984
        %v9325 = vunpack.c.h.b16 %v8984
        %v9326 = vunpack.c.l.b16 %v8985
        %v9327 = vunpack.c.h.b16 %v8985
        %v9328 = vunpack.c.l.b16 %v8986
        %v9329 = vunpack.c.h.b16 %v8986
        %v9330 = vunpack.c.l.b16 %v8987
        %v9331 = vunpack.c.h.b16 %v8987
        %v9332 = vunpack.c.l.b16 %v8988
        %v9333 = vunpack.c.h.b16 %v8988
        %v9334 = vunpack.c.l.b16 %v8989
        %v9335 = vunpack.c.h.b16 %v8989
        %v9336 = vunpack.c.l.b16 %v8990
        %v9337 = vunpack.c.h.b16 %v8990
        %v9338 = vunpack.c.l.b16 %v8991
        %v9339 = vunpack.c.h.b16 %v8991
        %v9340 = vunpack.c.l.b16 %v8992
        %v9341 = vunpack.c.h.b16 %v8992
        %v9342 = vunpack.c.l.b16 %v8993
        %v9343 = vunpack.c.h.b16 %v8993
        %v9344 = vunpack.c.l.b16 %v8994
        %v9345 = vunpack.c.h.b16 %v8994
        %v9346 = vunpack.c.l.b16 %v8995
        %v9347 = vunpack.c.h.b16 %v8995
        %v9348 = vunpack.c.l.b16 %v8996
        %v9349 = vunpack.c.h.b16 %v8996
        %v9350 = vunpack.c.l.b16 %v8997
        %v9351 = vunpack.c.h.b16 %v8997
        %v9352 = vunpack.c.l.b16 %v8998
        %v9353 = vunpack.c.h.b16 %v8998
        %v9354 = vunpack.c.l.b16 %v8999
        %v9355 = vunpack.c.h.b16 %v8999
        %v9356 = vunpack.c.l.b16 %v9000
        %v9357 = vunpack.c.h.b16 %v9000
        %v9358 = vunpack.c.l.b16 %v9001
        %v9359 = vunpack.c.h.b16 %v9001
        %v9360 = vunpack.c.l.b16 %v9002
        %v9361 = vunpack.c.h.b16 %v9002
        %v9362 = vunpack.c.l.b16 %v9003
        %v9363 = vunpack.c.h.b16 %v9003
        %v9364 = vunpack.c.l.b16 %v9004
        %v9365 = vunpack.c.h.b16 %v9004
        %v9366 = vunpack.c.l.b16 %v9005
        %v9367 = vunpack.c.h.b16 %v9005
        %v9368 = vunpack.c.l.b16 %v9006
        %v9369 = vunpack.c.h.b16 %v9006
        %v9370 = vunpack.c.l.b16 %v9007
        %v9371 = vunpack.c.h.b16 %v9007
        %v9372 = vunpack.c.l.b16 %v9008
        %v9373 = vunpack.c.h.b16 %v9008
        %v9374 = vunpack.c.l.b16 %v9009
        %v9375 = vunpack.c.h.b16 %v9009
        %v9376 = vunpack.c.l.b16 %v9010
        %v9377 = vunpack.c.h.b16 %v9010
        %v9378 = vunpack.c.l.b16 %v9011
        %v9379 = vunpack.c.h.b16 %v9011
        %v9380 = vunpack.c.l.b16 %v9012
        %v9381 = vunpack.c.h.b16 %v9012
        %v9382 = vunpack.c.l.b16 %v9013
        %v9383 = vunpack.c.h.b16 %v9013
        %v9384 = vunpack.c.l.b16 %v9014
        %v9385 = vunpack.c.h.b16 %v9014
        %v9386 = vunpack.c.l.b16 %v9015
        %v9387 = vunpack.c.h.b16 %v9015
        %v9388 = vunpack.c.l.b16 %v9016
        %v9389 = vunpack.c.h.b16 %v9016
        %v9390 = vunpack.c.l.b16 %v9017
        %v9391 = vunpack.c.h.b16 %v9017
        %v9392 = vunpack.c.l.b16 %v9018
        %v9393 = vunpack.c.h.b16 %v9018
        %v9394 = vunpack.c.l.b16 %v9019
        %v9395 = vunpack.c.h.b16 %v9019
        %v9396 = vunpack.c.l.b16 %v9020
        %v9397 = vunpack.c.h.b16 %v9020
        %v9398 = vunpack.c.l.b16 %v9021
        %v9399 = vunpack.c.h.b16 %v9021
        %v9400 = vunpack.c.l.b16 %v9022
        %v9401 = vunpack.c.h.b16 %v9022
        %v9402 = vunpack.c.l.b16 %v9023
        %v9403 = vunpack.c.h.b16 %v9023
        %v9404 = vunpack.c.l.b16 %v9024
        %v9405 = vunpack.c.h.b16 %v9024
        %v9406 = vunpack.c.l.b16 %v9025
        %v9407 = vunpack.c.h.b16 %v9025
        %v9408 = vunpack.c.l.b16 %v9026
        %v9409 = vunpack.c.h.b16 %v9026
        %v9410 = vunpack.c.l.b16 %v9027
        %v9411 = vunpack.c.h.b16 %v9027
        %v9412 = vunpack.c.l.b16 %v9028
        %v9413 = vunpack.c.h.b16 %v9028
        %v9414 = vunpack.c.l.b16 %v9029
        %v9415 = vunpack.c.h.b16 %v9029
        %v9416 = vunpack.c.l.b16 %v9030
        %v9417 = vunpack.c.h.b16 %v9030
        %v9418 = vunpack.c.l.b16 %v9031
        %v9419 = vunpack.c.h.b16 %v9031
        %v9420 = vunpack.c.l.b16 %v9032
        %v9421 = vunpack.c.h.b16 %v9032
        %v9422 = vunpack.c.l.b16 %v9033
        %v9423 = vunpack.c.h.b16 %v9033
        %v9424 = vunpack.c.l.b16 %v9034
        %v9425 = vunpack.c.h.b16 %v9034
        %v9426 = vunpack.c.l.b16 %v9035
        %v9427 = vunpack.c.h.b16 %v9035
        %v9428 = vunpack.c.l.b16 %v9036
        %v9429 = vunpack.c.h.b16 %v9036
        %v9430 = vunpack.c.l.b16 %v9037
        %v9431 = vunpack.c.h.b16 %v9037
        %v9432 = vunpack.c.l.b16 %v9038
        %v9433 = vunpack.c.h.b16 %v9038
        %v9434 = vunpack.c.l.b16 %v9039
        %v9435 = vunpack.c.h.b16 %v9039
        %v9436 = vunpack.c.l.b16 %v9040
        %v9437 = vunpack.c.h.b16 %v9040
        %v9438 = vunpack.c.l.b16 %v9041
        %v9439 = vunpack.c.h.b16 %v9041
        %v9440 = vunpack.c.l.b16 %v9042
        %v9441 = vunpack.c.h.b16 %v9042
        %v9442 = vunpack.c.l.b16 %v9043
        %v9443 = vunpack.c.h.b16 %v9043
        %v9444 = vunpack.c.l.b16 %v9044
        %v9445 = vunpack.c.h.b16 %v9044
        %v9446 = vunpack.c.l.b16 %v9045
        %v9447 = vunpack.c.h.b16 %v9045
        %v9448 = vunpack.c.l.b16 %v9046
        %v9449 = vunpack.c.h.b16 %v9046
        %v9450 = vunpack.c.l.b16 %v9047
        %v9451 = vunpack.c.h.b16 %v9047
        %v9452 = vunpack.c.l.b16 %v9048
        %v9453 = vunpack.c.h.b16 %v9048
        %v9454 = vunpack.c.l.b16 %v9049
        %v9455 = vunpack.c.h.b16 %v9049
        %v9456 = vpack.c.b16 %v9204, %v9200
        %v9457 = vpack.c.b16 %v9205, %v9201
        %v9458 = vpack.c.b16 %v9206, %v9202
        %v9459 = vpack.c.b16 %v9207, %v9203
        %v9460 = vpack.c.b16 %v9212, %v9208
        %v9461 = vpack.c.b16 %v9213, %v9209
        %v9462 = vpack.c.b16 %v9214, %v9210
        %v9463 = vpack.c.b16 %v9215, %v9211
        %v9464 = vpack.c.b16 %v9220, %v9216
        %v9465 = vpack.c.b16 %v9221, %v9217
        %v9466 = vpack.c.b16 %v9222, %v9218
        %v9467 = vpack.c.b16 %v9223, %v9219
        %v9468 = vpack.c.b16 %v9228, %v9224
        %v9469 = vpack.c.b16 %v9229, %v9225
        %v9470 = vpack.c.b16 %v9230, %v9226
        %v9471 = vpack.c.b16 %v9231, %v9227
        %v9472 = vpack.c.b16 %v9236, %v9232
        %v9473 = vpack.c.b16 %v9237, %v9233
        %v9474 = vpack.c.b16 %v9238, %v9234
        %v9475 = vpack.c.b16 %v9239, %v9235
        %v9476 = vpack.c.b16 %v9244, %v9240
        %v9477 = vpack.c.b16 %v9245, %v9241
        %v9478 = vpack.c.b16 %v9246, %v9242
        %v9479 = vpack.c.b16 %v9247, %v9243
        %v9480 = vpack.c.b16 %v9252, %v9248
        %v9481 = vpack.c.b16 %v9253, %v9249
        %v9482 = vpack.c.b16 %v9254, %v9250
        %v9483 = vpack.c.b16 %v9255, %v9251
        %v9484 = vpack.c.b16 %v9260, %v9256
        %v9485 = vpack.c.b16 %v9261, %v9257
        %v9486 = vpack.c.b16 %v9262, %v9258
        %v9487 = vpack.c.b16 %v9263, %v9259
        %v9488 = vpack.c.b16 %v9268, %v9264
        %v9489 = vpack.c.b16 %v9269, %v9265
        %v9490 = vpack.c.b16 %v9270, %v9266
        %v9491 = vpack.c.b16 %v9271, %v9267
        %v9492 = vpack.c.b16 %v9276, %v9272
        %v9493 = vpack.c.b16 %v9277, %v9273
        %v9494 = vpack.c.b16 %v9278, %v9274
        %v9495 = vpack.c.b16 %v9279, %v9275
        %v9496 = vpack.c.b16 %v9284, %v9280
        %v9497 = vpack.c.b16 %v9285, %v9281
        %v9498 = vpack.c.b16 %v9286, %v9282
        %v9499 = vpack.c.b16 %v9287, %v9283
        %v9500 = vpack.c.b16 %v9292, %v9288
        %v9501 = vpack.c.b16 %v9293, %v9289
        %v9502 = vpack.c.b16 %v9294, %v9290
        %v9503 = vpack.c.b16 %v9295, %v9291
        %v9504 = vpack.c.b16 %v9300, %v9296
        %v9505 = vpack.c.b16 %v9301, %v9297
        %v9506 = vpack.c.b16 %v9302, %v9298
        %v9507 = vpack.c.b16 %v9303, %v9299
        %v9508 = vpack.c.b16 %v9308, %v9304
        %v9509 = vpack.c.b16 %v9309, %v9305
        %v9510 = vpack.c.b16 %v9310, %v9306
        %v9511 = vpack.c.b16 %v9311, %v9307
        %v9512 = vpack.c.b16 %v9316, %v9312
        %v9513 = vpack.c.b16 %v9317, %v9313
        %v9514 = vpack.c.b16 %v9318, %v9314
        %v9515 = vpack.c.b16 %v9319, %v9315
        %v9516 = vpack.c.b16 %v9324, %v9320
        %v9517 = vpack.c.b16 %v9325, %v9321
        %v9518 = vpack.c.b16 %v9326, %v9322
        %v9519 = vpack.c.b16 %v9327, %v9323
        %v9520 = vpack.c.b16 %v9332, %v9328
        %v9521 = vpack.c.b16 %v9333, %v9329
        %v9522 = vpack.c.b16 %v9334, %v9330
        %v9523 = vpack.c.b16 %v9335, %v9331
        %v9524 = vpack.c.b16 %v9340, %v9336
        %v9525 = vpack.c.b16 %v9341, %v9337
        %v9526 = vpack.c.b16 %v9342, %v9338
        %v9527 = vpack.c.b16 %v9343, %v9339
        %v9528 = vpack.c.b16 %v9348, %v9344
        %v9529 = vpack.c.b16 %v9349, %v9345
        %v9530 = vpack.c.b16 %v9350, %v9346
        %v9531 = vpack.c.b16 %v9351, %v9347
        %v9532 = vpack.c.b16 %v9356, %v9352
        %v9533 = vpack.c.b16 %v9357, %v9353
        %v9534 = vpack.c.b16 %v9358, %v9354
        %v9535 = vpack.c.b16 %v9359, %v9355
        %v9536 = vpack.c.b16 %v9364, %v9360
        %v9537 = vpack.c.b16 %v9365, %v9361
        %v9538 = vpack.c.b16 %v9366, %v9362
        %v9539 = vpack.c.b16 %v9367, %v9363
        %v9540 = vpack.c.b16 %v9372, %v9368
        %v9541 = vpack.c.b16 %v9373, %v9369
        %v9542 = vpack.c.b16 %v9374, %v9370
        %v9543 = vpack.c.b16 %v9375, %v9371
        %v9544 = vpack.c.b16 %v9380, %v9376
        %v9545 = vpack.c.b16 %v9381, %v9377
        %v9546 = vpack.c.b16 %v9382, %v9378
        %v9547 = vpack.c.b16 %v9383, %v9379
        %v9548 = vpack.c.b16 %v9388, %v9384
        %v9549 = vpack.c.b16 %v9389, %v9385
        %v9550 = vpack.c.b16 %v9390, %v9386
        %v9551 = vpack.c.b16 %v9391, %v9387
        %v9552 = vpack.c.b16 %v9396, %v9392
        %v9553 = vpack.c.b16 %v9397, %v9393
        %v9554 = vpack.c.b16 %v9398, %v9394
        %v9555 = vpack.c.b16 %v9399, %v9395
        %v9556 = vpack.c.b16 %v9404, %v9400
        %v9557 = vpack.c.b16 %v9405, %v9401
        %v9558 = vpack.c.b16 %v9406, %v9402
        %v9559 = vpack.c.b16 %v9407, %v9403
        %v9560 = vpack.c.b16 %v9412, %v9408
        %v9561 = vpack.c.b16 %v9413, %v9409
        %v9562 = vpack.c.b16 %v9414, %v9410
        %v9563 = vpack.c.b16 %v9415, %v9411
        %v9564 = vpack.c.b16 %v9420, %v9416
        %v9565 = vpack.c.b16 %v9421, %v9417
        %v9566 = vpack.c.b16 %v9422, %v9418
        %v9567 = vpack.c.b16 %v9423, %v9419
        %v9568 = vpack.c.b16 %v9428, %v9424
        %v9569 = vpack.c.b16 %v9429, %v9425
        %v9570 = vpack.c.b16 %v9430, %v9426
        %v9571 = vpack.c.b16 %v9431, %v9427
        %v9572 = vpack.c.b16 %v9436, %v9432
        %v9573 = vpack.c.b16 %v9437, %v9433
        %v9574 = vpack.c.b16 %v9438, %v9434
        %v9575 = vpack.c.b16 %v9439, %v9435
        %v9576 = vpack.c.b16 %v9444, %v9440
        %v9577 = vpack.c.b16 %v9445, %v9441
        %v9578 = vpack.c.b16 %v9446, %v9442
        %v9579 = vpack.c.b16 %v9447, %v9443
        %v9580 = vpack.c.b16 %v9452, %v9448
        %v9581 = vpack.c.b16 %v9453, %v9449
        %v9582 = vpack.c.b16 %v9454, %v9450
        %v9583 = vpack.c.b16 %v9455, %v9451
        %9712 = vmatprep.subr.bf16.mxu0 %v9485
        %9713 = vmatpush1.bf16.msra.mxu0 %v9484
        %9714 = vmatprep.subr.bf16.mxu0 %v9481
        %9715 = vmatpush1.bf16.msra.mxu0 %v9480
        %9716 = vmatprep.subr.bf16.mxu0 %v9477
        %9717 = vmatpush1.bf16.msra.mxu0 %v9476
        %9718 = vmatprep.subr.bf16.mxu0 %v9473
        %9719 = vmatpush1.bf16.msra.mxu0 %v9472
        %9720 = vmatprep.subr.bf16.mxu0 %v9469
        %9721 = vmatpush1.bf16.msra.mxu0 %v9468
        %9722 = vmatprep.subr.bf16.mxu0 %v9465
        %9723 = vmatpush1.bf16.msra.mxu0 %v9464
        %9724 = vmatprep.subr.bf16.mxu0 %v9461
        %9725 = vmatpush1.bf16.msra.mxu0 %v9460
        %9726 = vmatprep.subr.bf16.mxu0 %v9457
        %9727 = vmatpush1.bf16.msra.mxu0 %v9456
        %9728 = vmatprep.subr.bf16.mxu0 %v9517
        %9729 = vmatpush2.bf16.msra.mxu0 %v9516
        %9730 = vmatprep.subr.bf16.mxu0 %v9513
        %9731 = vmatpush2.bf16.msra.mxu0 %v9512
        %9732 = vmatprep.subr.bf16.mxu0 %v9509
        %9733 = vmatpush2.bf16.msra.mxu0 %v9508
        %9734 = vmatprep.subr.bf16.mxu0 %v9505
        %9735 = vmatpush2.bf16.msra.mxu0 %v9504
        %9736 = vmatprep.subr.bf16.mxu0 %v9501
        %9737 = vmatpush2.bf16.msra.mxu0 %v9500
        %9738 = vmatprep.subr.bf16.mxu0 %v9497
        %9739 = vmatpush2.bf16.msra.mxu0 %v9496
        %9740 = vmatprep.subr.bf16.mxu0 %v9493
        %9741 = vmatpush2.bf16.msra.mxu0 %v9492
        %9742 = vmatprep.subr.bf16.mxu0 %v9489
        %9743 = vmatpush2.bf16.msra.mxu0 %v9488
        %9744 = vmatprep.mubr.bf16.mxu0 %v8919
        %9745 = vmatmul.mubr.bf16.gmra.mxu0 %v8918
        %v9746 = vpop.f32.mrf.mxu0
        %v9747 = vadd.f32 %v9055, %v9746
        %v9748 = vpop.f32.mrf.mxu0
        %v9749 = vadd.f32 %v9059, %v9748
        %v9750 = vpop.f32.mrf.mxu0
        %v9751 = vpop.f32.mrf.mxu0
        %9752 = vdwg.mxu0
        %9753 = vmatprep.subr.bf16.mxu0 %v9549
        %9754 = vmatpush1.bf16.msra.mxu0 %v9548
        %9755 = vmatprep.subr.bf16.mxu0 %v9545
        %9756 = vmatpush1.bf16.msra.mxu0 %v9544
        %9757 = vmatprep.subr.bf16.mxu0 %v9541
        %9758 = vmatpush1.bf16.msra.mxu0 %v9540
        %9759 = vmatprep.subr.bf16.mxu0 %v9537
        %9760 = vmatpush1.bf16.msra.mxu0 %v9536
        %9761 = vmatprep.subr.bf16.mxu0 %v9533
        %9762 = vmatpush1.bf16.msra.mxu0 %v9532
        %9763 = vmatprep.subr.bf16.mxu0 %v9529
        %9764 = vmatpush1.bf16.msra.mxu0 %v9528
        %9765 = vmatprep.subr.bf16.mxu0 %v9525
        %9766 = vmatpush1.bf16.msra.mxu0 %v9524
        %9767 = vmatprep.subr.bf16.mxu0 %v9521
        %9768 = vmatpush1.bf16.msra.mxu0 %v9520
        %9769 = vmatprep.subr.bf16.mxu0 %v9581
        %9770 = vmatpush2.bf16.msra.mxu0 %v9580
        %9771 = vmatprep.subr.bf16.mxu0 %v9577
        %9772 = vmatpush2.bf16.msra.mxu0 %v9576
        %9773 = vmatprep.subr.bf16.mxu0 %v9573
        %9774 = vmatpush2.bf16.msra.mxu0 %v9572
        %9775 = vmatprep.subr.bf16.mxu0 %v9569
        %9776 = vmatpush2.bf16.msra.mxu0 %v9568
        %9777 = vmatprep.subr.bf16.mxu0 %v9565
        %9778 = vmatpush2.bf16.msra.mxu0 %v9564
        %9779 = vmatprep.subr.bf16.mxu0 %v9561
        %9780 = vmatpush2.bf16.msra.mxu0 %v9560
        %9781 = vmatprep.subr.bf16.mxu0 %v9557
        %9782 = vmatpush2.bf16.msra.mxu0 %v9556
        %9783 = vmatprep.subr.bf16.mxu0 %v9553
        %9784 = vmatpush2.bf16.msra.mxu0 %v9552
        %9785 = vmatprep.mubr.bf16.mxu0 %v8921
        %9786 = vmatmul.mubr.bf16.gmra.mxu0 %v8920
        %v9787 = vpop.f32.mrf.mxu0
        %v9788 = vadd.f32 %v9747, %v9787
        %v9789 = vpop.f32.mrf.mxu0
        %v9790 = vadd.f32 %v9749, %v9789
        %v9791 = vpop.f32.mrf.mxu0
        %v9792 = vpop.f32.mrf.mxu0
        %9793 = vdwg.mxu0
        %9794 = vmatprep.subr.bf16.mxu0 %v9487
        %9795 = vmatpush1.bf16.msra.mxu0 %v9486
        %9796 = vmatprep.subr.bf16.mxu0 %v9483
        %9797 = vmatpush1.bf16.msra.mxu0 %v9482
        %9798 = vmatprep.subr.bf16.mxu0 %v9479
        %9799 = vmatpush1.bf16.msra.mxu0 %v9478
        %9800 = vmatprep.subr.bf16.mxu0 %v9475
        %9801 = vmatpush1.bf16.msra.mxu0 %v9474
        %9802 = vmatprep.subr.bf16.mxu0 %v9471
        %9803 = vmatpush1.bf16.msra.mxu0 %v9470
        %9804 = vmatprep.subr.bf16.mxu0 %v9467
        %9805 = vmatpush1.bf16.msra.mxu0 %v9466
        %9806 = vmatprep.subr.bf16.mxu0 %v9463
        %9807 = vmatpush1.bf16.msra.mxu0 %v9462
        %9808 = vmatprep.subr.bf16.mxu0 %v9459
        %9809 = vmatpush1.bf16.msra.mxu0 %v9458
        %9810 = vmatprep.subr.bf16.mxu0 %v9519
        %9811 = vmatpush2.bf16.msra.mxu0 %v9518
        %9812 = vmatprep.subr.bf16.mxu0 %v9515
        %9813 = vmatpush2.bf16.msra.mxu0 %v9514
        %9814 = vmatprep.subr.bf16.mxu0 %v9511
        %9815 = vmatpush2.bf16.msra.mxu0 %v9510
        %9816 = vmatprep.subr.bf16.mxu0 %v9507
        %9817 = vmatpush2.bf16.msra.mxu0 %v9506
        %9818 = vmatprep.subr.bf16.mxu0 %v9503
        %9819 = vmatpush2.bf16.msra.mxu0 %v9502
        %9820 = vmatprep.subr.bf16.mxu0 %v9499
        %9821 = vmatpush2.bf16.msra.mxu0 %v9498
        %9822 = vmatprep.subr.bf16.mxu0 %v9495
        %9823 = vmatpush2.bf16.msra.mxu0 %v9494
        %9824 = vmatprep.subr.bf16.mxu0 %v9491
        %9825 = vmatpush2.bf16.msra.mxu0 %v9490
        %9826 = vmatprep.mubr.bf16.mxu0 %v8919
        %9827 = vmatmul.mubr.bf16.gmra.mxu0 %v8918
        %v9828 = vpop.f32.mrf.mxu0
        %v9829 = vadd.f32 %v9063, %v9828
        %v9830 = vpop.f32.mrf.mxu0
        %v9831 = vadd.f32 %v9067, %v9830
        %v9832 = vpop.f32.mrf.mxu0
        %v9833 = vpop.f32.mrf.mxu0
        %9834 = vdwg.mxu0
        %9835 = vmatprep.subr.bf16.mxu0 %v9551
        %9836 = vmatpush1.bf16.msra.mxu0 %v9550
        %9837 = vmatprep.subr.bf16.mxu0 %v9547
        %9838 = vmatpush1.bf16.msra.mxu0 %v9546
        %9839 = vmatprep.subr.bf16.mxu0 %v9543
        %9840 = vmatpush1.bf16.msra.mxu0 %v9542
        %9841 = vmatprep.subr.bf16.mxu0 %v9539
        %9842 = vmatpush1.bf16.msra.mxu0 %v9538
        %9843 = vmatprep.subr.bf16.mxu0 %v9535
        %9844 = vmatpush1.bf16.msra.mxu0 %v9534
        %9845 = vmatprep.subr.bf16.mxu0 %v9531
        %9846 = vmatpush1.bf16.msra.mxu0 %v9530
        %9847 = vmatprep.subr.bf16.mxu0 %v9527
        %9848 = vmatpush1.bf16.msra.mxu0 %v9526
        %9849 = vmatprep.subr.bf16.mxu0 %v9523
        %9850 = vmatpush1.bf16.msra.mxu0 %v9522
        %9851 = vmatprep.subr.bf16.mxu0 %v9583
        %9852 = vmatpush2.bf16.msra.mxu0 %v9582
        %9853 = vmatprep.subr.bf16.mxu0 %v9579
        %9854 = vmatpush2.bf16.msra.mxu0 %v9578
        %9855 = vmatprep.subr.bf16.mxu0 %v9575
        %9856 = vmatpush2.bf16.msra.mxu0 %v9574
        %9857 = vmatprep.subr.bf16.mxu0 %v9571
        %9858 = vmatpush2.bf16.msra.mxu0 %v9570
        %9859 = vmatprep.subr.bf16.mxu0 %v9567
        %9860 = vmatpush2.bf16.msra.mxu0 %v9566
        %9861 = vmatprep.subr.bf16.mxu0 %v9563
        %9862 = vmatpush2.bf16.msra.mxu0 %v9562
        %9863 = vmatprep.subr.bf16.mxu0 %v9559
        %9864 = vmatpush2.bf16.msra.mxu0 %v9558
        %9865 = vmatprep.subr.bf16.mxu0 %v9555
        %9866 = vmatpush2.bf16.msra.mxu0 %v9554
        %9867 = vmatprep.mubr.bf16.mxu0 %v8921
        %9868 = vmatmul.mubr.bf16.gmra.mxu0 %v8920
        %v9869 = vpop.f32.mrf.mxu0
        %v9870 = vadd.f32 %v9829, %v9869
        %v9871 = vpop.f32.mrf.mxu0
        %v9872 = vadd.f32 %v9831, %v9871
        %v9873 = vpop.f32.mrf.mxu0
        %v9874 = vpop.f32.mrf.mxu0
        %9875 = vdwg.mxu0
        %s9876 = sld [smem:[#allocation7 + %s8512]]
        %s9877 = smax.f32 %s9876, 0.0
        %v9878 = vld [vmem:[%s13] ss:$4 sm:$0xf]
        %v9879 = vstv %s9877
        %v9880 = vmul.f32 %v9879, %v9878
        %v9882 = vlaneseq
        %v9883 = vshrl.u32 %v9882, 7
        %v9884 = vsub.s32 0, %v9883
        %v9885 = vrot.slane %v9880, %v9884
        %v9886 = vlaneseq
        %v9887 = vshrl.u32 %v9886, 7
        %v9888 = vsub.s32 1, %v9887
        %v9889 = vrot.slane %v9880, %v9888
        %v9890 = vlaneseq
        %v9891 = vshrl.u32 %v9890, 7
        %v9892 = vsub.s32 2, %v9891
        %v9893 = vrot.slane %v9880, %v9892
        %v9894 = vlaneseq
        %v9895 = vshrl.u32 %v9894, 7
        %v9896 = vsub.s32 3, %v9895
        %v9897 = vrot.slane %v9880, %v9896
        %v9902 = vadd.f32 %v9788, %v9885
        %v9903 = vadd.f32 %v9790, %v9889
        %v9904 = vadd.f32 %v9870, %v9893
        %v9905 = vadd.f32 %v9872, %v9897
        %s9906 = sld [smem:[#allocation7 + %s8514]]
        %s9907 = smax.f32 %s9906, 0.0
        %s9908 = scalar_lea.vmem %s13, 1
        %v9909 = vld [vmem:[%s9908] ss:$4 sm:$0xf]
        %v9910 = vstv %s9907
        %v9911 = vmul.f32 %v9910, %v9909
        %v9913 = vlaneseq
        %v9914 = vshrl.u32 %v9913, 7
        %v9915 = vsub.s32 0, %v9914
        %v9916 = vrot.slane %v9911, %v9915
        %v9917 = vlaneseq
        %v9918 = vshrl.u32 %v9917, 7
        %v9919 = vsub.s32 1, %v9918
        %v9920 = vrot.slane %v9911, %v9919
        %v9921 = vlaneseq
        %v9922 = vshrl.u32 %v9921, 7
        %v9923 = vsub.s32 2, %v9922
        %v9924 = vrot.slane %v9911, %v9923
        %v9925 = vlaneseq
        %v9926 = vshrl.u32 %v9925, 7
        %v9927 = vsub.s32 3, %v9926
        %v9928 = vrot.slane %v9911, %v9927
        %v9933 = vadd.f32 %v9902, %v9916
        %v9934 = vadd.f32 %v9903, %v9920
        %v9935 = vadd.f32 %v9904, %v9924
        %v9936 = vadd.f32 %v9905, %v9928
        %s9937 = sld [smem:[#allocation7 + %s8516]]
        %s9938 = smax.f32 %s9937, 0.0
        %s9939 = scalar_lea.vmem %s13, 2
        %v9940 = vld [vmem:[%s9939] ss:$4 sm:$0xf]
        %v9941 = vstv %s9938
        %v9942 = vmul.f32 %v9941, %v9940
        %v9944 = vlaneseq
        %v9945 = vshrl.u32 %v9944, 7
        %v9946 = vsub.s32 0, %v9945
        %v9947 = vrot.slane %v9942, %v9946
        %v9948 = vlaneseq
        %v9949 = vshrl.u32 %v9948, 7
        %v9950 = vsub.s32 1, %v9949
        %v9951 = vrot.slane %v9942, %v9950
        %v9952 = vlaneseq
        %v9953 = vshrl.u32 %v9952, 7
        %v9954 = vsub.s32 2, %v9953
        %v9955 = vrot.slane %v9942, %v9954
        %v9956 = vlaneseq
        %v9957 = vshrl.u32 %v9956, 7
        %v9958 = vsub.s32 3, %v9957
        %v9959 = vrot.slane %v9942, %v9958
        %v9964 = vadd.f32 %v9933, %v9947
        %v9965 = vadd.f32 %v9934, %v9951
        %v9966 = vadd.f32 %v9935, %v9955
        %v9967 = vadd.f32 %v9936, %v9959
        %v9968 = vmax.f32 %v9964, 0.0
        %v9969 = vmax.f32 %v9965, 0.0
        %v9970 = vmax.f32 %v9966, 0.0
        %v9971 = vmax.f32 %v9967, 0.0
        %v9972 = vpack.c.bf16 %v9968, %v9968
        %v9973 = vpack.c.bf16 %v9969, %v9969
        %v9974 = vpack.c.bf16 %v9970, %v9970
        %v9975 = vpack.c.bf16 %v9971, %v9971
        %v9976 = vld [vmem:[%s15] sm:$0xf]
        %v9977 = vld [vmem:[%s15 + $0x4] sm:$0xf]
        %v9978 = vld [vmem:[%s15 + $0x8] sm:$0xf]
        %v9979 = vld [vmem:[%s15 + $0xc] sm:$0xf]
        %v9980 = vld [vmem:[%s15 + $0x10] sm:$0xf]
        %v9981 = vld [vmem:[%s15 + $0x14] sm:$0xf]
        %v9982 = vld [vmem:[%s15 + $0x18] sm:$0xf]
        %v9983 = vld [vmem:[%s15 + $0x1c] sm:$0xf]
        %v9984 = vld [vmem:[%s15 + $0x20] sm:$0xf]
        %v9985 = vld [vmem:[%s15 + $0x24] sm:$0xf]
        %v9986 = vld [vmem:[%s15 + $0x28] sm:$0xf]
        %v9987 = vld [vmem:[%s15 + $0x2c] sm:$0xf]
        %v9988 = vld [vmem:[%s15 + $0x30] sm:$0xf]
        %v9989 = vld [vmem:[%s15 + $0x34] sm:$0xf]
        %v9990 = vld [vmem:[%s15 + $0x38] sm:$0xf]
        %v9991 = vld [vmem:[%s15 + $0x3c] sm:$0xf]
        %v9992 = vld [vmem:[%s15 + $0x40] sm:$0xf]
        %v9993 = vld [vmem:[%s15 + $0x44] sm:$0xf]
        %v9994 = vld [vmem:[%s15 + $0x48] sm:$0xf]
        %v9995 = vld [vmem:[%s15 + $0x4c] sm:$0xf]
        %v9996 = vld [vmem:[%s15 + $0x50] sm:$0xf]
        %v9997 = vld [vmem:[%s15 + $0x54] sm:$0xf]
        %v9998 = vld [vmem:[%s15 + $0x58] sm:$0xf]
        %v9999 = vld [vmem:[%s15 + $0x5c] sm:$0xf]
        %v10000 = vld [vmem:[%s15 + $0x60] sm:$0xf]
        %v10001 = vld [vmem:[%s15 + $0x64] sm:$0xf]
        %v10002 = vld [vmem:[%s15 + $0x68] sm:$0xf]
        %v10003 = vld [vmem:[%s15 + $0x6c] sm:$0xf]
        %v10004 = vld [vmem:[%s15 + $0x70] sm:$0xf]
        %v10005 = vld [vmem:[%s15 + $0x74] sm:$0xf]
        %v10006 = vld [vmem:[%s15 + $0x78] sm:$0xf]
        %v10007 = vld [vmem:[%s15 + $0x7c] sm:$0xf]
        %v10008 = vld [vmem:[%s15 + $0x80] sm:$0xf]
        %v10009 = vld [vmem:[%s15 + $0x84] sm:$0xf]
        %v10010 = vld [vmem:[%s15 + $0x88] sm:$0xf]
        %v10011 = vld [vmem:[%s15 + $0x8c] sm:$0xf]
        %v10012 = vld [vmem:[%s15 + $0x90] sm:$0xf]
        %v10013 = vld [vmem:[%s15 + $0x94] sm:$0xf]
        %v10014 = vld [vmem:[%s15 + $0x98] sm:$0xf]
        %v10015 = vld [vmem:[%s15 + $0x9c] sm:$0xf]
        %v10016 = vld [vmem:[%s15 + $0xa0] sm:$0xf]
        %v10017 = vld [vmem:[%s15 + $0xa4] sm:$0xf]
        %v10018 = vld [vmem:[%s15 + $0xa8] sm:$0xf]
        %v10019 = vld [vmem:[%s15 + $0xac] sm:$0xf]
        %v10020 = vld [vmem:[%s15 + $0xb0] sm:$0xf]
        %v10021 = vld [vmem:[%s15 + $0xb4] sm:$0xf]
        %v10022 = vld [vmem:[%s15 + $0xb8] sm:$0xf]
        %v10023 = vld [vmem:[%s15 + $0xbc] sm:$0xf]
        %v10024 = vld [vmem:[%s15 + $0xc0] sm:$0xf]
        %v10025 = vld [vmem:[%s15 + $0xc4] sm:$0xf]
        %v10026 = vld [vmem:[%s15 + $0xc8] sm:$0xf]
        %v10027 = vld [vmem:[%s15 + $0xcc] sm:$0xf]
        %v10028 = vld [vmem:[%s15 + $0xd0] sm:$0xf]
        %v10029 = vld [vmem:[%s15 + $0xd4] sm:$0xf]
        %v10030 = vld [vmem:[%s15 + $0xd8] sm:$0xf]
        %v10031 = vld [vmem:[%s15 + $0xdc] sm:$0xf]
        %v10032 = vld [vmem:[%s15 + $0xe0] sm:$0xf]
        %v10033 = vld [vmem:[%s15 + $0xe4] sm:$0xf]
        %v10034 = vld [vmem:[%s15 + $0xe8] sm:$0xf]
        %v10035 = vld [vmem:[%s15 + $0xec] sm:$0xf]
        %v10036 = vld [vmem:[%s15 + $0xf0] sm:$0xf]
        %v10037 = vld [vmem:[%s15 + $0xf4] sm:$0xf]
        %v10038 = vld [vmem:[%s15 + $0xf8] sm:$0xf]
        %v10039 = vld [vmem:[%s15 + $0xfc] sm:$0xf]
        %v10040 = vld [vmem:[#allocation17] sm:$0x1]
        %v10042 = vlaneseq
        %v10043 = vshrl.u32 %v10042, 7
        %v10044 = vsub.s32 0, %v10043
        %v10045 = vrot.slane %v10040, %v10044
        %v10111 = vunpack.c.l.b16 %v9976
        %v10112 = vunpack.c.l.b16 %v9977
        %v10113 = vunpack.c.l.b16 %v9978
        %v10114 = vunpack.c.l.b16 %v9979
        %v10115 = vunpack.c.l.b16 %v9980
        %v10116 = vunpack.c.l.b16 %v9981
        %v10117 = vunpack.c.l.b16 %v9982
        %v10118 = vunpack.c.l.b16 %v9983
        %v10119 = vunpack.c.l.b16 %v9984
        %v10120 = vunpack.c.l.b16 %v9985
        %v10121 = vunpack.c.l.b16 %v9986
        %v10122 = vunpack.c.l.b16 %v9987
        %v10123 = vunpack.c.l.b16 %v9988
        %v10124 = vunpack.c.l.b16 %v9989
        %v10125 = vunpack.c.l.b16 %v9990
        %v10126 = vunpack.c.l.b16 %v9991
        %v10127 = vunpack.c.l.b16 %v9992
        %v10128 = vunpack.c.l.b16 %v9993
        %v10129 = vunpack.c.l.b16 %v9994
        %v10130 = vunpack.c.l.b16 %v9995
        %v10131 = vunpack.c.l.b16 %v9996
        %v10132 = vunpack.c.l.b16 %v9997
        %v10133 = vunpack.c.l.b16 %v9998
        %v10134 = vunpack.c.l.b16 %v9999
        %v10135 = vunpack.c.l.b16 %v10000
        %v10136 = vunpack.c.l.b16 %v10001
        %v10137 = vunpack.c.l.b16 %v10002
        %v10138 = vunpack.c.l.b16 %v10003
        %v10139 = vunpack.c.l.b16 %v10004
        %v10140 = vunpack.c.l.b16 %v10005
        %v10141 = vunpack.c.l.b16 %v10006
        %v10142 = vunpack.c.l.b16 %v10007
        %v10143 = vunpack.c.l.b16 %v10008
        %v10144 = vunpack.c.l.b16 %v10009
        %v10145 = vunpack.c.l.b16 %v10010
        %v10146 = vunpack.c.l.b16 %v10011
        %v10147 = vunpack.c.l.b16 %v10012
        %v10148 = vunpack.c.l.b16 %v10013
        %v10149 = vunpack.c.l.b16 %v10014
        %v10150 = vunpack.c.l.b16 %v10015
        %v10151 = vunpack.c.l.b16 %v10016
        %v10152 = vunpack.c.l.b16 %v10017
        %v10153 = vunpack.c.l.b16 %v10018
        %v10154 = vunpack.c.l.b16 %v10019
        %v10155 = vunpack.c.l.b16 %v10020
        %v10156 = vunpack.c.l.b16 %v10021
        %v10157 = vunpack.c.l.b16 %v10022
        %v10158 = vunpack.c.l.b16 %v10023
        %v10159 = vunpack.c.l.b16 %v10024
        %v10160 = vunpack.c.l.b16 %v10025
        %v10161 = vunpack.c.l.b16 %v10026
        %v10162 = vunpack.c.l.b16 %v10027
        %v10163 = vunpack.c.l.b16 %v10028
        %v10164 = vunpack.c.l.b16 %v10029
        %v10165 = vunpack.c.l.b16 %v10030
        %v10166 = vunpack.c.l.b16 %v10031
        %v10167 = vunpack.c.l.b16 %v10032
        %v10168 = vunpack.c.l.b16 %v10033
        %v10169 = vunpack.c.l.b16 %v10034
        %v10170 = vunpack.c.l.b16 %v10035
        %v10171 = vunpack.c.l.b16 %v10036
        %v10172 = vunpack.c.l.b16 %v10037
        %v10173 = vunpack.c.l.b16 %v10038
        %v10174 = vunpack.c.l.b16 %v10039
        %v10175 = vpack.c.b16 %v10112, %v10111
        %v10176 = vpack.c.b16 %v10114, %v10113
        %v10177 = vpack.c.b16 %v10116, %v10115
        %v10178 = vpack.c.b16 %v10118, %v10117
        %v10179 = vpack.c.b16 %v10120, %v10119
        %v10180 = vpack.c.b16 %v10122, %v10121
        %v10181 = vpack.c.b16 %v10124, %v10123
        %v10182 = vpack.c.b16 %v10126, %v10125
        %v10183 = vpack.c.b16 %v10128, %v10127
        %v10184 = vpack.c.b16 %v10130, %v10129
        %v10185 = vpack.c.b16 %v10132, %v10131
        %v10186 = vpack.c.b16 %v10134, %v10133
        %v10187 = vpack.c.b16 %v10136, %v10135
        %v10188 = vpack.c.b16 %v10138, %v10137
        %v10189 = vpack.c.b16 %v10140, %v10139
        %v10190 = vpack.c.b16 %v10142, %v10141
        %v10191 = vpack.c.b16 %v10144, %v10143
        %v10192 = vpack.c.b16 %v10146, %v10145
        %v10193 = vpack.c.b16 %v10148, %v10147
        %v10194 = vpack.c.b16 %v10150, %v10149
        %v10195 = vpack.c.b16 %v10152, %v10151
        %v10196 = vpack.c.b16 %v10154, %v10153
        %v10197 = vpack.c.b16 %v10156, %v10155
        %v10198 = vpack.c.b16 %v10158, %v10157
        %v10199 = vpack.c.b16 %v10160, %v10159
        %v10200 = vpack.c.b16 %v10162, %v10161
        %v10201 = vpack.c.b16 %v10164, %v10163
        %v10202 = vpack.c.b16 %v10166, %v10165
        %v10203 = vpack.c.b16 %v10168, %v10167
        %v10204 = vpack.c.b16 %v10170, %v10169
        %v10205 = vpack.c.b16 %v10172, %v10171
        %v10206 = vpack.c.b16 %v10174, %v10173
        %10239 = vmatprep.subr.bf16.mxu0 0
        %10240 = vmatpush1.bf16.msra.mxu0 %v10182
        %10241 = vmatprep.subr.bf16.mxu0 0
        %10242 = vmatpush1.bf16.msra.mxu0 %v10181
        %10243 = vmatprep.subr.bf16.mxu0 0
        %10244 = vmatpush1.bf16.msra.mxu0 %v10180
        %10245 = vmatprep.subr.bf16.mxu0 0
        %10246 = vmatpush1.bf16.msra.mxu0 %v10179
        %10247 = vmatprep.subr.bf16.mxu0 0
        %10248 = vmatpush1.bf16.msra.mxu0 %v10178
        %10249 = vmatprep.subr.bf16.mxu0 0
        %10250 = vmatpush1.bf16.msra.mxu0 %v10177
        %10251 = vmatprep.subr.bf16.mxu0 0
        %10252 = vmatpush1.bf16.msra.mxu0 %v10176
        %10253 = vmatprep.subr.bf16.mxu0 0
        %10254 = vmatpush1.bf16.msra.mxu0 %v10175
        %10255 = vmatprep.subr.bf16.mxu0 0
        %10256 = vmatpush2.bf16.msra.mxu0 %v10190
        %10257 = vmatprep.subr.bf16.mxu0 0
        %10258 = vmatpush2.bf16.msra.mxu0 %v10189
        %10259 = vmatprep.subr.bf16.mxu0 0
        %10260 = vmatpush2.bf16.msra.mxu0 %v10188
        %10261 = vmatprep.subr.bf16.mxu0 0
        %10262 = vmatpush2.bf16.msra.mxu0 %v10187
        %10263 = vmatprep.subr.bf16.mxu0 0
        %10264 = vmatpush2.bf16.msra.mxu0 %v10186
        %10265 = vmatprep.subr.bf16.mxu0 0
        %10266 = vmatpush2.bf16.msra.mxu0 %v10185
        %10267 = vmatprep.subr.bf16.mxu0 0
        %10268 = vmatpush2.bf16.msra.mxu0 %v10184
        %10269 = vmatprep.subr.bf16.mxu0 0
        %10270 = vmatpush2.bf16.msra.mxu0 %v10183
        %10271 = vmatprep.mubr.bf16.mxu0 %v9973
        %10272 = vmatmul.mubr.bf16.gmra.mxu0 %v9972
        %v10273 = vpop.f32.mrf.mxu0
        %v10274 = vadd.f32 %v10045, %v10273
        %v10275 = vpop.f32.mrf.mxu0
        %v10276 = vpop.f32.mrf.mxu0
        %v10277 = vpop.f32.mrf.mxu0
        %10278 = vdwg.mxu0
        %10279 = vmatprep.subr.bf16.mxu0 0
        %10280 = vmatpush1.bf16.msra.mxu0 %v10198
        %10281 = vmatprep.subr.bf16.mxu0 0
        %10282 = vmatpush1.bf16.msra.mxu0 %v10197
        %10283 = vmatprep.subr.bf16.mxu0 0
        %10284 = vmatpush1.bf16.msra.mxu0 %v10196
        %10285 = vmatprep.subr.bf16.mxu0 0
        %10286 = vmatpush1.bf16.msra.mxu0 %v10195
        %10287 = vmatprep.subr.bf16.mxu0 0
        %10288 = vmatpush1.bf16.msra.mxu0 %v10194
        %10289 = vmatprep.subr.bf16.mxu0 0
        %10290 = vmatpush1.bf16.msra.mxu0 %v10193
        %10291 = vmatprep.subr.bf16.mxu0 0
        %10292 = vmatpush1.bf16.msra.mxu0 %v10192
        %10293 = vmatprep.subr.bf16.mxu0 0
        %10294 = vmatpush1.bf16.msra.mxu0 %v10191
        %10295 = vmatprep.subr.bf16.mxu0 0
        %10296 = vmatpush2.bf16.msra.mxu0 %v10206
        %10297 = vmatprep.subr.bf16.mxu0 0
        %10298 = vmatpush2.bf16.msra.mxu0 %v10205
        %10299 = vmatprep.subr.bf16.mxu0 0
        %10300 = vmatpush2.bf16.msra.mxu0 %v10204
        %10301 = vmatprep.subr.bf16.mxu0 0
        %10302 = vmatpush2.bf16.msra.mxu0 %v10203
        %10303 = vmatprep.subr.bf16.mxu0 0
        %10304 = vmatpush2.bf16.msra.mxu0 %v10202
        %10305 = vmatprep.subr.bf16.mxu0 0
        %10306 = vmatpush2.bf16.msra.mxu0 %v10201
        %10307 = vmatprep.subr.bf16.mxu0 0
        %10308 = vmatpush2.bf16.msra.mxu0 %v10200
        %10309 = vmatprep.subr.bf16.mxu0 0
        %10310 = vmatpush2.bf16.msra.mxu0 %v10199
        %10311 = vmatprep.mubr.bf16.mxu0 %v9975
        %10312 = vmatmul.mubr.bf16.gmra.mxu0 %v9974
        %v10313 = vpop.f32.mrf.mxu0
        %v10314 = vadd.f32 %v10274, %v10313
        %v10315 = vpop.f32.mrf.mxu0
        %v10316 = vpop.f32.mrf.mxu0
        %v10317 = vpop.f32.mrf.mxu0
        %10318 = vdwg.mxu0
        %v10319 = vmax.f32 %v10314, 0.0
        %v10320 = vpack.c.bf16 %v10319, %v10319
        %v10321 = vld [vmem:[%s17] sm:$0xf]
        %v10322 = vld [vmem:[%s17 + $0x4] sm:$0xf]
        %v10323 = vld [vmem:[%s17 + $0x8] sm:$0xf]
        %v10324 = vld [vmem:[%s17 + $0xc] sm:$0xf]
        %v10325 = vld [vmem:[%s17 + $0x10] sm:$0xf]
        %v10326 = vld [vmem:[%s17 + $0x14] sm:$0xf]
        %v10327 = vld [vmem:[%s17 + $0x18] sm:$0xf]
        %v10328 = vld [vmem:[#allocation18] sm:$0x1]
        %v10330 = vlaneseq
        %v10331 = vshrl.u32 %v10330, 7
        %v10332 = vsub.s32 0, %v10331
        %v10333 = vrot.slane %v10328, %v10332
        %v10342 = vunpack.c.l.b16 %v10321
        %v10343 = vunpack.c.l.b16 %v10322
        %v10344 = vunpack.c.l.b16 %v10323
        %v10345 = vunpack.c.l.b16 %v10324
        %v10346 = vunpack.c.l.b16 %v10325
        %v10347 = vunpack.c.l.b16 %v10326
        %v10348 = vunpack.c.l.b16 %v10327
        %v10349 = vpack.c.b16 %v10343, %v10342
        %v10350 = vpack.c.b16 %v10345, %v10344
        %v10351 = vpack.c.b16 %v10347, %v10346
        %v10352 = vpack.c.b16 %v10348, %v10348
        %vm10356 = vcmask 457728
        %v10358 = vsel %vm10356, %v10320, 0
        %vm10360 = vcmask 1043456
        %v10362 = vsel %vm10360, %v10352, 0
        %10364 = vmatprep.subr.bf16.mxu0 0
        %10365 = vmatpush1.bf16.msra.mxu0 0
        %10366 = vmatprep.subr.bf16.mxu0 0
        %10367 = vmatpush1.bf16.msra.mxu0 0
        %10368 = vmatprep.subr.bf16.mxu0 0
        %10369 = vmatpush1.bf16.msra.mxu0 0
        %10370 = vmatprep.subr.bf16.mxu0 0
        %10371 = vmatpush1.bf16.msra.mxu0 0
        %10372 = vmatprep.subr.bf16.mxu0 0
        %10373 = vmatpush1.bf16.msra.mxu0 %v10362
        %10374 = vmatprep.subr.bf16.mxu0 0
        %10375 = vmatpush1.bf16.msra.mxu0 %v10351
        %10376 = vmatprep.subr.bf16.mxu0 0
        %10377 = vmatpush1.bf16.msra.mxu0 %v10350
        %10378 = vmatprep.subr.bf16.mxu0 0
        %10379 = vmatpush1.bf16.msra.mxu0 %v10349
        %10380 = vmatprep.subr.bf16.mxu0 0
        %10381 = vmatpush2.bf16.msra.mxu0 0
        %10382 = vmatprep.subr.bf16.mxu0 0
        %10383 = vmatpush2.bf16.msra.mxu0 0
        %10384 = vmatprep.subr.bf16.mxu0 0
        %10385 = vmatpush2.bf16.msra.mxu0 0
        %10386 = vmatprep.subr.bf16.mxu0 0
        %10387 = vmatpush2.bf16.msra.mxu0 0
        %10388 = vmatprep.subr.bf16.mxu0 0
        %10389 = vmatpush2.bf16.msra.mxu0 0
        %10390 = vmatprep.subr.bf16.mxu0 0
        %10391 = vmatpush2.bf16.msra.mxu0 0
        %10392 = vmatprep.subr.bf16.mxu0 0
        %10393 = vmatpush2.bf16.msra.mxu0 0
        %10394 = vmatprep.subr.bf16.mxu0 0
        %10395 = vmatpush2.bf16.msra.mxu0 0
        %10396 = vmatprep.mubr.bf16.mxu0 0
        %10397 = vmatmul.mubr.bf16.gmra.mxu0 %v10358
        %v10398 = vpop.f32.mrf.mxu0
        %v10399 = vadd.f32 %v10333, %v10398
        %v10400 = vpop.f32.mrf.mxu0
        %v10401 = vpop.f32.mrf.mxu0
        %v10402 = vpop.f32.mrf.mxu0
        %10403 = vdwg.mxu0
        %vm10404 = vcmask 8192
        %10405 = vst.msk [vmem:[%s827] sm:$0x1] %vm10404, %v10399
        %s10406 = sand.u32 %s473, 1
        %s10407 = scalar_lea.sflag [#allocation4], %s10406
        %s10408 = sand.u32 %s473, 1
        %s10409 = scalar_lea.vmem [#allocation20], %s10408
        %s10410 = sand.u32 %s46, 1
        %s10411 = scalar_lea.sflag [#allocation22], %s10410
        %s10412 = sand.u32 %s499, 1
        %s10413 = smul.addr %s10412, 16
        %s10414 = scalar_lea.vmem [#allocation21], %s10413
        %s10415 = sand.u32 %s46, 1
        %s10416 = scalar_lea.sflag [#allocation22], %s10415
        %s10417 = sand.u32 %s525, 1
        %s10418 = smul.addr %s10417, 16
        %s10419 = scalar_lea.vmem [#allocation23], %s10418
        // Predicated region
        $region137: #{infosurgeon_forward.1} parent=95 // pred_check
          %p10420 = pneg %p483
        $region138: #{infosurgeon_forward.1} parent=95 // pred_check_branch
          %10422 = sbr.rel (%p10420) target = $region140
        $region139: #{infosurgeon_forward.1} parent=95 // pred_region
          %s10424 = ssub.s32 16, 16
          %10425 = vsyncadd %s10407, %s10424
          %s10426 = smul.addr %s46, 16
          %s10427 = scalar_lea.hbm %s19, %s10426
          %s10429 = sshll.u32 %s10409, 4
          %s10430 = int_to_ptr.vmem [resolvable:$true] %s10429
          %10432 = dma.vmem_to_hbm [thread:$0]  %s10430, 16, %s10427, %s10407
        $region140: #{infosurgeon_forward.1} parent=95 // pred_fallthru
          _
        // Predicated region
        $region141: #{infosurgeon_forward.1} parent=95 // pred_check
          %p10433 = pneg %p509
        $region142: #{infosurgeon_forward.1} parent=95 // pred_check_branch
          %10435 = sbr.rel (%p10433) target = $region144
        $region143: #{infosurgeon_forward.1} parent=95 // pred_region
          %s10437 = ssub.s32 256, 256
          %10438 = vsyncadd %s10411, %s10437
          %s10439 = smul.addr %s46, 4
          %s10440 = smul.addr %s10439, 64
          %s10441 = scalar_lea.hbm %s20, %s10440
          %s10443 = sshll.u32 %s10414, 4
          %s10444 = int_to_ptr.vmem [resolvable:$true] %s10443
          %10446 = dma.vmem_to_hbm [thread:$0]  %s10444, 256, %s10441, %s10411
        $region144: #{infosurgeon_forward.1} parent=95 // pred_fallthru
          _
        // Predicated region
        $region145: #{infosurgeon_forward.1} parent=95 // pred_check
          %p10447 = pneg %p535
        $region146: #{infosurgeon_forward.1} parent=95 // pred_check_branch
          %10449 = sbr.rel (%p10447) target = $region148
        $region147: #{infosurgeon_forward.1} parent=95 // pred_region
          %s10451 = ssub.s32 256, 256
          %10452 = vsyncadd %s10416, %s10451
          %s10453 = smul.addr %s46, 4
          %s10454 = smul.addr %s10453, 64
          %s10455 = scalar_lea.hbm %s21, %s10454
          %s10457 = sshll.u32 %s10419, 4
          %s10458 = int_to_ptr.vmem [resolvable:$true] %s10457
          %10460 = dma.vmem_to_hbm [thread:$0]  %s10458, 256, %s10455, %s10416
        $region148: #{infosurgeon_forward.1} parent=95 // pred_fallthru
          _
      $region96: #{infosurgeon_forward.1} parent=5 // pred_fallthru
        _
      %p10461 = scmp.le.s32.totalorder 2, %s41
      // Predicated region
      $region149: #{infosurgeon_forward.1} parent=5 // pred_check
        %p10462 = pneg %p10461
      $region150: #{infosurgeon_forward.1} parent=5 // pred_check_branch
        %10464 = sbr.rel (%p10462) target = $region152
      $region151: #{infosurgeon_forward.1} parent=5 // pred_region
        %s10465 = ssub.s32 %s41, 2
        // Predicated region
        $region153: #{infosurgeon_forward.1} parent=151 // pred_check
          %p10466 = pneg %p489
        $region154: #{infosurgeon_forward.1} parent=151 // pred_check_branch
          %10468 = sbr.rel (%p10466) target = $region156
        $region155: #{infosurgeon_forward.1} parent=151 // pred_region
          %s10469 = sand.u32 %s474, 1
          %s10470 = scalar_lea.sflag [#allocation4], %s10469
          %s10471 = sand.u32 %s474, 1
          %s10472 = scalar_lea.vmem [#allocation20], %s10471
          %10473 = dma.done %s10470, 16
        $region156: #{infosurgeon_forward.1} parent=151 // pred_fallthru
          _
        // Predicated region
        $region157: #{infosurgeon_forward.1} parent=151 // pred_check
          %p10474 = pneg %p515
        $region158: #{infosurgeon_forward.1} parent=151 // pred_check_branch
          %10476 = sbr.rel (%p10474) target = $region160
        $region159: #{infosurgeon_forward.1} parent=151 // pred_region
          %s10477 = sand.u32 %s47, 1
          %s10478 = scalar_lea.sflag [#allocation22], %s10477
          %s10479 = sand.u32 %s500, 1
          %s10480 = smul.addr %s10479, 16
          %s10481 = scalar_lea.vmem [#allocation21], %s10480
          %10482 = dma.done %s10478, 256
        $region160: #{infosurgeon_forward.1} parent=151 // pred_fallthru
          _
        // Predicated region
        $region161: #{infosurgeon_forward.1} parent=151 // pred_check
          %p10483 = pneg %p541
        $region162: #{infosurgeon_forward.1} parent=151 // pred_check_branch
          %10485 = sbr.rel (%p10483) target = $region164
        $region163: #{infosurgeon_forward.1} parent=151 // pred_region
          %s10486 = sand.u32 %s47, 1
          %s10487 = scalar_lea.sflag [#allocation22], %s10486
          %s10488 = sand.u32 %s526, 1
          %s10489 = smul.addr %s10488, 16
          %s10490 = scalar_lea.vmem [#allocation23], %s10489
          %10491 = dma.done %s10487, 256
        $region164: #{infosurgeon_forward.1} parent=151 // pred_fallthru
          _
      $region152: #{infosurgeon_forward.1} parent=5 // pred_fallthru
        _
    $region6: #{infosurgeon_forward.1} parent=1 // loop_footer
      %s45 = sadd.s32 1, %s41
    $region7: #{infosurgeon_forward.1} parent=1 // loop_footer_branch
      %40 = sbr.rel target = $region3
    $region8: #{infosurgeon_forward.1} parent=1 // loop_exit
      _
    %10492 = vsyncpa [#allocation3], 1
    %s10493 = scalar_lea.sflag [#allocation3], 1
    %10494 = vsyncpa %s10493, 1
    %10495 = vsyncpa [#allocation10], 1
    %10496 = vsyncpa [#allocation13], 1
    %10497 = vsyncpa [#allocation16], 1
    %10498 = vsyncpa [#allocation19], 1
    %10499 = vsyncpa [#allocation4], 1
    %s10500 = scalar_lea.sflag [#allocation4], 1
    %10501 = vsyncpa %s10500, 1
    %10502 = vsyncpa [#allocation22], 1
    %s10503 = scalar_lea.sflag [#allocation22], 1
    %10504 = vsyncpa %s10503, 1
    %10505 = vsyncpa [#allocation5], 1
    %s10506 = scalar_lea.sflag [#allocation5], 1
    %10507 = vsyncpa %s10506, 1
    %10508 = vsyncpa [#allocation6], 1
    %s10509 = scalar_lea.sflag [#allocation6], 1
    %10510 = vsyncpa %s10509, 1

</llo_original>
